<compile_context>
chip_gen: v7x
topology: tpu7x:2x2x1
jax: 0.10.0
libtpu: 0.0.40
codegen_flags: <defaults>
</compile_context>

<pallas_src>
import functools

import jax
import jax.numpy as jnp
from jax import lax
from jax.experimental import pallas as pl
from jax.experimental.pallas import tpu as pltpu

LANE = 128       # channel axis padded to a multiple of this (lane width)
SUBLANE = 8
MPAD = 16        # column offset of the intermediate payload (bf16 sublane-tile aligned)
BN_EPS = 1e-5


def _round_up(x, m):
    return (x + m - 1) // m * m


# --------------------------------------------------------------------------- kernel
def _double_conv_kernel(x_ref, w1_ref, b1_ref, w2_ref, b2_ref, o_ref,
                        mid_ref, acc1_ref, acc2_ref, *,
                        tiles_per_image, tile_h, img_h, img_w):
    """Fused (conv3x3 + folded BN + ReLU) x 2 for one row-tile of one image.

    x_ref   : (tile_h+4, Wxp, Cin_p)        bf16  input rows incl. 2-row halo
    w1_ref  : (9, Cin_p, Cmid_p)            bf16  conv1 weights (BN1 folded), tap = 3*dh+dw
    b1_ref  : (1, Cmid_p)                   f32   conv1 bias + BN1 shift (folded)
    w2_ref  : (9, Cmid_p, Cout_p)           bf16
    b2_ref  : (1, Cout_p)                   f32
    o_ref   : (tile_h, W, Cout_p)           bf16
    mid_ref : (tile_h+2, MPAD+W+8, Cmid_p)  bf16  scratch, payload at cols [MPAD, MPAD+W)
    acc1_ref: ((tile_h+2)*W, Cmid_p)        f32   conv1 tap accumulator
    acc2_ref: (tile_h*W, Cout_p)            f32   conv2 tap accumulator
    """
    hm = tile_h + 2
    cinp = x_ref.shape[-1]
    cmidp = mid_ref.shape[-1]
    coutp = o_ref.shape[-1]
    t = pl.program_id(1)                     # row-tile index within the image

    # ---- conv1: 9 accumulated MXU matmuls into an explicit f32 accumulator.
    #      dw (column) shift -> 3 shifted reads; dh (row) shift -> contiguous row-range
    #      slice of a single flattened view (one reshape per dw, not per tap). ----
    # TODO(synk): for tiny true channel counts (UNet's first conv, Cin=3) pack the 9
    # taps into the contraction dim (K = 9*Cin) so one matmul replaces nine on v6e/v7x.
    for dw in range(3):
        xs = x_ref[:, 1 + dw:1 + dw + img_w, :]                   # (tile_h+4, W, Cin_p)
        xs_flat = xs.reshape((tile_h + 4) * img_w, cinp)
        for dh in range(3):
            patch = xs_flat[dh * img_w:(dh + hm) * img_w]
            p = jnp.dot(patch, w1_ref[3 * dh + dw],
                        preferred_element_type=jnp.float32)
            if dh == 0 and dw == 0:
                acc1_ref[...] = p
            else:
                acc1_ref[...] += p
    y = jnp.maximum(acc1_ref[...] + b1_ref[...], 0.0)             # folded bias/BN + ReLU
    # Sublane-aligned (unmasked) store of the intermediate payload.
    mid_ref[:, MPAD:MPAD + img_w, :] = y.reshape(hm, img_w, cmidp).astype(mid_ref.dtype)

    # Boundary-only masking: intermediate rows outside the image are conv2's zero pad.
    # Interior tiles (the common case) pay nothing.
    @pl.when(t == 0)
    def _():
        mid_ref[0:1, MPAD:MPAD + img_w, :] = jnp.zeros((1, img_w, cmidp), mid_ref.dtype)

    @pl.when(t == tiles_per_image - 1)
    def _():
        r0_last = (tiles_per_image - 1) * tile_h       # static for the last tile
        start = img_h - r0_last + 1                    # first mid row with global >= H
        n_bad = hm - start                             # >= 1 (bottom zero-pad row)
        mid_ref[start:start + n_bad, MPAD:MPAD + img_w, :] = (
            jnp.zeros((n_bad, img_w, cmidp), mid_ref.dtype))

    # Column zero-halo (conv2's left/right padding).  Re-written every step: VMEM
    # scratch is per-TensorCore, so a "zero once at grid step 0" guard is unsafe when
    # the parallel grid is split across megacore TCs.  Two 1-column stores are tiny.
    zcol = jnp.zeros((hm, 1, cmidp), mid_ref.dtype)
    mid_ref[:, MPAD - 1:MPAD, :] = zcol
    mid_ref[:, MPAD + img_w:MPAD + img_w + 1, :] = zcol

    # ---- conv2: same structure on the staged intermediate ----
    for dw in range(3):
        ms = mid_ref[:, MPAD - 1 + dw:MPAD - 1 + dw + img_w, :]   # (tile_h+2, W, Cmid_p)
        ms_flat = ms.reshape(hm * img_w, cmidp)
        for dh in range(3):
            patch = ms_flat[dh * img_w:(dh + tile_h) * img_w]
            p = jnp.dot(patch, w2_ref[3 * dh + dw],
                        preferred_element_type=jnp.float32)
            if dh == 0 and dw == 0:
                acc2_ref[...] = p
            else:
                acc2_ref[...] += p
    z = jnp.maximum(acc2_ref[...] + b2_ref[...], 0.0)
    o_ref[...] = z.reshape(tile_h, img_w, coutp).astype(o_ref.dtype)


# --------------------------------------------------------------------------- wrapper
def _fold_conv_bn(w_pt, b, gamma, beta, mean, var, cin_p, cout_p, eps=BN_EPS):
    """Fold conv bias + inference BatchNorm into the conv weights.

    w_pt: (Cout, Cin, 3, 3) PyTorch layout.
    Returns w: (9, Cin_p, Cout_p) bf16 (tap = 3*dh + dw), bias: (1, Cout_p) f32.
    """
    cout, cin = w_pt.shape[0], w_pt.shape[1]
    scale = gamma * lax.rsqrt(var + eps)                 # (Cout,)
    shift = beta - mean * scale
    w = jnp.transpose(w_pt, (2, 3, 1, 0)).reshape(9, cin, cout) * scale[None, None, :]
    bias = b * scale + shift
    w = jnp.pad(w, ((0, 0), (0, cin_p - cin), (0, cout_p - cout)))
    bias = jnp.pad(bias, (0, cout_p - cout))
    return w.astype(jnp.bfloat16), bias.reshape(1, cout_p).astype(jnp.float32)


def _vmem_budget():
    """(vmem_limit_bytes, tile-sizing budget), generation aware."""
    try:
        phys = int(pltpu.get_tpu_info().vmem_capacity_bytes)
    except Exception:
        phys = 64 * 2**20            # conservative fallback (v7x physical size)
    limit = min(phys * 3 // 4, 96 * 2**20)     # 96 MiB on v5e/v6e, 48 MiB on v7x
    return limit, int(limit * 0.65)            # ~35% headroom for compiler temporaries


def _pick_tile_h(h, w, cin_p, cmid_p, cout_p, budget_bytes):
    """Largest row-tile whose per-step working set fits the VMEM budget."""
    wxp = _round_up(w + 4, SUBLANE)
    w_mid = MPAD + w + SUBLANE
    wts_b = 2 * 9 * (cin_p * cmid_p + cmid_p * cout_p) * 2        # 2x-buffered bf16 weights
    for cand in (512, 384, 256, 192, 128, 96, 64, 48, 32, 24, 16, 8):
        th = min(cand, h)
        in_b = 2 * (th + 4) * wxp * cin_p * 2                     # bf16 input, 2 buffers
        out_b = 2 * th * w * cout_p * 2                           # bf16 output, 2 buffers
        mid_b = (th + 2) * w_mid * cmid_p * 2                     # bf16 intermediate
        acc_b = (th + 2) * w * cmid_p * 4 + th * w * cout_p * 4   # f32 accumulators
        if in_b + out_b + mid_b + acc_b + wts_b <= budget_bytes:
            return th
    return min(8, h)


@functools.partial(jax.jit, static_argnames=("max_tile_h",))
def double_conv(x_nchw, w1_pt, b1, g1, be1, m1, v1, w2_pt, b2, g2, be2, m2, v2,
                max_tile_h=None):
    """DoubleConv forward: (Conv3x3 pad=1 -> BatchNorm(eval stats) -> ReLU) x 2.

    x_nchw: (N, Cin, H, W) f32; conv weights in PyTorch layout (Cout, Cin, 3, 3).
    Returns (N, Cout, H, W) f32.  `max_tile_h` is a test hook to force row tiling.
    """
    n, cin, h, w = x_nchw.shape
    cmid = w1_pt.shape[0]
    cout = w2_pt.shape[0]

    # Lane-dense channel padding (channels live on the 128-wide lane axis).
    cin_p, cmid_p, cout_p = (_round_up(c, LANE) for c in (cin, cmid, cout))

    vmem_limit, budget = _vmem_budget()
    tile_h = _pick_tile_h(h, w, cin_p, cmid_p, cout_p, budget)
    if max_tile_h is not None:
        tile_h = max(1, min(tile_h, max_tile_h))
    if n == 1 and tile_h >= h and h > 1:
        tile_h = -(-h // 2)          # keep >= 2 grid steps so both v7x TCs get work
    n_tiles = -(-h // tile_h)        # ceil(h / tile_h)
    wxp = _round_up(w + 4, SUBLANE)

    # Fold BN (+ conv bias) into the weights; cast to bf16 for the MXU.
    w1f, b1f = _fold_conv_bn(w1_pt, b1, g1, be1, m1, v1, cin_p, cmid_p)
    w2f, b2f = _fold_conv_bn(w2_pt, b2, g2, be2, m2, v2, cmid_p, cout_p)

    # NCHW -> NHWC, channel pad, 2-pixel spatial halo pad, bf16 cast (one fused XLA pass).
    x = jnp.transpose(x_nchw, (0, 2, 3, 1)).astype(jnp.bfloat16)
    x = jnp.pad(x, ((0, 0),
                    (2, n_tiles * tile_h + 4 - h - 2),
                    (2, wxp - w - 2),
                    (0, cin_p - cin)))
    if n_tiles == 1:
        x_tiles = x.reshape(n, 1, tile_h + 4, wxp, cin_p)   # pure reshape, no copy
    else:
        # TODO(synk): replace with in-kernel manual DMA (memory_space=pl.ANY +
        # pltpu.make_async_copy) to avoid materialising the overlapping halo rows.
        x_tiles = jnp.concatenate(
            [x[:, t * tile_h:t * tile_h + tile_h + 4][:, None] for t in range(n_tiles)],
            axis=1)

    kernel = functools.partial(_double_conv_kernel,
                               tiles_per_image=n_tiles, tile_h=tile_h,
                               img_h=h, img_w=w)

    out = pl.pallas_call(
        kernel,
        out_shape=jax.ShapeDtypeStruct((n, n_tiles, tile_h, w, cout_p), jnp.bfloat16),
        grid=(n, n_tiles),
        in_specs=[
            pl.BlockSpec((None, None, tile_h + 4, wxp, cin_p),
                         lambda b, t: (b, t, 0, 0, 0)),
            # TODO(synk): pipeline_mode=pl.Buffered(1) would single-buffer the resident
            # weights (their index_maps are constant); left at the default to stay safe.
            pl.BlockSpec((9, cin_p, cmid_p), lambda b, t: (0, 0, 0)),
            pl.BlockSpec((1, cmid_p), lambda b, t: (0, 0)),
            pl.BlockSpec((9, cmid_p, cout_p), lambda b, t: (0, 0, 0)),
            pl.BlockSpec((1, cout_p), lambda b, t: (0, 0)),
        ],
        out_specs=pl.BlockSpec((None, None, tile_h, w, cout_p),
                               lambda b, t: (b, t, 0, 0, 0)),
        scratch_shapes=[
            pltpu.VMEM((tile_h + 2, MPAD + w + SUBLANE, cmid_p), jnp.bfloat16),
            pltpu.VMEM(((tile_h + 2) * w, cmid_p), jnp.float32),
            pltpu.VMEM((tile_h * w, cout_p), jnp.float32),
        ],
        compiler_params=pltpu.CompilerParams(
            dimension_semantics=("parallel", "parallel"),   # independent tiles -> megacore
            vmem_limit_bytes=vmem_limit),
    )(x_tiles, w1f, b1f, w2f, b2f)

    # One pass: crop tile padding, drop channel padding, cast to f32, back to NCHW.
    out = out.reshape(n, n_tiles * tile_h, w, cout_p)[:, :h, :, :cout]
    return jnp.transpose(out.astype(jnp.float32), (0, 3, 1, 2))


# --------------------------------------------------------------------------- reference
def _reference(x_nchw, w1_pt, b1, bn1, w2_pt, b2, bn2, eps=BN_EPS):
    """Plain-JAX f32 reference (eval-mode BN), for correctness checking."""
    x = jnp.transpose(x_nchw, (0, 2, 3, 1))
    dn = lax.conv_dimension_numbers(x.shape, (3, 3, 1, 1), ("NHWC", "HWIO", "NHWC"))

    def block(x, w_pt, b, bn):
        g, bta, m, v = bn
        w_hwio = jnp.transpose(w_pt, (2, 3, 1, 0))
        y = lax.conv_general_dilated(x, w_hwio, (1, 1), "SAME",
                                     dimension_numbers=dn) + b
        y = (y - m) / jnp.sqrt(v + eps) * g + bta
        return jnp.maximum(y, 0.0)

    y = block(x, w1_pt, b1, bn1)
    y = block(y, w2_pt, b2, bn2)
    return jnp.transpose(y, (0, 3, 1, 2))


if __name__ == "__main__":
    N, Cin = 2, 4
    Cmid = Cout = 8  # mid_channels defaults to out_channels

    key = jax.random.PRNGKey(0)
    ks = jax.random.split(key, 13)

    w1_pt = jax.random.normal(ks[1], (Cmid, Cin, 3, 3), jnp.float32) * 0.2
    b1 = jax.random.normal(ks[2], (Cmid,), jnp.float32) * 0.1
    w2_pt = jax.random.normal(ks[3], (Cout, Cmid, 3, 3), jnp.float32) * 0.2
    b2 = jax.random.normal(ks[4], (Cout,), jnp.float32) * 0.1

    g1 = 1.0 + 0.1 * jax.random.normal(ks[5], (Cmid,), jnp.float32)
    be1 = 0.1 * jax.random.normal(ks[6], (Cmid,), jnp.float32)
    m1 = 0.1 * jax.random.normal(ks[7], (Cmid,), jnp.float32)
    v1 = 1.0 + 0.1 * jax.random.uniform(ks[8], (Cmid,), jnp.float32)
    g2 = 1.0 + 0.1 * jax.random.normal(ks[9], (Cout,), jnp.float32)
    be2 = 0.1 * jax.random.normal(ks[10], (Cout,), jnp.float32)
    m2 = 0.1 * jax.random.normal(ks[11], (Cout,), jnp.float32)
    v2 = 1.0 + 0.1 * jax.random.uniform(ks[12], (Cout,), jnp.float32)

    # (H, W, max_tile_h): whole-image tile / forced multi-tile / ragged last tile.
    configs = [(16, 16, None), (16, 16, 8), (13, 16, 8)]
    for idx, (H, W, mth) in enumerate(configs):
        xk = jax.random.fold_in(ks[0], idx)
        x = jax.random.normal(xk, (N, Cin, H, W), jnp.float32)

        out = double_conv(x, w1_pt, b1, g1, be1, m1, v1,
                          w2_pt, b2, g2, be2, m2, v2, max_tile_h=mth)
        out = jax.block_until_ready(out)

        ref = _reference(x, w1_pt, b1, (g1, be1, m1, v1), w2_pt, b2, (g2, be2, m2, v2))
        assert out.shape == (N, Cout, H, W)
        # bf16 matmuls / intermediate / output with f32 accumulation -> loose tolerance.
        max_err = float(jnp.max(jnp.abs(out - ref)))
        assert jnp.allclose(out, ref, atol=1e-1, rtol=5e-2), (
            f"config {(H, W, mth)}: mismatch, max abs err {max_err}")

    print("KERNEL_OK")
</pallas_src>

<mosaic_0001>
module attributes {stable_mosaic.version = 11 : i64} {
  func.func @_double_conv_kernel(%arg0: i32, %arg1: i32, %arg2: memref<1x1x20x24x128xbf16, #tpu.memory_space<vmem>>, %arg3: memref<9x128x128xbf16, #tpu.memory_space<vmem>>, %arg4: memref<1x128xf32, #tpu.memory_space<vmem>>, %arg5: memref<9x128x128xbf16, #tpu.memory_space<vmem>>, %arg6: memref<1x128xf32, #tpu.memory_space<vmem>>, %arg7: memref<1x1x16x16x128xbf16, #tpu.memory_space<vmem>>, %arg8: memref<18x40x128xbf16, #tpu.memory_space<vmem>>, %arg9: memref<288x128xf32, #tpu.memory_space<vmem>>, %arg10: memref<256x128xf32, #tpu.memory_space<vmem>>) attributes {dimension_semantics = [#tpu.dimension_semantics<parallel>, #tpu.dimension_semantics<parallel>], iteration_bounds = array<i64: 2, 1>, scalar_prefetch = 0 : i64, scratch_operands = 3 : i64, tpu.core_type = #tpu.core_type<tc>, window_params = [{transform_indices = @transform_0, window_bounds = array<i64: 1, 1, 20, 24, 128>}, {pipeline_mode = #tpu.pipeline_mode<synchronous>, transform_indices = @transform_1, window_bounds = array<i64: 9, 128, 128>}, {pipeline_mode = #tpu.pipeline_mode<synchronous>, transform_indices = @transform_2, window_bounds = array<i64: 1, 128>}, {pipeline_mode = #tpu.pipeline_mode<synchronous>, transform_indices = @transform_3, window_bounds = array<i64: 9, 128, 128>}, {pipeline_mode = #tpu.pipeline_mode<synchronous>, transform_indices = @transform_4, window_bounds = array<i64: 1, 128>}, {transform_indices = @transform_5, window_bounds = array<i64: 1, 1, 16, 16, 128>}]} {
    %c0 = arith.constant 0 : index
    %c0_0 = arith.constant 0 : index
    %c0_1 = arith.constant 0 : index
    %c1 = arith.constant 1 : index
    %c0_2 = arith.constant 0 : index
    %0 = vector.load %arg2[%c0, %c0_0, %c0_1, %c1, %c0_2] : memref<1x1x20x24x128xbf16, #tpu.memory_space<vmem>>, vector<1x1x20x16x128xbf16>
    %1 = vector.shape_cast %0 : vector<1x1x20x16x128xbf16> to vector<20x16x128xbf16>
    %2 = vector.shape_cast %1 : vector<20x16x128xbf16> to vector<320x128xbf16>
    %3 = vector.extract_strided_slice %2 {offsets = [0, 0], sizes = [288, 128], strides = [1, 1]} : vector<320x128xbf16> to vector<288x128xbf16>
    %c0_3 = arith.constant 0 : index
    %c0_4 = arith.constant 0 : index
    %c0_5 = arith.constant 0 : index
    %4 = vector.load %arg3[%c0_3, %c0_4, %c0_5] : memref<9x128x128xbf16, #tpu.memory_space<vmem>>, vector<1x128x128xbf16>
    %5 = vector.shape_cast %4 : vector<1x128x128xbf16> to vector<128x128xbf16>
    %cst = arith.constant dense<0.000000e+00> : vector<288x128xf32>
    %6 = tpu.matmul %3, %5, %cst {dimension_numbers = #tpu.dot_dimension_numbers<[1], [0], [0], [1], [0, 0, 1, 1], [], []>} : vector<288x128xbf16>, vector<128x128xbf16>, vector<288x128xf32> -> vector<288x128xf32>
    %c0_6 = arith.constant 0 : index
    %c0_7 = arith.constant 0 : index
    %7 = vector.load %arg9[%c0_6, %c0_7] : memref<288x128xf32, #tpu.memory_space<vmem>>, vector<288x128xf32>
    tpu.vector_store %arg9[%c0_6, %c0_7], %6 {strides = array<i32>} : memref<288x128xf32, #tpu.memory_space<vmem>>, vector<288x128xf32>,
    %8 = vector.extract_strided_slice %2 {offsets = [16, 0], sizes = [288, 128], strides = [1, 1]} : vector<320x128xbf16> to vector<288x128xbf16>
    %c3 = arith.constant 3 : index
    %c0_8 = arith.constant 0 : index
    %c0_9 = arith.constant 0 : index
    %9 = vector.load %arg3[%c3, %c0_8, %c0_9] : memref<9x128x128xbf16, #tpu.memory_space<vmem>>, vector<1x128x128xbf16>
    %10 = vector.shape_cast %9 : vector<1x128x128xbf16> to vector<128x128xbf16>
    %cst_10 = arith.constant dense<0.000000e+00> : vector<288x128xf32>
    %11 = tpu.matmul %8, %10, %cst_10 {dimension_numbers = #tpu.dot_dimension_numbers<[1], [0], [0], [1], [0, 0, 1, 1], [], []>} : vector<288x128xbf16>, vector<128x128xbf16>, vector<288x128xf32> -> vector<288x128xf32>
    %c0_11 = arith.constant 0 : index
    %c0_12 = arith.constant 0 : index
    %12 = vector.load %arg9[%c0_11, %c0_12] : memref<288x128xf32, #tpu.memory_space<vmem>>, vector<288x128xf32>
    %13 = arith.addf %12, %11 : vector<288x128xf32>
    %c0_13 = arith.constant 0 : index
    %c0_14 = arith.constant 0 : index
    %14 = vector.load %arg9[%c0_13, %c0_14] : memref<288x128xf32, #tpu.memory_space<vmem>>, vector<288x128xf32>
    tpu.vector_store %arg9[%c0_13, %c0_14], %13 {strides = array<i32>} : memref<288x128xf32, #tpu.memory_space<vmem>>, vector<288x128xf32>,
    %15 = vector.extract_strided_slice %2 {offsets = [32, 0], sizes = [288, 128], strides = [1, 1]} : vector<320x128xbf16> to vector<288x128xbf16>
    %c6 = arith.constant 6 : index
    %c0_15 = arith.constant 0 : index
    %c0_16 = arith.constant 0 : index
    %16 = vector.load %arg3[%c6, %c0_15, %c0_16] : memref<9x128x128xbf16, #tpu.memory_space<vmem>>, vector<1x128x128xbf16>
    %17 = vector.shape_cast %16 : vector<1x128x128xbf16> to vector<128x128xbf16>
    %cst_17 = arith.constant dense<0.000000e+00> : vector<288x128xf32>
    %18 = tpu.matmul %15, %17, %cst_17 {dimension_numbers = #tpu.dot_dimension_numbers<[1], [0], [0], [1], [0, 0, 1, 1], [], []>} : vector<288x128xbf16>, vector<128x128xbf16>, vector<288x128xf32> -> vector<288x128xf32>
    %c0_18 = arith.constant 0 : index
    %c0_19 = arith.constant 0 : index
    %19 = vector.load %arg9[%c0_18, %c0_19] : memref<288x128xf32, #tpu.memory_space<vmem>>, vector<288x128xf32>
    %20 = arith.addf %19, %18 : vector<288x128xf32>
    %c0_20 = arith.constant 0 : index
    %c0_21 = arith.constant 0 : index
    %21 = vector.load %arg9[%c0_20, %c0_21] : memref<288x128xf32, #tpu.memory_space<vmem>>, vector<288x128xf32>
    tpu.vector_store %arg9[%c0_20, %c0_21], %20 {strides = array<i32>} : memref<288x128xf32, #tpu.memory_space<vmem>>, vector<288x128xf32>,
    %c0_22 = arith.constant 0 : index
    %c0_23 = arith.constant 0 : index
    %c0_24 = arith.constant 0 : index
    %c2 = arith.constant 2 : index
    %c0_25 = arith.constant 0 : index
    %22 = vector.load %arg2[%c0_22, %c0_23, %c0_24, %c2, %c0_25] : memref<1x1x20x24x128xbf16, #tpu.memory_space<vmem>>, vector<1x1x20x16x128xbf16>
    %23 = vector.shape_cast %22 : vector<1x1x20x16x128xbf16> to vector<20x16x128xbf16>
    %24 = vector.shape_cast %23 : vector<20x16x128xbf16> to vector<320x128xbf16>
    %25 = vector.extract_strided_slice %24 {offsets = [0, 0], sizes = [288, 128], strides = [1, 1]} : vector<320x128xbf16> to vector<288x128xbf16>
    %c1_26 = arith.constant 1 : index
    %c0_27 = arith.constant 0 : index
    %c0_28 = arith.constant 0 : index
    %26 = vector.load %arg3[%c1_26, %c0_27, %c0_28] : memref<9x128x128xbf16, #tpu.memory_space<vmem>>, vector<1x128x128xbf16>
    %27 = vector.shape_cast %26 : vector<1x128x128xbf16> to vector<128x128xbf16>
    %cst_29 = arith.constant dense<0.000000e+00> : vector<288x128xf32>
    %28 = tpu.matmul %25, %27, %cst_29 {dimension_numbers = #tpu.dot_dimension_numbers<[1], [0], [0], [1], [0, 0, 1, 1], [], []>} : vector<288x128xbf16>, vector<128x128xbf16>, vector<288x128xf32> -> vector<288x128xf32>
    %c0_30 = arith.constant 0 : index
    %c0_31 = arith.constant 0 : index
    %29 = vector.load %arg9[%c0_30, %c0_31] : memref<288x128xf32, #tpu.memory_space<vmem>>, vector<288x128xf32>
    %30 = arith.addf %29, %28 : vector<288x128xf32>
    %c0_32 = arith.constant 0 : index
    %c0_33 = arith.constant 0 : index
    %31 = vector.load %arg9[%c0_32, %c0_33] : memref<288x128xf32, #tpu.memory_space<vmem>>, vector<288x128xf32>
    tpu.vector_store %arg9[%c0_32, %c0_33], %30 {strides = array<i32>} : memref<288x128xf32, #tpu.memory_space<vmem>>, vector<288x128xf32>,
    %32 = vector.extract_strided_slice %24 {offsets = [16, 0], sizes = [288, 128], strides = [1, 1]} : vector<320x128xbf16> to vector<288x128xbf16>
    %c4 = arith.constant 4 : index
    %c0_34 = arith.constant 0 : index
    %c0_35 = arith.constant 0 : index
    %33 = vector.load %arg3[%c4, %c0_34, %c0_35] : memref<9x128x128xbf16, #tpu.memory_space<vmem>>, vector<1x128x128xbf16>
    %34 = vector.shape_cast %33 : vector<1x128x128xbf16> to vector<128x128xbf16>
    %cst_36 = arith.constant dense<0.000000e+00> : vector<288x128xf32>
    %35 = tpu.matmul %32, %34, %cst_36 {dimension_numbers = #tpu.dot_dimension_numbers<[1], [0], [0], [1], [0, 0, 1, 1], [], []>} : vector<288x128xbf16>, vector<128x128xbf16>, vector<288x128xf32> -> vector<288x128xf32>
    %c0_37 = arith.constant 0 : index
    %c0_38 = arith.constant 0 : index
    %36 = vector.load %arg9[%c0_37, %c0_38] : memref<288x128xf32, #tpu.memory_space<vmem>>, vector<288x128xf32>
    %37 = arith.addf %36, %35 : vector<288x128xf32>
    %c0_39 = arith.constant 0 : index
    %c0_40 = arith.constant 0 : index
    %38 = vector.load %arg9[%c0_39, %c0_40] : memref<288x128xf32, #tpu.memory_space<vmem>>, vector<288x128xf32>
    tpu.vector_store %arg9[%c0_39, %c0_40], %37 {strides = array<i32>} : memref<288x128xf32, #tpu.memory_space<vmem>>, vector<288x128xf32>,
    %39 = vector.extract_strided_slice %24 {offsets = [32, 0], sizes = [288, 128], strides = [1, 1]} : vector<320x128xbf16> to vector<288x128xbf16>
    %c7 = arith.constant 7 : index
    %c0_41 = arith.constant 0 : index
    %c0_42 = arith.constant 0 : index
    %40 = vector.load %arg3[%c7, %c0_41, %c0_42] : memref<9x128x128xbf16, #tpu.memory_space<vmem>>, vector<1x128x128xbf16>
    %41 = vector.shape_cast %40 : vector<1x128x128xbf16> to vector<128x128xbf16>
    %cst_43 = arith.constant dense<0.000000e+00> : vector<288x128xf32>
    %42 = tpu.matmul %39, %41, %cst_43 {dimension_numbers = #tpu.dot_dimension_numbers<[1], [0], [0], [1], [0, 0, 1, 1], [], []>} : vector<288x128xbf16>, vector<128x128xbf16>, vector<288x128xf32> -> vector<288x128xf32>
    %c0_44 = arith.constant 0 : index
    %c0_45 = arith.constant 0 : index
    %43 = vector.load %arg9[%c0_44, %c0_45] : memref<288x128xf32, #tpu.memory_space<vmem>>, vector<288x128xf32>
    %44 = arith.addf %43, %42 : vector<288x128xf32>
    %c0_46 = arith.constant 0 : index
    %c0_47 = arith.constant 0 : index
    %45 = vector.load %arg9[%c0_46, %c0_47] : memref<288x128xf32, #tpu.memory_space<vmem>>, vector<288x128xf32>
    tpu.vector_store %arg9[%c0_46, %c0_47], %44 {strides = array<i32>} : memref<288x128xf32, #tpu.memory_space<vmem>>, vector<288x128xf32>,
    %c0_48 = arith.constant 0 : index
    %c0_49 = arith.constant 0 : index
    %c0_50 = arith.constant 0 : index
    %c3_51 = arith.constant 3 : index
    %c0_52 = arith.constant 0 : index
    %46 = vector.load %arg2[%c0_48, %c0_49, %c0_50, %c3_51, %c0_52] : memref<1x1x20x24x128xbf16, #tpu.memory_space<vmem>>, vector<1x1x20x16x128xbf16>
    %47 = vector.shape_cast %46 : vector<1x1x20x16x128xbf16> to vector<20x16x128xbf16>
    %48 = vector.shape_cast %47 : vector<20x16x128xbf16> to vector<320x128xbf16>
    %49 = vector.extract_strided_slice %48 {offsets = [0, 0], sizes = [288, 128], strides = [1, 1]} : vector<320x128xbf16> to vector<288x128xbf16>
    %c2_53 = arith.constant 2 : index
    %c0_54 = arith.constant 0 : index
    %c0_55 = arith.constant 0 : index
    %50 = vector.load %arg3[%c2_53, %c0_54, %c0_55] : memref<9x128x128xbf16, #tpu.memory_space<vmem>>, vector<1x128x128xbf16>
    %51 = vector.shape_cast %50 : vector<1x128x128xbf16> to vector<128x128xbf16>
    %cst_56 = arith.constant dense<0.000000e+00> : vector<288x128xf32>
    %52 = tpu.matmul %49, %51, %cst_56 {dimension_numbers = #tpu.dot_dimension_numbers<[1], [0], [0], [1], [0, 0, 1, 1], [], []>} : vector<288x128xbf16>, vector<128x128xbf16>, vector<288x128xf32> -> vector<288x128xf32>
    %c0_57 = arith.constant 0 : index
    %c0_58 = arith.constant 0 : index
    %53 = vector.load %arg9[%c0_57, %c0_58] : memref<288x128xf32, #tpu.memory_space<vmem>>, vector<288x128xf32>
    %54 = arith.addf %53, %52 : vector<288x128xf32>
    %c0_59 = arith.constant 0 : index
    %c0_60 = arith.constant 0 : index
    %55 = vector.load %arg9[%c0_59, %c0_60] : memref<288x128xf32, #tpu.memory_space<vmem>>, vector<288x128xf32>
    tpu.vector_store %arg9[%c0_59, %c0_60], %54 {strides = array<i32>} : memref<288x128xf32, #tpu.memory_space<vmem>>, vector<288x128xf32>,
    %56 = vector.extract_strided_slice %48 {offsets = [16, 0], sizes = [288, 128], strides = [1, 1]} : vector<320x128xbf16> to vector<288x128xbf16>
    %c5 = arith.constant 5 : index
    %c0_61 = arith.constant 0 : index
    %c0_62 = arith.constant 0 : index
    %57 = vector.load %arg3[%c5, %c0_61, %c0_62] : memref<9x128x128xbf16, #tpu.memory_space<vmem>>, vector<1x128x128xbf16>
    %58 = vector.shape_cast %57 : vector<1x128x128xbf16> to vector<128x128xbf16>
    %cst_63 = arith.constant dense<0.000000e+00> : vector<288x128xf32>
    %59 = tpu.matmul %56, %58, %cst_63 {dimension_numbers = #tpu.dot_dimension_numbers<[1], [0], [0], [1], [0, 0, 1, 1], [], []>} : vector<288x128xbf16>, vector<128x128xbf16>, vector<288x128xf32> -> vector<288x128xf32>
    %c0_64 = arith.constant 0 : index
    %c0_65 = arith.constant 0 : index
    %60 = vector.load %arg9[%c0_64, %c0_65] : memref<288x128xf32, #tpu.memory_space<vmem>>, vector<288x128xf32>
    %61 = arith.addf %60, %59 : vector<288x128xf32>
    %c0_66 = arith.constant 0 : index
    %c0_67 = arith.constant 0 : index
    %62 = vector.load %arg9[%c0_66, %c0_67] : memref<288x128xf32, #tpu.memory_space<vmem>>, vector<288x128xf32>
    tpu.vector_store %arg9[%c0_66, %c0_67], %61 {strides = array<i32>} : memref<288x128xf32, #tpu.memory_space<vmem>>, vector<288x128xf32>,
    %63 = vector.extract_strided_slice %48 {offsets = [32, 0], sizes = [288, 128], strides = [1, 1]} : vector<320x128xbf16> to vector<288x128xbf16>
    %c8 = arith.constant 8 : index
    %c0_68 = arith.constant 0 : index
    %c0_69 = arith.constant 0 : index
    %64 = vector.load %arg3[%c8, %c0_68, %c0_69] : memref<9x128x128xbf16, #tpu.memory_space<vmem>>, vector<1x128x128xbf16>
    %65 = vector.shape_cast %64 : vector<1x128x128xbf16> to vector<128x128xbf16>
    %cst_70 = arith.constant dense<0.000000e+00> : vector<288x128xf32>
    %66 = tpu.matmul %63, %65, %cst_70 {dimension_numbers = #tpu.dot_dimension_numbers<[1], [0], [0], [1], [0, 0, 1, 1], [], []>} : vector<288x128xbf16>, vector<128x128xbf16>, vector<288x128xf32> -> vector<288x128xf32>
    %c0_71 = arith.constant 0 : index
    %c0_72 = arith.constant 0 : index
    %67 = vector.load %arg9[%c0_71, %c0_72] : memref<288x128xf32, #tpu.memory_space<vmem>>, vector<288x128xf32>
    %68 = arith.addf %67, %66 : vector<288x128xf32>
    %c0_73 = arith.constant 0 : index
    %c0_74 = arith.constant 0 : index
    %69 = vector.load %arg9[%c0_73, %c0_74] : memref<288x128xf32, #tpu.memory_space<vmem>>, vector<288x128xf32>
    tpu.vector_store %arg9[%c0_73, %c0_74], %68 {strides = array<i32>} : memref<288x128xf32, #tpu.memory_space<vmem>>, vector<288x128xf32>,
    %c0_75 = arith.constant 0 : index
    %c0_76 = arith.constant 0 : index
    %70 = vector.load %arg9[%c0_75, %c0_76] : memref<288x128xf32, #tpu.memory_space<vmem>>, vector<288x128xf32>
    %c0_77 = arith.constant 0 : index
    %c0_78 = arith.constant 0 : index
    %71 = vector.load %arg4[%c0_77, %c0_78] : memref<1x128xf32, #tpu.memory_space<vmem>>, vector<1x128xf32>
    %72 = vector.broadcast %71 : vector<1x128xf32> to vector<288x128xf32>
    %73 = arith.addf %70, %72 : vector<288x128xf32>
    %cst_79 = arith.constant 0.000000e+00 : f32
    %74 = vector.broadcast %cst_79 : f32 to vector<288x128xf32>
    %75 = arith.maximumf %73, %74 : vector<288x128xf32>
    %76 = vector.shape_cast %75 : vector<288x128xf32> to vector<18x16x128xf32>
    %77 = arith.truncf %76 : vector<18x16x128xf32> to vector<18x16x128xbf16>
    %c0_80 = arith.constant 0 : index
    %c16 = arith.constant 16 : index
    %c0_81 = arith.constant 0 : index
    %78 = vector.load %arg8[%c0_80, %c16, %c0_81] : memref<18x40x128xbf16, #tpu.memory_space<vmem>>, vector<18x16x128xbf16>
    tpu.vector_store %arg8[%c0_80, %c16, %c0_81], %77 {strides = array<i32>} : memref<18x40x128xbf16, #tpu.memory_space<vmem>>, vector<18x16x128xbf16>,
    %c0_i32 = arith.constant 0 : i32
    %79 = arith.cmpi eq, %arg1, %c0_i32 : i32
    %80 = arith.extui %79 : i1 to i32
    %c0_i32_82 = arith.constant 0 : i32
    %81 = arith.cmpi ne, %80, %c0_i32_82 : i32
    scf.if %81 {
      %cst_178 = arith.constant 0.000000e+00 : bf16
      %166 = vector.broadcast %cst_178 : bf16 to vector<1x16x128xbf16>
      %c0_179 = arith.constant 0 : index
      %c16_180 = arith.constant 16 : index
      %c0_181 = arith.constant 0 : index
      %167 = vector.load %arg8[%c0_179, %c16_180, %c0_181] : memref<18x40x128xbf16, #tpu.memory_space<vmem>>, vector<1x16x128xbf16>
      tpu.vector_store %arg8[%c0_179, %c16_180, %c0_181], %166 {strides = array<i32>} : memref<18x40x128xbf16, #tpu.memory_space<vmem>>, vector<1x16x128xbf16>,
    } else {
    }
    %c0_i32_83 = arith.constant 0 : i32
    %82 = arith.cmpi eq, %arg1, %c0_i32_83 : i32
    %83 = arith.extui %82 : i1 to i32
    %c0_i32_84 = arith.constant 0 : i32
    %84 = arith.cmpi ne, %83, %c0_i32_84 : i32
    scf.if %84 {
      %cst_178 = arith.constant 0.000000e+00 : bf16
      %166 = vector.broadcast %cst_178 : bf16 to vector<1x16x128xbf16>
      %c17_179 = arith.constant 17 : index
      %c16_180 = arith.constant 16 : index
      %c0_181 = arith.constant 0 : index
      %167 = vector.load %arg8[%c17_179, %c16_180, %c0_181] : memref<18x40x128xbf16, #tpu.memory_space<vmem>>, vector<1x16x128xbf16>
      tpu.vector_store %arg8[%c17_179, %c16_180, %c0_181], %166 {strides = array<i32>} : memref<18x40x128xbf16, #tpu.memory_space<vmem>>, vector<1x16x128xbf16>,
    } else {
    }
    %cst_85 = arith.constant 0.000000e+00 : bf16
    %85 = vector.broadcast %cst_85 : bf16 to vector<18x1x128xbf16>
    %c0_86 = arith.constant 0 : index
    %c15 = arith.constant 15 : index
    %c0_87 = arith.constant 0 : index
    %86 = vector.load %arg8[%c0_86, %c15, %c0_87] : memref<18x40x128xbf16, #tpu.memory_space<vmem>>, vector<18x1x128xbf16>
    tpu.vector_store %arg8[%c0_86, %c15, %c0_87], %85 {strides = array<i32>} : memref<18x40x128xbf16, #tpu.memory_space<vmem>>, vector<18x1x128xbf16>,
    %c0_88 = arith.constant 0 : index
    %c32 = arith.constant 32 : index
    %c0_89 = arith.constant 0 : index
    %87 = vector.load %arg8[%c0_88, %c32, %c0_89] : memref<18x40x128xbf16, #tpu.memory_space<vmem>>, vector<18x1x128xbf16>
    tpu.vector_store %arg8[%c0_88, %c32, %c0_89], %85 {strides = array<i32>} : memref<18x40x128xbf16, #tpu.memory_space<vmem>>, vector<18x1x128xbf16>,
    %c0_90 = arith.constant 0 : index
    %c15_91 = arith.constant 15 : index
    %c0_92 = arith.constant 0 : index
    %88 = vector.load %arg8[%c0_90, %c15_91, %c0_92] : memref<18x40x128xbf16, #tpu.memory_space<vmem>>, vector<18x16x128xbf16>
    %89 = vector.shape_cast %88 : vector<18x16x128xbf16> to vector<288x128xbf16>
    %90 = vector.extract_strided_slice %89 {offsets = [0, 0], sizes = [256, 128], strides = [1, 1]} : vector<288x128xbf16> to vector<256x128xbf16>
    %c0_93 = arith.constant 0 : index
    %c0_94 = arith.constant 0 : index
    %c0_95 = arith.constant 0 : index
    %91 = vector.load %arg5[%c0_93, %c0_94, %c0_95] : memref<9x128x128xbf16, #tpu.memory_space<vmem>>, vector<1x128x128xbf16>
    %92 = vector.shape_cast %91 : vector<1x128x128xbf16> to vector<128x128xbf16>
    %cst_96 = arith.constant dense<0.000000e+00> : vector<256x128xf32>
    %93 = tpu.matmul %90, %92, %cst_96 {dimension_numbers = #tpu.dot_dimension_numbers<[1], [0], [0], [1], [0, 0, 1, 1], [], []>} : vector<256x128xbf16>, vector<128x128xbf16>, vector<256x128xf32> -> vector<256x128xf32>
    %c0_97 = arith.constant 0 : index
    %c0_98 = arith.constant 0 : index
    %94 = vector.load %arg10[%c0_97, %c0_98] : memref<256x128xf32, #tpu.memory_space<vmem>>, vector<256x128xf32>
    tpu.vector_store %arg10[%c0_97, %c0_98], %93 {strides = array<i32>} : memref<256x128xf32, #tpu.memory_space<vmem>>, vector<256x128xf32>,
    %95 = vector.extract_strided_slice %89 {offsets = [16, 0], sizes = [256, 128], strides = [1, 1]} : vector<288x128xbf16> to vector<256x128xbf16>
    %c3_99 = arith.constant 3 : index
    %c0_100 = arith.constant 0 : index
    %c0_101 = arith.constant 0 : index
    %96 = vector.load %arg5[%c3_99, %c0_100, %c0_101] : memref<9x128x128xbf16, #tpu.memory_space<vmem>>, vector<1x128x128xbf16>
    %97 = vector.shape_cast %96 : vector<1x128x128xbf16> to vector<128x128xbf16>
    %cst_102 = arith.constant dense<0.000000e+00> : vector<256x128xf32>
    %98 = tpu.matmul %95, %97, %cst_102 {dimension_numbers = #tpu.dot_dimension_numbers<[1], [0], [0], [1], [0, 0, 1, 1], [], []>} : vector<256x128xbf16>, vector<128x128xbf16>, vector<256x128xf32> -> vector<256x128xf32>
    %c0_103 = arith.constant 0 : index
    %c0_104 = arith.constant 0 : index
    %99 = vector.load %arg10[%c0_103, %c0_104] : memref<256x128xf32, #tpu.memory_space<vmem>>, vector<256x128xf32>
    %100 = arith.addf %99, %98 : vector<256x128xf32>
    %c0_105 = arith.constant 0 : index
    %c0_106 = arith.constant 0 : index
    %101 = vector.load %arg10[%c0_105, %c0_106] : memref<256x128xf32, #tpu.memory_space<vmem>>, vector<256x128xf32>
    tpu.vector_store %arg10[%c0_105, %c0_106], %100 {strides = array<i32>} : memref<256x128xf32, #tpu.memory_space<vmem>>, vector<256x128xf32>,
    %102 = vector.extract_strided_slice %89 {offsets = [32, 0], sizes = [256, 128], strides = [1, 1]} : vector<288x128xbf16> to vector<256x128xbf16>
    %c6_107 = arith.constant 6 : index
    %c0_108 = arith.constant 0 : index
    %c0_109 = arith.constant 0 : index
    %103 = vector.load %arg5[%c6_107, %c0_108, %c0_109] : memref<9x128x128xbf16, #tpu.memory_space<vmem>>, vector<1x128x128xbf16>
    %104 = vector.shape_cast %103 : vector<1x128x128xbf16> to vector<128x128xbf16>
    %cst_110 = arith.constant dense<0.000000e+00> : vector<256x128xf32>
    %105 = tpu.matmul %102, %104, %cst_110 {dimension_numbers = #tpu.dot_dimension_numbers<[1], [0], [0], [1], [0, 0, 1, 1], [], []>} : vector<256x128xbf16>, vector<128x128xbf16>, vector<256x128xf32> -> vector<256x128xf32>
    %c0_111 = arith.constant 0 : index
    %c0_112 = arith.constant 0 : index
    %106 = vector.load %arg10[%c0_111, %c0_112] : memref<256x128xf32, #tpu.memory_space<vmem>>, vector<256x128xf32>
    %107 = arith.addf %106, %105 : vector<256x128xf32>
    %c0_113 = arith.constant 0 : index
    %c0_114 = arith.constant 0 : index
    %108 = vector.load %arg10[%c0_113, %c0_114] : memref<256x128xf32, #tpu.memory_space<vmem>>, vector<256x128xf32>
    tpu.vector_store %arg10[%c0_113, %c0_114], %107 {strides = array<i32>} : memref<256x128xf32, #tpu.memory_space<vmem>>, vector<256x128xf32>,
    %c0_115 = arith.constant 0 : index
    %c16_116 = arith.constant 16 : index
    %c0_117 = arith.constant 0 : index
    %109 = vector.load %arg8[%c0_115, %c16_116, %c0_117] : memref<18x40x128xbf16, #tpu.memory_space<vmem>>, vector<18x16x128xbf16>
    %110 = vector.shape_cast %109 : vector<18x16x128xbf16> to vector<288x128xbf16>
    %111 = vector.extract_strided_slice %110 {offsets = [0, 0], sizes = [256, 128], strides = [1, 1]} : vector<288x128xbf16> to vector<256x128xbf16>
    %c1_118 = arith.constant 1 : index
    %c0_119 = arith.constant 0 : index
    %c0_120 = arith.constant 0 : index
    %112 = vector.load %arg5[%c1_118, %c0_119, %c0_120] : memref<9x128x128xbf16, #tpu.memory_space<vmem>>, vector<1x128x128xbf16>
    %113 = vector.shape_cast %112 : vector<1x128x128xbf16> to vector<128x128xbf16>
    %cst_121 = arith.constant dense<0.000000e+00> : vector<256x128xf32>
    %114 = tpu.matmul %111, %113, %cst_121 {dimension_numbers = #tpu.dot_dimension_numbers<[1], [0], [0], [1], [0, 0, 1, 1], [], []>} : vector<256x128xbf16>, vector<128x128xbf16>, vector<256x128xf32> -> vector<256x128xf32>
    %c0_122 = arith.constant 0 : index
    %c0_123 = arith.constant 0 : index
    %115 = vector.load %arg10[%c0_122, %c0_123] : memref<256x128xf32, #tpu.memory_space<vmem>>, vector<256x128xf32>
    %116 = arith.addf %115, %114 : vector<256x128xf32>
    %c0_124 = arith.constant 0 : index
    %c0_125 = arith.constant 0 : index
    %117 = vector.load %arg10[%c0_124, %c0_125] : memref<256x128xf32, #tpu.memory_space<vmem>>, vector<256x128xf32>
    tpu.vector_store %arg10[%c0_124, %c0_125], %116 {strides = array<i32>} : memref<256x128xf32, #tpu.memory_space<vmem>>, vector<256x128xf32>,
    %118 = vector.extract_strided_slice %110 {offsets = [16, 0], sizes = [256, 128], strides = [1, 1]} : vector<288x128xbf16> to vector<256x128xbf16>
    %c4_126 = arith.constant 4 : index
    %c0_127 = arith.constant 0 : index
    %c0_128 = arith.constant 0 : index
    %119 = vector.load %arg5[%c4_126, %c0_127, %c0_128] : memref<9x128x128xbf16, #tpu.memory_space<vmem>>, vector<1x128x128xbf16>
    %120 = vector.shape_cast %119 : vector<1x128x128xbf16> to vector<128x128xbf16>
    %cst_129 = arith.constant dense<0.000000e+00> : vector<256x128xf32>
    %121 = tpu.matmul %118, %120, %cst_129 {dimension_numbers = #tpu.dot_dimension_numbers<[1], [0], [0], [1], [0, 0, 1, 1], [], []>} : vector<256x128xbf16>, vector<128x128xbf16>, vector<256x128xf32> -> vector<256x128xf32>
    %c0_130 = arith.constant 0 : index
    %c0_131 = arith.constant 0 : index
    %122 = vector.load %arg10[%c0_130, %c0_131] : memref<256x128xf32, #tpu.memory_space<vmem>>, vector<256x128xf32>
    %123 = arith.addf %122, %121 : vector<256x128xf32>
    %c0_132 = arith.constant 0 : index
    %c0_133 = arith.constant 0 : index
    %124 = vector.load %arg10[%c0_132, %c0_133] : memref<256x128xf32, #tpu.memory_space<vmem>>, vector<256x128xf32>
    tpu.vector_store %arg10[%c0_132, %c0_133], %123 {strides = array<i32>} : memref<256x128xf32, #tpu.memory_space<vmem>>, vector<256x128xf32>,
    %125 = vector.extract_strided_slice %110 {offsets = [32, 0], sizes = [256, 128], strides = [1, 1]} : vector<288x128xbf16> to vector<256x128xbf16>
    %c7_134 = arith.constant 7 : index
    %c0_135 = arith.constant 0 : index
    %c0_136 = arith.constant 0 : index
    %126 = vector.load %arg5[%c7_134, %c0_135, %c0_136] : memref<9x128x128xbf16, #tpu.memory_space<vmem>>, vector<1x128x128xbf16>
    %127 = vector.shape_cast %126 : vector<1x128x128xbf16> to vector<128x128xbf16>
    %cst_137 = arith.constant dense<0.000000e+00> : vector<256x128xf32>
    %128 = tpu.matmul %125, %127, %cst_137 {dimension_numbers = #tpu.dot_dimension_numbers<[1], [0], [0], [1], [0, 0, 1, 1], [], []>} : vector<256x128xbf16>, vector<128x128xbf16>, vector<256x128xf32> -> vector<256x128xf32>
    %c0_138 = arith.constant 0 : index
    %c0_139 = arith.constant 0 : index
    %129 = vector.load %arg10[%c0_138, %c0_139] : memref<256x128xf32, #tpu.memory_space<vmem>>, vector<256x128xf32>
    %130 = arith.addf %129, %128 : vector<256x128xf32>
    %c0_140 = arith.constant 0 : index
    %c0_141 = arith.constant 0 : index
    %131 = vector.load %arg10[%c0_140, %c0_141] : memref<256x128xf32, #tpu.memory_space<vmem>>, vector<256x128xf32>
    tpu.vector_store %arg10[%c0_140, %c0_141], %130 {strides = array<i32>} : memref<256x128xf32, #tpu.memory_space<vmem>>, vector<256x128xf32>,
    %c0_142 = arith.constant 0 : index
    %c17 = arith.constant 17 : index
    %c0_143 = arith.constant 0 : index
    %132 = vector.load %arg8[%c0_142, %c17, %c0_143] : memref<18x40x128xbf16, #tpu.memory_space<vmem>>, vector<18x16x128xbf16>
    %133 = vector.shape_cast %132 : vector<18x16x128xbf16> to vector<288x128xbf16>
    %134 = vector.extract_strided_slice %133 {offsets = [0, 0], sizes = [256, 128], strides = [1, 1]} : vector<288x128xbf16> to vector<256x128xbf16>
    %c2_144 = arith.constant 2 : index
    %c0_145 = arith.constant 0 : index
    %c0_146 = arith.constant 0 : index
    %135 = vector.load %arg5[%c2_144, %c0_145, %c0_146] : memref<9x128x128xbf16, #tpu.memory_space<vmem>>, vector<1x128x128xbf16>
    %136 = vector.shape_cast %135 : vector<1x128x128xbf16> to vector<128x128xbf16>
    %cst_147 = arith.constant dense<0.000000e+00> : vector<256x128xf32>
    %137 = tpu.matmul %134, %136, %cst_147 {dimension_numbers = #tpu.dot_dimension_numbers<[1], [0], [0], [1], [0, 0, 1, 1], [], []>} : vector<256x128xbf16>, vector<128x128xbf16>, vector<256x128xf32> -> vector<256x128xf32>
    %c0_148 = arith.constant 0 : index
    %c0_149 = arith.constant 0 : index
    %138 = vector.load %arg10[%c0_148, %c0_149] : memref<256x128xf32, #tpu.memory_space<vmem>>, vector<256x128xf32>
    %139 = arith.addf %138, %137 : vector<256x128xf32>
    %c0_150 = arith.constant 0 : index
    %c0_151 = arith.constant 0 : index
    %140 = vector.load %arg10[%c0_150, %c0_151] : memref<256x128xf32, #tpu.memory_space<vmem>>, vector<256x128xf32>
    tpu.vector_store %arg10[%c0_150, %c0_151], %139 {strides = array<i32>} : memref<256x128xf32, #tpu.memory_space<vmem>>, vector<256x128xf32>,
    %141 = vector.extract_strided_slice %133 {offsets = [16, 0], sizes = [256, 128], strides = [1, 1]} : vector<288x128xbf16> to vector<256x128xbf16>
    %c5_152 = arith.constant 5 : index
    %c0_153 = arith.constant 0 : index
    %c0_154 = arith.constant 0 : index
    %142 = vector.load %arg5[%c5_152, %c0_153, %c0_154] : memref<9x128x128xbf16, #tpu.memory_space<vmem>>, vector<1x128x128xbf16>
    %143 = vector.shape_cast %142 : vector<1x128x128xbf16> to vector<128x128xbf16>
    %cst_155 = arith.constant dense<0.000000e+00> : vector<256x128xf32>
    %144 = tpu.matmul %141, %143, %cst_155 {dimension_numbers = #tpu.dot_dimension_numbers<[1], [0], [0], [1], [0, 0, 1, 1], [], []>} : vector<256x128xbf16>, vector<128x128xbf16>, vector<256x128xf32> -> vector<256x128xf32>
    %c0_156 = arith.constant 0 : index
    %c0_157 = arith.constant 0 : index
    %145 = vector.load %arg10[%c0_156, %c0_157] : memref<256x128xf32, #tpu.memory_space<vmem>>, vector<256x128xf32>
    %146 = arith.addf %145, %144 : vector<256x128xf32>
    %c0_158 = arith.constant 0 : index
    %c0_159 = arith.constant 0 : index
    %147 = vector.load %arg10[%c0_158, %c0_159] : memref<256x128xf32, #tpu.memory_space<vmem>>, vector<256x128xf32>
    tpu.vector_store %arg10[%c0_158, %c0_159], %146 {strides = array<i32>} : memref<256x128xf32, #tpu.memory_space<vmem>>, vector<256x128xf32>,
    %148 = vector.extract_strided_slice %133 {offsets = [32, 0], sizes = [256, 128], strides = [1, 1]} : vector<288x128xbf16> to vector<256x128xbf16>
    %c8_160 = arith.constant 8 : index
    %c0_161 = arith.constant 0 : index
    %c0_162 = arith.constant 0 : index
    %149 = vector.load %arg5[%c8_160, %c0_161, %c0_162] : memref<9x128x128xbf16, #tpu.memory_space<vmem>>, vector<1x128x128xbf16>
    %150 = vector.shape_cast %149 : vector<1x128x128xbf16> to vector<128x128xbf16>
    %cst_163 = arith.constant dense<0.000000e+00> : vector<256x128xf32>
    %151 = tpu.matmul %148, %150, %cst_163 {dimension_numbers = #tpu.dot_dimension_numbers<[1], [0], [0], [1], [0, 0, 1, 1], [], []>} : vector<256x128xbf16>, vector<128x128xbf16>, vector<256x128xf32> -> vector<256x128xf32>
    %c0_164 = arith.constant 0 : index
    %c0_165 = arith.constant 0 : index
    %152 = vector.load %arg10[%c0_164, %c0_165] : memref<256x128xf32, #tpu.memory_space<vmem>>, vector<256x128xf32>
    %153 = arith.addf %152, %151 : vector<256x128xf32>
    %c0_166 = arith.constant 0 : index
    %c0_167 = arith.constant 0 : index
    %154 = vector.load %arg10[%c0_166, %c0_167] : memref<256x128xf32, #tpu.memory_space<vmem>>, vector<256x128xf32>
    tpu.vector_store %arg10[%c0_166, %c0_167], %153 {strides = array<i32>} : memref<256x128xf32, #tpu.memory_space<vmem>>, vector<256x128xf32>,
    %c0_168 = arith.constant 0 : index
    %c0_169 = arith.constant 0 : index
    %155 = vector.load %arg10[%c0_168, %c0_169] : memref<256x128xf32, #tpu.memory_space<vmem>>, vector<256x128xf32>
    %c0_170 = arith.constant 0 : index
    %c0_171 = arith.constant 0 : index
    %156 = vector.load %arg6[%c0_170, %c0_171] : memref<1x128xf32, #tpu.memory_space<vmem>>, vector<1x128xf32>
    %157 = vector.broadcast %156 : vector<1x128xf32> to vector<256x128xf32>
    %158 = arith.addf %155, %157 : vector<256x128xf32>
    %cst_172 = arith.constant 0.000000e+00 : f32
    %159 = vector.broadcast %cst_172 : f32 to vector<256x128xf32>
    %160 = arith.maximumf %158, %159 : vector<256x128xf32>
    %161 = vector.shape_cast %160 : vector<256x128xf32> to vector<16x16x128xf32>
    %162 = arith.truncf %161 : vector<16x16x128xf32> to vector<16x16x128xbf16>
    %c0_173 = arith.constant 0 : index
    %c0_174 = arith.constant 0 : index
    %c0_175 = arith.constant 0 : index
    %c0_176 = arith.constant 0 : index
    %c0_177 = arith.constant 0 : index
    %163 = vector.load %arg7[%c0_173, %c0_174, %c0_175, %c0_176, %c0_177] : memref<1x1x16x16x128xbf16, #tpu.memory_space<vmem>>, vector<1x1x16x16x128xbf16>
    %164 = vector.shape_cast %163 : vector<1x1x16x16x128xbf16> to vector<16x16x128xbf16>
    %165 = vector.shape_cast %162 : vector<16x16x128xbf16> to vector<1x1x16x16x128xbf16>
    tpu.vector_store %arg7[%c0_173, %c0_174, %c0_175, %c0_176, %c0_177], %165 {strides = array<i32>} : memref<1x1x16x16x128xbf16, #tpu.memory_space<vmem>>, vector<1x1x16x16x128xbf16>,
    return
  }
  func.func @transform_0(%arg0: i32, %arg1: i32) -> (i32, i32, i32, i32, i32) {
    %c0_i32 = arith.constant 0 : i32
    %c0_i32_0 = arith.constant 0 : i32
    %c0_i32_1 = arith.constant 0 : i32
    %c0_i32_2 = arith.constant 0 : i32
    return %arg0, %arg1, %c0_i32, %c0_i32_0, %c0_i32_1 : i32, i32, i32, i32, i32
  }
  func.func @transform_1(%arg0: i32, %arg1: i32) -> (i32, i32, i32) {
    %c0_i32 = arith.constant 0 : i32
    %c0_i32_0 = arith.constant 0 : i32
    %c0_i32_1 = arith.constant 0 : i32
    %c0_i32_2 = arith.constant 0 : i32
    return %c0_i32, %c0_i32_0, %c0_i32_1 : i32, i32, i32
  }
  func.func @transform_2(%arg0: i32, %arg1: i32) -> (i32, i32) {
    %c0_i32 = arith.constant 0 : i32
    %c0_i32_0 = arith.constant 0 : i32
    %c0_i32_1 = arith.constant 0 : i32
    return %c0_i32, %c0_i32_0 : i32, i32
  }
  func.func @transform_3(%arg0: i32, %arg1: i32) -> (i32, i32, i32) {
    %c0_i32 = arith.constant 0 : i32
    %c0_i32_0 = arith.constant 0 : i32
    %c0_i32_1 = arith.constant 0 : i32
    %c0_i32_2 = arith.constant 0 : i32
    return %c0_i32, %c0_i32_0, %c0_i32_1 : i32, i32, i32
  }
  func.func @transform_4(%arg0: i32, %arg1: i32) -> (i32, i32) {
    %c0_i32 = arith.constant 0 : i32
    %c0_i32_0 = arith.constant 0 : i32
    %c0_i32_1 = arith.constant 0 : i32
    return %c0_i32, %c0_i32_0 : i32, i32
  }
  func.func @transform_5(%arg0: i32, %arg1: i32) -> (i32, i32, i32, i32, i32) {
    %c0_i32 = arith.constant 0 : i32
    %c0_i32_0 = arith.constant 0 : i32
    %c0_i32_1 = arith.constant 0 : i32
    %c0_i32_2 = arith.constant 0 : i32
    return %arg0, %arg1, %c0_i32, %c0_i32_0, %c0_i32_1 : i32, i32, i32, i32, i32
  }
}

</mosaic_0001>

<llo_original>
// kernel: double_conv.1
$region0: #{double_conv.1}
  #allocation0 [shape = 'u32[]', space=smem, size = 0x4, offset = 0x4, fixed_abs, tag = 'smem constant byte address 0x4 - core index']
  #allocation1 [shape = 'u32[144,128]{1,0:T(1,128)}', space=vmem, size = 0x12000, scoped, tag = 'internal scratch']
  #allocation2 [shape = 'bf16[18,40,128]{2,1,0:T(8,128)(2,1)}', space=vmem, size = 0x2d000, scoped, tag = 'scratch operand']
  #allocation3 [shape = 'f32[288,128]{1,0:T(8,128)}', space=vmem, size = 0x24000, scoped, tag = 'scratch operand']
  #allocation4 [shape = 'f32[256,128]{1,0:T(8,128)}', space=vmem, size = 0x20000, scoped, tag = 'scratch operand']
  %s0 = inlined_call_operand.vmem [shape: bf16[2,1,20,24,128], index: 0, kind: input, shape index: {}]
  %s1 = inlined_call_operand.vmem [shape: bf16[9,128,128], index: 1, kind: input, shape index: {}]
  %s2 = inlined_call_operand.vmem [shape: f32[1,128], index: 2, kind: input, shape index: {}]
  %s3 = inlined_call_operand.vmem [shape: bf16[9,128,128], index: 3, kind: input, shape index: {}]
  %s4 = inlined_call_operand.vmem [shape: f32[1,128], index: 4, kind: input, shape index: {}]
  %s5 = inlined_call_operand.vmem [shape: bf16[2,1,16,16,128], index: 5, kind: output, shape index: {}]
  %s6 = sld [smem:[#allocation0]]
  $region57: #{double_conv.1} parent=0
    _
  %s8 = ssub.s32 1, %s6
  %s9 = scalar_select 0, %s8, %s6
  loop: start=0, step=1, limit=4
  $region2: #{double_conv.1} parent=0 // loop_pre_header
    _
  $region3: #{double_conv.1} parent=0 // loop_header
    %s11 = sphi 0, %s15
    %p12 = scmp.ge.s32.totalorder %s11, 4
    %s18 = sphi 0, %s30
    %s19 = sphi 0, %s26
    %s20 = sphi 0, %s18
    %s21 = sphi 0, %s19
    %s22 = sphi 0, %s20
    %s23 = sphi 0, %s21
    %s35 = sphi 0, %s37
    %s38 = sphi 0, %s35
    %s39 = sphi 0, %s38
    %s55 = sphi 0, %s39
    %s59 = sphi 0, %s59
    %s61 = sphi 0, %s59
    %s62 = sphi 0, %s61
    %s76 = sphi 0, %s62
    %s80 = sphi 0, %s80
    %s82 = sphi 0, %s80
    %s83 = sphi 0, %s82
    %s97 = sphi 0, %s83
    %s101 = sphi 0, %s101
    %s103 = sphi 0, %s101
    %s104 = sphi 0, %s103
    %s118 = sphi 0, %s104
    %s122 = sphi 0, %s122
    %s124 = sphi 0, %s122
    %s125 = sphi 0, %s124
    %s139 = sphi 0, %s125
    %s147 = sphi 0, %s149
    %s150 = sphi 0, %s147
    %s151 = sphi 0, %s150
    %s167 = sphi 0, %s151
  $region4: #{double_conv.1} parent=0 // loop_header_branch
    %14 = sbr.rel (%p12) target = $region8
  $region5: #{double_conv.1} parent=0 // loop_body
    %s16 = ssub.s32 %s11, 1
    %s17 = ssub.s32 %s11, 2
    %s24 = sadd.s32 1, %s19
    %p25 = scmp.ge.s32.totalorder %s24, 1
    %s26 = scalar_select %p25, 0, %s24
    %s27 = sadd.s32 1, %s18
    %s28 = scalar_select %p25, %s27, %s18
    %p29 = scmp.ge.s32.totalorder %s28, 2
    %s30 = scalar_select %p29, 0, %s28
    %s31 = ssub.s32 %s18, %s30
    %s32 = ssub.s32 %s19, %s26
    %s33 = sor.u32 %s31, %s32
    %p34 = scmp.eq.s32.totalorder %s33, 0
    %s36 = sadd.s32 %s35, 1
    %s37 = scalar_select %p34, %s35, %s36
    %p40 = pneg %p34
    %p41 = scmp.eq.s32.totalorder %s11, 1
    %p42 = por %p40, %p41
    %p43 = scmp.ne.s32.totalorder %s35, %s38
    %p44 = scmp.eq.s32.totalorder %s11, 0
    %p45 = por %p43, %p44
    %p46 = scmp.ne.s32.totalorder %s35, %s38
    %p47 = scmp.eq.s32.totalorder %s16, 1
    %p48 = por %p46, %p47
    %p49 = scmp.ne.s32.totalorder %s38, %s39
    %p50 = scmp.eq.s32.totalorder %s16, 0
    %p51 = por %p49, %p50
    %p52 = scmp.ne.s32.totalorder %s38, %s39
    %p53 = scmp.eq.s32.totalorder %s17, 1
    %p54 = por %p52, %p53
    %p56 = scmp.ne.s32.totalorder %s39, %s55
    %p57 = scmp.eq.s32.totalorder %s17, 0
    %p58 = por %p56, %p57
    %s60 = sadd.s32 %s59, 1
    %p63 = scmp.eq.s32.totalorder %s11, 1
    %p64 = scmp.ne.s32.totalorder %s59, %s61
    %p65 = scmp.eq.s32.totalorder %s11, 0
    %p66 = por %p64, %p65
    %p67 = scmp.ne.s32.totalorder %s59, %s61
    %p68 = scmp.eq.s32.totalorder %s16, 1
    %p69 = por %p67, %p68
    %p70 = scmp.ne.s32.totalorder %s61, %s62
    %p71 = scmp.eq.s32.totalorder %s16, 0
    %p72 = por %p70, %p71
    %p73 = scmp.ne.s32.totalorder %s61, %s62
    %p74 = scmp.eq.s32.totalorder %s17, 1
    %p75 = por %p73, %p74
    %p77 = scmp.ne.s32.totalorder %s62, %s76
    %p78 = scmp.eq.s32.totalorder %s17, 0
    %p79 = por %p77, %p78
    %s81 = sadd.s32 %s80, 1
    %p84 = scmp.eq.s32.totalorder %s11, 1
    %p85 = scmp.ne.s32.totalorder %s80, %s82
    %p86 = scmp.eq.s32.totalorder %s11, 0
    %p87 = por %p85, %p86
    %p88 = scmp.ne.s32.totalorder %s80, %s82
    %p89 = scmp.eq.s32.totalorder %s16, 1
    %p90 = por %p88, %p89
    %p91 = scmp.ne.s32.totalorder %s82, %s83
    %p92 = scmp.eq.s32.totalorder %s16, 0
    %p93 = por %p91, %p92
    %p94 = scmp.ne.s32.totalorder %s82, %s83
    %p95 = scmp.eq.s32.totalorder %s17, 1
    %p96 = por %p94, %p95
    %p98 = scmp.ne.s32.totalorder %s83, %s97
    %p99 = scmp.eq.s32.totalorder %s17, 0
    %p100 = por %p98, %p99
    %s102 = sadd.s32 %s101, 1
    %p105 = scmp.eq.s32.totalorder %s11, 1
    %p106 = scmp.ne.s32.totalorder %s101, %s103
    %p107 = scmp.eq.s32.totalorder %s11, 0
    %p108 = por %p106, %p107
    %p109 = scmp.ne.s32.totalorder %s101, %s103
    %p110 = scmp.eq.s32.totalorder %s16, 1
    %p111 = por %p109, %p110
    %p112 = scmp.ne.s32.totalorder %s103, %s104
    %p113 = scmp.eq.s32.totalorder %s16, 0
    %p114 = por %p112, %p113
    %p115 = scmp.ne.s32.totalorder %s103, %s104
    %p116 = scmp.eq.s32.totalorder %s17, 1
    %p117 = por %p115, %p116
    %p119 = scmp.ne.s32.totalorder %s104, %s118
    %p120 = scmp.eq.s32.totalorder %s17, 0
    %p121 = por %p119, %p120
    %s123 = sadd.s32 %s122, 1
    %p126 = scmp.eq.s32.totalorder %s11, 1
    %p127 = scmp.ne.s32.totalorder %s122, %s124
    %p128 = scmp.eq.s32.totalorder %s11, 0
    %p129 = por %p127, %p128
    %p130 = scmp.ne.s32.totalorder %s122, %s124
    %p131 = scmp.eq.s32.totalorder %s16, 1
    %p132 = por %p130, %p131
    %p133 = scmp.ne.s32.totalorder %s124, %s125
    %p134 = scmp.eq.s32.totalorder %s16, 0
    %p135 = por %p133, %p134
    %p136 = scmp.ne.s32.totalorder %s124, %s125
    %p137 = scmp.eq.s32.totalorder %s17, 1
    %p138 = por %p136, %p137
    %p140 = scmp.ne.s32.totalorder %s125, %s139
    %p141 = scmp.eq.s32.totalorder %s17, 0
    %p142 = por %p140, %p141
    %s143 = ssub.s32 %s18, %s30
    %s144 = ssub.s32 %s19, %s26
    %s145 = sor.u32 %s143, %s144
    %p146 = scmp.eq.s32.totalorder %s145, 0
    %s148 = sadd.s32 %s147, 1
    %s149 = scalar_select %p146, %s147, %s148
    %p152 = pneg %p146
    %p153 = scmp.eq.s32.totalorder %s11, 1
    %p154 = por %p152, %p153
    %p155 = scmp.ne.s32.totalorder %s147, %s150
    %p156 = scmp.eq.s32.totalorder %s11, 0
    %p157 = por %p155, %p156
    %p158 = scmp.ne.s32.totalorder %s147, %s150
    %p159 = scmp.eq.s32.totalorder %s16, 1
    %p160 = por %p158, %p159
    %p161 = scmp.ne.s32.totalorder %s150, %s151
    %p162 = scmp.eq.s32.totalorder %s16, 0
    %p163 = por %p161, %p162
    %p164 = scmp.ne.s32.totalorder %s150, %s151
    %p165 = scmp.eq.s32.totalorder %s17, 1
    %p166 = por %p164, %p165
    %p168 = scmp.ne.s32.totalorder %s151, %s167
    %p169 = scmp.eq.s32.totalorder %s17, 0
    %p170 = por %p168, %p169
    %p171 = scmp.le.s32.totalorder 1, %s11
    %p172 = scmp.lt.s32.totalorder %s11, 3
    %p173 = pnand %p171, %p172
    %p174 = pneg %p173
    // Predicated region
    $region9: #{double_conv.1} parent=5 // pred_check
      _
    $region10: #{double_conv.1} parent=5 // pred_check_branch
      %176 = sbr.rel (%p173) target = $region12
    $region11: #{double_conv.1} parent=5 // pred_region
      %s177 = ssub.s32 %s11, 1
      // Predicated region
      $region13: #{double_conv.1} parent=11 // pred_check
        %p178 = pneg %p72
      $region14: #{double_conv.1} parent=11 // pred_check_branch
        %180 = sbr.rel (%p178) target = $region16
      $region15: #{double_conv.1} parent=11 // pred_region
        _
      $region16: #{double_conv.1} parent=11 // pred_fallthru
        _
      // Predicated region
      $region17: #{double_conv.1} parent=11 // pred_check
        %p181 = pneg %p93
      $region18: #{double_conv.1} parent=11 // pred_check_branch
        %183 = sbr.rel (%p181) target = $region20
      $region19: #{double_conv.1} parent=11 // pred_region
        _
      $region20: #{double_conv.1} parent=11 // pred_fallthru
        _
      // Predicated region
      $region21: #{double_conv.1} parent=11 // pred_check
        %p184 = pneg %p114
      $region22: #{double_conv.1} parent=11 // pred_check_branch
        %186 = sbr.rel (%p184) target = $region24
      $region23: #{double_conv.1} parent=11 // pred_region
        _
      $region24: #{double_conv.1} parent=11 // pred_fallthru
        _
      // Predicated region
      $region25: #{double_conv.1} parent=11 // pred_check
        %p187 = pneg %p135
      $region26: #{double_conv.1} parent=11 // pred_check_branch
        %189 = sbr.rel (%p187) target = $region28
      $region27: #{double_conv.1} parent=11 // pred_region
        _
      $region28: #{double_conv.1} parent=11 // pred_fallthru
        _
    $region12: #{double_conv.1} parent=5 // pred_fallthru
      _
    %p190 = scmp.lt.s32.totalorder %s11, 2
    // Predicated region
    $region29: #{double_conv.1} parent=5 // pred_check
      %p191 = pneg %p190
    $region30: #{double_conv.1} parent=5 // pred_check_branch
      %193 = sbr.rel (%p191) target = $region32
    $region31: #{double_conv.1} parent=5 // pred_region
      // Predicated region
      $region33: #{double_conv.1} parent=31 // pred_check
        %p194 = pneg %p45
      $region34: #{double_conv.1} parent=31 // pred_check_branch
        %196 = sbr.rel (%p194) target = $region36
      $region35: #{double_conv.1} parent=31 // pred_region
        %p197 = scmp.lt.s32.totalorder %s18, 1
        %s198 = scalar_select %p197, %s18, 1
        %p199 = scmp.lt.s32.totalorder %s19, 0
        %s200 = scalar_select %p199, %s19, 0
        %s201 = smul.addr %s200, 60
        %s202 = smul.addr %s198, 60
        %s203 = sadd.s32 %s201, %s202
        %s204 = smul.addr %s203, 4
        %s205 = scalar_lea.vmem %s0, %s204
      $region36: #{double_conv.1} parent=31 // pred_fallthru
        _
    $region32: #{double_conv.1} parent=5 // pred_fallthru
      _
    %p206 = scmp.le.s32.totalorder 1, %s11
    %p207 = scmp.lt.s32.totalorder %s11, 3
    %p208 = pnand %p206, %p207
    %p209 = pneg %p208
    // Predicated region
    $region37: #{double_conv.1} parent=5 // pred_check
      _
    $region38: #{double_conv.1} parent=5 // pred_check_branch
      %211 = sbr.rel (%p208) target = $region40
    $region39: #{double_conv.1} parent=5 // pred_region
      %s212 = ssub.s32 %s11, 1
      %p213 = scmp.lt.s32.totalorder %s20, 1
      %s214 = scalar_select %p213, %s20, 1
      %p215 = scmp.lt.s32.totalorder %s21, 0
      %s216 = scalar_select %p215, %s21, 0
      %s217 = smul.addr %s216, 60
      %s218 = smul.addr %s214, 60
      %s219 = sadd.s32 %s217, %s218
      %s220 = smul.addr %s219, 4
      %s221 = scalar_lea.vmem %s0, %s220
      %p222 = pneg %p51
      %p223 = pneg %p48
      %p224 = pneg %p72
      %p225 = pneg %p69
      %p226 = pneg %p93
      %p227 = pneg %p90
      %p228 = pneg %p114
      %p229 = pneg %p111
      %p230 = pneg %p135
      %p231 = pneg %p132
      %p232 = pneg %p163
      %p233 = pneg %p160
      %p234 = scmp.lt.s32.totalorder %s20, 1
      %s235 = scalar_select %p234, %s20, 1
      %p236 = scmp.lt.s32.totalorder %s21, 0
      %s237 = scalar_select %p236, %s21, 0
      %s238 = smul.addr %s237, 32
      %s239 = smul.addr %s235, 32
      %s240 = sadd.s32 %s238, %s239
      %s241 = smul.addr %s240, 4
      %s242 = scalar_lea.vmem %s5, %s241
      %p243 = scmp.lt.s32.totalorder %s20, 1
      %s244 = scalar_select %p243, %s20, 1
      %p245 = scmp.lt.s32.totalorder %s21, 0
      %s246 = scalar_select %p245, %s21, 0
      %s247 = smul.addr %s246, 60
      %s248 = smul.addr %s244, 60
      %s249 = sadd.s32 %s247, %s248
      %s250 = smul.addr %s249, 4
      %s251 = scalar_lea.vmem %s0, %s250
      %p252 = scmp.lt.s32.totalorder %s20, 1
      %s253 = scalar_select %p252, %s20, 1
      %p254 = scmp.lt.s32.totalorder %s21, 0
      %s255 = scalar_select %p254, %s21, 0
      %s256 = smul.addr %s255, 32
      %s257 = smul.addr %s253, 32
      %s258 = sadd.s32 %s256, %s257
      %s259 = smul.addr %s258, 4
      %s260 = scalar_lea.vmem %s5, %s259
      %v262 = vld [vmem:[%s251] sm:$0xf]
      %v263 = vld [vmem:[%s251 + $0x4] sm:$0xf]
      %v264 = vld [vmem:[%s251 + $0x8] sm:$0x1]
      %v265 = vld [vmem:[%s251 + $0xc] sm:$0xf]
      %v266 = vld [vmem:[%s251 + $0x10] sm:$0xf]
      %v267 = vld [vmem:[%s251 + $0x14] sm:$0x1]
      %v268 = vld [vmem:[%s251 + $0x18] sm:$0xf]
      %v269 = vld [vmem:[%s251 + $0x1c] sm:$0xf]
      %v270 = vld [vmem:[%s251 + $0x20] sm:$0x1]
      %v271 = vld [vmem:[%s251 + $0x24] sm:$0xf]
      %v272 = vld [vmem:[%s251 + $0x28] sm:$0xf]
      %v273 = vld [vmem:[%s251 + $0x2c] sm:$0x1]
      %v274 = vld [vmem:[%s251 + $0x30] sm:$0xf]
      %v275 = vld [vmem:[%s251 + $0x34] sm:$0xf]
      %v276 = vld [vmem:[%s251 + $0x38] sm:$0x1]
      %v277 = vld [vmem:[%s251 + $0x3c] sm:$0xf]
      %v278 = vld [vmem:[%s251 + $0x40] sm:$0xf]
      %v279 = vld [vmem:[%s251 + $0x44] sm:$0x1]
      %v280 = vld [vmem:[%s251 + $0x48] sm:$0xf]
      %v281 = vld [vmem:[%s251 + $0x4c] sm:$0xf]
      %v282 = vld [vmem:[%s251 + $0x50] sm:$0x1]
      %v283 = vld [vmem:[%s251 + $0x54] sm:$0xf]
      %v284 = vld [vmem:[%s251 + $0x58] sm:$0xf]
      %v285 = vld [vmem:[%s251 + $0x5c] sm:$0x1]
      %v286 = vld [vmem:[%s251 + $0x60] sm:$0xf]
      %v287 = vld [vmem:[%s251 + $0x64] sm:$0xf]
      %v288 = vld [vmem:[%s251 + $0x68] sm:$0x1]
      %v289 = vld [vmem:[%s251 + $0x6c] sm:$0xf]
      %v290 = vld [vmem:[%s251 + $0x70] sm:$0xf]
      %v291 = vld [vmem:[%s251 + $0x74] sm:$0x1]
      %v292 = vld [vmem:[%s251 + $0x78] sm:$0xf]
      %v293 = vld [vmem:[%s251 + $0x7c] sm:$0xf]
      %v294 = vld [vmem:[%s251 + $0x80] sm:$0x1]
      %v295 = vld [vmem:[%s251 + $0x84] sm:$0xf]
      %v296 = vld [vmem:[%s251 + $0x88] sm:$0xf]
      %v297 = vld [vmem:[%s251 + $0x8c] sm:$0x1]
      %v298 = vld [vmem:[%s251 + $0x90] sm:$0xf]
      %v299 = vld [vmem:[%s251 + $0x94] sm:$0xf]
      %v300 = vld [vmem:[%s251 + $0x98] sm:$0x1]
      %v301 = vld [vmem:[%s251 + $0x9c] sm:$0xf]
      %v302 = vld [vmem:[%s251 + $0xa0] sm:$0xf]
      %v303 = vld [vmem:[%s251 + $0xa4] sm:$0x1]
      %v304 = vld [vmem:[%s251 + $0xa8] sm:$0xf]
      %v305 = vld [vmem:[%s251 + $0xac] sm:$0xf]
      %v306 = vld [vmem:[%s251 + $0xb0] sm:$0x1]
      %v307 = vld [vmem:[%s251 + $0xb4] sm:$0xf]
      %v308 = vld [vmem:[%s251 + $0xb8] sm:$0xf]
      %v309 = vld [vmem:[%s251 + $0xbc] sm:$0x1]
      %v310 = vld [vmem:[%s251 + $0xc0] sm:$0xf]
      %v311 = vld [vmem:[%s251 + $0xc4] sm:$0xf]
      %v312 = vld [vmem:[%s251 + $0xc8] sm:$0x1]
      %v313 = vld [vmem:[%s251 + $0xcc] sm:$0xf]
      %v314 = vld [vmem:[%s251 + $0xd0] sm:$0xf]
      %v315 = vld [vmem:[%s251 + $0xd4] sm:$0x1]
      %v316 = vld [vmem:[%s251 + $0xd8] sm:$0xf]
      %v317 = vld [vmem:[%s251 + $0xdc] sm:$0xf]
      %v318 = vld [vmem:[%s251 + $0xe0] sm:$0x1]
      %v319 = vld [vmem:[%s251 + $0xe4] sm:$0xf]
      %v320 = vld [vmem:[%s251 + $0xe8] sm:$0xf]
      %v321 = vld [vmem:[%s251 + $0xec] sm:$0x1]
      %vm322 = vsmask.f32 3328
      %vm323 = vsmask.f32 7440
      %vm324 = vmor %vm322, %vm323
      %v326 = vshrl.u32 %v262, 16
      %v328 = vrot.slane %v326, 4
      %v329 = vshll.u32 %v262, 16
      %v331 = vrot.slane %v329, 5
      %v332 = vor.u32 %v328, %v331
      %v333 = vrot.slane %v332, 4
      %v335 = vshll.u32 %v263, 16
      %v337 = vrot.slane %v335, 5
      %v338 = vsel %vm324, %v333, %v337
      %v339 = vshrl.u32 %v263, 16
      %v341 = vrot.slane %v339, 4
      %v342 = vor.u32 %v341, %v337
      %v343 = vrot.slane %v342, 4
      %v345 = vshll.u32 %v264, 16
      %v347 = vrot.slane %v345, 5
      %v348 = vsel %vm324, %v343, %v347
      %v350 = vshrl.u32 %v265, 16
      %v352 = vrot.slane %v350, 4
      %v353 = vshll.u32 %v265, 16
      %v355 = vrot.slane %v353, 5
      %v356 = vor.u32 %v352, %v355
      %v357 = vrot.slane %v356, 4
      %v359 = vshll.u32 %v266, 16
      %v361 = vrot.slane %v359, 5
      %v362 = vsel %vm324, %v357, %v361
      %v363 = vshrl.u32 %v266, 16
      %v365 = vrot.slane %v363, 4
      %v366 = vor.u32 %v365, %v361
      %v367 = vrot.slane %v366, 4
      %v369 = vshll.u32 %v267, 16
      %v371 = vrot.slane %v369, 5
      %v372 = vsel %vm324, %v367, %v371
      %v374 = vshrl.u32 %v268, 16
      %v376 = vrot.slane %v374, 4
      %v377 = vshll.u32 %v268, 16
      %v379 = vrot.slane %v377, 5
      %v380 = vor.u32 %v376, %v379
      %v381 = vrot.slane %v380, 4
      %v383 = vshll.u32 %v269, 16
      %v385 = vrot.slane %v383, 5
      %v386 = vsel %vm324, %v381, %v385
      %v387 = vshrl.u32 %v269, 16
      %v389 = vrot.slane %v387, 4
      %v390 = vor.u32 %v389, %v385
      %v391 = vrot.slane %v390, 4
      %v393 = vshll.u32 %v270, 16
      %v395 = vrot.slane %v393, 5
      %v396 = vsel %vm324, %v391, %v395
      %v398 = vshrl.u32 %v271, 16
      %v400 = vrot.slane %v398, 4
      %v401 = vshll.u32 %v271, 16
      %v403 = vrot.slane %v401, 5
      %v404 = vor.u32 %v400, %v403
      %v405 = vrot.slane %v404, 4
      %v407 = vshll.u32 %v272, 16
      %v409 = vrot.slane %v407, 5
      %v410 = vsel %vm324, %v405, %v409
      %v411 = vshrl.u32 %v272, 16
      %v413 = vrot.slane %v411, 4
      %v414 = vor.u32 %v413, %v409
      %v415 = vrot.slane %v414, 4
      %v417 = vshll.u32 %v273, 16
      %v419 = vrot.slane %v417, 5
      %v420 = vsel %vm324, %v415, %v419
      %v422 = vshrl.u32 %v274, 16
      %v424 = vrot.slane %v422, 4
      %v425 = vshll.u32 %v274, 16
      %v427 = vrot.slane %v425, 5
      %v428 = vor.u32 %v424, %v427
      %v429 = vrot.slane %v428, 4
      %v431 = vshll.u32 %v275, 16
      %v433 = vrot.slane %v431, 5
      %v434 = vsel %vm324, %v429, %v433
      %v435 = vshrl.u32 %v275, 16
      %v437 = vrot.slane %v435, 4
      %v438 = vor.u32 %v437, %v433
      %v439 = vrot.slane %v438, 4
      %v441 = vshll.u32 %v276, 16
      %v443 = vrot.slane %v441, 5
      %v444 = vsel %vm324, %v439, %v443
      %v446 = vshrl.u32 %v277, 16
      %v448 = vrot.slane %v446, 4
      %v449 = vshll.u32 %v277, 16
      %v451 = vrot.slane %v449, 5
      %v452 = vor.u32 %v448, %v451
      %v453 = vrot.slane %v452, 4
      %v455 = vshll.u32 %v278, 16
      %v457 = vrot.slane %v455, 5
      %v458 = vsel %vm324, %v453, %v457
      %v459 = vshrl.u32 %v278, 16
      %v461 = vrot.slane %v459, 4
      %v462 = vor.u32 %v461, %v457
      %v463 = vrot.slane %v462, 4
      %v465 = vshll.u32 %v279, 16
      %v467 = vrot.slane %v465, 5
      %v468 = vsel %vm324, %v463, %v467
      %v470 = vshrl.u32 %v280, 16
      %v472 = vrot.slane %v470, 4
      %v473 = vshll.u32 %v280, 16
      %v475 = vrot.slane %v473, 5
      %v476 = vor.u32 %v472, %v475
      %v477 = vrot.slane %v476, 4
      %v479 = vshll.u32 %v281, 16
      %v481 = vrot.slane %v479, 5
      %v482 = vsel %vm324, %v477, %v481
      %v483 = vshrl.u32 %v281, 16
      %v485 = vrot.slane %v483, 4
      %v486 = vor.u32 %v485, %v481
      %v487 = vrot.slane %v486, 4
      %v489 = vshll.u32 %v282, 16
      %v491 = vrot.slane %v489, 5
      %v492 = vsel %vm324, %v487, %v491
      %v494 = vshrl.u32 %v283, 16
      %v496 = vrot.slane %v494, 4
      %v497 = vshll.u32 %v283, 16
      %v499 = vrot.slane %v497, 5
      %v500 = vor.u32 %v496, %v499
      %v501 = vrot.slane %v500, 4
      %v503 = vshll.u32 %v284, 16
      %v505 = vrot.slane %v503, 5
      %v506 = vsel %vm324, %v501, %v505
      %v507 = vshrl.u32 %v284, 16
      %v509 = vrot.slane %v507, 4
      %v510 = vor.u32 %v509, %v505
      %v511 = vrot.slane %v510, 4
      %v513 = vshll.u32 %v285, 16
      %v515 = vrot.slane %v513, 5
      %v516 = vsel %vm324, %v511, %v515
      %v518 = vshrl.u32 %v286, 16
      %v520 = vrot.slane %v518, 4
      %v521 = vshll.u32 %v286, 16
      %v523 = vrot.slane %v521, 5
      %v524 = vor.u32 %v520, %v523
      %v525 = vrot.slane %v524, 4
      %v527 = vshll.u32 %v287, 16
      %v529 = vrot.slane %v527, 5
      %v530 = vsel %vm324, %v525, %v529
      %v531 = vshrl.u32 %v287, 16
      %v533 = vrot.slane %v531, 4
      %v534 = vor.u32 %v533, %v529
      %v535 = vrot.slane %v534, 4
      %v537 = vshll.u32 %v288, 16
      %v539 = vrot.slane %v537, 5
      %v540 = vsel %vm324, %v535, %v539
      %v542 = vshrl.u32 %v289, 16
      %v544 = vrot.slane %v542, 4
      %v545 = vshll.u32 %v289, 16
      %v547 = vrot.slane %v545, 5
      %v548 = vor.u32 %v544, %v547
      %v549 = vrot.slane %v548, 4
      %v551 = vshll.u32 %v290, 16
      %v553 = vrot.slane %v551, 5
      %v554 = vsel %vm324, %v549, %v553
      %v555 = vshrl.u32 %v290, 16
      %v557 = vrot.slane %v555, 4
      %v558 = vor.u32 %v557, %v553
      %v559 = vrot.slane %v558, 4
      %v561 = vshll.u32 %v291, 16
      %v563 = vrot.slane %v561, 5
      %v564 = vsel %vm324, %v559, %v563
      %v566 = vshrl.u32 %v292, 16
      %v568 = vrot.slane %v566, 4
      %v569 = vshll.u32 %v292, 16
      %v571 = vrot.slane %v569, 5
      %v572 = vor.u32 %v568, %v571
      %v573 = vrot.slane %v572, 4
      %v575 = vshll.u32 %v293, 16
      %v577 = vrot.slane %v575, 5
      %v578 = vsel %vm324, %v573, %v577
      %v579 = vshrl.u32 %v293, 16
      %v581 = vrot.slane %v579, 4
      %v582 = vor.u32 %v581, %v577
      %v583 = vrot.slane %v582, 4
      %v585 = vshll.u32 %v294, 16
      %v587 = vrot.slane %v585, 5
      %v588 = vsel %vm324, %v583, %v587
      %v590 = vshrl.u32 %v295, 16
      %v592 = vrot.slane %v590, 4
      %v593 = vshll.u32 %v295, 16
      %v595 = vrot.slane %v593, 5
      %v596 = vor.u32 %v592, %v595
      %v597 = vrot.slane %v596, 4
      %v599 = vshll.u32 %v296, 16
      %v601 = vrot.slane %v599, 5
      %v602 = vsel %vm324, %v597, %v601
      %v603 = vshrl.u32 %v296, 16
      %v605 = vrot.slane %v603, 4
      %v606 = vor.u32 %v605, %v601
      %v607 = vrot.slane %v606, 4
      %v609 = vshll.u32 %v297, 16
      %v611 = vrot.slane %v609, 5
      %v612 = vsel %vm324, %v607, %v611
      %v614 = vshrl.u32 %v298, 16
      %v616 = vrot.slane %v614, 4
      %v617 = vshll.u32 %v298, 16
      %v619 = vrot.slane %v617, 5
      %v620 = vor.u32 %v616, %v619
      %v621 = vrot.slane %v620, 4
      %v623 = vshll.u32 %v299, 16
      %v625 = vrot.slane %v623, 5
      %v626 = vsel %vm324, %v621, %v625
      %v627 = vshrl.u32 %v299, 16
      %v629 = vrot.slane %v627, 4
      %v630 = vor.u32 %v629, %v625
      %v631 = vrot.slane %v630, 4
      %v633 = vshll.u32 %v300, 16
      %v635 = vrot.slane %v633, 5
      %v636 = vsel %vm324, %v631, %v635
      %v638 = vshrl.u32 %v301, 16
      %v640 = vrot.slane %v638, 4
      %v641 = vshll.u32 %v301, 16
      %v643 = vrot.slane %v641, 5
      %v644 = vor.u32 %v640, %v643
      %v645 = vrot.slane %v644, 4
      %v647 = vshll.u32 %v302, 16
      %v649 = vrot.slane %v647, 5
      %v650 = vsel %vm324, %v645, %v649
      %v651 = vshrl.u32 %v302, 16
      %v653 = vrot.slane %v651, 4
      %v654 = vor.u32 %v653, %v649
      %v655 = vrot.slane %v654, 4
      %v657 = vshll.u32 %v303, 16
      %v659 = vrot.slane %v657, 5
      %v660 = vsel %vm324, %v655, %v659
      %v662 = vshrl.u32 %v304, 16
      %v664 = vrot.slane %v662, 4
      %v665 = vshll.u32 %v304, 16
      %v667 = vrot.slane %v665, 5
      %v668 = vor.u32 %v664, %v667
      %v669 = vrot.slane %v668, 4
      %v671 = vshll.u32 %v305, 16
      %v673 = vrot.slane %v671, 5
      %v674 = vsel %vm324, %v669, %v673
      %v675 = vshrl.u32 %v305, 16
      %v677 = vrot.slane %v675, 4
      %v678 = vor.u32 %v677, %v673
      %v679 = vrot.slane %v678, 4
      %v681 = vshll.u32 %v306, 16
      %v683 = vrot.slane %v681, 5
      %v684 = vsel %vm324, %v679, %v683
      %v686 = vshrl.u32 %v307, 16
      %v688 = vrot.slane %v686, 4
      %v689 = vshll.u32 %v307, 16
      %v691 = vrot.slane %v689, 5
      %v692 = vor.u32 %v688, %v691
      %v693 = vrot.slane %v692, 4
      %v695 = vshll.u32 %v308, 16
      %v697 = vrot.slane %v695, 5
      %v698 = vsel %vm324, %v693, %v697
      %v699 = vshrl.u32 %v308, 16
      %v701 = vrot.slane %v699, 4
      %v702 = vor.u32 %v701, %v697
      %v703 = vrot.slane %v702, 4
      %v705 = vshll.u32 %v309, 16
      %v707 = vrot.slane %v705, 5
      %v708 = vsel %vm324, %v703, %v707
      %v710 = vshrl.u32 %v310, 16
      %v712 = vrot.slane %v710, 4
      %v713 = vshll.u32 %v310, 16
      %v715 = vrot.slane %v713, 5
      %v716 = vor.u32 %v712, %v715
      %v717 = vrot.slane %v716, 4
      %v719 = vshll.u32 %v311, 16
      %v721 = vrot.slane %v719, 5
      %v722 = vsel %vm324, %v717, %v721
      %v723 = vshrl.u32 %v311, 16
      %v725 = vrot.slane %v723, 4
      %v726 = vor.u32 %v725, %v721
      %v727 = vrot.slane %v726, 4
      %v729 = vshll.u32 %v312, 16
      %v731 = vrot.slane %v729, 5
      %v732 = vsel %vm324, %v727, %v731
      %v734 = vshrl.u32 %v313, 16
      %v736 = vrot.slane %v734, 4
      %v737 = vshll.u32 %v313, 16
      %v739 = vrot.slane %v737, 5
      %v740 = vor.u32 %v736, %v739
      %v741 = vrot.slane %v740, 4
      %v743 = vshll.u32 %v314, 16
      %v745 = vrot.slane %v743, 5
      %v746 = vsel %vm324, %v741, %v745
      %v747 = vshrl.u32 %v314, 16
      %v749 = vrot.slane %v747, 4
      %v750 = vor.u32 %v749, %v745
      %v751 = vrot.slane %v750, 4
      %v753 = vshll.u32 %v315, 16
      %v755 = vrot.slane %v753, 5
      %v756 = vsel %vm324, %v751, %v755
      %v758 = vshrl.u32 %v316, 16
      %v760 = vrot.slane %v758, 4
      %v761 = vshll.u32 %v316, 16
      %v763 = vrot.slane %v761, 5
      %v764 = vor.u32 %v760, %v763
      %v765 = vrot.slane %v764, 4
      %v767 = vshll.u32 %v317, 16
      %v769 = vrot.slane %v767, 5
      %v770 = vsel %vm324, %v765, %v769
      %v771 = vshrl.u32 %v317, 16
      %v773 = vrot.slane %v771, 4
      %v774 = vor.u32 %v773, %v769
      %v775 = vrot.slane %v774, 4
      %v777 = vshll.u32 %v318, 16
      %v779 = vrot.slane %v777, 5
      %v780 = vsel %vm324, %v775, %v779
      %v782 = vshrl.u32 %v319, 16
      %v784 = vrot.slane %v782, 4
      %v785 = vshll.u32 %v319, 16
      %v787 = vrot.slane %v785, 5
      %v788 = vor.u32 %v784, %v787
      %v789 = vrot.slane %v788, 4
      %v791 = vshll.u32 %v320, 16
      %v793 = vrot.slane %v791, 5
      %v794 = vsel %vm324, %v789, %v793
      %v795 = vshrl.u32 %v320, 16
      %v797 = vrot.slane %v795, 4
      %v798 = vor.u32 %v797, %v793
      %v799 = vrot.slane %v798, 4
      %v801 = vshll.u32 %v321, 16
      %v803 = vrot.slane %v801, 5
      %v804 = vsel %vm324, %v799, %v803
      %v805 = vld [vmem:[%s1] sm:$0xf]
      %v806 = vld [vmem:[%s1 + $0x4] sm:$0xf]
      %v807 = vld [vmem:[%s1 + $0x8] sm:$0xf]
      %v808 = vld [vmem:[%s1 + $0xc] sm:$0xf]
      %v809 = vld [vmem:[%s1 + $0x10] sm:$0xf]
      %v810 = vld [vmem:[%s1 + $0x14] sm:$0xf]
      %v811 = vld [vmem:[%s1 + $0x18] sm:$0xf]
      %v812 = vld [vmem:[%s1 + $0x1c] sm:$0xf]
      %v813 = vld [vmem:[%s1 + $0x20] sm:$0xf]
      %v814 = vld [vmem:[%s1 + $0x24] sm:$0xf]
      %v815 = vld [vmem:[%s1 + $0x28] sm:$0xf]
      %v816 = vld [vmem:[%s1 + $0x2c] sm:$0xf]
      %v817 = vld [vmem:[%s1 + $0x30] sm:$0xf]
      %v818 = vld [vmem:[%s1 + $0x34] sm:$0xf]
      %v819 = vld [vmem:[%s1 + $0x38] sm:$0xf]
      %v820 = vld [vmem:[%s1 + $0x3c] sm:$0xf]
      %v821 = vunpack.c.l.b16 %v338
      %v822 = vunpack.c.l.b16 %v348
      %v823 = vunpack.c.l.b16 %v362
      %v824 = vunpack.c.l.b16 %v372
      %v825 = vunpack.c.l.b16 %v386
      %v826 = vunpack.c.l.b16 %v396
      %v827 = vunpack.c.l.b16 %v410
      %v828 = vunpack.c.l.b16 %v420
      %v829 = vunpack.c.l.b16 %v434
      %v830 = vunpack.c.l.b16 %v444
      %v831 = vunpack.c.l.b16 %v458
      %v832 = vunpack.c.l.b16 %v468
      %v833 = vunpack.c.l.b16 %v482
      %v834 = vunpack.c.l.b16 %v492
      %v835 = vunpack.c.l.b16 %v506
      %v836 = vunpack.c.l.b16 %v516
      %v837 = vunpack.c.l.b16 %v530
      %v838 = vunpack.c.l.b16 %v540
      %v839 = vunpack.c.l.b16 %v554
      %v840 = vunpack.c.l.b16 %v564
      %v841 = vunpack.c.l.b16 %v578
      %v842 = vunpack.c.l.b16 %v588
      %v843 = vunpack.c.l.b16 %v602
      %v844 = vunpack.c.l.b16 %v612
      %v845 = vunpack.c.l.b16 %v626
      %v846 = vunpack.c.l.b16 %v636
      %v847 = vunpack.c.l.b16 %v650
      %v848 = vunpack.c.l.b16 %v660
      %v849 = vunpack.c.l.b16 %v674
      %v850 = vunpack.c.l.b16 %v684
      %v851 = vunpack.c.l.b16 %v698
      %v852 = vunpack.c.l.b16 %v708
      %v853 = vunpack.c.l.b16 %v722
      %v854 = vunpack.c.l.b16 %v732
      %v855 = vunpack.c.l.b16 %v746
      %v856 = vunpack.c.l.b16 %v756
      %v857 = vpack.c.b16 %v822, %v821
      %v858 = vpack.c.b16 %v824, %v823
      %v859 = vpack.c.b16 %v826, %v825
      %v860 = vpack.c.b16 %v828, %v827
      %v861 = vpack.c.b16 %v830, %v829
      %v862 = vpack.c.b16 %v832, %v831
      %v863 = vpack.c.b16 %v834, %v833
      %v864 = vpack.c.b16 %v836, %v835
      %v865 = vpack.c.b16 %v838, %v837
      %v866 = vpack.c.b16 %v840, %v839
      %v867 = vpack.c.b16 %v842, %v841
      %v868 = vpack.c.b16 %v844, %v843
      %v869 = vpack.c.b16 %v846, %v845
      %v870 = vpack.c.b16 %v848, %v847
      %v871 = vpack.c.b16 %v850, %v849
      %v872 = vpack.c.b16 %v852, %v851
      %v873 = vpack.c.b16 %v854, %v853
      %v874 = vpack.c.b16 %v856, %v855
      %v909 = vunpack.c.l.b16 %v805
      %v910 = vunpack.c.l.b16 %v806
      %v911 = vunpack.c.l.b16 %v807
      %v912 = vunpack.c.l.b16 %v808
      %v913 = vunpack.c.l.b16 %v809
      %v914 = vunpack.c.l.b16 %v810
      %v915 = vunpack.c.l.b16 %v811
      %v916 = vunpack.c.l.b16 %v812
      %v917 = vunpack.c.l.b16 %v813
      %v918 = vunpack.c.l.b16 %v814
      %v919 = vunpack.c.l.b16 %v815
      %v920 = vunpack.c.l.b16 %v816
      %v921 = vunpack.c.l.b16 %v817
      %v922 = vunpack.c.l.b16 %v818
      %v923 = vunpack.c.l.b16 %v819
      %v924 = vunpack.c.l.b16 %v820
      %v925 = vpack.c.b16 %v910, %v909
      %v926 = vpack.c.b16 %v912, %v911
      %v927 = vpack.c.b16 %v914, %v913
      %v928 = vpack.c.b16 %v916, %v915
      %v929 = vpack.c.b16 %v918, %v917
      %v930 = vpack.c.b16 %v920, %v919
      %v931 = vpack.c.b16 %v922, %v921
      %v932 = vpack.c.b16 %v924, %v923
      %941 = vmatprep.subr.bf16.mxu0 0
      %942 = vmatpush1.bf16.msra.mxu0 %v925
      %943 = vmatprep.subr.bf16.mxu0 0
      %944 = vmatpush1.bf16.msra.mxu0 %v926
      %945 = vmatprep.subr.bf16.mxu0 0
      %946 = vmatpush1.bf16.msra.mxu0 %v927
      %947 = vmatprep.subr.bf16.mxu0 0
      %948 = vmatpush1.bf16.msra.mxu0 %v928
      %949 = vmatprep.subr.bf16.mxu0 0
      %950 = vmatpush1.bf16.msra.mxu0 %v929
      %951 = vmatprep.subr.bf16.mxu0 0
      %952 = vmatpush1.bf16.msra.mxu0 %v930
      %953 = vmatprep.subr.bf16.mxu0 0
      %954 = vmatpush1.bf16.msra.mxu0 %v931
      %955 = vmatprep.subr.bf16.mxu0 0
      %956 = vmatpush1.bf16.msra.mxu0 %v932
      %957 = vmatprep.subr.bf16.mxu0 0
      %958 = vmatpush1.bf16.msra.mxu0 0
      %959 = vmatprep.subr.bf16.mxu0 0
      %960 = vmatpush1.bf16.msra.mxu0 0
      %961 = vmatprep.subr.bf16.mxu0 0
      %962 = vmatpush1.bf16.msra.mxu0 0
      %963 = vmatprep.subr.bf16.mxu0 0
      %964 = vmatpush1.bf16.msra.mxu0 0
      %965 = vmatprep.subr.bf16.mxu0 0
      %966 = vmatpush1.bf16.msra.mxu0 0
      %967 = vmatprep.subr.bf16.mxu0 0
      %968 = vmatpush1.bf16.msra.mxu0 0
      %969 = vmatprep.subr.bf16.mxu0 0
      %970 = vmatpush1.bf16.msra.mxu0 0
      %971 = vmatprep.subr.bf16.mxu0 0
      %972 = vmatpush1.bf16.msra.mxu0 0
      %973 = vmatprep.mubr.bf16.mxu0 0
      %974 = vmatmul.mubr.bf16.gmra.mrb[0].mxu0 %v857
      %v975 = vpop.f32.mrb[0].mxu0
      %v976 = vadd.f32 0.0, %v975
      %v977 = vpop.f32.mrb[0].mxu0
      %v978 = vpop.f32.mrb[0].mxu0
      %v979 = vadd.f32 0.0, %v978
      %v980 = vpop.f32.mrb[0].mxu0
      %981 = vmatprep.mubr.bf16.mxu0 0
      %982 = vmatmul.mubr.bf16.gmra.mrb[0].mxu0 %v858
      %v983 = vpop.f32.mrb[0].mxu0
      %v984 = vadd.f32 0.0, %v983
      %v985 = vpop.f32.mrb[0].mxu0
      %v986 = vpop.f32.mrb[0].mxu0
      %v987 = vadd.f32 0.0, %v986
      %v988 = vpop.f32.mrb[0].mxu0
      %989 = vmatprep.mubr.bf16.mxu0 0
      %990 = vmatmul.mubr.bf16.gmra.mrb[0].mxu0 %v859
      %v991 = vpop.f32.mrb[0].mxu0
      %v992 = vadd.f32 0.0, %v991
      %v993 = vpop.f32.mrb[0].mxu0
      %v994 = vpop.f32.mrb[0].mxu0
      %v995 = vadd.f32 0.0, %v994
      %v996 = vpop.f32.mrb[0].mxu0
      %997 = vmatprep.mubr.bf16.mxu0 0
      %998 = vmatmul.mubr.bf16.gmra.mrb[0].mxu0 %v860
      %v999 = vpop.f32.mrb[0].mxu0
      %v1000 = vadd.f32 0.0, %v999
      %v1001 = vpop.f32.mrb[0].mxu0
      %v1002 = vpop.f32.mrb[0].mxu0
      %v1003 = vadd.f32 0.0, %v1002
      %v1004 = vpop.f32.mrb[0].mxu0
      %1005 = vmatprep.mubr.bf16.mxu0 0
      %1006 = vmatmul.mubr.bf16.gmra.mrb[0].mxu0 %v861
      %v1007 = vpop.f32.mrb[0].mxu0
      %v1008 = vadd.f32 0.0, %v1007
      %v1009 = vpop.f32.mrb[0].mxu0
      %v1010 = vpop.f32.mrb[0].mxu0
      %v1011 = vadd.f32 0.0, %v1010
      %v1012 = vpop.f32.mrb[0].mxu0
      %1013 = vmatprep.mubr.bf16.mxu0 0
      %1014 = vmatmul.mubr.bf16.gmra.mrb[0].mxu0 %v862
      %v1015 = vpop.f32.mrb[0].mxu0
      %v1016 = vadd.f32 0.0, %v1015
      %v1017 = vpop.f32.mrb[0].mxu0
      %v1018 = vpop.f32.mrb[0].mxu0
      %v1019 = vadd.f32 0.0, %v1018
      %v1020 = vpop.f32.mrb[0].mxu0
      %1021 = vmatprep.mubr.bf16.mxu0 0
      %1022 = vmatmul.mubr.bf16.gmra.mrb[0].mxu0 %v863
      %v1023 = vpop.f32.mrb[0].mxu0
      %v1024 = vadd.f32 0.0, %v1023
      %v1025 = vpop.f32.mrb[0].mxu0
      %v1026 = vpop.f32.mrb[0].mxu0
      %v1027 = vadd.f32 0.0, %v1026
      %v1028 = vpop.f32.mrb[0].mxu0
      %1029 = vmatprep.mubr.bf16.mxu0 0
      %1030 = vmatmul.mubr.bf16.gmra.mrb[0].mxu0 %v864
      %v1031 = vpop.f32.mrb[0].mxu0
      %v1032 = vadd.f32 0.0, %v1031
      %v1033 = vpop.f32.mrb[0].mxu0
      %v1034 = vpop.f32.mrb[0].mxu0
      %v1035 = vadd.f32 0.0, %v1034
      %v1036 = vpop.f32.mrb[0].mxu0
      %1037 = vmatprep.mubr.bf16.mxu0 0
      %1038 = vmatmul.mubr.bf16.gmra.mrb[0].mxu0 %v865
      %v1039 = vpop.f32.mrb[0].mxu0
      %v1040 = vadd.f32 0.0, %v1039
      %v1041 = vpop.f32.mrb[0].mxu0
      %v1042 = vpop.f32.mrb[0].mxu0
      %v1043 = vadd.f32 0.0, %v1042
      %v1044 = vpop.f32.mrb[0].mxu0
      %1045 = vmatprep.mubr.bf16.mxu0 0
      %1046 = vmatmul.mubr.bf16.gmra.mrb[0].mxu0 %v866
      %v1047 = vpop.f32.mrb[0].mxu0
      %v1048 = vadd.f32 0.0, %v1047
      %v1049 = vpop.f32.mrb[0].mxu0
      %v1050 = vpop.f32.mrb[0].mxu0
      %v1051 = vadd.f32 0.0, %v1050
      %v1052 = vpop.f32.mrb[0].mxu0
      %1053 = vmatprep.mubr.bf16.mxu0 0
      %1054 = vmatmul.mubr.bf16.gmra.mrb[0].mxu0 %v867
      %v1055 = vpop.f32.mrb[0].mxu0
      %v1056 = vadd.f32 0.0, %v1055
      %v1057 = vpop.f32.mrb[0].mxu0
      %v1058 = vpop.f32.mrb[0].mxu0
      %v1059 = vadd.f32 0.0, %v1058
      %v1060 = vpop.f32.mrb[0].mxu0
      %1061 = vmatprep.mubr.bf16.mxu0 0
      %1062 = vmatmul.mubr.bf16.gmra.mrb[0].mxu0 %v868
      %v1063 = vpop.f32.mrb[0].mxu0
      %v1064 = vadd.f32 0.0, %v1063
      %v1065 = vpop.f32.mrb[0].mxu0
      %v1066 = vpop.f32.mrb[0].mxu0
      %v1067 = vadd.f32 0.0, %v1066
      %v1068 = vpop.f32.mrb[0].mxu0
      %1069 = vmatprep.mubr.bf16.mxu0 0
      %1070 = vmatmul.mubr.bf16.gmra.mrb[0].mxu0 %v869
      %v1071 = vpop.f32.mrb[0].mxu0
      %v1072 = vadd.f32 0.0, %v1071
      %v1073 = vpop.f32.mrb[0].mxu0
      %v1074 = vpop.f32.mrb[0].mxu0
      %v1075 = vadd.f32 0.0, %v1074
      %v1076 = vpop.f32.mrb[0].mxu0
      %1077 = vmatprep.mubr.bf16.mxu0 0
      %1078 = vmatmul.mubr.bf16.gmra.mrb[0].mxu0 %v870
      %v1079 = vpop.f32.mrb[0].mxu0
      %v1080 = vadd.f32 0.0, %v1079
      %v1081 = vpop.f32.mrb[0].mxu0
      %v1082 = vpop.f32.mrb[0].mxu0
      %v1083 = vadd.f32 0.0, %v1082
      %v1084 = vpop.f32.mrb[0].mxu0
      %1085 = vmatprep.mubr.bf16.mxu0 0
      %1086 = vmatmul.mubr.bf16.gmra.mrb[0].mxu0 %v871
      %v1087 = vpop.f32.mrb[0].mxu0
      %v1088 = vadd.f32 0.0, %v1087
      %v1089 = vpop.f32.mrb[0].mxu0
      %v1090 = vpop.f32.mrb[0].mxu0
      %v1091 = vadd.f32 0.0, %v1090
      %v1092 = vpop.f32.mrb[0].mxu0
      %1093 = vmatprep.mubr.bf16.mxu0 0
      %1094 = vmatmul.mubr.bf16.gmra.mrb[0].mxu0 %v872
      %v1095 = vpop.f32.mrb[0].mxu0
      %v1096 = vadd.f32 0.0, %v1095
      %v1097 = vpop.f32.mrb[0].mxu0
      %v1098 = vpop.f32.mrb[0].mxu0
      %v1099 = vadd.f32 0.0, %v1098
      %v1100 = vpop.f32.mrb[0].mxu0
      %1101 = vmatprep.mubr.bf16.mxu0 0
      %1102 = vmatmul.mubr.bf16.gmra.mrb[0].mxu0 %v873
      %v1103 = vpop.f32.mrb[0].mxu0
      %v1104 = vadd.f32 0.0, %v1103
      %v1105 = vpop.f32.mrb[0].mxu0
      %v1106 = vpop.f32.mrb[0].mxu0
      %v1107 = vadd.f32 0.0, %v1106
      %v1108 = vpop.f32.mrb[0].mxu0
      %1109 = vmatprep.mubr.bf16.mxu0 0
      %1110 = vmatmul.mubr.bf16.gmra.mrb[0].mxu0 %v874
      %v1111 = vpop.f32.mrb[0].mxu0
      %v1112 = vadd.f32 0.0, %v1111
      %v1113 = vpop.f32.mrb[0].mxu0
      %v1114 = vpop.f32.mrb[0].mxu0
      %v1115 = vadd.f32 0.0, %v1114
      %v1116 = vpop.f32.mrb[0].mxu0
      %1117 = vdwg.mxu0
      %1118 = vst [vmem:[#allocation3] sm:$0xff] %v976
      %1119 = vst [vmem:[#allocation3 + $0x8] sm:$0xff] %v979
      %1120 = vst [vmem:[#allocation3 + $0x10] sm:$0xff] %v984
      %1121 = vst [vmem:[#allocation3 + $0x18] sm:$0xff] %v987
      %1122 = vst [vmem:[#allocation3 + $0x20] sm:$0xff] %v992
      %1123 = vst [vmem:[#allocation3 + $0x28] sm:$0xff] %v995
      %1124 = vst [vmem:[#allocation3 + $0x30] sm:$0xff] %v1000
      %1125 = vst [vmem:[#allocation3 + $0x38] sm:$0xff] %v1003
      %1126 = vst [vmem:[#allocation3 + $0x40] sm:$0xff] %v1008
      %1127 = vst [vmem:[#allocation3 + $0x48] sm:$0xff] %v1011
      %1128 = vst [vmem:[#allocation3 + $0x50] sm:$0xff] %v1016
      %1129 = vst [vmem:[#allocation3 + $0x58] sm:$0xff] %v1019
      %1130 = vst [vmem:[#allocation3 + $0x60] sm:$0xff] %v1024
      %1131 = vst [vmem:[#allocation3 + $0x68] sm:$0xff] %v1027
      %1132 = vst [vmem:[#allocation3 + $0x70] sm:$0xff] %v1032
      %1133 = vst [vmem:[#allocation3 + $0x78] sm:$0xff] %v1035
      %1134 = vst [vmem:[#allocation3 + $0x80] sm:$0xff] %v1040
      %1135 = vst [vmem:[#allocation3 + $0x88] sm:$0xff] %v1043
      %1136 = vst [vmem:[#allocation3 + $0x90] sm:$0xff] %v1048
      %1137 = vst [vmem:[#allocation3 + $0x98] sm:$0xff] %v1051
      %1138 = vst [vmem:[#allocation3 + $0xa0] sm:$0xff] %v1056
      %1139 = vst [vmem:[#allocation3 + $0xa8] sm:$0xff] %v1059
      %1140 = vst [vmem:[#allocation3 + $0xb0] sm:$0xff] %v1064
      %1141 = vst [vmem:[#allocation3 + $0xb8] sm:$0xff] %v1067
      %1142 = vst [vmem:[#allocation3 + $0xc0] sm:$0xff] %v1072
      %1143 = vst [vmem:[#allocation3 + $0xc8] sm:$0xff] %v1075
      %1144 = vst [vmem:[#allocation3 + $0xd0] sm:$0xff] %v1080
      %1145 = vst [vmem:[#allocation3 + $0xd8] sm:$0xff] %v1083
      %1146 = vst [vmem:[#allocation3 + $0xe0] sm:$0xff] %v1088
      %1147 = vst [vmem:[#allocation3 + $0xe8] sm:$0xff] %v1091
      %1148 = vst [vmem:[#allocation3 + $0xf0] sm:$0xff] %v1096
      %1149 = vst [vmem:[#allocation3 + $0xf8] sm:$0xff] %v1099
      %1150 = vst [vmem:[#allocation3 + $0x100] sm:$0xff] %v1104
      %1151 = vst [vmem:[#allocation3 + $0x108] sm:$0xff] %v1107
      %1152 = vst [vmem:[#allocation3 + $0x110] sm:$0xff] %v1112
      %1153 = vst [vmem:[#allocation3 + $0x118] sm:$0xff] %v1115
      %s1154 = scalar_lea.vmem %s1, 192
      %v1155 = vld [vmem:[%s1154] sm:$0xf]
      %v1156 = vld [vmem:[%s1154 + $0x4] sm:$0xf]
      %v1157 = vld [vmem:[%s1154 + $0x8] sm:$0xf]
      %v1158 = vld [vmem:[%s1154 + $0xc] sm:$0xf]
      %v1159 = vld [vmem:[%s1154 + $0x10] sm:$0xf]
      %v1160 = vld [vmem:[%s1154 + $0x14] sm:$0xf]
      %v1161 = vld [vmem:[%s1154 + $0x18] sm:$0xf]
      %v1162 = vld [vmem:[%s1154 + $0x1c] sm:$0xf]
      %v1163 = vld [vmem:[%s1154 + $0x20] sm:$0xf]
      %v1164 = vld [vmem:[%s1154 + $0x24] sm:$0xf]
      %v1165 = vld [vmem:[%s1154 + $0x28] sm:$0xf]
      %v1166 = vld [vmem:[%s1154 + $0x2c] sm:$0xf]
      %v1167 = vld [vmem:[%s1154 + $0x30] sm:$0xf]
      %v1168 = vld [vmem:[%s1154 + $0x34] sm:$0xf]
      %v1169 = vld [vmem:[%s1154 + $0x38] sm:$0xf]
      %v1170 = vld [vmem:[%s1154 + $0x3c] sm:$0xf]
      %v1171 = vunpack.c.l.b16 %v770
      %v1172 = vunpack.c.l.b16 %v780
      %v1173 = vpack.c.b16 %v1172, %v1171
      %v1191 = vunpack.c.l.b16 %v1155
      %v1192 = vunpack.c.l.b16 %v1156
      %v1193 = vunpack.c.l.b16 %v1157
      %v1194 = vunpack.c.l.b16 %v1158
      %v1195 = vunpack.c.l.b16 %v1159
      %v1196 = vunpack.c.l.b16 %v1160
      %v1197 = vunpack.c.l.b16 %v1161
      %v1198 = vunpack.c.l.b16 %v1162
      %v1199 = vunpack.c.l.b16 %v1163
      %v1200 = vunpack.c.l.b16 %v1164
      %v1201 = vunpack.c.l.b16 %v1165
      %v1202 = vunpack.c.l.b16 %v1166
      %v1203 = vunpack.c.l.b16 %v1167
      %v1204 = vunpack.c.l.b16 %v1168
      %v1205 = vunpack.c.l.b16 %v1169
      %v1206 = vunpack.c.l.b16 %v1170
      %v1207 = vpack.c.b16 %v1192, %v1191
      %v1208 = vpack.c.b16 %v1194, %v1193
      %v1209 = vpack.c.b16 %v1196, %v1195
      %v1210 = vpack.c.b16 %v1198, %v1197
      %v1211 = vpack.c.b16 %v1200, %v1199
      %v1212 = vpack.c.b16 %v1202, %v1201
      %v1213 = vpack.c.b16 %v1204, %v1203
      %v1214 = vpack.c.b16 %v1206, %v1205
      %1223 = vmatprep.subr.bf16.mxu0 0
      %1224 = vmatpush1.bf16.msra.mxu0 %v1207
      %1225 = vmatprep.subr.bf16.mxu0 0
      %1226 = vmatpush1.bf16.msra.mxu0 %v1208
      %1227 = vmatprep.subr.bf16.mxu0 0
      %1228 = vmatpush1.bf16.msra.mxu0 %v1209
      %1229 = vmatprep.subr.bf16.mxu0 0
      %1230 = vmatpush1.bf16.msra.mxu0 %v1210
      %1231 = vmatprep.subr.bf16.mxu0 0
      %1232 = vmatpush1.bf16.msra.mxu0 %v1211
      %1233 = vmatprep.subr.bf16.mxu0 0
      %1234 = vmatpush1.bf16.msra.mxu0 %v1212
      %1235 = vmatprep.subr.bf16.mxu0 0
      %1236 = vmatpush1.bf16.msra.mxu0 %v1213
      %1237 = vmatprep.subr.bf16.mxu0 0
      %1238 = vmatpush1.bf16.msra.mxu0 %v1214
      %1239 = vmatprep.subr.bf16.mxu0 0
      %1240 = vmatpush1.bf16.msra.mxu0 0
      %1241 = vmatprep.subr.bf16.mxu0 0
      %1242 = vmatpush1.bf16.msra.mxu0 0
      %1243 = vmatprep.subr.bf16.mxu0 0
      %1244 = vmatpush1.bf16.msra.mxu0 0
      %1245 = vmatprep.subr.bf16.mxu0 0
      %1246 = vmatpush1.bf16.msra.mxu0 0
      %1247 = vmatprep.subr.bf16.mxu0 0
      %1248 = vmatpush1.bf16.msra.mxu0 0
      %1249 = vmatprep.subr.bf16.mxu0 0
      %1250 = vmatpush1.bf16.msra.mxu0 0
      %1251 = vmatprep.subr.bf16.mxu0 0
      %1252 = vmatpush1.bf16.msra.mxu0 0
      %1253 = vmatprep.subr.bf16.mxu0 0
      %1254 = vmatpush1.bf16.msra.mxu0 0
      %1255 = vmatprep.mubr.bf16.mxu0 0
      %1256 = vmatmul.mubr.bf16.gmra.mrb[0].mxu0 %v858
      %v1257 = vpop.f32.mrb[0].mxu0
      %v1258 = vadd.f32 0.0, %v1257
      %v1259 = vpop.f32.mrb[0].mxu0
      %v1260 = vpop.f32.mrb[0].mxu0
      %v1261 = vadd.f32 0.0, %v1260
      %v1262 = vpop.f32.mrb[0].mxu0
      %1263 = vmatprep.mubr.bf16.mxu0 0
      %1264 = vmatmul.mubr.bf16.gmra.mrb[0].mxu0 %v859
      %v1265 = vpop.f32.mrb[0].mxu0
      %v1266 = vadd.f32 0.0, %v1265
      %v1267 = vpop.f32.mrb[0].mxu0
      %v1268 = vpop.f32.mrb[0].mxu0
      %v1269 = vadd.f32 0.0, %v1268
      %v1270 = vpop.f32.mrb[0].mxu0
      %1271 = vmatprep.mubr.bf16.mxu0 0
      %1272 = vmatmul.mubr.bf16.gmra.mrb[0].mxu0 %v860
      %v1273 = vpop.f32.mrb[0].mxu0
      %v1274 = vadd.f32 0.0, %v1273
      %v1275 = vpop.f32.mrb[0].mxu0
      %v1276 = vpop.f32.mrb[0].mxu0
      %v1277 = vadd.f32 0.0, %v1276
      %v1278 = vpop.f32.mrb[0].mxu0
      %1279 = vmatprep.mubr.bf16.mxu0 0
      %1280 = vmatmul.mubr.bf16.gmra.mrb[0].mxu0 %v861
      %v1281 = vpop.f32.mrb[0].mxu0
      %v1282 = vadd.f32 0.0, %v1281
      %v1283 = vpop.f32.mrb[0].mxu0
      %v1284 = vpop.f32.mrb[0].mxu0
      %v1285 = vadd.f32 0.0, %v1284
      %v1286 = vpop.f32.mrb[0].mxu0
      %1287 = vmatprep.mubr.bf16.mxu0 0
      %1288 = vmatmul.mubr.bf16.gmra.mrb[0].mxu0 %v862
      %v1289 = vpop.f32.mrb[0].mxu0
      %v1290 = vadd.f32 0.0, %v1289
      %v1291 = vpop.f32.mrb[0].mxu0
      %v1292 = vpop.f32.mrb[0].mxu0
      %v1293 = vadd.f32 0.0, %v1292
      %v1294 = vpop.f32.mrb[0].mxu0
      %1295 = vmatprep.mubr.bf16.mxu0 0
      %1296 = vmatmul.mubr.bf16.gmra.mrb[0].mxu0 %v863
      %v1297 = vpop.f32.mrb[0].mxu0
      %v1298 = vadd.f32 0.0, %v1297
      %v1299 = vpop.f32.mrb[0].mxu0
      %v1300 = vpop.f32.mrb[0].mxu0
      %v1301 = vadd.f32 0.0, %v1300
      %v1302 = vpop.f32.mrb[0].mxu0
      %1303 = vmatprep.mubr.bf16.mxu0 0
      %1304 = vmatmul.mubr.bf16.gmra.mrb[0].mxu0 %v864
      %v1305 = vpop.f32.mrb[0].mxu0
      %v1306 = vadd.f32 0.0, %v1305
      %v1307 = vpop.f32.mrb[0].mxu0
      %v1308 = vpop.f32.mrb[0].mxu0
      %v1309 = vadd.f32 0.0, %v1308
      %v1310 = vpop.f32.mrb[0].mxu0
      %1311 = vmatprep.mubr.bf16.mxu0 0
      %1312 = vmatmul.mubr.bf16.gmra.mrb[0].mxu0 %v865
      %v1313 = vpop.f32.mrb[0].mxu0
      %v1314 = vadd.f32 0.0, %v1313
      %v1315 = vpop.f32.mrb[0].mxu0
      %v1316 = vpop.f32.mrb[0].mxu0
      %v1317 = vadd.f32 0.0, %v1316
      %v1318 = vpop.f32.mrb[0].mxu0
      %1319 = vmatprep.mubr.bf16.mxu0 0
      %1320 = vmatmul.mubr.bf16.gmra.mrb[0].mxu0 %v866
      %v1321 = vpop.f32.mrb[0].mxu0
      %v1322 = vadd.f32 0.0, %v1321
      %v1323 = vpop.f32.mrb[0].mxu0
      %v1324 = vpop.f32.mrb[0].mxu0
      %v1325 = vadd.f32 0.0, %v1324
      %v1326 = vpop.f32.mrb[0].mxu0
      %1327 = vmatprep.mubr.bf16.mxu0 0
      %1328 = vmatmul.mubr.bf16.gmra.mrb[0].mxu0 %v867
      %v1329 = vpop.f32.mrb[0].mxu0
      %v1330 = vadd.f32 0.0, %v1329
      %v1331 = vpop.f32.mrb[0].mxu0
      %v1332 = vpop.f32.mrb[0].mxu0
      %v1333 = vadd.f32 0.0, %v1332
      %v1334 = vpop.f32.mrb[0].mxu0
      %1335 = vmatprep.mubr.bf16.mxu0 0
      %1336 = vmatmul.mubr.bf16.gmra.mrb[0].mxu0 %v868
      %v1337 = vpop.f32.mrb[0].mxu0
      %v1338 = vadd.f32 0.0, %v1337
      %v1339 = vpop.f32.mrb[0].mxu0
      %v1340 = vpop.f32.mrb[0].mxu0
      %v1341 = vadd.f32 0.0, %v1340
      %v1342 = vpop.f32.mrb[0].mxu0
      %1343 = vmatprep.mubr.bf16.mxu0 0
      %1344 = vmatmul.mubr.bf16.gmra.mrb[0].mxu0 %v869
      %v1345 = vpop.f32.mrb[0].mxu0
      %v1346 = vadd.f32 0.0, %v1345
      %v1347 = vpop.f32.mrb[0].mxu0
      %v1348 = vpop.f32.mrb[0].mxu0
      %v1349 = vadd.f32 0.0, %v1348
      %v1350 = vpop.f32.mrb[0].mxu0
      %1351 = vmatprep.mubr.bf16.mxu0 0
      %1352 = vmatmul.mubr.bf16.gmra.mrb[0].mxu0 %v870
      %v1353 = vpop.f32.mrb[0].mxu0
      %v1354 = vadd.f32 0.0, %v1353
      %v1355 = vpop.f32.mrb[0].mxu0
      %v1356 = vpop.f32.mrb[0].mxu0
      %v1357 = vadd.f32 0.0, %v1356
      %v1358 = vpop.f32.mrb[0].mxu0
      %1359 = vmatprep.mubr.bf16.mxu0 0
      %1360 = vmatmul.mubr.bf16.gmra.mrb[0].mxu0 %v871
      %v1361 = vpop.f32.mrb[0].mxu0
      %v1362 = vadd.f32 0.0, %v1361
      %v1363 = vpop.f32.mrb[0].mxu0
      %v1364 = vpop.f32.mrb[0].mxu0
      %v1365 = vadd.f32 0.0, %v1364
      %v1366 = vpop.f32.mrb[0].mxu0
      %1367 = vmatprep.mubr.bf16.mxu0 0
      %1368 = vmatmul.mubr.bf16.gmra.mrb[0].mxu0 %v872
      %v1369 = vpop.f32.mrb[0].mxu0
      %v1370 = vadd.f32 0.0, %v1369
      %v1371 = vpop.f32.mrb[0].mxu0
      %v1372 = vpop.f32.mrb[0].mxu0
      %v1373 = vadd.f32 0.0, %v1372
      %v1374 = vpop.f32.mrb[0].mxu0
      %1375 = vmatprep.mubr.bf16.mxu0 0
      %1376 = vmatmul.mubr.bf16.gmra.mrb[0].mxu0 %v873
      %v1377 = vpop.f32.mrb[0].mxu0
      %v1378 = vadd.f32 0.0, %v1377
      %v1379 = vpop.f32.mrb[0].mxu0
      %v1380 = vpop.f32.mrb[0].mxu0
      %v1381 = vadd.f32 0.0, %v1380
      %v1382 = vpop.f32.mrb[0].mxu0
      %1383 = vmatprep.mubr.bf16.mxu0 0
      %1384 = vmatmul.mubr.bf16.gmra.mrb[0].mxu0 %v874
      %v1385 = vpop.f32.mrb[0].mxu0
      %v1386 = vadd.f32 0.0, %v1385
      %v1387 = vpop.f32.mrb[0].mxu0
      %v1388 = vpop.f32.mrb[0].mxu0
      %v1389 = vadd.f32 0.0, %v1388
      %v1390 = vpop.f32.mrb[0].mxu0
      %1391 = vmatprep.mubr.bf16.mxu0 0
      %1392 = vmatmul.mubr.bf16.gmra.mrb[0].mxu0 %v1173
      %v1393 = vpop.f32.mrb[0].mxu0
      %v1394 = vadd.f32 0.0, %v1393
      %v1395 = vpop.f32.mrb[0].mxu0
      %v1396 = vpop.f32.mrb[0].mxu0
      %v1397 = vadd.f32 0.0, %v1396
      %v1398 = vpop.f32.mrb[0].mxu0
      %1399 = vdwg.mxu0
      %v1400 = vld [vmem:[#allocation3] sm:$0xff]
      %v1401 = vld [vmem:[#allocation3 + $0x8] sm:$0xff]
      %v1402 = vld [vmem:[#allocation3 + $0x10] sm:$0xff]
      %v1403 = vld [vmem:[#allocation3 + $0x18] sm:$0xff]
      %v1404 = vld [vmem:[#allocation3 + $0x20] sm:$0xff]
      %v1405 = vld [vmem:[#allocation3 + $0x28] sm:$0xff]
      %v1406 = vld [vmem:[#allocation3 + $0x30] sm:$0xff]
      %v1407 = vld [vmem:[#allocation3 + $0x38] sm:$0xff]
      %v1408 = vld [vmem:[#allocation3 + $0x40] sm:$0xff]
      %v1409 = vld [vmem:[#allocation3 + $0x48] sm:$0xff]
      %v1410 = vld [vmem:[#allocation3 + $0x50] sm:$0xff]
      %v1411 = vld [vmem:[#allocation3 + $0x58] sm:$0xff]
      %v1412 = vld [vmem:[#allocation3 + $0x60] sm:$0xff]
      %v1413 = vld [vmem:[#allocation3 + $0x68] sm:$0xff]
      %v1414 = vld [vmem:[#allocation3 + $0x70] sm:$0xff]
      %v1415 = vld [vmem:[#allocation3 + $0x78] sm:$0xff]
      %v1416 = vld [vmem:[#allocation3 + $0x80] sm:$0xff]
      %v1417 = vld [vmem:[#allocation3 + $0x88] sm:$0xff]
      %v1418 = vld [vmem:[#allocation3 + $0x90] sm:$0xff]
      %v1419 = vld [vmem:[#allocation3 + $0x98] sm:$0xff]
      %v1420 = vld [vmem:[#allocation3 + $0xa0] sm:$0xff]
      %v1421 = vld [vmem:[#allocation3 + $0xa8] sm:$0xff]
      %v1422 = vld [vmem:[#allocation3 + $0xb0] sm:$0xff]
      %v1423 = vld [vmem:[#allocation3 + $0xb8] sm:$0xff]
      %v1424 = vld [vmem:[#allocation3 + $0xc0] sm:$0xff]
      %v1425 = vld [vmem:[#allocation3 + $0xc8] sm:$0xff]
      %v1426 = vld [vmem:[#allocation3 + $0xd0] sm:$0xff]
      %v1427 = vld [vmem:[#allocation3 + $0xd8] sm:$0xff]
      %v1428 = vld [vmem:[#allocation3 + $0xe0] sm:$0xff]
      %v1429 = vld [vmem:[#allocation3 + $0xe8] sm:$0xff]
      %v1430 = vld [vmem:[#allocation3 + $0xf0] sm:$0xff]
      %v1431 = vld [vmem:[#allocation3 + $0xf8] sm:$0xff]
      %v1432 = vld [vmem:[#allocation3 + $0x100] sm:$0xff]
      %v1433 = vld [vmem:[#allocation3 + $0x108] sm:$0xff]
      %v1434 = vld [vmem:[#allocation3 + $0x110] sm:$0xff]
      %v1435 = vld [vmem:[#allocation3 + $0x118] sm:$0xff]
      %v1436 = vadd.f32 %v1400, %v1258
      %v1437 = vadd.f32 %v1401, %v1261
      %v1438 = vadd.f32 %v1402, %v1266
      %v1439 = vadd.f32 %v1403, %v1269
      %v1440 = vadd.f32 %v1404, %v1274
      %v1441 = vadd.f32 %v1405, %v1277
      %v1442 = vadd.f32 %v1406, %v1282
      %v1443 = vadd.f32 %v1407, %v1285
      %v1444 = vadd.f32 %v1408, %v1290
      %v1445 = vadd.f32 %v1409, %v1293
      %v1446 = vadd.f32 %v1410, %v1298
      %v1447 = vadd.f32 %v1411, %v1301
      %v1448 = vadd.f32 %v1412, %v1306
      %v1449 = vadd.f32 %v1413, %v1309
      %v1450 = vadd.f32 %v1414, %v1314
      %v1451 = vadd.f32 %v1415, %v1317
      %v1452 = vadd.f32 %v1416, %v1322
      %v1453 = vadd.f32 %v1417, %v1325
      %v1454 = vadd.f32 %v1418, %v1330
      %v1455 = vadd.f32 %v1419, %v1333
      %v1456 = vadd.f32 %v1420, %v1338
      %v1457 = vadd.f32 %v1421, %v1341
      %v1458 = vadd.f32 %v1422, %v1346
      %v1459 = vadd.f32 %v1423, %v1349
      %v1460 = vadd.f32 %v1424, %v1354
      %v1461 = vadd.f32 %v1425, %v1357
      %v1462 = vadd.f32 %v1426, %v1362
      %v1463 = vadd.f32 %v1427, %v1365
      %v1464 = vadd.f32 %v1428, %v1370
      %v1465 = vadd.f32 %v1429, %v1373
      %v1466 = vadd.f32 %v1430, %v1378
      %v1467 = vadd.f32 %v1431, %v1381
      %v1468 = vadd.f32 %v1432, %v1386
      %v1469 = vadd.f32 %v1433, %v1389
      %v1470 = vadd.f32 %v1434, %v1394
      %v1471 = vadd.f32 %v1435, %v1397
      %1472 = vst [vmem:[#allocation3] sm:$0xff] %v1436
      %1473 = vst [vmem:[#allocation3 + $0x8] sm:$0xff] %v1437
      %1474 = vst [vmem:[#allocation3 + $0x10] sm:$0xff] %v1438
      %1475 = vst [vmem:[#allocation3 + $0x18] sm:$0xff] %v1439
      %1476 = vst [vmem:[#allocation3 + $0x20] sm:$0xff] %v1440
      %1477 = vst [vmem:[#allocation3 + $0x28] sm:$0xff] %v1441
      %1478 = vst [vmem:[#allocation3 + $0x30] sm:$0xff] %v1442
      %1479 = vst [vmem:[#allocation3 + $0x38] sm:$0xff] %v1443
      %1480 = vst [vmem:[#allocation3 + $0x40] sm:$0xff] %v1444
      %1481 = vst [vmem:[#allocation3 + $0x48] sm:$0xff] %v1445
      %1482 = vst [vmem:[#allocation3 + $0x50] sm:$0xff] %v1446
      %1483 = vst [vmem:[#allocation3 + $0x58] sm:$0xff] %v1447
      %1484 = vst [vmem:[#allocation3 + $0x60] sm:$0xff] %v1448
      %1485 = vst [vmem:[#allocation3 + $0x68] sm:$0xff] %v1449
      %1486 = vst [vmem:[#allocation3 + $0x70] sm:$0xff] %v1450
      %1487 = vst [vmem:[#allocation3 + $0x78] sm:$0xff] %v1451
      %1488 = vst [vmem:[#allocation3 + $0x80] sm:$0xff] %v1452
      %1489 = vst [vmem:[#allocation3 + $0x88] sm:$0xff] %v1453
      %1490 = vst [vmem:[#allocation3 + $0x90] sm:$0xff] %v1454
      %1491 = vst [vmem:[#allocation3 + $0x98] sm:$0xff] %v1455
      %1492 = vst [vmem:[#allocation3 + $0xa0] sm:$0xff] %v1456
      %1493 = vst [vmem:[#allocation3 + $0xa8] sm:$0xff] %v1457
      %1494 = vst [vmem:[#allocation3 + $0xb0] sm:$0xff] %v1458
      %1495 = vst [vmem:[#allocation3 + $0xb8] sm:$0xff] %v1459
      %1496 = vst [vmem:[#allocation3 + $0xc0] sm:$0xff] %v1460
      %1497 = vst [vmem:[#allocation3 + $0xc8] sm:$0xff] %v1461
      %1498 = vst [vmem:[#allocation3 + $0xd0] sm:$0xff] %v1462
      %1499 = vst [vmem:[#allocation3 + $0xd8] sm:$0xff] %v1463
      %1500 = vst [vmem:[#allocation3 + $0xe0] sm:$0xff] %v1464
      %1501 = vst [vmem:[#allocation3 + $0xe8] sm:$0xff] %v1465
      %1502 = vst [vmem:[#allocation3 + $0xf0] sm:$0xff] %v1466
      %1503 = vst [vmem:[#allocation3 + $0xf8] sm:$0xff] %v1467
      %1504 = vst [vmem:[#allocation3 + $0x100] sm:$0xff] %v1468
      %1505 = vst [vmem:[#allocation3 + $0x108] sm:$0xff] %v1469
      %1506 = vst [vmem:[#allocation3 + $0x110] sm:$0xff] %v1470
      %1507 = vst [vmem:[#allocation3 + $0x118] sm:$0xff] %v1471
      %s1508 = scalar_lea.vmem %s1, 384
      %v1509 = vld [vmem:[%s1508] sm:$0xf]
      %v1510 = vld [vmem:[%s1508 + $0x4] sm:$0xf]
      %v1511 = vld [vmem:[%s1508 + $0x8] sm:$0xf]
      %v1512 = vld [vmem:[%s1508 + $0xc] sm:$0xf]
      %v1513 = vld [vmem:[%s1508 + $0x10] sm:$0xf]
      %v1514 = vld [vmem:[%s1508 + $0x14] sm:$0xf]
      %v1515 = vld [vmem:[%s1508 + $0x18] sm:$0xf]
      %v1516 = vld [vmem:[%s1508 + $0x1c] sm:$0xf]
      %v1517 = vld [vmem:[%s1508 + $0x20] sm:$0xf]
      %v1518 = vld [vmem:[%s1508 + $0x24] sm:$0xf]
      %v1519 = vld [vmem:[%s1508 + $0x28] sm:$0xf]
      %v1520 = vld [vmem:[%s1508 + $0x2c] sm:$0xf]
      %v1521 = vld [vmem:[%s1508 + $0x30] sm:$0xf]
      %v1522 = vld [vmem:[%s1508 + $0x34] sm:$0xf]
      %v1523 = vld [vmem:[%s1508 + $0x38] sm:$0xf]
      %v1524 = vld [vmem:[%s1508 + $0x3c] sm:$0xf]
      %v1525 = vunpack.c.l.b16 %v794
      %v1526 = vunpack.c.l.b16 %v804
      %v1527 = vpack.c.b16 %v1526, %v1525
      %v1545 = vunpack.c.l.b16 %v1509
      %v1546 = vunpack.c.l.b16 %v1510
      %v1547 = vunpack.c.l.b16 %v1511
      %v1548 = vunpack.c.l.b16 %v1512
      %v1549 = vunpack.c.l.b16 %v1513
      %v1550 = vunpack.c.l.b16 %v1514
      %v1551 = vunpack.c.l.b16 %v1515
      %v1552 = vunpack.c.l.b16 %v1516
      %v1553 = vunpack.c.l.b16 %v1517
      %v1554 = vunpack.c.l.b16 %v1518
      %v1555 = vunpack.c.l.b16 %v1519
      %v1556 = vunpack.c.l.b16 %v1520
      %v1557 = vunpack.c.l.b16 %v1521
      %v1558 = vunpack.c.l.b16 %v1522
      %v1559 = vunpack.c.l.b16 %v1523
      %v1560 = vunpack.c.l.b16 %v1524
      %v1561 = vpack.c.b16 %v1546, %v1545
      %v1562 = vpack.c.b16 %v1548, %v1547
      %v1563 = vpack.c.b16 %v1550, %v1549
      %v1564 = vpack.c.b16 %v1552, %v1551
      %v1565 = vpack.c.b16 %v1554, %v1553
      %v1566 = vpack.c.b16 %v1556, %v1555
      %v1567 = vpack.c.b16 %v1558, %v1557
      %v1568 = vpack.c.b16 %v1560, %v1559
      %1577 = vmatprep.subr.bf16.mxu0 0
      %1578 = vmatpush1.bf16.msra.mxu0 %v1561
      %1579 = vmatprep.subr.bf16.mxu0 0
      %1580 = vmatpush1.bf16.msra.mxu0 %v1562
      %1581 = vmatprep.subr.bf16.mxu0 0
      %1582 = vmatpush1.bf16.msra.mxu0 %v1563
      %1583 = vmatprep.subr.bf16.mxu0 0
      %1584 = vmatpush1.bf16.msra.mxu0 %v1564
      %1585 = vmatprep.subr.bf16.mxu0 0
      %1586 = vmatpush1.bf16.msra.mxu0 %v1565
      %1587 = vmatprep.subr.bf16.mxu0 0
      %1588 = vmatpush1.bf16.msra.mxu0 %v1566
      %1589 = vmatprep.subr.bf16.mxu0 0
      %1590 = vmatpush1.bf16.msra.mxu0 %v1567
      %1591 = vmatprep.subr.bf16.mxu0 0
      %1592 = vmatpush1.bf16.msra.mxu0 %v1568
      %1593 = vmatprep.subr.bf16.mxu0 0
      %1594 = vmatpush1.bf16.msra.mxu0 0
      %1595 = vmatprep.subr.bf16.mxu0 0
      %1596 = vmatpush1.bf16.msra.mxu0 0
      %1597 = vmatprep.subr.bf16.mxu0 0
      %1598 = vmatpush1.bf16.msra.mxu0 0
      %1599 = vmatprep.subr.bf16.mxu0 0
      %1600 = vmatpush1.bf16.msra.mxu0 0
      %1601 = vmatprep.subr.bf16.mxu0 0
      %1602 = vmatpush1.bf16.msra.mxu0 0
      %1603 = vmatprep.subr.bf16.mxu0 0
      %1604 = vmatpush1.bf16.msra.mxu0 0
      %1605 = vmatprep.subr.bf16.mxu0 0
      %1606 = vmatpush1.bf16.msra.mxu0 0
      %1607 = vmatprep.subr.bf16.mxu0 0
      %1608 = vmatpush1.bf16.msra.mxu0 0
      %1609 = vmatprep.mubr.bf16.mxu0 0
      %1610 = vmatmul.mubr.bf16.gmra.mrb[0].mxu0 %v859
      %v1611 = vpop.f32.mrb[0].mxu0
      %v1612 = vadd.f32 0.0, %v1611
      %v1613 = vpop.f32.mrb[0].mxu0
      %v1614 = vpop.f32.mrb[0].mxu0
      %v1615 = vadd.f32 0.0, %v1614
      %v1616 = vpop.f32.mrb[0].mxu0
      %1617 = vmatprep.mubr.bf16.mxu0 0
      %1618 = vmatmul.mubr.bf16.gmra.mrb[0].mxu0 %v860
      %v1619 = vpop.f32.mrb[0].mxu0
      %v1620 = vadd.f32 0.0, %v1619
      %v1621 = vpop.f32.mrb[0].mxu0
      %v1622 = vpop.f32.mrb[0].mxu0
      %v1623 = vadd.f32 0.0, %v1622
      %v1624 = vpop.f32.mrb[0].mxu0
      %1625 = vmatprep.mubr.bf16.mxu0 0
      %1626 = vmatmul.mubr.bf16.gmra.mrb[0].mxu0 %v861
      %v1627 = vpop.f32.mrb[0].mxu0
      %v1628 = vadd.f32 0.0, %v1627
      %v1629 = vpop.f32.mrb[0].mxu0
      %v1630 = vpop.f32.mrb[0].mxu0
      %v1631 = vadd.f32 0.0, %v1630
      %v1632 = vpop.f32.mrb[0].mxu0
      %1633 = vmatprep.mubr.bf16.mxu0 0
      %1634 = vmatmul.mubr.bf16.gmra.mrb[0].mxu0 %v862
      %v1635 = vpop.f32.mrb[0].mxu0
      %v1636 = vadd.f32 0.0, %v1635
      %v1637 = vpop.f32.mrb[0].mxu0
      %v1638 = vpop.f32.mrb[0].mxu0
      %v1639 = vadd.f32 0.0, %v1638
      %v1640 = vpop.f32.mrb[0].mxu0
      %1641 = vmatprep.mubr.bf16.mxu0 0
      %1642 = vmatmul.mubr.bf16.gmra.mrb[0].mxu0 %v863
      %v1643 = vpop.f32.mrb[0].mxu0
      %v1644 = vadd.f32 0.0, %v1643
      %v1645 = vpop.f32.mrb[0].mxu0
      %v1646 = vpop.f32.mrb[0].mxu0
      %v1647 = vadd.f32 0.0, %v1646
      %v1648 = vpop.f32.mrb[0].mxu0
      %1649 = vmatprep.mubr.bf16.mxu0 0
      %1650 = vmatmul.mubr.bf16.gmra.mrb[0].mxu0 %v864
      %v1651 = vpop.f32.mrb[0].mxu0
      %v1652 = vadd.f32 0.0, %v1651
      %v1653 = vpop.f32.mrb[0].mxu0
      %v1654 = vpop.f32.mrb[0].mxu0
      %v1655 = vadd.f32 0.0, %v1654
      %v1656 = vpop.f32.mrb[0].mxu0
      %1657 = vmatprep.mubr.bf16.mxu0 0
      %1658 = vmatmul.mubr.bf16.gmra.mrb[0].mxu0 %v865
      %v1659 = vpop.f32.mrb[0].mxu0
      %v1660 = vadd.f32 0.0, %v1659
      %v1661 = vpop.f32.mrb[0].mxu0
      %v1662 = vpop.f32.mrb[0].mxu0
      %v1663 = vadd.f32 0.0, %v1662
      %v1664 = vpop.f32.mrb[0].mxu0
      %1665 = vmatprep.mubr.bf16.mxu0 0
      %1666 = vmatmul.mubr.bf16.gmra.mrb[0].mxu0 %v866
      %v1667 = vpop.f32.mrb[0].mxu0
      %v1668 = vadd.f32 0.0, %v1667
      %v1669 = vpop.f32.mrb[0].mxu0
      %v1670 = vpop.f32.mrb[0].mxu0
      %v1671 = vadd.f32 0.0, %v1670
      %v1672 = vpop.f32.mrb[0].mxu0
      %1673 = vmatprep.mubr.bf16.mxu0 0
      %1674 = vmatmul.mubr.bf16.gmra.mrb[0].mxu0 %v867
      %v1675 = vpop.f32.mrb[0].mxu0
      %v1676 = vadd.f32 0.0, %v1675
      %v1677 = vpop.f32.mrb[0].mxu0
      %v1678 = vpop.f32.mrb[0].mxu0
      %v1679 = vadd.f32 0.0, %v1678
      %v1680 = vpop.f32.mrb[0].mxu0
      %1681 = vmatprep.mubr.bf16.mxu0 0
      %1682 = vmatmul.mubr.bf16.gmra.mrb[0].mxu0 %v868
      %v1683 = vpop.f32.mrb[0].mxu0
      %v1684 = vadd.f32 0.0, %v1683
      %v1685 = vpop.f32.mrb[0].mxu0
      %v1686 = vpop.f32.mrb[0].mxu0
      %v1687 = vadd.f32 0.0, %v1686
      %v1688 = vpop.f32.mrb[0].mxu0
      %1689 = vmatprep.mubr.bf16.mxu0 0
      %1690 = vmatmul.mubr.bf16.gmra.mrb[0].mxu0 %v869
      %v1691 = vpop.f32.mrb[0].mxu0
      %v1692 = vadd.f32 0.0, %v1691
      %v1693 = vpop.f32.mrb[0].mxu0
      %v1694 = vpop.f32.mrb[0].mxu0
      %v1695 = vadd.f32 0.0, %v1694
      %v1696 = vpop.f32.mrb[0].mxu0
      %1697 = vmatprep.mubr.bf16.mxu0 0
      %1698 = vmatmul.mubr.bf16.gmra.mrb[0].mxu0 %v870
      %v1699 = vpop.f32.mrb[0].mxu0
      %v1700 = vadd.f32 0.0, %v1699
      %v1701 = vpop.f32.mrb[0].mxu0
      %v1702 = vpop.f32.mrb[0].mxu0
      %v1703 = vadd.f32 0.0, %v1702
      %v1704 = vpop.f32.mrb[0].mxu0
      %1705 = vmatprep.mubr.bf16.mxu0 0
      %1706 = vmatmul.mubr.bf16.gmra.mrb[0].mxu0 %v871
      %v1707 = vpop.f32.mrb[0].mxu0
      %v1708 = vadd.f32 0.0, %v1707
      %v1709 = vpop.f32.mrb[0].mxu0
      %v1710 = vpop.f32.mrb[0].mxu0
      %v1711 = vadd.f32 0.0, %v1710
      %v1712 = vpop.f32.mrb[0].mxu0
      %1713 = vmatprep.mubr.bf16.mxu0 0
      %1714 = vmatmul.mubr.bf16.gmra.mrb[0].mxu0 %v872
      %v1715 = vpop.f32.mrb[0].mxu0
      %v1716 = vadd.f32 0.0, %v1715
      %v1717 = vpop.f32.mrb[0].mxu0
      %v1718 = vpop.f32.mrb[0].mxu0
      %v1719 = vadd.f32 0.0, %v1718
      %v1720 = vpop.f32.mrb[0].mxu0
      %1721 = vmatprep.mubr.bf16.mxu0 0
      %1722 = vmatmul.mubr.bf16.gmra.mrb[0].mxu0 %v873
      %v1723 = vpop.f32.mrb[0].mxu0
      %v1724 = vadd.f32 0.0, %v1723
      %v1725 = vpop.f32.mrb[0].mxu0
      %v1726 = vpop.f32.mrb[0].mxu0
      %v1727 = vadd.f32 0.0, %v1726
      %v1728 = vpop.f32.mrb[0].mxu0
      %1729 = vmatprep.mubr.bf16.mxu0 0
      %1730 = vmatmul.mubr.bf16.gmra.mrb[0].mxu0 %v874
      %v1731 = vpop.f32.mrb[0].mxu0
      %v1732 = vadd.f32 0.0, %v1731
      %v1733 = vpop.f32.mrb[0].mxu0
      %v1734 = vpop.f32.mrb[0].mxu0
      %v1735 = vadd.f32 0.0, %v1734
      %v1736 = vpop.f32.mrb[0].mxu0
      %1737 = vmatprep.mubr.bf16.mxu0 0
      %1738 = vmatmul.mubr.bf16.gmra.mrb[0].mxu0 %v1173
      %v1739 = vpop.f32.mrb[0].mxu0
      %v1740 = vadd.f32 0.0, %v1739
      %v1741 = vpop.f32.mrb[0].mxu0
      %v1742 = vpop.f32.mrb[0].mxu0
      %v1743 = vadd.f32 0.0, %v1742
      %v1744 = vpop.f32.mrb[0].mxu0
      %1745 = vmatprep.mubr.bf16.mxu0 0
      %1746 = vmatmul.mubr.bf16.gmra.mrb[0].mxu0 %v1527
      %v1747 = vpop.f32.mrb[0].mxu0
      %v1748 = vadd.f32 0.0, %v1747
      %v1749 = vpop.f32.mrb[0].mxu0
      %v1750 = vpop.f32.mrb[0].mxu0
      %v1751 = vadd.f32 0.0, %v1750
      %v1752 = vpop.f32.mrb[0].mxu0
      %1753 = vdwg.mxu0
      %v1754 = vld [vmem:[#allocation3] sm:$0xff]
      %v1755 = vld [vmem:[#allocation3 + $0x8] sm:$0xff]
      %v1756 = vld [vmem:[#allocation3 + $0x10] sm:$0xff]
      %v1757 = vld [vmem:[#allocation3 + $0x18] sm:$0xff]
      %v1758 = vld [vmem:[#allocation3 + $0x20] sm:$0xff]
      %v1759 = vld [vmem:[#allocation3 + $0x28] sm:$0xff]
      %v1760 = vld [vmem:[#allocation3 + $0x30] sm:$0xff]
      %v1761 = vld [vmem:[#allocation3 + $0x38] sm:$0xff]
      %v1762 = vld [vmem:[#allocation3 + $0x40] sm:$0xff]
      %v1763 = vld [vmem:[#allocation3 + $0x48] sm:$0xff]
      %v1764 = vld [vmem:[#allocation3 + $0x50] sm:$0xff]
      %v1765 = vld [vmem:[#allocation3 + $0x58] sm:$0xff]
      %v1766 = vld [vmem:[#allocation3 + $0x60] sm:$0xff]
      %v1767 = vld [vmem:[#allocation3 + $0x68] sm:$0xff]
      %v1768 = vld [vmem:[#allocation3 + $0x70] sm:$0xff]
      %v1769 = vld [vmem:[#allocation3 + $0x78] sm:$0xff]
      %v1770 = vld [vmem:[#allocation3 + $0x80] sm:$0xff]
      %v1771 = vld [vmem:[#allocation3 + $0x88] sm:$0xff]
      %v1772 = vld [vmem:[#allocation3 + $0x90] sm:$0xff]
      %v1773 = vld [vmem:[#allocation3 + $0x98] sm:$0xff]
      %v1774 = vld [vmem:[#allocation3 + $0xa0] sm:$0xff]
      %v1775 = vld [vmem:[#allocation3 + $0xa8] sm:$0xff]
      %v1776 = vld [vmem:[#allocation3 + $0xb0] sm:$0xff]
      %v1777 = vld [vmem:[#allocation3 + $0xb8] sm:$0xff]
      %v1778 = vld [vmem:[#allocation3 + $0xc0] sm:$0xff]
      %v1779 = vld [vmem:[#allocation3 + $0xc8] sm:$0xff]
      %v1780 = vld [vmem:[#allocation3 + $0xd0] sm:$0xff]
      %v1781 = vld [vmem:[#allocation3 + $0xd8] sm:$0xff]
      %v1782 = vld [vmem:[#allocation3 + $0xe0] sm:$0xff]
      %v1783 = vld [vmem:[#allocation3 + $0xe8] sm:$0xff]
      %v1784 = vld [vmem:[#allocation3 + $0xf0] sm:$0xff]
      %v1785 = vld [vmem:[#allocation3 + $0xf8] sm:$0xff]
      %v1786 = vld [vmem:[#allocation3 + $0x100] sm:$0xff]
      %v1787 = vld [vmem:[#allocation3 + $0x108] sm:$0xff]
      %v1788 = vld [vmem:[#allocation3 + $0x110] sm:$0xff]
      %v1789 = vld [vmem:[#allocation3 + $0x118] sm:$0xff]
      %v1790 = vadd.f32 %v1754, %v1612
      %v1791 = vadd.f32 %v1755, %v1615
      %v1792 = vadd.f32 %v1756, %v1620
      %v1793 = vadd.f32 %v1757, %v1623
      %v1794 = vadd.f32 %v1758, %v1628
      %v1795 = vadd.f32 %v1759, %v1631
      %v1796 = vadd.f32 %v1760, %v1636
      %v1797 = vadd.f32 %v1761, %v1639
      %v1798 = vadd.f32 %v1762, %v1644
      %v1799 = vadd.f32 %v1763, %v1647
      %v1800 = vadd.f32 %v1764, %v1652
      %v1801 = vadd.f32 %v1765, %v1655
      %v1802 = vadd.f32 %v1766, %v1660
      %v1803 = vadd.f32 %v1767, %v1663
      %v1804 = vadd.f32 %v1768, %v1668
      %v1805 = vadd.f32 %v1769, %v1671
      %v1806 = vadd.f32 %v1770, %v1676
      %v1807 = vadd.f32 %v1771, %v1679
      %v1808 = vadd.f32 %v1772, %v1684
      %v1809 = vadd.f32 %v1773, %v1687
      %v1810 = vadd.f32 %v1774, %v1692
      %v1811 = vadd.f32 %v1775, %v1695
      %v1812 = vadd.f32 %v1776, %v1700
      %v1813 = vadd.f32 %v1777, %v1703
      %v1814 = vadd.f32 %v1778, %v1708
      %v1815 = vadd.f32 %v1779, %v1711
      %v1816 = vadd.f32 %v1780, %v1716
      %v1817 = vadd.f32 %v1781, %v1719
      %v1818 = vadd.f32 %v1782, %v1724
      %v1819 = vadd.f32 %v1783, %v1727
      %v1820 = vadd.f32 %v1784, %v1732
      %v1821 = vadd.f32 %v1785, %v1735
      %v1822 = vadd.f32 %v1786, %v1740
      %v1823 = vadd.f32 %v1787, %v1743
      %v1824 = vadd.f32 %v1788, %v1748
      %v1825 = vadd.f32 %v1789, %v1751
      %1826 = vst [vmem:[#allocation3] sm:$0xff] %v1790
      %1827 = vst [vmem:[#allocation3 + $0x8] sm:$0xff] %v1791
      %1828 = vst [vmem:[#allocation3 + $0x10] sm:$0xff] %v1792
      %1829 = vst [vmem:[#allocation3 + $0x18] sm:$0xff] %v1793
      %1830 = vst [vmem:[#allocation3 + $0x20] sm:$0xff] %v1794
      %1831 = vst [vmem:[#allocation3 + $0x28] sm:$0xff] %v1795
      %1832 = vst [vmem:[#allocation3 + $0x30] sm:$0xff] %v1796
      %1833 = vst [vmem:[#allocation3 + $0x38] sm:$0xff] %v1797
      %1834 = vst [vmem:[#allocation3 + $0x40] sm:$0xff] %v1798
      %1835 = vst [vmem:[#allocation3 + $0x48] sm:$0xff] %v1799
      %1836 = vst [vmem:[#allocation3 + $0x50] sm:$0xff] %v1800
      %1837 = vst [vmem:[#allocation3 + $0x58] sm:$0xff] %v1801
      %1838 = vst [vmem:[#allocation3 + $0x60] sm:$0xff] %v1802
      %1839 = vst [vmem:[#allocation3 + $0x68] sm:$0xff] %v1803
      %1840 = vst [vmem:[#allocation3 + $0x70] sm:$0xff] %v1804
      %1841 = vst [vmem:[#allocation3 + $0x78] sm:$0xff] %v1805
      %1842 = vst [vmem:[#allocation3 + $0x80] sm:$0xff] %v1806
      %1843 = vst [vmem:[#allocation3 + $0x88] sm:$0xff] %v1807
      %1844 = vst [vmem:[#allocation3 + $0x90] sm:$0xff] %v1808
      %1845 = vst [vmem:[#allocation3 + $0x98] sm:$0xff] %v1809
      %1846 = vst [vmem:[#allocation3 + $0xa0] sm:$0xff] %v1810
      %1847 = vst [vmem:[#allocation3 + $0xa8] sm:$0xff] %v1811
      %1848 = vst [vmem:[#allocation3 + $0xb0] sm:$0xff] %v1812
      %1849 = vst [vmem:[#allocation3 + $0xb8] sm:$0xff] %v1813
      %1850 = vst [vmem:[#allocation3 + $0xc0] sm:$0xff] %v1814
      %1851 = vst [vmem:[#allocation3 + $0xc8] sm:$0xff] %v1815
      %1852 = vst [vmem:[#allocation3 + $0xd0] sm:$0xff] %v1816
      %1853 = vst [vmem:[#allocation3 + $0xd8] sm:$0xff] %v1817
      %1854 = vst [vmem:[#allocation3 + $0xe0] sm:$0xff] %v1818
      %1855 = vst [vmem:[#allocation3 + $0xe8] sm:$0xff] %v1819
      %1856 = vst [vmem:[#allocation3 + $0xf0] sm:$0xff] %v1820
      %1857 = vst [vmem:[#allocation3 + $0xf8] sm:$0xff] %v1821
      %1858 = vst [vmem:[#allocation3 + $0x100] sm:$0xff] %v1822
      %1859 = vst [vmem:[#allocation3 + $0x108] sm:$0xff] %v1823
      %1860 = vst [vmem:[#allocation3 + $0x110] sm:$0xff] %v1824
      %1861 = vst [vmem:[#allocation3 + $0x118] sm:$0xff] %v1825
      %v1862 = vld [vmem:[%s251] sm:$0xe]
      %v1863 = vld [vmem:[%s251 + $0x4] sm:$0xf]
      %v1864 = vld [vmem:[%s251 + $0x8] sm:$0x1]
      %v1865 = vld [vmem:[%s251 + $0xc] sm:$0xe]
      %v1866 = vld [vmem:[%s251 + $0x10] sm:$0xf]
      %v1867 = vld [vmem:[%s251 + $0x14] sm:$0x1]
      %v1868 = vld [vmem:[%s251 + $0x18] sm:$0xe]
      %v1869 = vld [vmem:[%s251 + $0x1c] sm:$0xf]
      %v1870 = vld [vmem:[%s251 + $0x20] sm:$0x1]
      %v1871 = vld [vmem:[%s251 + $0x24] sm:$0xe]
      %v1872 = vld [vmem:[%s251 + $0x28] sm:$0xf]
      %v1873 = vld [vmem:[%s251 + $0x2c] sm:$0x1]
      %v1874 = vld [vmem:[%s251 + $0x30] sm:$0xe]
      %v1875 = vld [vmem:[%s251 + $0x34] sm:$0xf]
      %v1876 = vld [vmem:[%s251 + $0x38] sm:$0x1]
      %v1877 = vld [vmem:[%s251 + $0x3c] sm:$0xe]
      %v1878 = vld [vmem:[%s251 + $0x40] sm:$0xf]
      %v1879 = vld [vmem:[%s251 + $0x44] sm:$0x1]
      %v1880 = vld [vmem:[%s251 + $0x48] sm:$0xe]
      %v1881 = vld [vmem:[%s251 + $0x4c] sm:$0xf]
      %v1882 = vld [vmem:[%s251 + $0x50] sm:$0x1]
      %v1883 = vld [vmem:[%s251 + $0x54] sm:$0xe]
      %v1884 = vld [vmem:[%s251 + $0x58] sm:$0xf]
      %v1885 = vld [vmem:[%s251 + $0x5c] sm:$0x1]
      %v1886 = vld [vmem:[%s251 + $0x60] sm:$0xe]
      %v1887 = vld [vmem:[%s251 + $0x64] sm:$0xf]
      %v1888 = vld [vmem:[%s251 + $0x68] sm:$0x1]
      %v1889 = vld [vmem:[%s251 + $0x6c] sm:$0xe]
      %v1890 = vld [vmem:[%s251 + $0x70] sm:$0xf]
      %v1891 = vld [vmem:[%s251 + $0x74] sm:$0x1]
      %v1892 = vld [vmem:[%s251 + $0x78] sm:$0xe]
      %v1893 = vld [vmem:[%s251 + $0x7c] sm:$0xf]
      %v1894 = vld [vmem:[%s251 + $0x80] sm:$0x1]
      %v1895 = vld [vmem:[%s251 + $0x84] sm:$0xe]
      %v1896 = vld [vmem:[%s251 + $0x88] sm:$0xf]
      %v1897 = vld [vmem:[%s251 + $0x8c] sm:$0x1]
      %v1898 = vld [vmem:[%s251 + $0x90] sm:$0xe]
      %v1899 = vld [vmem:[%s251 + $0x94] sm:$0xf]
      %v1900 = vld [vmem:[%s251 + $0x98] sm:$0x1]
      %v1901 = vld [vmem:[%s251 + $0x9c] sm:$0xe]
      %v1902 = vld [vmem:[%s251 + $0xa0] sm:$0xf]
      %v1903 = vld [vmem:[%s251 + $0xa4] sm:$0x1]
      %v1904 = vld [vmem:[%s251 + $0xa8] sm:$0xe]
      %v1905 = vld [vmem:[%s251 + $0xac] sm:$0xf]
      %v1906 = vld [vmem:[%s251 + $0xb0] sm:$0x1]
      %v1907 = vld [vmem:[%s251 + $0xb4] sm:$0xe]
      %v1908 = vld [vmem:[%s251 + $0xb8] sm:$0xf]
      %v1909 = vld [vmem:[%s251 + $0xbc] sm:$0x1]
      %v1910 = vld [vmem:[%s251 + $0xc0] sm:$0xe]
      %v1911 = vld [vmem:[%s251 + $0xc4] sm:$0xf]
      %v1912 = vld [vmem:[%s251 + $0xc8] sm:$0x1]
      %v1913 = vld [vmem:[%s251 + $0xcc] sm:$0xe]
      %v1914 = vld [vmem:[%s251 + $0xd0] sm:$0xf]
      %v1915 = vld [vmem:[%s251 + $0xd4] sm:$0x1]
      %v1916 = vld [vmem:[%s251 + $0xd8] sm:$0xe]
      %v1917 = vld [vmem:[%s251 + $0xdc] sm:$0xf]
      %v1918 = vld [vmem:[%s251 + $0xe0] sm:$0x1]
      %v1919 = vld [vmem:[%s251 + $0xe4] sm:$0xe]
      %v1920 = vld [vmem:[%s251 + $0xe8] sm:$0xf]
      %v1921 = vld [vmem:[%s251 + $0xec] sm:$0x1]
      %vm1982 = vcmask 1042432
      %vm1983 = vcmask 1046532
      %vm1984 = vmor %vm1982, %vm1983
      %v1985 = vrot.slane %v1862, 5
      %v1986 = vrot.slane %v1985, 4
      %v1987 = vrot.slane %v1863, 5
      %v1988 = vsel %vm1984, %v1986, %v1987
      %v1989 = vrot.slane %v1987, 4
      %v1990 = vrot.slane %v1864, 5
      %v1991 = vsel %vm1984, %v1989, %v1990
      %v1992 = vrot.slane %v1865, 5
      %v1993 = vrot.slane %v1992, 4
      %v1994 = vrot.slane %v1866, 5
      %v1995 = vsel %vm1984, %v1993, %v1994
      %v1996 = vrot.slane %v1994, 4
      %v1997 = vrot.slane %v1867, 5
      %v1998 = vsel %vm1984, %v1996, %v1997
      %v1999 = vrot.slane %v1868, 5
      %v2000 = vrot.slane %v1999, 4
      %v2001 = vrot.slane %v1869, 5
      %v2002 = vsel %vm1984, %v2000, %v2001
      %v2003 = vrot.slane %v2001, 4
      %v2004 = vrot.slane %v1870, 5
      %v2005 = vsel %vm1984, %v2003, %v2004
      %v2006 = vrot.slane %v1871, 5
      %v2007 = vrot.slane %v2006, 4
      %v2008 = vrot.slane %v1872, 5
      %v2009 = vsel %vm1984, %v2007, %v2008
      %v2010 = vrot.slane %v2008, 4
      %v2011 = vrot.slane %v1873, 5
      %v2012 = vsel %vm1984, %v2010, %v2011
      %v2013 = vrot.slane %v1874, 5
      %v2014 = vrot.slane %v2013, 4
      %v2015 = vrot.slane %v1875, 5
      %v2016 = vsel %vm1984, %v2014, %v2015
      %v2017 = vrot.slane %v2015, 4
      %v2018 = vrot.slane %v1876, 5
      %v2019 = vsel %vm1984, %v2017, %v2018
      %v2020 = vrot.slane %v1877, 5
      %v2021 = vrot.slane %v2020, 4
      %v2022 = vrot.slane %v1878, 5
      %v2023 = vsel %vm1984, %v2021, %v2022
      %v2024 = vrot.slane %v2022, 4
      %v2025 = vrot.slane %v1879, 5
      %v2026 = vsel %vm1984, %v2024, %v2025
      %v2027 = vrot.slane %v1880, 5
      %v2028 = vrot.slane %v2027, 4
      %v2029 = vrot.slane %v1881, 5
      %v2030 = vsel %vm1984, %v2028, %v2029
      %v2031 = vrot.slane %v2029, 4
      %v2032 = vrot.slane %v1882, 5
      %v2033 = vsel %vm1984, %v2031, %v2032
      %v2034 = vrot.slane %v1883, 5
      %v2035 = vrot.slane %v2034, 4
      %v2036 = vrot.slane %v1884, 5
      %v2037 = vsel %vm1984, %v2035, %v2036
      %v2038 = vrot.slane %v2036, 4
      %v2039 = vrot.slane %v1885, 5
      %v2040 = vsel %vm1984, %v2038, %v2039
      %v2041 = vrot.slane %v1886, 5
      %v2042 = vrot.slane %v2041, 4
      %v2043 = vrot.slane %v1887, 5
      %v2044 = vsel %vm1984, %v2042, %v2043
      %v2045 = vrot.slane %v2043, 4
      %v2046 = vrot.slane %v1888, 5
      %v2047 = vsel %vm1984, %v2045, %v2046
      %v2048 = vrot.slane %v1889, 5
      %v2049 = vrot.slane %v2048, 4
      %v2050 = vrot.slane %v1890, 5
      %v2051 = vsel %vm1984, %v2049, %v2050
      %v2052 = vrot.slane %v2050, 4
      %v2053 = vrot.slane %v1891, 5
      %v2054 = vsel %vm1984, %v2052, %v2053
      %v2055 = vrot.slane %v1892, 5
      %v2056 = vrot.slane %v2055, 4
      %v2057 = vrot.slane %v1893, 5
      %v2058 = vsel %vm1984, %v2056, %v2057
      %v2059 = vrot.slane %v2057, 4
      %v2060 = vrot.slane %v1894, 5
      %v2061 = vsel %vm1984, %v2059, %v2060
      %v2062 = vrot.slane %v1895, 5
      %v2063 = vrot.slane %v2062, 4
      %v2064 = vrot.slane %v1896, 5
      %v2065 = vsel %vm1984, %v2063, %v2064
      %v2066 = vrot.slane %v2064, 4
      %v2067 = vrot.slane %v1897, 5
      %v2068 = vsel %vm1984, %v2066, %v2067
      %v2069 = vrot.slane %v1898, 5
      %v2070 = vrot.slane %v2069, 4
      %v2071 = vrot.slane %v1899, 5
      %v2072 = vsel %vm1984, %v2070, %v2071
      %v2073 = vrot.slane %v2071, 4
      %v2074 = vrot.slane %v1900, 5
      %v2075 = vsel %vm1984, %v2073, %v2074
      %v2076 = vrot.slane %v1901, 5
      %v2077 = vrot.slane %v2076, 4
      %v2078 = vrot.slane %v1902, 5
      %v2079 = vsel %vm1984, %v2077, %v2078
      %v2080 = vrot.slane %v2078, 4
      %v2081 = vrot.slane %v1903, 5
      %v2082 = vsel %vm1984, %v2080, %v2081
      %v2083 = vrot.slane %v1904, 5
      %v2084 = vrot.slane %v2083, 4
      %v2085 = vrot.slane %v1905, 5
      %v2086 = vsel %vm1984, %v2084, %v2085
      %v2087 = vrot.slane %v2085, 4
      %v2088 = vrot.slane %v1906, 5
      %v2089 = vsel %vm1984, %v2087, %v2088
      %v2090 = vrot.slane %v1907, 5
      %v2091 = vrot.slane %v2090, 4
      %v2092 = vrot.slane %v1908, 5
      %v2093 = vsel %vm1984, %v2091, %v2092
      %v2094 = vrot.slane %v2092, 4
      %v2095 = vrot.slane %v1909, 5
      %v2096 = vsel %vm1984, %v2094, %v2095
      %v2097 = vrot.slane %v1910, 5
      %v2098 = vrot.slane %v2097, 4
      %v2099 = vrot.slane %v1911, 5
      %v2100 = vsel %vm1984, %v2098, %v2099
      %v2101 = vrot.slane %v2099, 4
      %v2102 = vrot.slane %v1912, 5
      %v2103 = vsel %vm1984, %v2101, %v2102
      %v2104 = vrot.slane %v1913, 5
      %v2105 = vrot.slane %v2104, 4
      %v2106 = vrot.slane %v1914, 5
      %v2107 = vsel %vm1984, %v2105, %v2106
      %v2108 = vrot.slane %v2106, 4
      %v2109 = vrot.slane %v1915, 5
      %v2110 = vsel %vm1984, %v2108, %v2109
      %v2111 = vrot.slane %v1916, 5
      %v2112 = vrot.slane %v2111, 4
      %v2113 = vrot.slane %v1917, 5
      %v2114 = vsel %vm1984, %v2112, %v2113
      %v2115 = vrot.slane %v2113, 4
      %v2116 = vrot.slane %v1918, 5
      %v2117 = vsel %vm1984, %v2115, %v2116
      %v2118 = vrot.slane %v1919, 5
      %v2119 = vrot.slane %v2118, 4
      %v2120 = vrot.slane %v1920, 5
      %v2121 = vsel %vm1984, %v2119, %v2120
      %v2122 = vrot.slane %v2120, 4
      %v2123 = vrot.slane %v1921, 5
      %v2124 = vsel %vm1984, %v2122, %v2123
      %s2125 = scalar_lea.vmem %s1, 64
      %v2126 = vld [vmem:[%s2125] sm:$0xf]
      %v2127 = vld [vmem:[%s2125 + $0x4] sm:$0xf]
      %v2128 = vld [vmem:[%s2125 + $0x8] sm:$0xf]
      %v2129 = vld [vmem:[%s2125 + $0xc] sm:$0xf]
      %v2130 = vld [vmem:[%s2125 + $0x10] sm:$0xf]
      %v2131 = vld [vmem:[%s2125 + $0x14] sm:$0xf]
      %v2132 = vld [vmem:[%s2125 + $0x18] sm:$0xf]
      %v2133 = vld [vmem:[%s2125 + $0x1c] sm:$0xf]
      %v2134 = vld [vmem:[%s2125 + $0x20] sm:$0xf]
      %v2135 = vld [vmem:[%s2125 + $0x24] sm:$0xf]
      %v2136 = vld [vmem:[%s2125 + $0x28] sm:$0xf]
      %v2137 = vld [vmem:[%s2125 + $0x2c] sm:$0xf]
      %v2138 = vld [vmem:[%s2125 + $0x30] sm:$0xf]
      %v2139 = vld [vmem:[%s2125 + $0x34] sm:$0xf]
      %v2140 = vld [vmem:[%s2125 + $0x38] sm:$0xf]
      %v2141 = vld [vmem:[%s2125 + $0x3c] sm:$0xf]
      %v2142 = vunpack.c.l.b16 %v1988
      %v2143 = vunpack.c.l.b16 %v1991
      %v2144 = vunpack.c.l.b16 %v1995
      %v2145 = vunpack.c.l.b16 %v1998
      %v2146 = vunpack.c.l.b16 %v2002
      %v2147 = vunpack.c.l.b16 %v2005
      %v2148 = vunpack.c.l.b16 %v2009
      %v2149 = vunpack.c.l.b16 %v2012
      %v2150 = vunpack.c.l.b16 %v2016
      %v2151 = vunpack.c.l.b16 %v2019
      %v2152 = vunpack.c.l.b16 %v2023
      %v2153 = vunpack.c.l.b16 %v2026
      %v2154 = vunpack.c.l.b16 %v2030
      %v2155 = vunpack.c.l.b16 %v2033
      %v2156 = vunpack.c.l.b16 %v2037
      %v2157 = vunpack.c.l.b16 %v2040
      %v2158 = vunpack.c.l.b16 %v2044
      %v2159 = vunpack.c.l.b16 %v2047
      %v2160 = vunpack.c.l.b16 %v2051
      %v2161 = vunpack.c.l.b16 %v2054
      %v2162 = vunpack.c.l.b16 %v2058
      %v2163 = vunpack.c.l.b16 %v2061
      %v2164 = vunpack.c.l.b16 %v2065
      %v2165 = vunpack.c.l.b16 %v2068
      %v2166 = vunpack.c.l.b16 %v2072
      %v2167 = vunpack.c.l.b16 %v2075
      %v2168 = vunpack.c.l.b16 %v2079
      %v2169 = vunpack.c.l.b16 %v2082
      %v2170 = vunpack.c.l.b16 %v2086
      %v2171 = vunpack.c.l.b16 %v2089
      %v2172 = vunpack.c.l.b16 %v2093
      %v2173 = vunpack.c.l.b16 %v2096
      %v2174 = vunpack.c.l.b16 %v2100
      %v2175 = vunpack.c.l.b16 %v2103
      %v2176 = vunpack.c.l.b16 %v2107
      %v2177 = vunpack.c.l.b16 %v2110
      %v2178 = vpack.c.b16 %v2143, %v2142
      %v2179 = vpack.c.b16 %v2145, %v2144
      %v2180 = vpack.c.b16 %v2147, %v2146
      %v2181 = vpack.c.b16 %v2149, %v2148
      %v2182 = vpack.c.b16 %v2151, %v2150
      %v2183 = vpack.c.b16 %v2153, %v2152
      %v2184 = vpack.c.b16 %v2155, %v2154
      %v2185 = vpack.c.b16 %v2157, %v2156
      %v2186 = vpack.c.b16 %v2159, %v2158
      %v2187 = vpack.c.b16 %v2161, %v2160
      %v2188 = vpack.c.b16 %v2163, %v2162
      %v2189 = vpack.c.b16 %v2165, %v2164
      %v2190 = vpack.c.b16 %v2167, %v2166
      %v2191 = vpack.c.b16 %v2169, %v2168
      %v2192 = vpack.c.b16 %v2171, %v2170
      %v2193 = vpack.c.b16 %v2173, %v2172
      %v2194 = vpack.c.b16 %v2175, %v2174
      %v2195 = vpack.c.b16 %v2177, %v2176
      %v2230 = vunpack.c.l.b16 %v2126
      %v2231 = vunpack.c.l.b16 %v2127
      %v2232 = vunpack.c.l.b16 %v2128
      %v2233 = vunpack.c.l.b16 %v2129
      %v2234 = vunpack.c.l.b16 %v2130
      %v2235 = vunpack.c.l.b16 %v2131
      %v2236 = vunpack.c.l.b16 %v2132
      %v2237 = vunpack.c.l.b16 %v2133
      %v2238 = vunpack.c.l.b16 %v2134
      %v2239 = vunpack.c.l.b16 %v2135
      %v2240 = vunpack.c.l.b16 %v2136
      %v2241 = vunpack.c.l.b16 %v2137
      %v2242 = vunpack.c.l.b16 %v2138
      %v2243 = vunpack.c.l.b16 %v2139
      %v2244 = vunpack.c.l.b16 %v2140
      %v2245 = vunpack.c.l.b16 %v2141
      %v2246 = vpack.c.b16 %v2231, %v2230
      %v2247 = vpack.c.b16 %v2233, %v2232
      %v2248 = vpack.c.b16 %v2235, %v2234
      %v2249 = vpack.c.b16 %v2237, %v2236
      %v2250 = vpack.c.b16 %v2239, %v2238
      %v2251 = vpack.c.b16 %v2241, %v2240
      %v2252 = vpack.c.b16 %v2243, %v2242
      %v2253 = vpack.c.b16 %v2245, %v2244
      %2262 = vmatprep.subr.bf16.mxu0 0
      %2263 = vmatpush1.bf16.msra.mxu0 %v2246
      %2264 = vmatprep.subr.bf16.mxu0 0
      %2265 = vmatpush1.bf16.msra.mxu0 %v2247
      %2266 = vmatprep.subr.bf16.mxu0 0
      %2267 = vmatpush1.bf16.msra.mxu0 %v2248
      %2268 = vmatprep.subr.bf16.mxu0 0
      %2269 = vmatpush1.bf16.msra.mxu0 %v2249
      %2270 = vmatprep.subr.bf16.mxu0 0
      %2271 = vmatpush1.bf16.msra.mxu0 %v2250
      %2272 = vmatprep.subr.bf16.mxu0 0
      %2273 = vmatpush1.bf16.msra.mxu0 %v2251
      %2274 = vmatprep.subr.bf16.mxu0 0
      %2275 = vmatpush1.bf16.msra.mxu0 %v2252
      %2276 = vmatprep.subr.bf16.mxu0 0
      %2277 = vmatpush1.bf16.msra.mxu0 %v2253
      %2278 = vmatprep.subr.bf16.mxu0 0
      %2279 = vmatpush1.bf16.msra.mxu0 0
      %2280 = vmatprep.subr.bf16.mxu0 0
      %2281 = vmatpush1.bf16.msra.mxu0 0
      %2282 = vmatprep.subr.bf16.mxu0 0
      %2283 = vmatpush1.bf16.msra.mxu0 0
      %2284 = vmatprep.subr.bf16.mxu0 0
      %2285 = vmatpush1.bf16.msra.mxu0 0
      %2286 = vmatprep.subr.bf16.mxu0 0
      %2287 = vmatpush1.bf16.msra.mxu0 0
      %2288 = vmatprep.subr.bf16.mxu0 0
      %2289 = vmatpush1.bf16.msra.mxu0 0
      %2290 = vmatprep.subr.bf16.mxu0 0
      %2291 = vmatpush1.bf16.msra.mxu0 0
      %2292 = vmatprep.subr.bf16.mxu0 0
      %2293 = vmatpush1.bf16.msra.mxu0 0
      %2294 = vmatprep.mubr.bf16.mxu0 0
      %2295 = vmatmul.mubr.bf16.gmra.mrb[0].mxu0 %v2178
      %v2296 = vpop.f32.mrb[0].mxu0
      %v2297 = vadd.f32 0.0, %v2296
      %v2298 = vpop.f32.mrb[0].mxu0
      %v2299 = vpop.f32.mrb[0].mxu0
      %v2300 = vadd.f32 0.0, %v2299
      %v2301 = vpop.f32.mrb[0].mxu0
      %2302 = vmatprep.mubr.bf16.mxu0 0
      %2303 = vmatmul.mubr.bf16.gmra.mrb[0].mxu0 %v2179
      %v2304 = vpop.f32.mrb[0].mxu0
      %v2305 = vadd.f32 0.0, %v2304
      %v2306 = vpop.f32.mrb[0].mxu0
      %v2307 = vpop.f32.mrb[0].mxu0
      %v2308 = vadd.f32 0.0, %v2307
      %v2309 = vpop.f32.mrb[0].mxu0
      %2310 = vmatprep.mubr.bf16.mxu0 0
      %2311 = vmatmul.mubr.bf16.gmra.mrb[0].mxu0 %v2180
      %v2312 = vpop.f32.mrb[0].mxu0
      %v2313 = vadd.f32 0.0, %v2312
      %v2314 = vpop.f32.mrb[0].mxu0
      %v2315 = vpop.f32.mrb[0].mxu0
      %v2316 = vadd.f32 0.0, %v2315
      %v2317 = vpop.f32.mrb[0].mxu0
      %2318 = vmatprep.mubr.bf16.mxu0 0
      %2319 = vmatmul.mubr.bf16.gmra.mrb[0].mxu0 %v2181
      %v2320 = vpop.f32.mrb[0].mxu0
      %v2321 = vadd.f32 0.0, %v2320
      %v2322 = vpop.f32.mrb[0].mxu0
      %v2323 = vpop.f32.mrb[0].mxu0
      %v2324 = vadd.f32 0.0, %v2323
      %v2325 = vpop.f32.mrb[0].mxu0
      %2326 = vmatprep.mubr.bf16.mxu0 0
      %2327 = vmatmul.mubr.bf16.gmra.mrb[0].mxu0 %v2182
      %v2328 = vpop.f32.mrb[0].mxu0
      %v2329 = vadd.f32 0.0, %v2328
      %v2330 = vpop.f32.mrb[0].mxu0
      %v2331 = vpop.f32.mrb[0].mxu0
      %v2332 = vadd.f32 0.0, %v2331
      %v2333 = vpop.f32.mrb[0].mxu0
      %2334 = vmatprep.mubr.bf16.mxu0 0
      %2335 = vmatmul.mubr.bf16.gmra.mrb[0].mxu0 %v2183
      %v2336 = vpop.f32.mrb[0].mxu0
      %v2337 = vadd.f32 0.0, %v2336
      %v2338 = vpop.f32.mrb[0].mxu0
      %v2339 = vpop.f32.mrb[0].mxu0
      %v2340 = vadd.f32 0.0, %v2339
      %v2341 = vpop.f32.mrb[0].mxu0
      %2342 = vmatprep.mubr.bf16.mxu0 0
      %2343 = vmatmul.mubr.bf16.gmra.mrb[0].mxu0 %v2184
      %v2344 = vpop.f32.mrb[0].mxu0
      %v2345 = vadd.f32 0.0, %v2344
      %v2346 = vpop.f32.mrb[0].mxu0
      %v2347 = vpop.f32.mrb[0].mxu0
      %v2348 = vadd.f32 0.0, %v2347
      %v2349 = vpop.f32.mrb[0].mxu0
      %2350 = vmatprep.mubr.bf16.mxu0 0
      %2351 = vmatmul.mubr.bf16.gmra.mrb[0].mxu0 %v2185
      %v2352 = vpop.f32.mrb[0].mxu0
      %v2353 = vadd.f32 0.0, %v2352
      %v2354 = vpop.f32.mrb[0].mxu0
      %v2355 = vpop.f32.mrb[0].mxu0
      %v2356 = vadd.f32 0.0, %v2355
      %v2357 = vpop.f32.mrb[0].mxu0
      %2358 = vmatprep.mubr.bf16.mxu0 0
      %2359 = vmatmul.mubr.bf16.gmra.mrb[0].mxu0 %v2186
      %v2360 = vpop.f32.mrb[0].mxu0
      %v2361 = vadd.f32 0.0, %v2360
      %v2362 = vpop.f32.mrb[0].mxu0
      %v2363 = vpop.f32.mrb[0].mxu0
      %v2364 = vadd.f32 0.0, %v2363
      %v2365 = vpop.f32.mrb[0].mxu0
      %2366 = vmatprep.mubr.bf16.mxu0 0
      %2367 = vmatmul.mubr.bf16.gmra.mrb[0].mxu0 %v2187
      %v2368 = vpop.f32.mrb[0].mxu0
      %v2369 = vadd.f32 0.0, %v2368
      %v2370 = vpop.f32.mrb[0].mxu0
      %v2371 = vpop.f32.mrb[0].mxu0
      %v2372 = vadd.f32 0.0, %v2371
      %v2373 = vpop.f32.mrb[0].mxu0
      %2374 = vmatprep.mubr.bf16.mxu0 0
      %2375 = vmatmul.mubr.bf16.gmra.mrb[0].mxu0 %v2188
      %v2376 = vpop.f32.mrb[0].mxu0
      %v2377 = vadd.f32 0.0, %v2376
      %v2378 = vpop.f32.mrb[0].mxu0
      %v2379 = vpop.f32.mrb[0].mxu0
      %v2380 = vadd.f32 0.0, %v2379
      %v2381 = vpop.f32.mrb[0].mxu0
      %2382 = vmatprep.mubr.bf16.mxu0 0
      %2383 = vmatmul.mubr.bf16.gmra.mrb[0].mxu0 %v2189
      %v2384 = vpop.f32.mrb[0].mxu0
      %v2385 = vadd.f32 0.0, %v2384
      %v2386 = vpop.f32.mrb[0].mxu0
      %v2387 = vpop.f32.mrb[0].mxu0
      %v2388 = vadd.f32 0.0, %v2387
      %v2389 = vpop.f32.mrb[0].mxu0
      %2390 = vmatprep.mubr.bf16.mxu0 0
      %2391 = vmatmul.mubr.bf16.gmra.mrb[0].mxu0 %v2190
      %v2392 = vpop.f32.mrb[0].mxu0
      %v2393 = vadd.f32 0.0, %v2392
      %v2394 = vpop.f32.mrb[0].mxu0
      %v2395 = vpop.f32.mrb[0].mxu0
      %v2396 = vadd.f32 0.0, %v2395
      %v2397 = vpop.f32.mrb[0].mxu0
      %2398 = vmatprep.mubr.bf16.mxu0 0
      %2399 = vmatmul.mubr.bf16.gmra.mrb[0].mxu0 %v2191
      %v2400 = vpop.f32.mrb[0].mxu0
      %v2401 = vadd.f32 0.0, %v2400
      %v2402 = vpop.f32.mrb[0].mxu0
      %v2403 = vpop.f32.mrb[0].mxu0
      %v2404 = vadd.f32 0.0, %v2403
      %v2405 = vpop.f32.mrb[0].mxu0
      %2406 = vmatprep.mubr.bf16.mxu0 0
      %2407 = vmatmul.mubr.bf16.gmra.mrb[0].mxu0 %v2192
      %v2408 = vpop.f32.mrb[0].mxu0
      %v2409 = vadd.f32 0.0, %v2408
      %v2410 = vpop.f32.mrb[0].mxu0
      %v2411 = vpop.f32.mrb[0].mxu0
      %v2412 = vadd.f32 0.0, %v2411
      %v2413 = vpop.f32.mrb[0].mxu0
      %2414 = vmatprep.mubr.bf16.mxu0 0
      %2415 = vmatmul.mubr.bf16.gmra.mrb[0].mxu0 %v2193
      %v2416 = vpop.f32.mrb[0].mxu0
      %v2417 = vadd.f32 0.0, %v2416
      %v2418 = vpop.f32.mrb[0].mxu0
      %v2419 = vpop.f32.mrb[0].mxu0
      %v2420 = vadd.f32 0.0, %v2419
      %v2421 = vpop.f32.mrb[0].mxu0
      %2422 = vmatprep.mubr.bf16.mxu0 0
      %2423 = vmatmul.mubr.bf16.gmra.mrb[0].mxu0 %v2194
      %v2424 = vpop.f32.mrb[0].mxu0
      %v2425 = vadd.f32 0.0, %v2424
      %v2426 = vpop.f32.mrb[0].mxu0
      %v2427 = vpop.f32.mrb[0].mxu0
      %v2428 = vadd.f32 0.0, %v2427
      %v2429 = vpop.f32.mrb[0].mxu0
      %2430 = vmatprep.mubr.bf16.mxu0 0
      %2431 = vmatmul.mubr.bf16.gmra.mrb[0].mxu0 %v2195
      %v2432 = vpop.f32.mrb[0].mxu0
      %v2433 = vadd.f32 0.0, %v2432
      %v2434 = vpop.f32.mrb[0].mxu0
      %v2435 = vpop.f32.mrb[0].mxu0
      %v2436 = vadd.f32 0.0, %v2435
      %v2437 = vpop.f32.mrb[0].mxu0
      %2438 = vdwg.mxu0
      %v2439 = vld [vmem:[#allocation3] sm:$0xff]
      %v2440 = vld [vmem:[#allocation3 + $0x8] sm:$0xff]
      %v2441 = vld [vmem:[#allocation3 + $0x10] sm:$0xff]
      %v2442 = vld [vmem:[#allocation3 + $0x18] sm:$0xff]
      %v2443 = vld [vmem:[#allocation3 + $0x20] sm:$0xff]
      %v2444 = vld [vmem:[#allocation3 + $0x28] sm:$0xff]
      %v2445 = vld [vmem:[#allocation3 + $0x30] sm:$0xff]
      %v2446 = vld [vmem:[#allocation3 + $0x38] sm:$0xff]
      %v2447 = vld [vmem:[#allocation3 + $0x40] sm:$0xff]
      %v2448 = vld [vmem:[#allocation3 + $0x48] sm:$0xff]
      %v2449 = vld [vmem:[#allocation3 + $0x50] sm:$0xff]
      %v2450 = vld [vmem:[#allocation3 + $0x58] sm:$0xff]
      %v2451 = vld [vmem:[#allocation3 + $0x60] sm:$0xff]
      %v2452 = vld [vmem:[#allocation3 + $0x68] sm:$0xff]
      %v2453 = vld [vmem:[#allocation3 + $0x70] sm:$0xff]
      %v2454 = vld [vmem:[#allocation3 + $0x78] sm:$0xff]
      %v2455 = vld [vmem:[#allocation3 + $0x80] sm:$0xff]
      %v2456 = vld [vmem:[#allocation3 + $0x88] sm:$0xff]
      %v2457 = vld [vmem:[#allocation3 + $0x90] sm:$0xff]
      %v2458 = vld [vmem:[#allocation3 + $0x98] sm:$0xff]
      %v2459 = vld [vmem:[#allocation3 + $0xa0] sm:$0xff]
      %v2460 = vld [vmem:[#allocation3 + $0xa8] sm:$0xff]
      %v2461 = vld [vmem:[#allocation3 + $0xb0] sm:$0xff]
      %v2462 = vld [vmem:[#allocation3 + $0xb8] sm:$0xff]
      %v2463 = vld [vmem:[#allocation3 + $0xc0] sm:$0xff]
      %v2464 = vld [vmem:[#allocation3 + $0xc8] sm:$0xff]
      %v2465 = vld [vmem:[#allocation3 + $0xd0] sm:$0xff]
      %v2466 = vld [vmem:[#allocation3 + $0xd8] sm:$0xff]
      %v2467 = vld [vmem:[#allocation3 + $0xe0] sm:$0xff]
      %v2468 = vld [vmem:[#allocation3 + $0xe8] sm:$0xff]
      %v2469 = vld [vmem:[#allocation3 + $0xf0] sm:$0xff]
      %v2470 = vld [vmem:[#allocation3 + $0xf8] sm:$0xff]
      %v2471 = vld [vmem:[#allocation3 + $0x100] sm:$0xff]
      %v2472 = vld [vmem:[#allocation3 + $0x108] sm:$0xff]
      %v2473 = vld [vmem:[#allocation3 + $0x110] sm:$0xff]
      %v2474 = vld [vmem:[#allocation3 + $0x118] sm:$0xff]
      %v2475 = vadd.f32 %v2439, %v2297
      %v2476 = vadd.f32 %v2440, %v2300
      %v2477 = vadd.f32 %v2441, %v2305
      %v2478 = vadd.f32 %v2442, %v2308
      %v2479 = vadd.f32 %v2443, %v2313
      %v2480 = vadd.f32 %v2444, %v2316
      %v2481 = vadd.f32 %v2445, %v2321
      %v2482 = vadd.f32 %v2446, %v2324
      %v2483 = vadd.f32 %v2447, %v2329
      %v2484 = vadd.f32 %v2448, %v2332
      %v2485 = vadd.f32 %v2449, %v2337
      %v2486 = vadd.f32 %v2450, %v2340
      %v2487 = vadd.f32 %v2451, %v2345
      %v2488 = vadd.f32 %v2452, %v2348
      %v2489 = vadd.f32 %v2453, %v2353
      %v2490 = vadd.f32 %v2454, %v2356
      %v2491 = vadd.f32 %v2455, %v2361
      %v2492 = vadd.f32 %v2456, %v2364
      %v2493 = vadd.f32 %v2457, %v2369
      %v2494 = vadd.f32 %v2458, %v2372
      %v2495 = vadd.f32 %v2459, %v2377
      %v2496 = vadd.f32 %v2460, %v2380
      %v2497 = vadd.f32 %v2461, %v2385
      %v2498 = vadd.f32 %v2462, %v2388
      %v2499 = vadd.f32 %v2463, %v2393
      %v2500 = vadd.f32 %v2464, %v2396
      %v2501 = vadd.f32 %v2465, %v2401
      %v2502 = vadd.f32 %v2466, %v2404
      %v2503 = vadd.f32 %v2467, %v2409
      %v2504 = vadd.f32 %v2468, %v2412
      %v2505 = vadd.f32 %v2469, %v2417
      %v2506 = vadd.f32 %v2470, %v2420
      %v2507 = vadd.f32 %v2471, %v2425
      %v2508 = vadd.f32 %v2472, %v2428
      %v2509 = vadd.f32 %v2473, %v2433
      %v2510 = vadd.f32 %v2474, %v2436
      %2511 = vst [vmem:[#allocation3] sm:$0xff] %v2475
      %2512 = vst [vmem:[#allocation3 + $0x8] sm:$0xff] %v2476
      %2513 = vst [vmem:[#allocation3 + $0x10] sm:$0xff] %v2477
      %2514 = vst [vmem:[#allocation3 + $0x18] sm:$0xff] %v2478
      %2515 = vst [vmem:[#allocation3 + $0x20] sm:$0xff] %v2479
      %2516 = vst [vmem:[#allocation3 + $0x28] sm:$0xff] %v2480
      %2517 = vst [vmem:[#allocation3 + $0x30] sm:$0xff] %v2481
      %2518 = vst [vmem:[#allocation3 + $0x38] sm:$0xff] %v2482
      %2519 = vst [vmem:[#allocation3 + $0x40] sm:$0xff] %v2483
      %2520 = vst [vmem:[#allocation3 + $0x48] sm:$0xff] %v2484
      %2521 = vst [vmem:[#allocation3 + $0x50] sm:$0xff] %v2485
      %2522 = vst [vmem:[#allocation3 + $0x58] sm:$0xff] %v2486
      %2523 = vst [vmem:[#allocation3 + $0x60] sm:$0xff] %v2487
      %2524 = vst [vmem:[#allocation3 + $0x68] sm:$0xff] %v2488
      %2525 = vst [vmem:[#allocation3 + $0x70] sm:$0xff] %v2489
      %2526 = vst [vmem:[#allocation3 + $0x78] sm:$0xff] %v2490
      %2527 = vst [vmem:[#allocation3 + $0x80] sm:$0xff] %v2491
      %2528 = vst [vmem:[#allocation3 + $0x88] sm:$0xff] %v2492
      %2529 = vst [vmem:[#allocation3 + $0x90] sm:$0xff] %v2493
      %2530 = vst [vmem:[#allocation3 + $0x98] sm:$0xff] %v2494
      %2531 = vst [vmem:[#allocation3 + $0xa0] sm:$0xff] %v2495
      %2532 = vst [vmem:[#allocation3 + $0xa8] sm:$0xff] %v2496
      %2533 = vst [vmem:[#allocation3 + $0xb0] sm:$0xff] %v2497
      %2534 = vst [vmem:[#allocation3 + $0xb8] sm:$0xff] %v2498
      %2535 = vst [vmem:[#allocation3 + $0xc0] sm:$0xff] %v2499
      %2536 = vst [vmem:[#allocation3 + $0xc8] sm:$0xff] %v2500
      %2537 = vst [vmem:[#allocation3 + $0xd0] sm:$0xff] %v2501
      %2538 = vst [vmem:[#allocation3 + $0xd8] sm:$0xff] %v2502
      %2539 = vst [vmem:[#allocation3 + $0xe0] sm:$0xff] %v2503
      %2540 = vst [vmem:[#allocation3 + $0xe8] sm:$0xff] %v2504
      %2541 = vst [vmem:[#allocation3 + $0xf0] sm:$0xff] %v2505
      %2542 = vst [vmem:[#allocation3 + $0xf8] sm:$0xff] %v2506
      %2543 = vst [vmem:[#allocation3 + $0x100] sm:$0xff] %v2507
      %2544 = vst [vmem:[#allocation3 + $0x108] sm:$0xff] %v2508
      %2545 = vst [vmem:[#allocation3 + $0x110] sm:$0xff] %v2509
      %2546 = vst [vmem:[#allocation3 + $0x118] sm:$0xff] %v2510
      %s2547 = scalar_lea.vmem %s1, 256
      %v2548 = vld [vmem:[%s2547] sm:$0xf]
      %v2549 = vld [vmem:[%s2547 + $0x4] sm:$0xf]
      %v2550 = vld [vmem:[%s2547 + $0x8] sm:$0xf]
      %v2551 = vld [vmem:[%s2547 + $0xc] sm:$0xf]
      %v2552 = vld [vmem:[%s2547 + $0x10] sm:$0xf]
      %v2553 = vld [vmem:[%s2547 + $0x14] sm:$0xf]
      %v2554 = vld [vmem:[%s2547 + $0x18] sm:$0xf]
      %v2555 = vld [vmem:[%s2547 + $0x1c] sm:$0xf]
      %v2556 = vld [vmem:[%s2547 + $0x20] sm:$0xf]
      %v2557 = vld [vmem:[%s2547 + $0x24] sm:$0xf]
      %v2558 = vld [vmem:[%s2547 + $0x28] sm:$0xf]
      %v2559 = vld [vmem:[%s2547 + $0x2c] sm:$0xf]
      %v2560 = vld [vmem:[%s2547 + $0x30] sm:$0xf]
      %v2561 = vld [vmem:[%s2547 + $0x34] sm:$0xf]
      %v2562 = vld [vmem:[%s2547 + $0x38] sm:$0xf]
      %v2563 = vld [vmem:[%s2547 + $0x3c] sm:$0xf]
      %v2564 = vunpack.c.l.b16 %v2114
      %v2565 = vunpack.c.l.b16 %v2117
      %v2566 = vpack.c.b16 %v2565, %v2564
      %v2584 = vunpack.c.l.b16 %v2548
      %v2585 = vunpack.c.l.b16 %v2549
      %v2586 = vunpack.c.l.b16 %v2550
      %v2587 = vunpack.c.l.b16 %v2551
      %v2588 = vunpack.c.l.b16 %v2552
      %v2589 = vunpack.c.l.b16 %v2553
      %v2590 = vunpack.c.l.b16 %v2554
      %v2591 = vunpack.c.l.b16 %v2555
      %v2592 = vunpack.c.l.b16 %v2556
      %v2593 = vunpack.c.l.b16 %v2557
      %v2594 = vunpack.c.l.b16 %v2558
      %v2595 = vunpack.c.l.b16 %v2559
      %v2596 = vunpack.c.l.b16 %v2560
      %v2597 = vunpack.c.l.b16 %v2561
      %v2598 = vunpack.c.l.b16 %v2562
      %v2599 = vunpack.c.l.b16 %v2563
      %v2600 = vpack.c.b16 %v2585, %v2584
      %v2601 = vpack.c.b16 %v2587, %v2586
      %v2602 = vpack.c.b16 %v2589, %v2588
      %v2603 = vpack.c.b16 %v2591, %v2590
      %v2604 = vpack.c.b16 %v2593, %v2592
      %v2605 = vpack.c.b16 %v2595, %v2594
      %v2606 = vpack.c.b16 %v2597, %v2596
      %v2607 = vpack.c.b16 %v2599, %v2598
      %2616 = vmatprep.subr.bf16.mxu0 0
      %2617 = vmatpush1.bf16.msra.mxu0 %v2600
      %2618 = vmatprep.subr.bf16.mxu0 0
      %2619 = vmatpush1.bf16.msra.mxu0 %v2601
      %2620 = vmatprep.subr.bf16.mxu0 0
      %2621 = vmatpush1.bf16.msra.mxu0 %v2602
      %2622 = vmatprep.subr.bf16.mxu0 0
      %2623 = vmatpush1.bf16.msra.mxu0 %v2603
      %2624 = vmatprep.subr.bf16.mxu0 0
      %2625 = vmatpush1.bf16.msra.mxu0 %v2604
      %2626 = vmatprep.subr.bf16.mxu0 0
      %2627 = vmatpush1.bf16.msra.mxu0 %v2605
      %2628 = vmatprep.subr.bf16.mxu0 0
      %2629 = vmatpush1.bf16.msra.mxu0 %v2606
      %2630 = vmatprep.subr.bf16.mxu0 0
      %2631 = vmatpush1.bf16.msra.mxu0 %v2607
      %2632 = vmatprep.subr.bf16.mxu0 0
      %2633 = vmatpush1.bf16.msra.mxu0 0
      %2634 = vmatprep.subr.bf16.mxu0 0
      %2635 = vmatpush1.bf16.msra.mxu0 0
      %2636 = vmatprep.subr.bf16.mxu0 0
      %2637 = vmatpush1.bf16.msra.mxu0 0
      %2638 = vmatprep.subr.bf16.mxu0 0
      %2639 = vmatpush1.bf16.msra.mxu0 0
      %2640 = vmatprep.subr.bf16.mxu0 0
      %2641 = vmatpush1.bf16.msra.mxu0 0
      %2642 = vmatprep.subr.bf16.mxu0 0
      %2643 = vmatpush1.bf16.msra.mxu0 0
      %2644 = vmatprep.subr.bf16.mxu0 0
      %2645 = vmatpush1.bf16.msra.mxu0 0
      %2646 = vmatprep.subr.bf16.mxu0 0
      %2647 = vmatpush1.bf16.msra.mxu0 0
      %2648 = vmatprep.mubr.bf16.mxu0 0
      %2649 = vmatmul.mubr.bf16.gmra.mrb[0].mxu0 %v2179
      %v2650 = vpop.f32.mrb[0].mxu0
      %v2651 = vadd.f32 0.0, %v2650
      %v2652 = vpop.f32.mrb[0].mxu0
      %v2653 = vpop.f32.mrb[0].mxu0
      %v2654 = vadd.f32 0.0, %v2653
      %v2655 = vpop.f32.mrb[0].mxu0
      %2656 = vmatprep.mubr.bf16.mxu0 0
      %2657 = vmatmul.mubr.bf16.gmra.mrb[0].mxu0 %v2180
      %v2658 = vpop.f32.mrb[0].mxu0
      %v2659 = vadd.f32 0.0, %v2658
      %v2660 = vpop.f32.mrb[0].mxu0
      %v2661 = vpop.f32.mrb[0].mxu0
      %v2662 = vadd.f32 0.0, %v2661
      %v2663 = vpop.f32.mrb[0].mxu0
      %2664 = vmatprep.mubr.bf16.mxu0 0
      %2665 = vmatmul.mubr.bf16.gmra.mrb[0].mxu0 %v2181
      %v2666 = vpop.f32.mrb[0].mxu0
      %v2667 = vadd.f32 0.0, %v2666
      %v2668 = vpop.f32.mrb[0].mxu0
      %v2669 = vpop.f32.mrb[0].mxu0
      %v2670 = vadd.f32 0.0, %v2669
      %v2671 = vpop.f32.mrb[0].mxu0
      %2672 = vmatprep.mubr.bf16.mxu0 0
      %2673 = vmatmul.mubr.bf16.gmra.mrb[0].mxu0 %v2182
      %v2674 = vpop.f32.mrb[0].mxu0
      %v2675 = vadd.f32 0.0, %v2674
      %v2676 = vpop.f32.mrb[0].mxu0
      %v2677 = vpop.f32.mrb[0].mxu0
      %v2678 = vadd.f32 0.0, %v2677
      %v2679 = vpop.f32.mrb[0].mxu0
      %2680 = vmatprep.mubr.bf16.mxu0 0
      %2681 = vmatmul.mubr.bf16.gmra.mrb[0].mxu0 %v2183
      %v2682 = vpop.f32.mrb[0].mxu0
      %v2683 = vadd.f32 0.0, %v2682
      %v2684 = vpop.f32.mrb[0].mxu0
      %v2685 = vpop.f32.mrb[0].mxu0
      %v2686 = vadd.f32 0.0, %v2685
      %v2687 = vpop.f32.mrb[0].mxu0
      %2688 = vmatprep.mubr.bf16.mxu0 0
      %2689 = vmatmul.mubr.bf16.gmra.mrb[0].mxu0 %v2184
      %v2690 = vpop.f32.mrb[0].mxu0
      %v2691 = vadd.f32 0.0, %v2690
      %v2692 = vpop.f32.mrb[0].mxu0
      %v2693 = vpop.f32.mrb[0].mxu0
      %v2694 = vadd.f32 0.0, %v2693
      %v2695 = vpop.f32.mrb[0].mxu0
      %2696 = vmatprep.mubr.bf16.mxu0 0
      %2697 = vmatmul.mubr.bf16.gmra.mrb[0].mxu0 %v2185
      %v2698 = vpop.f32.mrb[0].mxu0
      %v2699 = vadd.f32 0.0, %v2698
      %v2700 = vpop.f32.mrb[0].mxu0
      %v2701 = vpop.f32.mrb[0].mxu0
      %v2702 = vadd.f32 0.0, %v2701
      %v2703 = vpop.f32.mrb[0].mxu0
      %2704 = vmatprep.mubr.bf16.mxu0 0
      %2705 = vmatmul.mubr.bf16.gmra.mrb[0].mxu0 %v2186
      %v2706 = vpop.f32.mrb[0].mxu0
      %v2707 = vadd.f32 0.0, %v2706
      %v2708 = vpop.f32.mrb[0].mxu0
      %v2709 = vpop.f32.mrb[0].mxu0
      %v2710 = vadd.f32 0.0, %v2709
      %v2711 = vpop.f32.mrb[0].mxu0
      %2712 = vmatprep.mubr.bf16.mxu0 0
      %2713 = vmatmul.mubr.bf16.gmra.mrb[0].mxu0 %v2187
      %v2714 = vpop.f32.mrb[0].mxu0
      %v2715 = vadd.f32 0.0, %v2714
      %v2716 = vpop.f32.mrb[0].mxu0
      %v2717 = vpop.f32.mrb[0].mxu0
      %v2718 = vadd.f32 0.0, %v2717
      %v2719 = vpop.f32.mrb[0].mxu0
      %2720 = vmatprep.mubr.bf16.mxu0 0
      %2721 = vmatmul.mubr.bf16.gmra.mrb[0].mxu0 %v2188
      %v2722 = vpop.f32.mrb[0].mxu0
      %v2723 = vadd.f32 0.0, %v2722
      %v2724 = vpop.f32.mrb[0].mxu0
      %v2725 = vpop.f32.mrb[0].mxu0
      %v2726 = vadd.f32 0.0, %v2725
      %v2727 = vpop.f32.mrb[0].mxu0
      %2728 = vmatprep.mubr.bf16.mxu0 0
      %2729 = vmatmul.mubr.bf16.gmra.mrb[0].mxu0 %v2189
      %v2730 = vpop.f32.mrb[0].mxu0
      %v2731 = vadd.f32 0.0, %v2730
      %v2732 = vpop.f32.mrb[0].mxu0
      %v2733 = vpop.f32.mrb[0].mxu0
      %v2734 = vadd.f32 0.0, %v2733
      %v2735 = vpop.f32.mrb[0].mxu0
      %2736 = vmatprep.mubr.bf16.mxu0 0
      %2737 = vmatmul.mubr.bf16.gmra.mrb[0].mxu0 %v2190
      %v2738 = vpop.f32.mrb[0].mxu0
      %v2739 = vadd.f32 0.0, %v2738
      %v2740 = vpop.f32.mrb[0].mxu0
      %v2741 = vpop.f32.mrb[0].mxu0
      %v2742 = vadd.f32 0.0, %v2741
      %v2743 = vpop.f32.mrb[0].mxu0
      %2744 = vmatprep.mubr.bf16.mxu0 0
      %2745 = vmatmul.mubr.bf16.gmra.mrb[0].mxu0 %v2191
      %v2746 = vpop.f32.mrb[0].mxu0
      %v2747 = vadd.f32 0.0, %v2746
      %v2748 = vpop.f32.mrb[0].mxu0
      %v2749 = vpop.f32.mrb[0].mxu0
      %v2750 = vadd.f32 0.0, %v2749
      %v2751 = vpop.f32.mrb[0].mxu0
      %2752 = vmatprep.mubr.bf16.mxu0 0
      %2753 = vmatmul.mubr.bf16.gmra.mrb[0].mxu0 %v2192
      %v2754 = vpop.f32.mrb[0].mxu0
      %v2755 = vadd.f32 0.0, %v2754
      %v2756 = vpop.f32.mrb[0].mxu0
      %v2757 = vpop.f32.mrb[0].mxu0
      %v2758 = vadd.f32 0.0, %v2757
      %v2759 = vpop.f32.mrb[0].mxu0
      %2760 = vmatprep.mubr.bf16.mxu0 0
      %2761 = vmatmul.mubr.bf16.gmra.mrb[0].mxu0 %v2193
      %v2762 = vpop.f32.mrb[0].mxu0
      %v2763 = vadd.f32 0.0, %v2762
      %v2764 = vpop.f32.mrb[0].mxu0
      %v2765 = vpop.f32.mrb[0].mxu0
      %v2766 = vadd.f32 0.0, %v2765
      %v2767 = vpop.f32.mrb[0].mxu0
      %2768 = vmatprep.mubr.bf16.mxu0 0
      %2769 = vmatmul.mubr.bf16.gmra.mrb[0].mxu0 %v2194
      %v2770 = vpop.f32.mrb[0].mxu0
      %v2771 = vadd.f32 0.0, %v2770
      %v2772 = vpop.f32.mrb[0].mxu0
      %v2773 = vpop.f32.mrb[0].mxu0
      %v2774 = vadd.f32 0.0, %v2773
      %v2775 = vpop.f32.mrb[0].mxu0
      %2776 = vmatprep.mubr.bf16.mxu0 0
      %2777 = vmatmul.mubr.bf16.gmra.mrb[0].mxu0 %v2195
      %v2778 = vpop.f32.mrb[0].mxu0
      %v2779 = vadd.f32 0.0, %v2778
      %v2780 = vpop.f32.mrb[0].mxu0
      %v2781 = vpop.f32.mrb[0].mxu0
      %v2782 = vadd.f32 0.0, %v2781
      %v2783 = vpop.f32.mrb[0].mxu0
      %2784 = vmatprep.mubr.bf16.mxu0 0
      %2785 = vmatmul.mubr.bf16.gmra.mrb[0].mxu0 %v2566
      %v2786 = vpop.f32.mrb[0].mxu0
      %v2787 = vadd.f32 0.0, %v2786
      %v2788 = vpop.f32.mrb[0].mxu0
      %v2789 = vpop.f32.mrb[0].mxu0
      %v2790 = vadd.f32 0.0, %v2789
      %v2791 = vpop.f32.mrb[0].mxu0
      %2792 = vdwg.mxu0
      %v2793 = vld [vmem:[#allocation3] sm:$0xff]
      %v2794 = vld [vmem:[#allocation3 + $0x8] sm:$0xff]
      %v2795 = vld [vmem:[#allocation3 + $0x10] sm:$0xff]
      %v2796 = vld [vmem:[#allocation3 + $0x18] sm:$0xff]
      %v2797 = vld [vmem:[#allocation3 + $0x20] sm:$0xff]
      %v2798 = vld [vmem:[#allocation3 + $0x28] sm:$0xff]
      %v2799 = vld [vmem:[#allocation3 + $0x30] sm:$0xff]
      %v2800 = vld [vmem:[#allocation3 + $0x38] sm:$0xff]
      %v2801 = vld [vmem:[#allocation3 + $0x40] sm:$0xff]
      %v2802 = vld [vmem:[#allocation3 + $0x48] sm:$0xff]
      %v2803 = vld [vmem:[#allocation3 + $0x50] sm:$0xff]
      %v2804 = vld [vmem:[#allocation3 + $0x58] sm:$0xff]
      %v2805 = vld [vmem:[#allocation3 + $0x60] sm:$0xff]
      %v2806 = vld [vmem:[#allocation3 + $0x68] sm:$0xff]
      %v2807 = vld [vmem:[#allocation3 + $0x70] sm:$0xff]
      %v2808 = vld [vmem:[#allocation3 + $0x78] sm:$0xff]
      %v2809 = vld [vmem:[#allocation3 + $0x80] sm:$0xff]
      %v2810 = vld [vmem:[#allocation3 + $0x88] sm:$0xff]
      %v2811 = vld [vmem:[#allocation3 + $0x90] sm:$0xff]
      %v2812 = vld [vmem:[#allocation3 + $0x98] sm:$0xff]
      %v2813 = vld [vmem:[#allocation3 + $0xa0] sm:$0xff]
      %v2814 = vld [vmem:[#allocation3 + $0xa8] sm:$0xff]
      %v2815 = vld [vmem:[#allocation3 + $0xb0] sm:$0xff]
      %v2816 = vld [vmem:[#allocation3 + $0xb8] sm:$0xff]
      %v2817 = vld [vmem:[#allocation3 + $0xc0] sm:$0xff]
      %v2818 = vld [vmem:[#allocation3 + $0xc8] sm:$0xff]
      %v2819 = vld [vmem:[#allocation3 + $0xd0] sm:$0xff]
      %v2820 = vld [vmem:[#allocation3 + $0xd8] sm:$0xff]
      %v2821 = vld [vmem:[#allocation3 + $0xe0] sm:$0xff]
      %v2822 = vld [vmem:[#allocation3 + $0xe8] sm:$0xff]
      %v2823 = vld [vmem:[#allocation3 + $0xf0] sm:$0xff]
      %v2824 = vld [vmem:[#allocation3 + $0xf8] sm:$0xff]
      %v2825 = vld [vmem:[#allocation3 + $0x100] sm:$0xff]
      %v2826 = vld [vmem:[#allocation3 + $0x108] sm:$0xff]
      %v2827 = vld [vmem:[#allocation3 + $0x110] sm:$0xff]
      %v2828 = vld [vmem:[#allocation3 + $0x118] sm:$0xff]
      %v2829 = vadd.f32 %v2793, %v2651
      %v2830 = vadd.f32 %v2794, %v2654
      %v2831 = vadd.f32 %v2795, %v2659
      %v2832 = vadd.f32 %v2796, %v2662
      %v2833 = vadd.f32 %v2797, %v2667
      %v2834 = vadd.f32 %v2798, %v2670
      %v2835 = vadd.f32 %v2799, %v2675
      %v2836 = vadd.f32 %v2800, %v2678
      %v2837 = vadd.f32 %v2801, %v2683
      %v2838 = vadd.f32 %v2802, %v2686
      %v2839 = vadd.f32 %v2803, %v2691
      %v2840 = vadd.f32 %v2804, %v2694
      %v2841 = vadd.f32 %v2805, %v2699
      %v2842 = vadd.f32 %v2806, %v2702
      %v2843 = vadd.f32 %v2807, %v2707
      %v2844 = vadd.f32 %v2808, %v2710
      %v2845 = vadd.f32 %v2809, %v2715
      %v2846 = vadd.f32 %v2810, %v2718
      %v2847 = vadd.f32 %v2811, %v2723
      %v2848 = vadd.f32 %v2812, %v2726
      %v2849 = vadd.f32 %v2813, %v2731
      %v2850 = vadd.f32 %v2814, %v2734
      %v2851 = vadd.f32 %v2815, %v2739
      %v2852 = vadd.f32 %v2816, %v2742
      %v2853 = vadd.f32 %v2817, %v2747
      %v2854 = vadd.f32 %v2818, %v2750
      %v2855 = vadd.f32 %v2819, %v2755
      %v2856 = vadd.f32 %v2820, %v2758
      %v2857 = vadd.f32 %v2821, %v2763
      %v2858 = vadd.f32 %v2822, %v2766
      %v2859 = vadd.f32 %v2823, %v2771
      %v2860 = vadd.f32 %v2824, %v2774
      %v2861 = vadd.f32 %v2825, %v2779
      %v2862 = vadd.f32 %v2826, %v2782
      %v2863 = vadd.f32 %v2827, %v2787
      %v2864 = vadd.f32 %v2828, %v2790
      %2865 = vst [vmem:[#allocation3] sm:$0xff] %v2829
      %2866 = vst [vmem:[#allocation3 + $0x8] sm:$0xff] %v2830
      %2867 = vst [vmem:[#allocation3 + $0x10] sm:$0xff] %v2831
      %2868 = vst [vmem:[#allocation3 + $0x18] sm:$0xff] %v2832
      %2869 = vst [vmem:[#allocation3 + $0x20] sm:$0xff] %v2833
      %2870 = vst [vmem:[#allocation3 + $0x28] sm:$0xff] %v2834
      %2871 = vst [vmem:[#allocation3 + $0x30] sm:$0xff] %v2835
      %2872 = vst [vmem:[#allocation3 + $0x38] sm:$0xff] %v2836
      %2873 = vst [vmem:[#allocation3 + $0x40] sm:$0xff] %v2837
      %2874 = vst [vmem:[#allocation3 + $0x48] sm:$0xff] %v2838
      %2875 = vst [vmem:[#allocation3 + $0x50] sm:$0xff] %v2839
      %2876 = vst [vmem:[#allocation3 + $0x58] sm:$0xff] %v2840
      %2877 = vst [vmem:[#allocation3 + $0x60] sm:$0xff] %v2841
      %2878 = vst [vmem:[#allocation3 + $0x68] sm:$0xff] %v2842
      %2879 = vst [vmem:[#allocation3 + $0x70] sm:$0xff] %v2843
      %2880 = vst [vmem:[#allocation3 + $0x78] sm:$0xff] %v2844
      %2881 = vst [vmem:[#allocation3 + $0x80] sm:$0xff] %v2845
      %2882 = vst [vmem:[#allocation3 + $0x88] sm:$0xff] %v2846
      %2883 = vst [vmem:[#allocation3 + $0x90] sm:$0xff] %v2847
      %2884 = vst [vmem:[#allocation3 + $0x98] sm:$0xff] %v2848
      %2885 = vst [vmem:[#allocation3 + $0xa0] sm:$0xff] %v2849
      %2886 = vst [vmem:[#allocation3 + $0xa8] sm:$0xff] %v2850
      %2887 = vst [vmem:[#allocation3 + $0xb0] sm:$0xff] %v2851
      %2888 = vst [vmem:[#allocation3 + $0xb8] sm:$0xff] %v2852
      %2889 = vst [vmem:[#allocation3 + $0xc0] sm:$0xff] %v2853
      %2890 = vst [vmem:[#allocation3 + $0xc8] sm:$0xff] %v2854
      %2891 = vst [vmem:[#allocation3 + $0xd0] sm:$0xff] %v2855
      %2892 = vst [vmem:[#allocation3 + $0xd8] sm:$0xff] %v2856
      %2893 = vst [vmem:[#allocation3 + $0xe0] sm:$0xff] %v2857
      %2894 = vst [vmem:[#allocation3 + $0xe8] sm:$0xff] %v2858
      %2895 = vst [vmem:[#allocation3 + $0xf0] sm:$0xff] %v2859
      %2896 = vst [vmem:[#allocation3 + $0xf8] sm:$0xff] %v2860
      %2897 = vst [vmem:[#allocation3 + $0x100] sm:$0xff] %v2861
      %2898 = vst [vmem:[#allocation3 + $0x108] sm:$0xff] %v2862
      %2899 = vst [vmem:[#allocation3 + $0x110] sm:$0xff] %v2863
      %2900 = vst [vmem:[#allocation3 + $0x118] sm:$0xff] %v2864
      %s2901 = scalar_lea.vmem %s1, 448
      %v2902 = vld [vmem:[%s2901] sm:$0xf]
      %v2903 = vld [vmem:[%s2901 + $0x4] sm:$0xf]
      %v2904 = vld [vmem:[%s2901 + $0x8] sm:$0xf]
      %v2905 = vld [vmem:[%s2901 + $0xc] sm:$0xf]
      %v2906 = vld [vmem:[%s2901 + $0x10] sm:$0xf]
      %v2907 = vld [vmem:[%s2901 + $0x14] sm:$0xf]
      %v2908 = vld [vmem:[%s2901 + $0x18] sm:$0xf]
      %v2909 = vld [vmem:[%s2901 + $0x1c] sm:$0xf]
      %v2910 = vld [vmem:[%s2901 + $0x20] sm:$0xf]
      %v2911 = vld [vmem:[%s2901 + $0x24] sm:$0xf]
      %v2912 = vld [vmem:[%s2901 + $0x28] sm:$0xf]
      %v2913 = vld [vmem:[%s2901 + $0x2c] sm:$0xf]
      %v2914 = vld [vmem:[%s2901 + $0x30] sm:$0xf]
      %v2915 = vld [vmem:[%s2901 + $0x34] sm:$0xf]
      %v2916 = vld [vmem:[%s2901 + $0x38] sm:$0xf]
      %v2917 = vld [vmem:[%s2901 + $0x3c] sm:$0xf]
      %v2918 = vunpack.c.l.b16 %v2121
      %v2919 = vunpack.c.l.b16 %v2124
      %v2920 = vpack.c.b16 %v2919, %v2918
      %v2938 = vunpack.c.l.b16 %v2902
      %v2939 = vunpack.c.l.b16 %v2903
      %v2940 = vunpack.c.l.b16 %v2904
      %v2941 = vunpack.c.l.b16 %v2905
      %v2942 = vunpack.c.l.b16 %v2906
      %v2943 = vunpack.c.l.b16 %v2907
      %v2944 = vunpack.c.l.b16 %v2908
      %v2945 = vunpack.c.l.b16 %v2909
      %v2946 = vunpack.c.l.b16 %v2910
      %v2947 = vunpack.c.l.b16 %v2911
      %v2948 = vunpack.c.l.b16 %v2912
      %v2949 = vunpack.c.l.b16 %v2913
      %v2950 = vunpack.c.l.b16 %v2914
      %v2951 = vunpack.c.l.b16 %v2915
      %v2952 = vunpack.c.l.b16 %v2916
      %v2953 = vunpack.c.l.b16 %v2917
      %v2954 = vpack.c.b16 %v2939, %v2938
      %v2955 = vpack.c.b16 %v2941, %v2940
      %v2956 = vpack.c.b16 %v2943, %v2942
      %v2957 = vpack.c.b16 %v2945, %v2944
      %v2958 = vpack.c.b16 %v2947, %v2946
      %v2959 = vpack.c.b16 %v2949, %v2948
      %v2960 = vpack.c.b16 %v2951, %v2950
      %v2961 = vpack.c.b16 %v2953, %v2952
      %2970 = vmatprep.subr.bf16.mxu0 0
      %2971 = vmatpush1.bf16.msra.mxu0 %v2954
      %2972 = vmatprep.subr.bf16.mxu0 0
      %2973 = vmatpush1.bf16.msra.mxu0 %v2955
      %2974 = vmatprep.subr.bf16.mxu0 0
      %2975 = vmatpush1.bf16.msra.mxu0 %v2956
      %2976 = vmatprep.subr.bf16.mxu0 0
      %2977 = vmatpush1.bf16.msra.mxu0 %v2957
      %2978 = vmatprep.subr.bf16.mxu0 0
      %2979 = vmatpush1.bf16.msra.mxu0 %v2958
      %2980 = vmatprep.subr.bf16.mxu0 0
      %2981 = vmatpush1.bf16.msra.mxu0 %v2959
      %2982 = vmatprep.subr.bf16.mxu0 0
      %2983 = vmatpush1.bf16.msra.mxu0 %v2960
      %2984 = vmatprep.subr.bf16.mxu0 0
      %2985 = vmatpush1.bf16.msra.mxu0 %v2961
      %2986 = vmatprep.subr.bf16.mxu0 0
      %2987 = vmatpush1.bf16.msra.mxu0 0
      %2988 = vmatprep.subr.bf16.mxu0 0
      %2989 = vmatpush1.bf16.msra.mxu0 0
      %2990 = vmatprep.subr.bf16.mxu0 0
      %2991 = vmatpush1.bf16.msra.mxu0 0
      %2992 = vmatprep.subr.bf16.mxu0 0
      %2993 = vmatpush1.bf16.msra.mxu0 0
      %2994 = vmatprep.subr.bf16.mxu0 0
      %2995 = vmatpush1.bf16.msra.mxu0 0
      %2996 = vmatprep.subr.bf16.mxu0 0
      %2997 = vmatpush1.bf16.msra.mxu0 0
      %2998 = vmatprep.subr.bf16.mxu0 0
      %2999 = vmatpush1.bf16.msra.mxu0 0
      %3000 = vmatprep.subr.bf16.mxu0 0
      %3001 = vmatpush1.bf16.msra.mxu0 0
      %3002 = vmatprep.mubr.bf16.mxu0 0
      %3003 = vmatmul.mubr.bf16.gmra.mrb[0].mxu0 %v2180
      %v3004 = vpop.f32.mrb[0].mxu0
      %v3005 = vadd.f32 0.0, %v3004
      %v3006 = vpop.f32.mrb[0].mxu0
      %v3007 = vpop.f32.mrb[0].mxu0
      %v3008 = vadd.f32 0.0, %v3007
      %v3009 = vpop.f32.mrb[0].mxu0
      %3010 = vmatprep.mubr.bf16.mxu0 0
      %3011 = vmatmul.mubr.bf16.gmra.mrb[0].mxu0 %v2181
      %v3012 = vpop.f32.mrb[0].mxu0
      %v3013 = vadd.f32 0.0, %v3012
      %v3014 = vpop.f32.mrb[0].mxu0
      %v3015 = vpop.f32.mrb[0].mxu0
      %v3016 = vadd.f32 0.0, %v3015
      %v3017 = vpop.f32.mrb[0].mxu0
      %3018 = vmatprep.mubr.bf16.mxu0 0
      %3019 = vmatmul.mubr.bf16.gmra.mrb[0].mxu0 %v2182
      %v3020 = vpop.f32.mrb[0].mxu0
      %v3021 = vadd.f32 0.0, %v3020
      %v3022 = vpop.f32.mrb[0].mxu0
      %v3023 = vpop.f32.mrb[0].mxu0
      %v3024 = vadd.f32 0.0, %v3023
      %v3025 = vpop.f32.mrb[0].mxu0
      %3026 = vmatprep.mubr.bf16.mxu0 0
      %3027 = vmatmul.mubr.bf16.gmra.mrb[0].mxu0 %v2183
      %v3028 = vpop.f32.mrb[0].mxu0
      %v3029 = vadd.f32 0.0, %v3028
      %v3030 = vpop.f32.mrb[0].mxu0
      %v3031 = vpop.f32.mrb[0].mxu0
      %v3032 = vadd.f32 0.0, %v3031
      %v3033 = vpop.f32.mrb[0].mxu0
      %3034 = vmatprep.mubr.bf16.mxu0 0
      %3035 = vmatmul.mubr.bf16.gmra.mrb[0].mxu0 %v2184
      %v3036 = vpop.f32.mrb[0].mxu0
      %v3037 = vadd.f32 0.0, %v3036
      %v3038 = vpop.f32.mrb[0].mxu0
      %v3039 = vpop.f32.mrb[0].mxu0
      %v3040 = vadd.f32 0.0, %v3039
      %v3041 = vpop.f32.mrb[0].mxu0
      %3042 = vmatprep.mubr.bf16.mxu0 0
      %3043 = vmatmul.mubr.bf16.gmra.mrb[0].mxu0 %v2185
      %v3044 = vpop.f32.mrb[0].mxu0
      %v3045 = vadd.f32 0.0, %v3044
      %v3046 = vpop.f32.mrb[0].mxu0
      %v3047 = vpop.f32.mrb[0].mxu0
      %v3048 = vadd.f32 0.0, %v3047
      %v3049 = vpop.f32.mrb[0].mxu0
      %3050 = vmatprep.mubr.bf16.mxu0 0
      %3051 = vmatmul.mubr.bf16.gmra.mrb[0].mxu0 %v2186
      %v3052 = vpop.f32.mrb[0].mxu0
      %v3053 = vadd.f32 0.0, %v3052
      %v3054 = vpop.f32.mrb[0].mxu0
      %v3055 = vpop.f32.mrb[0].mxu0
      %v3056 = vadd.f32 0.0, %v3055
      %v3057 = vpop.f32.mrb[0].mxu0
      %3058 = vmatprep.mubr.bf16.mxu0 0
      %3059 = vmatmul.mubr.bf16.gmra.mrb[0].mxu0 %v2187
      %v3060 = vpop.f32.mrb[0].mxu0
      %v3061 = vadd.f32 0.0, %v3060
      %v3062 = vpop.f32.mrb[0].mxu0
      %v3063 = vpop.f32.mrb[0].mxu0
      %v3064 = vadd.f32 0.0, %v3063
      %v3065 = vpop.f32.mrb[0].mxu0
      %3066 = vmatprep.mubr.bf16.mxu0 0
      %3067 = vmatmul.mubr.bf16.gmra.mrb[0].mxu0 %v2188
      %v3068 = vpop.f32.mrb[0].mxu0
      %v3069 = vadd.f32 0.0, %v3068
      %v3070 = vpop.f32.mrb[0].mxu0
      %v3071 = vpop.f32.mrb[0].mxu0
      %v3072 = vadd.f32 0.0, %v3071
      %v3073 = vpop.f32.mrb[0].mxu0
      %3074 = vmatprep.mubr.bf16.mxu0 0
      %3075 = vmatmul.mubr.bf16.gmra.mrb[0].mxu0 %v2189
      %v3076 = vpop.f32.mrb[0].mxu0
      %v3077 = vadd.f32 0.0, %v3076
      %v3078 = vpop.f32.mrb[0].mxu0
      %v3079 = vpop.f32.mrb[0].mxu0
      %v3080 = vadd.f32 0.0, %v3079
      %v3081 = vpop.f32.mrb[0].mxu0
      %3082 = vmatprep.mubr.bf16.mxu0 0
      %3083 = vmatmul.mubr.bf16.gmra.mrb[0].mxu0 %v2190
      %v3084 = vpop.f32.mrb[0].mxu0
      %v3085 = vadd.f32 0.0, %v3084
      %v3086 = vpop.f32.mrb[0].mxu0
      %v3087 = vpop.f32.mrb[0].mxu0
      %v3088 = vadd.f32 0.0, %v3087
      %v3089 = vpop.f32.mrb[0].mxu0
      %3090 = vmatprep.mubr.bf16.mxu0 0
      %3091 = vmatmul.mubr.bf16.gmra.mrb[0].mxu0 %v2191
      %v3092 = vpop.f32.mrb[0].mxu0
      %v3093 = vadd.f32 0.0, %v3092
      %v3094 = vpop.f32.mrb[0].mxu0
      %v3095 = vpop.f32.mrb[0].mxu0
      %v3096 = vadd.f32 0.0, %v3095
      %v3097 = vpop.f32.mrb[0].mxu0
      %3098 = vmatprep.mubr.bf16.mxu0 0
      %3099 = vmatmul.mubr.bf16.gmra.mrb[0].mxu0 %v2192
      %v3100 = vpop.f32.mrb[0].mxu0
      %v3101 = vadd.f32 0.0, %v3100
      %v3102 = vpop.f32.mrb[0].mxu0
      %v3103 = vpop.f32.mrb[0].mxu0
      %v3104 = vadd.f32 0.0, %v3103
      %v3105 = vpop.f32.mrb[0].mxu0
      %3106 = vmatprep.mubr.bf16.mxu0 0
      %3107 = vmatmul.mubr.bf16.gmra.mrb[0].mxu0 %v2193
      %v3108 = vpop.f32.mrb[0].mxu0
      %v3109 = vadd.f32 0.0, %v3108
      %v3110 = vpop.f32.mrb[0].mxu0
      %v3111 = vpop.f32.mrb[0].mxu0
      %v3112 = vadd.f32 0.0, %v3111
      %v3113 = vpop.f32.mrb[0].mxu0
      %3114 = vmatprep.mubr.bf16.mxu0 0
      %3115 = vmatmul.mubr.bf16.gmra.mrb[0].mxu0 %v2194
      %v3116 = vpop.f32.mrb[0].mxu0
      %v3117 = vadd.f32 0.0, %v3116
      %v3118 = vpop.f32.mrb[0].mxu0
      %v3119 = vpop.f32.mrb[0].mxu0
      %v3120 = vadd.f32 0.0, %v3119
      %v3121 = vpop.f32.mrb[0].mxu0
      %3122 = vmatprep.mubr.bf16.mxu0 0
      %3123 = vmatmul.mubr.bf16.gmra.mrb[0].mxu0 %v2195
      %v3124 = vpop.f32.mrb[0].mxu0
      %v3125 = vadd.f32 0.0, %v3124
      %v3126 = vpop.f32.mrb[0].mxu0
      %v3127 = vpop.f32.mrb[0].mxu0
      %v3128 = vadd.f32 0.0, %v3127
      %v3129 = vpop.f32.mrb[0].mxu0
      %3130 = vmatprep.mubr.bf16.mxu0 0
      %3131 = vmatmul.mubr.bf16.gmra.mrb[0].mxu0 %v2566
      %v3132 = vpop.f32.mrb[0].mxu0
      %v3133 = vadd.f32 0.0, %v3132
      %v3134 = vpop.f32.mrb[0].mxu0
      %v3135 = vpop.f32.mrb[0].mxu0
      %v3136 = vadd.f32 0.0, %v3135
      %v3137 = vpop.f32.mrb[0].mxu0
      %3138 = vmatprep.mubr.bf16.mxu0 0
      %3139 = vmatmul.mubr.bf16.gmra.mrb[0].mxu0 %v2920
      %v3140 = vpop.f32.mrb[0].mxu0
      %v3141 = vadd.f32 0.0, %v3140
      %v3142 = vpop.f32.mrb[0].mxu0
      %v3143 = vpop.f32.mrb[0].mxu0
      %v3144 = vadd.f32 0.0, %v3143
      %v3145 = vpop.f32.mrb[0].mxu0
      %3146 = vdwg.mxu0
      %v3147 = vld [vmem:[#allocation3] sm:$0xff]
      %v3148 = vld [vmem:[#allocation3 + $0x8] sm:$0xff]
      %v3149 = vld [vmem:[#allocation3 + $0x10] sm:$0xff]
      %v3150 = vld [vmem:[#allocation3 + $0x18] sm:$0xff]
      %v3151 = vld [vmem:[#allocation3 + $0x20] sm:$0xff]
      %v3152 = vld [vmem:[#allocation3 + $0x28] sm:$0xff]
      %v3153 = vld [vmem:[#allocation3 + $0x30] sm:$0xff]
      %v3154 = vld [vmem:[#allocation3 + $0x38] sm:$0xff]
      %v3155 = vld [vmem:[#allocation3 + $0x40] sm:$0xff]
      %v3156 = vld [vmem:[#allocation3 + $0x48] sm:$0xff]
      %v3157 = vld [vmem:[#allocation3 + $0x50] sm:$0xff]
      %v3158 = vld [vmem:[#allocation3 + $0x58] sm:$0xff]
      %v3159 = vld [vmem:[#allocation3 + $0x60] sm:$0xff]
      %v3160 = vld [vmem:[#allocation3 + $0x68] sm:$0xff]
      %v3161 = vld [vmem:[#allocation3 + $0x70] sm:$0xff]
      %v3162 = vld [vmem:[#allocation3 + $0x78] sm:$0xff]
      %v3163 = vld [vmem:[#allocation3 + $0x80] sm:$0xff]
      %v3164 = vld [vmem:[#allocation3 + $0x88] sm:$0xff]
      %v3165 = vld [vmem:[#allocation3 + $0x90] sm:$0xff]
      %v3166 = vld [vmem:[#allocation3 + $0x98] sm:$0xff]
      %v3167 = vld [vmem:[#allocation3 + $0xa0] sm:$0xff]
      %v3168 = vld [vmem:[#allocation3 + $0xa8] sm:$0xff]
      %v3169 = vld [vmem:[#allocation3 + $0xb0] sm:$0xff]
      %v3170 = vld [vmem:[#allocation3 + $0xb8] sm:$0xff]
      %v3171 = vld [vmem:[#allocation3 + $0xc0] sm:$0xff]
      %v3172 = vld [vmem:[#allocation3 + $0xc8] sm:$0xff]
      %v3173 = vld [vmem:[#allocation3 + $0xd0] sm:$0xff]
      %v3174 = vld [vmem:[#allocation3 + $0xd8] sm:$0xff]
      %v3175 = vld [vmem:[#allocation3 + $0xe0] sm:$0xff]
      %v3176 = vld [vmem:[#allocation3 + $0xe8] sm:$0xff]
      %v3177 = vld [vmem:[#allocation3 + $0xf0] sm:$0xff]
      %v3178 = vld [vmem:[#allocation3 + $0xf8] sm:$0xff]
      %v3179 = vld [vmem:[#allocation3 + $0x100] sm:$0xff]
      %v3180 = vld [vmem:[#allocation3 + $0x108] sm:$0xff]
      %v3181 = vld [vmem:[#allocation3 + $0x110] sm:$0xff]
      %v3182 = vld [vmem:[#allocation3 + $0x118] sm:$0xff]
      %v3183 = vadd.f32 %v3147, %v3005
      %v3184 = vadd.f32 %v3148, %v3008
      %v3185 = vadd.f32 %v3149, %v3013
      %v3186 = vadd.f32 %v3150, %v3016
      %v3187 = vadd.f32 %v3151, %v3021
      %v3188 = vadd.f32 %v3152, %v3024
      %v3189 = vadd.f32 %v3153, %v3029
      %v3190 = vadd.f32 %v3154, %v3032
      %v3191 = vadd.f32 %v3155, %v3037
      %v3192 = vadd.f32 %v3156, %v3040
      %v3193 = vadd.f32 %v3157, %v3045
      %v3194 = vadd.f32 %v3158, %v3048
      %v3195 = vadd.f32 %v3159, %v3053
      %v3196 = vadd.f32 %v3160, %v3056
      %v3197 = vadd.f32 %v3161, %v3061
      %v3198 = vadd.f32 %v3162, %v3064
      %v3199 = vadd.f32 %v3163, %v3069
      %v3200 = vadd.f32 %v3164, %v3072
      %v3201 = vadd.f32 %v3165, %v3077
      %v3202 = vadd.f32 %v3166, %v3080
      %v3203 = vadd.f32 %v3167, %v3085
      %v3204 = vadd.f32 %v3168, %v3088
      %v3205 = vadd.f32 %v3169, %v3093
      %v3206 = vadd.f32 %v3170, %v3096
      %v3207 = vadd.f32 %v3171, %v3101
      %v3208 = vadd.f32 %v3172, %v3104
      %v3209 = vadd.f32 %v3173, %v3109
      %v3210 = vadd.f32 %v3174, %v3112
      %v3211 = vadd.f32 %v3175, %v3117
      %v3212 = vadd.f32 %v3176, %v3120
      %v3213 = vadd.f32 %v3177, %v3125
      %v3214 = vadd.f32 %v3178, %v3128
      %v3215 = vadd.f32 %v3179, %v3133
      %v3216 = vadd.f32 %v3180, %v3136
      %v3217 = vadd.f32 %v3181, %v3141
      %v3218 = vadd.f32 %v3182, %v3144
      %3219 = vst [vmem:[#allocation3] sm:$0xff] %v3183
      %3220 = vst [vmem:[#allocation3 + $0x8] sm:$0xff] %v3184
      %3221 = vst [vmem:[#allocation3 + $0x10] sm:$0xff] %v3185
      %3222 = vst [vmem:[#allocation3 + $0x18] sm:$0xff] %v3186
      %3223 = vst [vmem:[#allocation3 + $0x20] sm:$0xff] %v3187
      %3224 = vst [vmem:[#allocation3 + $0x28] sm:$0xff] %v3188
      %3225 = vst [vmem:[#allocation3 + $0x30] sm:$0xff] %v3189
      %3226 = vst [vmem:[#allocation3 + $0x38] sm:$0xff] %v3190
      %3227 = vst [vmem:[#allocation3 + $0x40] sm:$0xff] %v3191
      %3228 = vst [vmem:[#allocation3 + $0x48] sm:$0xff] %v3192
      %3229 = vst [vmem:[#allocation3 + $0x50] sm:$0xff] %v3193
      %3230 = vst [vmem:[#allocation3 + $0x58] sm:$0xff] %v3194
      %3231 = vst [vmem:[#allocation3 + $0x60] sm:$0xff] %v3195
      %3232 = vst [vmem:[#allocation3 + $0x68] sm:$0xff] %v3196
      %3233 = vst [vmem:[#allocation3 + $0x70] sm:$0xff] %v3197
      %3234 = vst [vmem:[#allocation3 + $0x78] sm:$0xff] %v3198
      %3235 = vst [vmem:[#allocation3 + $0x80] sm:$0xff] %v3199
      %3236 = vst [vmem:[#allocation3 + $0x88] sm:$0xff] %v3200
      %3237 = vst [vmem:[#allocation3 + $0x90] sm:$0xff] %v3201
      %3238 = vst [vmem:[#allocation3 + $0x98] sm:$0xff] %v3202
      %3239 = vst [vmem:[#allocation3 + $0xa0] sm:$0xff] %v3203
      %3240 = vst [vmem:[#allocation3 + $0xa8] sm:$0xff] %v3204
      %3241 = vst [vmem:[#allocation3 + $0xb0] sm:$0xff] %v3205
      %3242 = vst [vmem:[#allocation3 + $0xb8] sm:$0xff] %v3206
      %3243 = vst [vmem:[#allocation3 + $0xc0] sm:$0xff] %v3207
      %3244 = vst [vmem:[#allocation3 + $0xc8] sm:$0xff] %v3208
      %3245 = vst [vmem:[#allocation3 + $0xd0] sm:$0xff] %v3209
      %3246 = vst [vmem:[#allocation3 + $0xd8] sm:$0xff] %v3210
      %3247 = vst [vmem:[#allocation3 + $0xe0] sm:$0xff] %v3211
      %3248 = vst [vmem:[#allocation3 + $0xe8] sm:$0xff] %v3212
      %3249 = vst [vmem:[#allocation3 + $0xf0] sm:$0xff] %v3213
      %3250 = vst [vmem:[#allocation3 + $0xf8] sm:$0xff] %v3214
      %3251 = vst [vmem:[#allocation3 + $0x100] sm:$0xff] %v3215
      %3252 = vst [vmem:[#allocation3 + $0x108] sm:$0xff] %v3216
      %3253 = vst [vmem:[#allocation3 + $0x110] sm:$0xff] %v3217
      %3254 = vst [vmem:[#allocation3 + $0x118] sm:$0xff] %v3218
      %v3255 = vld [vmem:[%s251] sm:$0xe]
      %v3256 = vld [vmem:[%s251 + $0x4] sm:$0xf]
      %v3257 = vld [vmem:[%s251 + $0x8] sm:$0x3]
      %v3258 = vld [vmem:[%s251 + $0xc] sm:$0xe]
      %v3259 = vld [vmem:[%s251 + $0x10] sm:$0xf]
      %v3260 = vld [vmem:[%s251 + $0x14] sm:$0x3]
      %v3261 = vld [vmem:[%s251 + $0x18] sm:$0xe]
      %v3262 = vld [vmem:[%s251 + $0x1c] sm:$0xf]
      %v3263 = vld [vmem:[%s251 + $0x20] sm:$0x3]
      %v3264 = vld [vmem:[%s251 + $0x24] sm:$0xe]
      %v3265 = vld [vmem:[%s251 + $0x28] sm:$0xf]
      %v3266 = vld [vmem:[%s251 + $0x2c] sm:$0x3]
      %v3267 = vld [vmem:[%s251 + $0x30] sm:$0xe]
      %v3268 = vld [vmem:[%s251 + $0x34] sm:$0xf]
      %v3269 = vld [vmem:[%s251 + $0x38] sm:$0x3]
      %v3270 = vld [vmem:[%s251 + $0x3c] sm:$0xe]
      %v3271 = vld [vmem:[%s251 + $0x40] sm:$0xf]
      %v3272 = vld [vmem:[%s251 + $0x44] sm:$0x3]
      %v3273 = vld [vmem:[%s251 + $0x48] sm:$0xe]
      %v3274 = vld [vmem:[%s251 + $0x4c] sm:$0xf]
      %v3275 = vld [vmem:[%s251 + $0x50] sm:$0x3]
      %v3276 = vld [vmem:[%s251 + $0x54] sm:$0xe]
      %v3277 = vld [vmem:[%s251 + $0x58] sm:$0xf]
      %v3278 = vld [vmem:[%s251 + $0x5c] sm:$0x3]
      %v3279 = vld [vmem:[%s251 + $0x60] sm:$0xe]
      %v3280 = vld [vmem:[%s251 + $0x64] sm:$0xf]
      %v3281 = vld [vmem:[%s251 + $0x68] sm:$0x3]
      %v3282 = vld [vmem:[%s251 + $0x6c] sm:$0xe]
      %v3283 = vld [vmem:[%s251 + $0x70] sm:$0xf]
      %v3284 = vld [vmem:[%s251 + $0x74] sm:$0x3]
      %v3285 = vld [vmem:[%s251 + $0x78] sm:$0xe]
      %v3286 = vld [vmem:[%s251 + $0x7c] sm:$0xf]
      %v3287 = vld [vmem:[%s251 + $0x80] sm:$0x3]
      %v3288 = vld [vmem:[%s251 + $0x84] sm:$0xe]
      %v3289 = vld [vmem:[%s251 + $0x88] sm:$0xf]
      %v3290 = vld [vmem:[%s251 + $0x8c] sm:$0x3]
      %v3291 = vld [vmem:[%s251 + $0x90] sm:$0xe]
      %v3292 = vld [vmem:[%s251 + $0x94] sm:$0xf]
      %v3293 = vld [vmem:[%s251 + $0x98] sm:$0x3]
      %v3294 = vld [vmem:[%s251 + $0x9c] sm:$0xe]
      %v3295 = vld [vmem:[%s251 + $0xa0] sm:$0xf]
      %v3296 = vld [vmem:[%s251 + $0xa4] sm:$0x3]
      %v3297 = vld [vmem:[%s251 + $0xa8] sm:$0xe]
      %v3298 = vld [vmem:[%s251 + $0xac] sm:$0xf]
      %v3299 = vld [vmem:[%s251 + $0xb0] sm:$0x3]
      %v3300 = vld [vmem:[%s251 + $0xb4] sm:$0xe]
      %v3301 = vld [vmem:[%s251 + $0xb8] sm:$0xf]
      %v3302 = vld [vmem:[%s251 + $0xbc] sm:$0x3]
      %v3303 = vld [vmem:[%s251 + $0xc0] sm:$0xe]
      %v3304 = vld [vmem:[%s251 + $0xc4] sm:$0xf]
      %v3305 = vld [vmem:[%s251 + $0xc8] sm:$0x3]
      %v3306 = vld [vmem:[%s251 + $0xcc] sm:$0xe]
      %v3307 = vld [vmem:[%s251 + $0xd0] sm:$0xf]
      %v3308 = vld [vmem:[%s251 + $0xd4] sm:$0x3]
      %v3309 = vld [vmem:[%s251 + $0xd8] sm:$0xe]
      %v3310 = vld [vmem:[%s251 + $0xdc] sm:$0xf]
      %v3311 = vld [vmem:[%s251 + $0xe0] sm:$0x3]
      %v3312 = vld [vmem:[%s251 + $0xe4] sm:$0xe]
      %v3313 = vld [vmem:[%s251 + $0xe8] sm:$0xf]
      %v3314 = vld [vmem:[%s251 + $0xec] sm:$0x3]
      %vm3315 = vsmask.f32 2304
      %vm3316 = vsmask.f32 6416
      %vm3317 = vmor %vm3315, %vm3316
      %v3319 = vshrl.u32 %v3255, 16
      %v3321 = vrot.slane %v3319, 5
      %v3322 = vshll.u32 %v3255, 16
      %v3324 = vrot.slane %v3322, 6
      %v3325 = vor.u32 %v3321, %v3324
      %v3326 = vrot.slane %v3325, 4
      %v3328 = vshrl.u32 %v3256, 16
      %v3330 = vrot.slane %v3328, 5
      %v3331 = vshll.u32 %v3256, 16
      %v3333 = vrot.slane %v3331, 6
      %v3334 = vor.u32 %v3330, %v3333
      %v3335 = vsel %vm3317, %v3326, %v3334
      %v3336 = vrot.slane %v3334, 4
      %v3338 = vshrl.u32 %v3257, 16
      %v3340 = vrot.slane %v3338, 5
      %v3341 = vshll.u32 %v3257, 16
      %v3343 = vrot.slane %v3341, 6
      %v3344 = vor.u32 %v3340, %v3343
      %v3345 = vsel %vm3317, %v3336, %v3344
      %v3347 = vshrl.u32 %v3258, 16
      %v3349 = vrot.slane %v3347, 5
      %v3350 = vshll.u32 %v3258, 16
      %v3352 = vrot.slane %v3350, 6
      %v3353 = vor.u32 %v3349, %v3352
      %v3354 = vrot.slane %v3353, 4
      %v3356 = vshrl.u32 %v3259, 16
      %v3358 = vrot.slane %v3356, 5
      %v3359 = vshll.u32 %v3259, 16
      %v3361 = vrot.slane %v3359, 6
      %v3362 = vor.u32 %v3358, %v3361
      %v3363 = vsel %vm3317, %v3354, %v3362
      %v3364 = vrot.slane %v3362, 4
      %v3366 = vshrl.u32 %v3260, 16
      %v3368 = vrot.slane %v3366, 5
      %v3369 = vshll.u32 %v3260, 16
      %v3371 = vrot.slane %v3369, 6
      %v3372 = vor.u32 %v3368, %v3371
      %v3373 = vsel %vm3317, %v3364, %v3372
      %v3375 = vshrl.u32 %v3261, 16
      %v3377 = vrot.slane %v3375, 5
      %v3378 = vshll.u32 %v3261, 16
      %v3380 = vrot.slane %v3378, 6
      %v3381 = vor.u32 %v3377, %v3380
      %v3382 = vrot.slane %v3381, 4
      %v3384 = vshrl.u32 %v3262, 16
      %v3386 = vrot.slane %v3384, 5
      %v3387 = vshll.u32 %v3262, 16
      %v3389 = vrot.slane %v3387, 6
      %v3390 = vor.u32 %v3386, %v3389
      %v3391 = vsel %vm3317, %v3382, %v3390
      %v3392 = vrot.slane %v3390, 4
      %v3394 = vshrl.u32 %v3263, 16
      %v3396 = vrot.slane %v3394, 5
      %v3397 = vshll.u32 %v3263, 16
      %v3399 = vrot.slane %v3397, 6
      %v3400 = vor.u32 %v3396, %v3399
      %v3401 = vsel %vm3317, %v3392, %v3400
      %v3403 = vshrl.u32 %v3264, 16
      %v3405 = vrot.slane %v3403, 5
      %v3406 = vshll.u32 %v3264, 16
      %v3408 = vrot.slane %v3406, 6
      %v3409 = vor.u32 %v3405, %v3408
      %v3410 = vrot.slane %v3409, 4
      %v3412 = vshrl.u32 %v3265, 16
      %v3414 = vrot.slane %v3412, 5
      %v3415 = vshll.u32 %v3265, 16
      %v3417 = vrot.slane %v3415, 6
      %v3418 = vor.u32 %v3414, %v3417
      %v3419 = vsel %vm3317, %v3410, %v3418
      %v3420 = vrot.slane %v3418, 4
      %v3422 = vshrl.u32 %v3266, 16
      %v3424 = vrot.slane %v3422, 5
      %v3425 = vshll.u32 %v3266, 16
      %v3427 = vrot.slane %v3425, 6
      %v3428 = vor.u32 %v3424, %v3427
      %v3429 = vsel %vm3317, %v3420, %v3428
      %v3431 = vshrl.u32 %v3267, 16
      %v3433 = vrot.slane %v3431, 5
      %v3434 = vshll.u32 %v3267, 16
      %v3436 = vrot.slane %v3434, 6
      %v3437 = vor.u32 %v3433, %v3436
      %v3438 = vrot.slane %v3437, 4
      %v3440 = vshrl.u32 %v3268, 16
      %v3442 = vrot.slane %v3440, 5
      %v3443 = vshll.u32 %v3268, 16
      %v3445 = vrot.slane %v3443, 6
      %v3446 = vor.u32 %v3442, %v3445
      %v3447 = vsel %vm3317, %v3438, %v3446
      %v3448 = vrot.slane %v3446, 4
      %v3450 = vshrl.u32 %v3269, 16
      %v3452 = vrot.slane %v3450, 5
      %v3453 = vshll.u32 %v3269, 16
      %v3455 = vrot.slane %v3453, 6
      %v3456 = vor.u32 %v3452, %v3455
      %v3457 = vsel %vm3317, %v3448, %v3456
      %v3459 = vshrl.u32 %v3270, 16
      %v3461 = vrot.slane %v3459, 5
      %v3462 = vshll.u32 %v3270, 16
      %v3464 = vrot.slane %v3462, 6
      %v3465 = vor.u32 %v3461, %v3464
      %v3466 = vrot.slane %v3465, 4
      %v3468 = vshrl.u32 %v3271, 16
      %v3470 = vrot.slane %v3468, 5
      %v3471 = vshll.u32 %v3271, 16
      %v3473 = vrot.slane %v3471, 6
      %v3474 = vor.u32 %v3470, %v3473
      %v3475 = vsel %vm3317, %v3466, %v3474
      %v3476 = vrot.slane %v3474, 4
      %v3478 = vshrl.u32 %v3272, 16
      %v3480 = vrot.slane %v3478, 5
      %v3481 = vshll.u32 %v3272, 16
      %v3483 = vrot.slane %v3481, 6
      %v3484 = vor.u32 %v3480, %v3483
      %v3485 = vsel %vm3317, %v3476, %v3484
      %v3487 = vshrl.u32 %v3273, 16
      %v3489 = vrot.slane %v3487, 5
      %v3490 = vshll.u32 %v3273, 16
      %v3492 = vrot.slane %v3490, 6
      %v3493 = vor.u32 %v3489, %v3492
      %v3494 = vrot.slane %v3493, 4
      %v3496 = vshrl.u32 %v3274, 16
      %v3498 = vrot.slane %v3496, 5
      %v3499 = vshll.u32 %v3274, 16
      %v3501 = vrot.slane %v3499, 6
      %v3502 = vor.u32 %v3498, %v3501
      %v3503 = vsel %vm3317, %v3494, %v3502
      %v3504 = vrot.slane %v3502, 4
      %v3506 = vshrl.u32 %v3275, 16
      %v3508 = vrot.slane %v3506, 5
      %v3509 = vshll.u32 %v3275, 16
      %v3511 = vrot.slane %v3509, 6
      %v3512 = vor.u32 %v3508, %v3511
      %v3513 = vsel %vm3317, %v3504, %v3512
      %v3515 = vshrl.u32 %v3276, 16
      %v3517 = vrot.slane %v3515, 5
      %v3518 = vshll.u32 %v3276, 16
      %v3520 = vrot.slane %v3518, 6
      %v3521 = vor.u32 %v3517, %v3520
      %v3522 = vrot.slane %v3521, 4
      %v3524 = vshrl.u32 %v3277, 16
      %v3526 = vrot.slane %v3524, 5
      %v3527 = vshll.u32 %v3277, 16
      %v3529 = vrot.slane %v3527, 6
      %v3530 = vor.u32 %v3526, %v3529
      %v3531 = vsel %vm3317, %v3522, %v3530
      %v3532 = vrot.slane %v3530, 4
      %v3534 = vshrl.u32 %v3278, 16
      %v3536 = vrot.slane %v3534, 5
      %v3537 = vshll.u32 %v3278, 16
      %v3539 = vrot.slane %v3537, 6
      %v3540 = vor.u32 %v3536, %v3539
      %v3541 = vsel %vm3317, %v3532, %v3540
      %v3543 = vshrl.u32 %v3279, 16
      %v3545 = vrot.slane %v3543, 5
      %v3546 = vshll.u32 %v3279, 16
      %v3548 = vrot.slane %v3546, 6
      %v3549 = vor.u32 %v3545, %v3548
      %v3550 = vrot.slane %v3549, 4
      %v3552 = vshrl.u32 %v3280, 16
      %v3554 = vrot.slane %v3552, 5
      %v3555 = vshll.u32 %v3280, 16
      %v3557 = vrot.slane %v3555, 6
      %v3558 = vor.u32 %v3554, %v3557
      %v3559 = vsel %vm3317, %v3550, %v3558
      %v3560 = vrot.slane %v3558, 4
      %v3562 = vshrl.u32 %v3281, 16
      %v3564 = vrot.slane %v3562, 5
      %v3565 = vshll.u32 %v3281, 16
      %v3567 = vrot.slane %v3565, 6
      %v3568 = vor.u32 %v3564, %v3567
      %v3569 = vsel %vm3317, %v3560, %v3568
      %v3571 = vshrl.u32 %v3282, 16
      %v3573 = vrot.slane %v3571, 5
      %v3574 = vshll.u32 %v3282, 16
      %v3576 = vrot.slane %v3574, 6
      %v3577 = vor.u32 %v3573, %v3576
      %v3578 = vrot.slane %v3577, 4
      %v3580 = vshrl.u32 %v3283, 16
      %v3582 = vrot.slane %v3580, 5
      %v3583 = vshll.u32 %v3283, 16
      %v3585 = vrot.slane %v3583, 6
      %v3586 = vor.u32 %v3582, %v3585
      %v3587 = vsel %vm3317, %v3578, %v3586
      %v3588 = vrot.slane %v3586, 4
      %v3590 = vshrl.u32 %v3284, 16
      %v3592 = vrot.slane %v3590, 5
      %v3593 = vshll.u32 %v3284, 16
      %v3595 = vrot.slane %v3593, 6
      %v3596 = vor.u32 %v3592, %v3595
      %v3597 = vsel %vm3317, %v3588, %v3596
      %v3599 = vshrl.u32 %v3285, 16
      %v3601 = vrot.slane %v3599, 5
      %v3602 = vshll.u32 %v3285, 16
      %v3604 = vrot.slane %v3602, 6
      %v3605 = vor.u32 %v3601, %v3604
      %v3606 = vrot.slane %v3605, 4
      %v3608 = vshrl.u32 %v3286, 16
      %v3610 = vrot.slane %v3608, 5
      %v3611 = vshll.u32 %v3286, 16
      %v3613 = vrot.slane %v3611, 6
      %v3614 = vor.u32 %v3610, %v3613
      %v3615 = vsel %vm3317, %v3606, %v3614
      %v3616 = vrot.slane %v3614, 4
      %v3618 = vshrl.u32 %v3287, 16
      %v3620 = vrot.slane %v3618, 5
      %v3621 = vshll.u32 %v3287, 16
      %v3623 = vrot.slane %v3621, 6
      %v3624 = vor.u32 %v3620, %v3623
      %v3625 = vsel %vm3317, %v3616, %v3624
      %v3627 = vshrl.u32 %v3288, 16
      %v3629 = vrot.slane %v3627, 5
      %v3630 = vshll.u32 %v3288, 16
      %v3632 = vrot.slane %v3630, 6
      %v3633 = vor.u32 %v3629, %v3632
      %v3634 = vrot.slane %v3633, 4
      %v3636 = vshrl.u32 %v3289, 16
      %v3638 = vrot.slane %v3636, 5
      %v3639 = vshll.u32 %v3289, 16
      %v3641 = vrot.slane %v3639, 6
      %v3642 = vor.u32 %v3638, %v3641
      %v3643 = vsel %vm3317, %v3634, %v3642
      %v3644 = vrot.slane %v3642, 4
      %v3646 = vshrl.u32 %v3290, 16
      %v3648 = vrot.slane %v3646, 5
      %v3649 = vshll.u32 %v3290, 16
      %v3651 = vrot.slane %v3649, 6
      %v3652 = vor.u32 %v3648, %v3651
      %v3653 = vsel %vm3317, %v3644, %v3652
      %v3655 = vshrl.u32 %v3291, 16
      %v3657 = vrot.slane %v3655, 5
      %v3658 = vshll.u32 %v3291, 16
      %v3660 = vrot.slane %v3658, 6
      %v3661 = vor.u32 %v3657, %v3660
      %v3662 = vrot.slane %v3661, 4
      %v3664 = vshrl.u32 %v3292, 16
      %v3666 = vrot.slane %v3664, 5
      %v3667 = vshll.u32 %v3292, 16
      %v3669 = vrot.slane %v3667, 6
      %v3670 = vor.u32 %v3666, %v3669
      %v3671 = vsel %vm3317, %v3662, %v3670
      %v3672 = vrot.slane %v3670, 4
      %v3674 = vshrl.u32 %v3293, 16
      %v3676 = vrot.slane %v3674, 5
      %v3677 = vshll.u32 %v3293, 16
      %v3679 = vrot.slane %v3677, 6
      %v3680 = vor.u32 %v3676, %v3679
      %v3681 = vsel %vm3317, %v3672, %v3680
      %v3683 = vshrl.u32 %v3294, 16
      %v3685 = vrot.slane %v3683, 5
      %v3686 = vshll.u32 %v3294, 16
      %v3688 = vrot.slane %v3686, 6
      %v3689 = vor.u32 %v3685, %v3688
      %v3690 = vrot.slane %v3689, 4
      %v3692 = vshrl.u32 %v3295, 16
      %v3694 = vrot.slane %v3692, 5
      %v3695 = vshll.u32 %v3295, 16
      %v3697 = vrot.slane %v3695, 6
      %v3698 = vor.u32 %v3694, %v3697
      %v3699 = vsel %vm3317, %v3690, %v3698
      %v3700 = vrot.slane %v3698, 4
      %v3702 = vshrl.u32 %v3296, 16
      %v3704 = vrot.slane %v3702, 5
      %v3705 = vshll.u32 %v3296, 16
      %v3707 = vrot.slane %v3705, 6
      %v3708 = vor.u32 %v3704, %v3707
      %v3709 = vsel %vm3317, %v3700, %v3708
      %v3711 = vshrl.u32 %v3297, 16
      %v3713 = vrot.slane %v3711, 5
      %v3714 = vshll.u32 %v3297, 16
      %v3716 = vrot.slane %v3714, 6
      %v3717 = vor.u32 %v3713, %v3716
      %v3718 = vrot.slane %v3717, 4
      %v3720 = vshrl.u32 %v3298, 16
      %v3722 = vrot.slane %v3720, 5
      %v3723 = vshll.u32 %v3298, 16
      %v3725 = vrot.slane %v3723, 6
      %v3726 = vor.u32 %v3722, %v3725
      %v3727 = vsel %vm3317, %v3718, %v3726
      %v3728 = vrot.slane %v3726, 4
      %v3730 = vshrl.u32 %v3299, 16
      %v3732 = vrot.slane %v3730, 5
      %v3733 = vshll.u32 %v3299, 16
      %v3735 = vrot.slane %v3733, 6
      %v3736 = vor.u32 %v3732, %v3735
      %v3737 = vsel %vm3317, %v3728, %v3736
      %v3739 = vshrl.u32 %v3300, 16
      %v3741 = vrot.slane %v3739, 5
      %v3742 = vshll.u32 %v3300, 16
      %v3744 = vrot.slane %v3742, 6
      %v3745 = vor.u32 %v3741, %v3744
      %v3746 = vrot.slane %v3745, 4
      %v3748 = vshrl.u32 %v3301, 16
      %v3750 = vrot.slane %v3748, 5
      %v3751 = vshll.u32 %v3301, 16
      %v3753 = vrot.slane %v3751, 6
      %v3754 = vor.u32 %v3750, %v3753
      %v3755 = vsel %vm3317, %v3746, %v3754
      %v3756 = vrot.slane %v3754, 4
      %v3758 = vshrl.u32 %v3302, 16
      %v3760 = vrot.slane %v3758, 5
      %v3761 = vshll.u32 %v3302, 16
      %v3763 = vrot.slane %v3761, 6
      %v3764 = vor.u32 %v3760, %v3763
      %v3765 = vsel %vm3317, %v3756, %v3764
      %v3767 = vshrl.u32 %v3303, 16
      %v3769 = vrot.slane %v3767, 5
      %v3770 = vshll.u32 %v3303, 16
      %v3772 = vrot.slane %v3770, 6
      %v3773 = vor.u32 %v3769, %v3772
      %v3774 = vrot.slane %v3773, 4
      %v3776 = vshrl.u32 %v3304, 16
      %v3778 = vrot.slane %v3776, 5
      %v3779 = vshll.u32 %v3304, 16
      %v3781 = vrot.slane %v3779, 6
      %v3782 = vor.u32 %v3778, %v3781
      %v3783 = vsel %vm3317, %v3774, %v3782
      %v3784 = vrot.slane %v3782, 4
      %v3786 = vshrl.u32 %v3305, 16
      %v3788 = vrot.slane %v3786, 5
      %v3789 = vshll.u32 %v3305, 16
      %v3791 = vrot.slane %v3789, 6
      %v3792 = vor.u32 %v3788, %v3791
      %v3793 = vsel %vm3317, %v3784, %v3792
      %v3795 = vshrl.u32 %v3306, 16
      %v3797 = vrot.slane %v3795, 5
      %v3798 = vshll.u32 %v3306, 16
      %v3800 = vrot.slane %v3798, 6
      %v3801 = vor.u32 %v3797, %v3800
      %v3802 = vrot.slane %v3801, 4
      %v3804 = vshrl.u32 %v3307, 16
      %v3806 = vrot.slane %v3804, 5
      %v3807 = vshll.u32 %v3307, 16
      %v3809 = vrot.slane %v3807, 6
      %v3810 = vor.u32 %v3806, %v3809
      %v3811 = vsel %vm3317, %v3802, %v3810
      %v3812 = vrot.slane %v3810, 4
      %v3814 = vshrl.u32 %v3308, 16
      %v3816 = vrot.slane %v3814, 5
      %v3817 = vshll.u32 %v3308, 16
      %v3819 = vrot.slane %v3817, 6
      %v3820 = vor.u32 %v3816, %v3819
      %v3821 = vsel %vm3317, %v3812, %v3820
      %v3823 = vshrl.u32 %v3309, 16
      %v3825 = vrot.slane %v3823, 5
      %v3826 = vshll.u32 %v3309, 16
      %v3828 = vrot.slane %v3826, 6
      %v3829 = vor.u32 %v3825, %v3828
      %v3830 = vrot.slane %v3829, 4
      %v3832 = vshrl.u32 %v3310, 16
      %v3834 = vrot.slane %v3832, 5
      %v3835 = vshll.u32 %v3310, 16
      %v3837 = vrot.slane %v3835, 6
      %v3838 = vor.u32 %v3834, %v3837
      %v3839 = vsel %vm3317, %v3830, %v3838
      %v3840 = vrot.slane %v3838, 4
      %v3842 = vshrl.u32 %v3311, 16
      %v3844 = vrot.slane %v3842, 5
      %v3845 = vshll.u32 %v3311, 16
      %v3847 = vrot.slane %v3845, 6
      %v3848 = vor.u32 %v3844, %v3847
      %v3849 = vsel %vm3317, %v3840, %v3848
      %v3851 = vshrl.u32 %v3312, 16
      %v3853 = vrot.slane %v3851, 5
      %v3854 = vshll.u32 %v3312, 16
      %v3856 = vrot.slane %v3854, 6
      %v3857 = vor.u32 %v3853, %v3856
      %v3858 = vrot.slane %v3857, 4
      %v3860 = vshrl.u32 %v3313, 16
      %v3862 = vrot.slane %v3860, 5
      %v3863 = vshll.u32 %v3313, 16
      %v3865 = vrot.slane %v3863, 6
      %v3866 = vor.u32 %v3862, %v3865
      %v3867 = vsel %vm3317, %v3858, %v3866
      %v3868 = vrot.slane %v3866, 4
      %v3870 = vshrl.u32 %v3314, 16
      %v3872 = vrot.slane %v3870, 5
      %v3873 = vshll.u32 %v3314, 16
      %v3875 = vrot.slane %v3873, 6
      %v3876 = vor.u32 %v3872, %v3875
      %v3877 = vsel %vm3317, %v3868, %v3876
      %s3878 = scalar_lea.vmem %s1, 128
      %v3879 = vld [vmem:[%s3878] sm:$0xf]
      %v3880 = vld [vmem:[%s3878 + $0x4] sm:$0xf]
      %v3881 = vld [vmem:[%s3878 + $0x8] sm:$0xf]
      %v3882 = vld [vmem:[%s3878 + $0xc] sm:$0xf]
      %v3883 = vld [vmem:[%s3878 + $0x10] sm:$0xf]
      %v3884 = vld [vmem:[%s3878 + $0x14] sm:$0xf]
      %v3885 = vld [vmem:[%s3878 + $0x18] sm:$0xf]
      %v3886 = vld [vmem:[%s3878 + $0x1c] sm:$0xf]
      %v3887 = vld [vmem:[%s3878 + $0x20] sm:$0xf]
      %v3888 = vld [vmem:[%s3878 + $0x24] sm:$0xf]
      %v3889 = vld [vmem:[%s3878 + $0x28] sm:$0xf]
      %v3890 = vld [vmem:[%s3878 + $0x2c] sm:$0xf]
      %v3891 = vld [vmem:[%s3878 + $0x30] sm:$0xf]
      %v3892 = vld [vmem:[%s3878 + $0x34] sm:$0xf]
      %v3893 = vld [vmem:[%s3878 + $0x38] sm:$0xf]
      %v3894 = vld [vmem:[%s3878 + $0x3c] sm:$0xf]
      %v3895 = vunpack.c.l.b16 %v3335
      %v3896 = vunpack.c.l.b16 %v3345
      %v3897 = vunpack.c.l.b16 %v3363
      %v3898 = vunpack.c.l.b16 %v3373
      %v3899 = vunpack.c.l.b16 %v3391
      %v3900 = vunpack.c.l.b16 %v3401
      %v3901 = vunpack.c.l.b16 %v3419
      %v3902 = vunpack.c.l.b16 %v3429
      %v3903 = vunpack.c.l.b16 %v3447
      %v3904 = vunpack.c.l.b16 %v3457
      %v3905 = vunpack.c.l.b16 %v3475
      %v3906 = vunpack.c.l.b16 %v3485
      %v3907 = vunpack.c.l.b16 %v3503
      %v3908 = vunpack.c.l.b16 %v3513
      %v3909 = vunpack.c.l.b16 %v3531
      %v3910 = vunpack.c.l.b16 %v3541
      %v3911 = vunpack.c.l.b16 %v3559
      %v3912 = vunpack.c.l.b16 %v3569
      %v3913 = vunpack.c.l.b16 %v3587
      %v3914 = vunpack.c.l.b16 %v3597
      %v3915 = vunpack.c.l.b16 %v3615
      %v3916 = vunpack.c.l.b16 %v3625
      %v3917 = vunpack.c.l.b16 %v3643
      %v3918 = vunpack.c.l.b16 %v3653
      %v3919 = vunpack.c.l.b16 %v3671
      %v3920 = vunpack.c.l.b16 %v3681
      %v3921 = vunpack.c.l.b16 %v3699
      %v3922 = vunpack.c.l.b16 %v3709
      %v3923 = vunpack.c.l.b16 %v3727
      %v3924 = vunpack.c.l.b16 %v3737
      %v3925 = vunpack.c.l.b16 %v3755
      %v3926 = vunpack.c.l.b16 %v3765
      %v3927 = vunpack.c.l.b16 %v3783
      %v3928 = vunpack.c.l.b16 %v3793
      %v3929 = vunpack.c.l.b16 %v3811
      %v3930 = vunpack.c.l.b16 %v3821
      %v3931 = vpack.c.b16 %v3896, %v3895
      %v3932 = vpack.c.b16 %v3898, %v3897
      %v3933 = vpack.c.b16 %v3900, %v3899
      %v3934 = vpack.c.b16 %v3902, %v3901
      %v3935 = vpack.c.b16 %v3904, %v3903
      %v3936 = vpack.c.b16 %v3906, %v3905
      %v3937 = vpack.c.b16 %v3908, %v3907
      %v3938 = vpack.c.b16 %v3910, %v3909
      %v3939 = vpack.c.b16 %v3912, %v3911
      %v3940 = vpack.c.b16 %v3914, %v3913
      %v3941 = vpack.c.b16 %v3916, %v3915
      %v3942 = vpack.c.b16 %v3918, %v3917
      %v3943 = vpack.c.b16 %v3920, %v3919
      %v3944 = vpack.c.b16 %v3922, %v3921
      %v3945 = vpack.c.b16 %v3924, %v3923
      %v3946 = vpack.c.b16 %v3926, %v3925
      %v3947 = vpack.c.b16 %v3928, %v3927
      %v3948 = vpack.c.b16 %v3930, %v3929
      %v3983 = vunpack.c.l.b16 %v3879
      %v3984 = vunpack.c.l.b16 %v3880
      %v3985 = vunpack.c.l.b16 %v3881
      %v3986 = vunpack.c.l.b16 %v3882
      %v3987 = vunpack.c.l.b16 %v3883
      %v3988 = vunpack.c.l.b16 %v3884
      %v3989 = vunpack.c.l.b16 %v3885
      %v3990 = vunpack.c.l.b16 %v3886
      %v3991 = vunpack.c.l.b16 %v3887
      %v3992 = vunpack.c.l.b16 %v3888
      %v3993 = vunpack.c.l.b16 %v3889
      %v3994 = vunpack.c.l.b16 %v3890
      %v3995 = vunpack.c.l.b16 %v3891
      %v3996 = vunpack.c.l.b16 %v3892
      %v3997 = vunpack.c.l.b16 %v3893
      %v3998 = vunpack.c.l.b16 %v3894
      %v3999 = vpack.c.b16 %v3984, %v3983
      %v4000 = vpack.c.b16 %v3986, %v3985
      %v4001 = vpack.c.b16 %v3988, %v3987
      %v4002 = vpack.c.b16 %v3990, %v3989
      %v4003 = vpack.c.b16 %v3992, %v3991
      %v4004 = vpack.c.b16 %v3994, %v3993
      %v4005 = vpack.c.b16 %v3996, %v3995
      %v4006 = vpack.c.b16 %v3998, %v3997
      %4015 = vmatprep.subr.bf16.mxu0 0
      %4016 = vmatpush1.bf16.msra.mxu0 %v3999
      %4017 = vmatprep.subr.bf16.mxu0 0
      %4018 = vmatpush1.bf16.msra.mxu0 %v4000
      %4019 = vmatprep.subr.bf16.mxu0 0
      %4020 = vmatpush1.bf16.msra.mxu0 %v4001
      %4021 = vmatprep.subr.bf16.mxu0 0
      %4022 = vmatpush1.bf16.msra.mxu0 %v4002
      %4023 = vmatprep.subr.bf16.mxu0 0
      %4024 = vmatpush1.bf16.msra.mxu0 %v4003
      %4025 = vmatprep.subr.bf16.mxu0 0
      %4026 = vmatpush1.bf16.msra.mxu0 %v4004
      %4027 = vmatprep.subr.bf16.mxu0 0
      %4028 = vmatpush1.bf16.msra.mxu0 %v4005
      %4029 = vmatprep.subr.bf16.mxu0 0
      %4030 = vmatpush1.bf16.msra.mxu0 %v4006
      %4031 = vmatprep.subr.bf16.mxu0 0
      %4032 = vmatpush1.bf16.msra.mxu0 0
      %4033 = vmatprep.subr.bf16.mxu0 0
      %4034 = vmatpush1.bf16.msra.mxu0 0
      %4035 = vmatprep.subr.bf16.mxu0 0
      %4036 = vmatpush1.bf16.msra.mxu0 0
      %4037 = vmatprep.subr.bf16.mxu0 0
      %4038 = vmatpush1.bf16.msra.mxu0 0
      %4039 = vmatprep.subr.bf16.mxu0 0
      %4040 = vmatpush1.bf16.msra.mxu0 0
      %4041 = vmatprep.subr.bf16.mxu0 0
      %4042 = vmatpush1.bf16.msra.mxu0 0
      %4043 = vmatprep.subr.bf16.mxu0 0
      %4044 = vmatpush1.bf16.msra.mxu0 0
      %4045 = vmatprep.subr.bf16.mxu0 0
      %4046 = vmatpush1.bf16.msra.mxu0 0
      %4047 = vmatprep.mubr.bf16.mxu0 0
      %4048 = vmatmul.mubr.bf16.gmra.mrb[0].mxu0 %v3931
      %v4049 = vpop.f32.mrb[0].mxu0
      %v4050 = vadd.f32 0.0, %v4049
      %v4051 = vpop.f32.mrb[0].mxu0
      %v4052 = vpop.f32.mrb[0].mxu0
      %v4053 = vadd.f32 0.0, %v4052
      %v4054 = vpop.f32.mrb[0].mxu0
      %4055 = vmatprep.mubr.bf16.mxu0 0
      %4056 = vmatmul.mubr.bf16.gmra.mrb[0].mxu0 %v3932
      %v4057 = vpop.f32.mrb[0].mxu0
      %v4058 = vadd.f32 0.0, %v4057
      %v4059 = vpop.f32.mrb[0].mxu0
      %v4060 = vpop.f32.mrb[0].mxu0
      %v4061 = vadd.f32 0.0, %v4060
      %v4062 = vpop.f32.mrb[0].mxu0
      %4063 = vmatprep.mubr.bf16.mxu0 0
      %4064 = vmatmul.mubr.bf16.gmra.mrb[0].mxu0 %v3933
      %v4065 = vpop.f32.mrb[0].mxu0
      %v4066 = vadd.f32 0.0, %v4065
      %v4067 = vpop.f32.mrb[0].mxu0
      %v4068 = vpop.f32.mrb[0].mxu0
      %v4069 = vadd.f32 0.0, %v4068
      %v4070 = vpop.f32.mrb[0].mxu0
      %4071 = vmatprep.mubr.bf16.mxu0 0
      %4072 = vmatmul.mubr.bf16.gmra.mrb[0].mxu0 %v3934
      %v4073 = vpop.f32.mrb[0].mxu0
      %v4074 = vadd.f32 0.0, %v4073
      %v4075 = vpop.f32.mrb[0].mxu0
      %v4076 = vpop.f32.mrb[0].mxu0
      %v4077 = vadd.f32 0.0, %v4076
      %v4078 = vpop.f32.mrb[0].mxu0
      %4079 = vmatprep.mubr.bf16.mxu0 0
      %4080 = vmatmul.mubr.bf16.gmra.mrb[0].mxu0 %v3935
      %v4081 = vpop.f32.mrb[0].mxu0
      %v4082 = vadd.f32 0.0, %v4081
      %v4083 = vpop.f32.mrb[0].mxu0
      %v4084 = vpop.f32.mrb[0].mxu0
      %v4085 = vadd.f32 0.0, %v4084
      %v4086 = vpop.f32.mrb[0].mxu0
      %4087 = vmatprep.mubr.bf16.mxu0 0
      %4088 = vmatmul.mubr.bf16.gmra.mrb[0].mxu0 %v3936
      %v4089 = vpop.f32.mrb[0].mxu0
      %v4090 = vadd.f32 0.0, %v4089
      %v4091 = vpop.f32.mrb[0].mxu0
      %v4092 = vpop.f32.mrb[0].mxu0
      %v4093 = vadd.f32 0.0, %v4092
      %v4094 = vpop.f32.mrb[0].mxu0
      %4095 = vmatprep.mubr.bf16.mxu0 0
      %4096 = vmatmul.mubr.bf16.gmra.mrb[0].mxu0 %v3937
      %v4097 = vpop.f32.mrb[0].mxu0
      %v4098 = vadd.f32 0.0, %v4097
      %v4099 = vpop.f32.mrb[0].mxu0
      %v4100 = vpop.f32.mrb[0].mxu0
      %v4101 = vadd.f32 0.0, %v4100
      %v4102 = vpop.f32.mrb[0].mxu0
      %4103 = vmatprep.mubr.bf16.mxu0 0
      %4104 = vmatmul.mubr.bf16.gmra.mrb[0].mxu0 %v3938
      %v4105 = vpop.f32.mrb[0].mxu0
      %v4106 = vadd.f32 0.0, %v4105
      %v4107 = vpop.f32.mrb[0].mxu0
      %v4108 = vpop.f32.mrb[0].mxu0
      %v4109 = vadd.f32 0.0, %v4108
      %v4110 = vpop.f32.mrb[0].mxu0
      %4111 = vmatprep.mubr.bf16.mxu0 0
      %4112 = vmatmul.mubr.bf16.gmra.mrb[0].mxu0 %v3939
      %v4113 = vpop.f32.mrb[0].mxu0
      %v4114 = vadd.f32 0.0, %v4113
      %v4115 = vpop.f32.mrb[0].mxu0
      %v4116 = vpop.f32.mrb[0].mxu0
      %v4117 = vadd.f32 0.0, %v4116
      %v4118 = vpop.f32.mrb[0].mxu0
      %4119 = vmatprep.mubr.bf16.mxu0 0
      %4120 = vmatmul.mubr.bf16.gmra.mrb[0].mxu0 %v3940
      %v4121 = vpop.f32.mrb[0].mxu0
      %v4122 = vadd.f32 0.0, %v4121
      %v4123 = vpop.f32.mrb[0].mxu0
      %v4124 = vpop.f32.mrb[0].mxu0
      %v4125 = vadd.f32 0.0, %v4124
      %v4126 = vpop.f32.mrb[0].mxu0
      %4127 = vmatprep.mubr.bf16.mxu0 0
      %4128 = vmatmul.mubr.bf16.gmra.mrb[0].mxu0 %v3941
      %v4129 = vpop.f32.mrb[0].mxu0
      %v4130 = vadd.f32 0.0, %v4129
      %v4131 = vpop.f32.mrb[0].mxu0
      %v4132 = vpop.f32.mrb[0].mxu0
      %v4133 = vadd.f32 0.0, %v4132
      %v4134 = vpop.f32.mrb[0].mxu0
      %4135 = vmatprep.mubr.bf16.mxu0 0
      %4136 = vmatmul.mubr.bf16.gmra.mrb[0].mxu0 %v3942
      %v4137 = vpop.f32.mrb[0].mxu0
      %v4138 = vadd.f32 0.0, %v4137
      %v4139 = vpop.f32.mrb[0].mxu0
      %v4140 = vpop.f32.mrb[0].mxu0
      %v4141 = vadd.f32 0.0, %v4140
      %v4142 = vpop.f32.mrb[0].mxu0
      %4143 = vmatprep.mubr.bf16.mxu0 0
      %4144 = vmatmul.mubr.bf16.gmra.mrb[0].mxu0 %v3943
      %v4145 = vpop.f32.mrb[0].mxu0
      %v4146 = vadd.f32 0.0, %v4145
      %v4147 = vpop.f32.mrb[0].mxu0
      %v4148 = vpop.f32.mrb[0].mxu0
      %v4149 = vadd.f32 0.0, %v4148
      %v4150 = vpop.f32.mrb[0].mxu0
      %4151 = vmatprep.mubr.bf16.mxu0 0
      %4152 = vmatmul.mubr.bf16.gmra.mrb[0].mxu0 %v3944
      %v4153 = vpop.f32.mrb[0].mxu0
      %v4154 = vadd.f32 0.0, %v4153
      %v4155 = vpop.f32.mrb[0].mxu0
      %v4156 = vpop.f32.mrb[0].mxu0
      %v4157 = vadd.f32 0.0, %v4156
      %v4158 = vpop.f32.mrb[0].mxu0
      %4159 = vmatprep.mubr.bf16.mxu0 0
      %4160 = vmatmul.mubr.bf16.gmra.mrb[0].mxu0 %v3945
      %v4161 = vpop.f32.mrb[0].mxu0
      %v4162 = vadd.f32 0.0, %v4161
      %v4163 = vpop.f32.mrb[0].mxu0
      %v4164 = vpop.f32.mrb[0].mxu0
      %v4165 = vadd.f32 0.0, %v4164
      %v4166 = vpop.f32.mrb[0].mxu0
      %4167 = vmatprep.mubr.bf16.mxu0 0
      %4168 = vmatmul.mubr.bf16.gmra.mrb[0].mxu0 %v3946
      %v4169 = vpop.f32.mrb[0].mxu0
      %v4170 = vadd.f32 0.0, %v4169
      %v4171 = vpop.f32.mrb[0].mxu0
      %v4172 = vpop.f32.mrb[0].mxu0
      %v4173 = vadd.f32 0.0, %v4172
      %v4174 = vpop.f32.mrb[0].mxu0
      %4175 = vmatprep.mubr.bf16.mxu0 0
      %4176 = vmatmul.mubr.bf16.gmra.mrb[0].mxu0 %v3947
      %v4177 = vpop.f32.mrb[0].mxu0
      %v4178 = vadd.f32 0.0, %v4177
      %v4179 = vpop.f32.mrb[0].mxu0
      %v4180 = vpop.f32.mrb[0].mxu0
      %v4181 = vadd.f32 0.0, %v4180
      %v4182 = vpop.f32.mrb[0].mxu0
      %4183 = vmatprep.mubr.bf16.mxu0 0
      %4184 = vmatmul.mubr.bf16.gmra.mrb[0].mxu0 %v3948
      %v4185 = vpop.f32.mrb[0].mxu0
      %v4186 = vadd.f32 0.0, %v4185
      %v4187 = vpop.f32.mrb[0].mxu0
      %v4188 = vpop.f32.mrb[0].mxu0
      %v4189 = vadd.f32 0.0, %v4188
      %v4190 = vpop.f32.mrb[0].mxu0
      %4191 = vdwg.mxu0
      %v4192 = vld [vmem:[#allocation3] sm:$0xff]
      %v4193 = vld [vmem:[#allocation3 + $0x8] sm:$0xff]
      %v4194 = vld [vmem:[#allocation3 + $0x10] sm:$0xff]
      %v4195 = vld [vmem:[#allocation3 + $0x18] sm:$0xff]
      %v4196 = vld [vmem:[#allocation3 + $0x20] sm:$0xff]
      %v4197 = vld [vmem:[#allocation3 + $0x28] sm:$0xff]
      %v4198 = vld [vmem:[#allocation3 + $0x30] sm:$0xff]
      %v4199 = vld [vmem:[#allocation3 + $0x38] sm:$0xff]
      %v4200 = vld [vmem:[#allocation3 + $0x40] sm:$0xff]
      %v4201 = vld [vmem:[#allocation3 + $0x48] sm:$0xff]
      %v4202 = vld [vmem:[#allocation3 + $0x50] sm:$0xff]
      %v4203 = vld [vmem:[#allocation3 + $0x58] sm:$0xff]
      %v4204 = vld [vmem:[#allocation3 + $0x60] sm:$0xff]
      %v4205 = vld [vmem:[#allocation3 + $0x68] sm:$0xff]
      %v4206 = vld [vmem:[#allocation3 + $0x70] sm:$0xff]
      %v4207 = vld [vmem:[#allocation3 + $0x78] sm:$0xff]
      %v4208 = vld [vmem:[#allocation3 + $0x80] sm:$0xff]
      %v4209 = vld [vmem:[#allocation3 + $0x88] sm:$0xff]
      %v4210 = vld [vmem:[#allocation3 + $0x90] sm:$0xff]
      %v4211 = vld [vmem:[#allocation3 + $0x98] sm:$0xff]
      %v4212 = vld [vmem:[#allocation3 + $0xa0] sm:$0xff]
      %v4213 = vld [vmem:[#allocation3 + $0xa8] sm:$0xff]
      %v4214 = vld [vmem:[#allocation3 + $0xb0] sm:$0xff]
      %v4215 = vld [vmem:[#allocation3 + $0xb8] sm:$0xff]
      %v4216 = vld [vmem:[#allocation3 + $0xc0] sm:$0xff]
      %v4217 = vld [vmem:[#allocation3 + $0xc8] sm:$0xff]
      %v4218 = vld [vmem:[#allocation3 + $0xd0] sm:$0xff]
      %v4219 = vld [vmem:[#allocation3 + $0xd8] sm:$0xff]
      %v4220 = vld [vmem:[#allocation3 + $0xe0] sm:$0xff]
      %v4221 = vld [vmem:[#allocation3 + $0xe8] sm:$0xff]
      %v4222 = vld [vmem:[#allocation3 + $0xf0] sm:$0xff]
      %v4223 = vld [vmem:[#allocation3 + $0xf8] sm:$0xff]
      %v4224 = vld [vmem:[#allocation3 + $0x100] sm:$0xff]
      %v4225 = vld [vmem:[#allocation3 + $0x108] sm:$0xff]
      %v4226 = vld [vmem:[#allocation3 + $0x110] sm:$0xff]
      %v4227 = vld [vmem:[#allocation3 + $0x118] sm:$0xff]
      %v4228 = vadd.f32 %v4192, %v4050
      %v4229 = vadd.f32 %v4193, %v4053
      %v4230 = vadd.f32 %v4194, %v4058
      %v4231 = vadd.f32 %v4195, %v4061
      %v4232 = vadd.f32 %v4196, %v4066
      %v4233 = vadd.f32 %v4197, %v4069
      %v4234 = vadd.f32 %v4198, %v4074
      %v4235 = vadd.f32 %v4199, %v4077
      %v4236 = vadd.f32 %v4200, %v4082
      %v4237 = vadd.f32 %v4201, %v4085
      %v4238 = vadd.f32 %v4202, %v4090
      %v4239 = vadd.f32 %v4203, %v4093
      %v4240 = vadd.f32 %v4204, %v4098
      %v4241 = vadd.f32 %v4205, %v4101
      %v4242 = vadd.f32 %v4206, %v4106
      %v4243 = vadd.f32 %v4207, %v4109
      %v4244 = vadd.f32 %v4208, %v4114
      %v4245 = vadd.f32 %v4209, %v4117
      %v4246 = vadd.f32 %v4210, %v4122
      %v4247 = vadd.f32 %v4211, %v4125
      %v4248 = vadd.f32 %v4212, %v4130
      %v4249 = vadd.f32 %v4213, %v4133
      %v4250 = vadd.f32 %v4214, %v4138
      %v4251 = vadd.f32 %v4215, %v4141
      %v4252 = vadd.f32 %v4216, %v4146
      %v4253 = vadd.f32 %v4217, %v4149
      %v4254 = vadd.f32 %v4218, %v4154
      %v4255 = vadd.f32 %v4219, %v4157
      %v4256 = vadd.f32 %v4220, %v4162
      %v4257 = vadd.f32 %v4221, %v4165
      %v4258 = vadd.f32 %v4222, %v4170
      %v4259 = vadd.f32 %v4223, %v4173
      %v4260 = vadd.f32 %v4224, %v4178
      %v4261 = vadd.f32 %v4225, %v4181
      %v4262 = vadd.f32 %v4226, %v4186
      %v4263 = vadd.f32 %v4227, %v4189
      %4264 = vst [vmem:[#allocation3] sm:$0xff] %v4228
      %4265 = vst [vmem:[#allocation3 + $0x8] sm:$0xff] %v4229
      %4266 = vst [vmem:[#allocation3 + $0x10] sm:$0xff] %v4230
      %4267 = vst [vmem:[#allocation3 + $0x18] sm:$0xff] %v4231
      %4268 = vst [vmem:[#allocation3 + $0x20] sm:$0xff] %v4232
      %4269 = vst [vmem:[#allocation3 + $0x28] sm:$0xff] %v4233
      %4270 = vst [vmem:[#allocation3 + $0x30] sm:$0xff] %v4234
      %4271 = vst [vmem:[#allocation3 + $0x38] sm:$0xff] %v4235
      %4272 = vst [vmem:[#allocation3 + $0x40] sm:$0xff] %v4236
      %4273 = vst [vmem:[#allocation3 + $0x48] sm:$0xff] %v4237
      %4274 = vst [vmem:[#allocation3 + $0x50] sm:$0xff] %v4238
      %4275 = vst [vmem:[#allocation3 + $0x58] sm:$0xff] %v4239
      %4276 = vst [vmem:[#allocation3 + $0x60] sm:$0xff] %v4240
      %4277 = vst [vmem:[#allocation3 + $0x68] sm:$0xff] %v4241
      %4278 = vst [vmem:[#allocation3 + $0x70] sm:$0xff] %v4242
      %4279 = vst [vmem:[#allocation3 + $0x78] sm:$0xff] %v4243
      %4280 = vst [vmem:[#allocation3 + $0x80] sm:$0xff] %v4244
      %4281 = vst [vmem:[#allocation3 + $0x88] sm:$0xff] %v4245
      %4282 = vst [vmem:[#allocation3 + $0x90] sm:$0xff] %v4246
      %4283 = vst [vmem:[#allocation3 + $0x98] sm:$0xff] %v4247
      %4284 = vst [vmem:[#allocation3 + $0xa0] sm:$0xff] %v4248
      %4285 = vst [vmem:[#allocation3 + $0xa8] sm:$0xff] %v4249
      %4286 = vst [vmem:[#allocation3 + $0xb0] sm:$0xff] %v4250
      %4287 = vst [vmem:[#allocation3 + $0xb8] sm:$0xff] %v4251
      %4288 = vst [vmem:[#allocation3 + $0xc0] sm:$0xff] %v4252
      %4289 = vst [vmem:[#allocation3 + $0xc8] sm:$0xff] %v4253
      %4290 = vst [vmem:[#allocation3 + $0xd0] sm:$0xff] %v4254
      %4291 = vst [vmem:[#allocation3 + $0xd8] sm:$0xff] %v4255
      %4292 = vst [vmem:[#allocation3 + $0xe0] sm:$0xff] %v4256
      %4293 = vst [vmem:[#allocation3 + $0xe8] sm:$0xff] %v4257
      %4294 = vst [vmem:[#allocation3 + $0xf0] sm:$0xff] %v4258
      %4295 = vst [vmem:[#allocation3 + $0xf8] sm:$0xff] %v4259
      %4296 = vst [vmem:[#allocation3 + $0x100] sm:$0xff] %v4260
      %4297 = vst [vmem:[#allocation3 + $0x108] sm:$0xff] %v4261
      %4298 = vst [vmem:[#allocation3 + $0x110] sm:$0xff] %v4262
      %4299 = vst [vmem:[#allocation3 + $0x118] sm:$0xff] %v4263
      %s4300 = scalar_lea.vmem %s1, 320
      %v4301 = vld [vmem:[%s4300] sm:$0xf]
      %v4302 = vld [vmem:[%s4300 + $0x4] sm:$0xf]
      %v4303 = vld [vmem:[%s4300 + $0x8] sm:$0xf]
      %v4304 = vld [vmem:[%s4300 + $0xc] sm:$0xf]
      %v4305 = vld [vmem:[%s4300 + $0x10] sm:$0xf]
      %v4306 = vld [vmem:[%s4300 + $0x14] sm:$0xf]
      %v4307 = vld [vmem:[%s4300 + $0x18] sm:$0xf]
      %v4308 = vld [vmem:[%s4300 + $0x1c] sm:$0xf]
      %v4309 = vld [vmem:[%s4300 + $0x20] sm:$0xf]
      %v4310 = vld [vmem:[%s4300 + $0x24] sm:$0xf]
      %v4311 = vld [vmem:[%s4300 + $0x28] sm:$0xf]
      %v4312 = vld [vmem:[%s4300 + $0x2c] sm:$0xf]
      %v4313 = vld [vmem:[%s4300 + $0x30] sm:$0xf]
      %v4314 = vld [vmem:[%s4300 + $0x34] sm:$0xf]
      %v4315 = vld [vmem:[%s4300 + $0x38] sm:$0xf]
      %v4316 = vld [vmem:[%s4300 + $0x3c] sm:$0xf]
      %v4317 = vunpack.c.l.b16 %v3839
      %v4318 = vunpack.c.l.b16 %v3849
      %v4319 = vpack.c.b16 %v4318, %v4317
      %v4337 = vunpack.c.l.b16 %v4301
      %v4338 = vunpack.c.l.b16 %v4302
      %v4339 = vunpack.c.l.b16 %v4303
      %v4340 = vunpack.c.l.b16 %v4304
      %v4341 = vunpack.c.l.b16 %v4305
      %v4342 = vunpack.c.l.b16 %v4306
      %v4343 = vunpack.c.l.b16 %v4307
      %v4344 = vunpack.c.l.b16 %v4308
      %v4345 = vunpack.c.l.b16 %v4309
      %v4346 = vunpack.c.l.b16 %v4310
      %v4347 = vunpack.c.l.b16 %v4311
      %v4348 = vunpack.c.l.b16 %v4312
      %v4349 = vunpack.c.l.b16 %v4313
      %v4350 = vunpack.c.l.b16 %v4314
      %v4351 = vunpack.c.l.b16 %v4315
      %v4352 = vunpack.c.l.b16 %v4316
      %v4353 = vpack.c.b16 %v4338, %v4337
      %v4354 = vpack.c.b16 %v4340, %v4339
      %v4355 = vpack.c.b16 %v4342, %v4341
      %v4356 = vpack.c.b16 %v4344, %v4343
      %v4357 = vpack.c.b16 %v4346, %v4345
      %v4358 = vpack.c.b16 %v4348, %v4347
      %v4359 = vpack.c.b16 %v4350, %v4349
      %v4360 = vpack.c.b16 %v4352, %v4351
      %4369 = vmatprep.subr.bf16.mxu0 0
      %4370 = vmatpush1.bf16.msra.mxu0 %v4353
      %4371 = vmatprep.subr.bf16.mxu0 0
      %4372 = vmatpush1.bf16.msra.mxu0 %v4354
      %4373 = vmatprep.subr.bf16.mxu0 0
      %4374 = vmatpush1.bf16.msra.mxu0 %v4355
      %4375 = vmatprep.subr.bf16.mxu0 0
      %4376 = vmatpush1.bf16.msra.mxu0 %v4356
      %4377 = vmatprep.subr.bf16.mxu0 0
      %4378 = vmatpush1.bf16.msra.mxu0 %v4357
      %4379 = vmatprep.subr.bf16.mxu0 0
      %4380 = vmatpush1.bf16.msra.mxu0 %v4358
      %4381 = vmatprep.subr.bf16.mxu0 0
      %4382 = vmatpush1.bf16.msra.mxu0 %v4359
      %4383 = vmatprep.subr.bf16.mxu0 0
      %4384 = vmatpush1.bf16.msra.mxu0 %v4360
      %4385 = vmatprep.subr.bf16.mxu0 0
      %4386 = vmatpush1.bf16.msra.mxu0 0
      %4387 = vmatprep.subr.bf16.mxu0 0
      %4388 = vmatpush1.bf16.msra.mxu0 0
      %4389 = vmatprep.subr.bf16.mxu0 0
      %4390 = vmatpush1.bf16.msra.mxu0 0
      %4391 = vmatprep.subr.bf16.mxu0 0
      %4392 = vmatpush1.bf16.msra.mxu0 0
      %4393 = vmatprep.subr.bf16.mxu0 0
      %4394 = vmatpush1.bf16.msra.mxu0 0
      %4395 = vmatprep.subr.bf16.mxu0 0
      %4396 = vmatpush1.bf16.msra.mxu0 0
      %4397 = vmatprep.subr.bf16.mxu0 0
      %4398 = vmatpush1.bf16.msra.mxu0 0
      %4399 = vmatprep.subr.bf16.mxu0 0
      %4400 = vmatpush1.bf16.msra.mxu0 0
      %4401 = vmatprep.mubr.bf16.mxu0 0
      %4402 = vmatmul.mubr.bf16.gmra.mrb[0].mxu0 %v3932
      %v4403 = vpop.f32.mrb[0].mxu0
      %v4404 = vadd.f32 0.0, %v4403
      %v4405 = vpop.f32.mrb[0].mxu0
      %v4406 = vpop.f32.mrb[0].mxu0
      %v4407 = vadd.f32 0.0, %v4406
      %v4408 = vpop.f32.mrb[0].mxu0
      %4409 = vmatprep.mubr.bf16.mxu0 0
      %4410 = vmatmul.mubr.bf16.gmra.mrb[0].mxu0 %v3933
      %v4411 = vpop.f32.mrb[0].mxu0
      %v4412 = vadd.f32 0.0, %v4411
      %v4413 = vpop.f32.mrb[0].mxu0
      %v4414 = vpop.f32.mrb[0].mxu0
      %v4415 = vadd.f32 0.0, %v4414
      %v4416 = vpop.f32.mrb[0].mxu0
      %4417 = vmatprep.mubr.bf16.mxu0 0
      %4418 = vmatmul.mubr.bf16.gmra.mrb[0].mxu0 %v3934
      %v4419 = vpop.f32.mrb[0].mxu0
      %v4420 = vadd.f32 0.0, %v4419
      %v4421 = vpop.f32.mrb[0].mxu0
      %v4422 = vpop.f32.mrb[0].mxu0
      %v4423 = vadd.f32 0.0, %v4422
      %v4424 = vpop.f32.mrb[0].mxu0
      %4425 = vmatprep.mubr.bf16.mxu0 0
      %4426 = vmatmul.mubr.bf16.gmra.mrb[0].mxu0 %v3935
      %v4427 = vpop.f32.mrb[0].mxu0
      %v4428 = vadd.f32 0.0, %v4427
      %v4429 = vpop.f32.mrb[0].mxu0
      %v4430 = vpop.f32.mrb[0].mxu0
      %v4431 = vadd.f32 0.0, %v4430
      %v4432 = vpop.f32.mrb[0].mxu0
      %4433 = vmatprep.mubr.bf16.mxu0 0
      %4434 = vmatmul.mubr.bf16.gmra.mrb[0].mxu0 %v3936
      %v4435 = vpop.f32.mrb[0].mxu0
      %v4436 = vadd.f32 0.0, %v4435
      %v4437 = vpop.f32.mrb[0].mxu0
      %v4438 = vpop.f32.mrb[0].mxu0
      %v4439 = vadd.f32 0.0, %v4438
      %v4440 = vpop.f32.mrb[0].mxu0
      %4441 = vmatprep.mubr.bf16.mxu0 0
      %4442 = vmatmul.mubr.bf16.gmra.mrb[0].mxu0 %v3937
      %v4443 = vpop.f32.mrb[0].mxu0
      %v4444 = vadd.f32 0.0, %v4443
      %v4445 = vpop.f32.mrb[0].mxu0
      %v4446 = vpop.f32.mrb[0].mxu0
      %v4447 = vadd.f32 0.0, %v4446
      %v4448 = vpop.f32.mrb[0].mxu0
      %4449 = vmatprep.mubr.bf16.mxu0 0
      %4450 = vmatmul.mubr.bf16.gmra.mrb[0].mxu0 %v3938
      %v4451 = vpop.f32.mrb[0].mxu0
      %v4452 = vadd.f32 0.0, %v4451
      %v4453 = vpop.f32.mrb[0].mxu0
      %v4454 = vpop.f32.mrb[0].mxu0
      %v4455 = vadd.f32 0.0, %v4454
      %v4456 = vpop.f32.mrb[0].mxu0
      %4457 = vmatprep.mubr.bf16.mxu0 0
      %4458 = vmatmul.mubr.bf16.gmra.mrb[0].mxu0 %v3939
      %v4459 = vpop.f32.mrb[0].mxu0
      %v4460 = vadd.f32 0.0, %v4459
      %v4461 = vpop.f32.mrb[0].mxu0
      %v4462 = vpop.f32.mrb[0].mxu0
      %v4463 = vadd.f32 0.0, %v4462
      %v4464 = vpop.f32.mrb[0].mxu0
      %4465 = vmatprep.mubr.bf16.mxu0 0
      %4466 = vmatmul.mubr.bf16.gmra.mrb[0].mxu0 %v3940
      %v4467 = vpop.f32.mrb[0].mxu0
      %v4468 = vadd.f32 0.0, %v4467
      %v4469 = vpop.f32.mrb[0].mxu0
      %v4470 = vpop.f32.mrb[0].mxu0
      %v4471 = vadd.f32 0.0, %v4470
      %v4472 = vpop.f32.mrb[0].mxu0
      %4473 = vmatprep.mubr.bf16.mxu0 0
      %4474 = vmatmul.mubr.bf16.gmra.mrb[0].mxu0 %v3941
      %v4475 = vpop.f32.mrb[0].mxu0
      %v4476 = vadd.f32 0.0, %v4475
      %v4477 = vpop.f32.mrb[0].mxu0
      %v4478 = vpop.f32.mrb[0].mxu0
      %v4479 = vadd.f32 0.0, %v4478
      %v4480 = vpop.f32.mrb[0].mxu0
      %4481 = vmatprep.mubr.bf16.mxu0 0
      %4482 = vmatmul.mubr.bf16.gmra.mrb[0].mxu0 %v3942
      %v4483 = vpop.f32.mrb[0].mxu0
      %v4484 = vadd.f32 0.0, %v4483
      %v4485 = vpop.f32.mrb[0].mxu0
      %v4486 = vpop.f32.mrb[0].mxu0
      %v4487 = vadd.f32 0.0, %v4486
      %v4488 = vpop.f32.mrb[0].mxu0
      %4489 = vmatprep.mubr.bf16.mxu0 0
      %4490 = vmatmul.mubr.bf16.gmra.mrb[0].mxu0 %v3943
      %v4491 = vpop.f32.mrb[0].mxu0
      %v4492 = vadd.f32 0.0, %v4491
      %v4493 = vpop.f32.mrb[0].mxu0
      %v4494 = vpop.f32.mrb[0].mxu0
      %v4495 = vadd.f32 0.0, %v4494
      %v4496 = vpop.f32.mrb[0].mxu0
      %4497 = vmatprep.mubr.bf16.mxu0 0
      %4498 = vmatmul.mubr.bf16.gmra.mrb[0].mxu0 %v3944
      %v4499 = vpop.f32.mrb[0].mxu0
      %v4500 = vadd.f32 0.0, %v4499
      %v4501 = vpop.f32.mrb[0].mxu0
      %v4502 = vpop.f32.mrb[0].mxu0
      %v4503 = vadd.f32 0.0, %v4502
      %v4504 = vpop.f32.mrb[0].mxu0
      %4505 = vmatprep.mubr.bf16.mxu0 0
      %4506 = vmatmul.mubr.bf16.gmra.mrb[0].mxu0 %v3945
      %v4507 = vpop.f32.mrb[0].mxu0
      %v4508 = vadd.f32 0.0, %v4507
      %v4509 = vpop.f32.mrb[0].mxu0
      %v4510 = vpop.f32.mrb[0].mxu0
      %v4511 = vadd.f32 0.0, %v4510
      %v4512 = vpop.f32.mrb[0].mxu0
      %4513 = vmatprep.mubr.bf16.mxu0 0
      %4514 = vmatmul.mubr.bf16.gmra.mrb[0].mxu0 %v3946
      %v4515 = vpop.f32.mrb[0].mxu0
      %v4516 = vadd.f32 0.0, %v4515
      %v4517 = vpop.f32.mrb[0].mxu0
      %v4518 = vpop.f32.mrb[0].mxu0
      %v4519 = vadd.f32 0.0, %v4518
      %v4520 = vpop.f32.mrb[0].mxu0
      %4521 = vmatprep.mubr.bf16.mxu0 0
      %4522 = vmatmul.mubr.bf16.gmra.mrb[0].mxu0 %v3947
      %v4523 = vpop.f32.mrb[0].mxu0
      %v4524 = vadd.f32 0.0, %v4523
      %v4525 = vpop.f32.mrb[0].mxu0
      %v4526 = vpop.f32.mrb[0].mxu0
      %v4527 = vadd.f32 0.0, %v4526
      %v4528 = vpop.f32.mrb[0].mxu0
      %4529 = vmatprep.mubr.bf16.mxu0 0
      %4530 = vmatmul.mubr.bf16.gmra.mrb[0].mxu0 %v3948
      %v4531 = vpop.f32.mrb[0].mxu0
      %v4532 = vadd.f32 0.0, %v4531
      %v4533 = vpop.f32.mrb[0].mxu0
      %v4534 = vpop.f32.mrb[0].mxu0
      %v4535 = vadd.f32 0.0, %v4534
      %v4536 = vpop.f32.mrb[0].mxu0
      %4537 = vmatprep.mubr.bf16.mxu0 0
      %4538 = vmatmul.mubr.bf16.gmra.mrb[0].mxu0 %v4319
      %v4539 = vpop.f32.mrb[0].mxu0
      %v4540 = vadd.f32 0.0, %v4539
      %v4541 = vpop.f32.mrb[0].mxu0
      %v4542 = vpop.f32.mrb[0].mxu0
      %v4543 = vadd.f32 0.0, %v4542
      %v4544 = vpop.f32.mrb[0].mxu0
      %4545 = vdwg.mxu0
      %v4546 = vld [vmem:[#allocation3] sm:$0xff]
      %v4547 = vld [vmem:[#allocation3 + $0x8] sm:$0xff]
      %v4548 = vld [vmem:[#allocation3 + $0x10] sm:$0xff]
      %v4549 = vld [vmem:[#allocation3 + $0x18] sm:$0xff]
      %v4550 = vld [vmem:[#allocation3 + $0x20] sm:$0xff]
      %v4551 = vld [vmem:[#allocation3 + $0x28] sm:$0xff]
      %v4552 = vld [vmem:[#allocation3 + $0x30] sm:$0xff]
      %v4553 = vld [vmem:[#allocation3 + $0x38] sm:$0xff]
      %v4554 = vld [vmem:[#allocation3 + $0x40] sm:$0xff]
      %v4555 = vld [vmem:[#allocation3 + $0x48] sm:$0xff]
      %v4556 = vld [vmem:[#allocation3 + $0x50] sm:$0xff]
      %v4557 = vld [vmem:[#allocation3 + $0x58] sm:$0xff]
      %v4558 = vld [vmem:[#allocation3 + $0x60] sm:$0xff]
      %v4559 = vld [vmem:[#allocation3 + $0x68] sm:$0xff]
      %v4560 = vld [vmem:[#allocation3 + $0x70] sm:$0xff]
      %v4561 = vld [vmem:[#allocation3 + $0x78] sm:$0xff]
      %v4562 = vld [vmem:[#allocation3 + $0x80] sm:$0xff]
      %v4563 = vld [vmem:[#allocation3 + $0x88] sm:$0xff]
      %v4564 = vld [vmem:[#allocation3 + $0x90] sm:$0xff]
      %v4565 = vld [vmem:[#allocation3 + $0x98] sm:$0xff]
      %v4566 = vld [vmem:[#allocation3 + $0xa0] sm:$0xff]
      %v4567 = vld [vmem:[#allocation3 + $0xa8] sm:$0xff]
      %v4568 = vld [vmem:[#allocation3 + $0xb0] sm:$0xff]
      %v4569 = vld [vmem:[#allocation3 + $0xb8] sm:$0xff]
      %v4570 = vld [vmem:[#allocation3 + $0xc0] sm:$0xff]
      %v4571 = vld [vmem:[#allocation3 + $0xc8] sm:$0xff]
      %v4572 = vld [vmem:[#allocation3 + $0xd0] sm:$0xff]
      %v4573 = vld [vmem:[#allocation3 + $0xd8] sm:$0xff]
      %v4574 = vld [vmem:[#allocation3 + $0xe0] sm:$0xff]
      %v4575 = vld [vmem:[#allocation3 + $0xe8] sm:$0xff]
      %v4576 = vld [vmem:[#allocation3 + $0xf0] sm:$0xff]
      %v4577 = vld [vmem:[#allocation3 + $0xf8] sm:$0xff]
      %v4578 = vld [vmem:[#allocation3 + $0x100] sm:$0xff]
      %v4579 = vld [vmem:[#allocation3 + $0x108] sm:$0xff]
      %v4580 = vld [vmem:[#allocation3 + $0x110] sm:$0xff]
      %v4581 = vld [vmem:[#allocation3 + $0x118] sm:$0xff]
      %v4582 = vadd.f32 %v4546, %v4404
      %v4583 = vadd.f32 %v4547, %v4407
      %v4584 = vadd.f32 %v4548, %v4412
      %v4585 = vadd.f32 %v4549, %v4415
      %v4586 = vadd.f32 %v4550, %v4420
      %v4587 = vadd.f32 %v4551, %v4423
      %v4588 = vadd.f32 %v4552, %v4428
      %v4589 = vadd.f32 %v4553, %v4431
      %v4590 = vadd.f32 %v4554, %v4436
      %v4591 = vadd.f32 %v4555, %v4439
      %v4592 = vadd.f32 %v4556, %v4444
      %v4593 = vadd.f32 %v4557, %v4447
      %v4594 = vadd.f32 %v4558, %v4452
      %v4595 = vadd.f32 %v4559, %v4455
      %v4596 = vadd.f32 %v4560, %v4460
      %v4597 = vadd.f32 %v4561, %v4463
      %v4598 = vadd.f32 %v4562, %v4468
      %v4599 = vadd.f32 %v4563, %v4471
      %v4600 = vadd.f32 %v4564, %v4476
      %v4601 = vadd.f32 %v4565, %v4479
      %v4602 = vadd.f32 %v4566, %v4484
      %v4603 = vadd.f32 %v4567, %v4487
      %v4604 = vadd.f32 %v4568, %v4492
      %v4605 = vadd.f32 %v4569, %v4495
      %v4606 = vadd.f32 %v4570, %v4500
      %v4607 = vadd.f32 %v4571, %v4503
      %v4608 = vadd.f32 %v4572, %v4508
      %v4609 = vadd.f32 %v4573, %v4511
      %v4610 = vadd.f32 %v4574, %v4516
      %v4611 = vadd.f32 %v4575, %v4519
      %v4612 = vadd.f32 %v4576, %v4524
      %v4613 = vadd.f32 %v4577, %v4527
      %v4614 = vadd.f32 %v4578, %v4532
      %v4615 = vadd.f32 %v4579, %v4535
      %v4616 = vadd.f32 %v4580, %v4540
      %v4617 = vadd.f32 %v4581, %v4543
      %4618 = vst [vmem:[#allocation3] sm:$0xff] %v4582
      %4619 = vst [vmem:[#allocation3 + $0x8] sm:$0xff] %v4583
      %4620 = vst [vmem:[#allocation3 + $0x10] sm:$0xff] %v4584
      %4621 = vst [vmem:[#allocation3 + $0x18] sm:$0xff] %v4585
      %4622 = vst [vmem:[#allocation3 + $0x20] sm:$0xff] %v4586
      %4623 = vst [vmem:[#allocation3 + $0x28] sm:$0xff] %v4587
      %4624 = vst [vmem:[#allocation3 + $0x30] sm:$0xff] %v4588
      %4625 = vst [vmem:[#allocation3 + $0x38] sm:$0xff] %v4589
      %4626 = vst [vmem:[#allocation3 + $0x40] sm:$0xff] %v4590
      %4627 = vst [vmem:[#allocation3 + $0x48] sm:$0xff] %v4591
      %4628 = vst [vmem:[#allocation3 + $0x50] sm:$0xff] %v4592
      %4629 = vst [vmem:[#allocation3 + $0x58] sm:$0xff] %v4593
      %4630 = vst [vmem:[#allocation3 + $0x60] sm:$0xff] %v4594
      %4631 = vst [vmem:[#allocation3 + $0x68] sm:$0xff] %v4595
      %4632 = vst [vmem:[#allocation3 + $0x70] sm:$0xff] %v4596
      %4633 = vst [vmem:[#allocation3 + $0x78] sm:$0xff] %v4597
      %4634 = vst [vmem:[#allocation3 + $0x80] sm:$0xff] %v4598
      %4635 = vst [vmem:[#allocation3 + $0x88] sm:$0xff] %v4599
      %4636 = vst [vmem:[#allocation3 + $0x90] sm:$0xff] %v4600
      %4637 = vst [vmem:[#allocation3 + $0x98] sm:$0xff] %v4601
      %4638 = vst [vmem:[#allocation3 + $0xa0] sm:$0xff] %v4602
      %4639 = vst [vmem:[#allocation3 + $0xa8] sm:$0xff] %v4603
      %4640 = vst [vmem:[#allocation3 + $0xb0] sm:$0xff] %v4604
      %4641 = vst [vmem:[#allocation3 + $0xb8] sm:$0xff] %v4605
      %4642 = vst [vmem:[#allocation3 + $0xc0] sm:$0xff] %v4606
      %4643 = vst [vmem:[#allocation3 + $0xc8] sm:$0xff] %v4607
      %4644 = vst [vmem:[#allocation3 + $0xd0] sm:$0xff] %v4608
      %4645 = vst [vmem:[#allocation3 + $0xd8] sm:$0xff] %v4609
      %4646 = vst [vmem:[#allocation3 + $0xe0] sm:$0xff] %v4610
      %4647 = vst [vmem:[#allocation3 + $0xe8] sm:$0xff] %v4611
      %4648 = vst [vmem:[#allocation3 + $0xf0] sm:$0xff] %v4612
      %4649 = vst [vmem:[#allocation3 + $0xf8] sm:$0xff] %v4613
      %4650 = vst [vmem:[#allocation3 + $0x100] sm:$0xff] %v4614
      %4651 = vst [vmem:[#allocation3 + $0x108] sm:$0xff] %v4615
      %4652 = vst [vmem:[#allocation3 + $0x110] sm:$0xff] %v4616
      %4653 = vst [vmem:[#allocation3 + $0x118] sm:$0xff] %v4617
      %s4654 = scalar_lea.vmem %s1, 512
      %v4655 = vld [vmem:[%s4654] sm:$0xf]
      %v4656 = vld [vmem:[%s4654 + $0x4] sm:$0xf]
      %v4657 = vld [vmem:[%s4654 + $0x8] sm:$0xf]
      %v4658 = vld [vmem:[%s4654 + $0xc] sm:$0xf]
      %v4659 = vld [vmem:[%s4654 + $0x10] sm:$0xf]
      %v4660 = vld [vmem:[%s4654 + $0x14] sm:$0xf]
      %v4661 = vld [vmem:[%s4654 + $0x18] sm:$0xf]
      %v4662 = vld [vmem:[%s4654 + $0x1c] sm:$0xf]
      %v4663 = vld [vmem:[%s4654 + $0x20] sm:$0xf]
      %v4664 = vld [vmem:[%s4654 + $0x24] sm:$0xf]
      %v4665 = vld [vmem:[%s4654 + $0x28] sm:$0xf]
      %v4666 = vld [vmem:[%s4654 + $0x2c] sm:$0xf]
      %v4667 = vld [vmem:[%s4654 + $0x30] sm:$0xf]
      %v4668 = vld [vmem:[%s4654 + $0x34] sm:$0xf]
      %v4669 = vld [vmem:[%s4654 + $0x38] sm:$0xf]
      %v4670 = vld [vmem:[%s4654 + $0x3c] sm:$0xf]
      %v4671 = vunpack.c.l.b16 %v3867
      %v4672 = vunpack.c.l.b16 %v3877
      %v4673 = vpack.c.b16 %v4672, %v4671
      %v4691 = vunpack.c.l.b16 %v4655
      %v4692 = vunpack.c.l.b16 %v4656
      %v4693 = vunpack.c.l.b16 %v4657
      %v4694 = vunpack.c.l.b16 %v4658
      %v4695 = vunpack.c.l.b16 %v4659
      %v4696 = vunpack.c.l.b16 %v4660
      %v4697 = vunpack.c.l.b16 %v4661
      %v4698 = vunpack.c.l.b16 %v4662
      %v4699 = vunpack.c.l.b16 %v4663
      %v4700 = vunpack.c.l.b16 %v4664
      %v4701 = vunpack.c.l.b16 %v4665
      %v4702 = vunpack.c.l.b16 %v4666
      %v4703 = vunpack.c.l.b16 %v4667
      %v4704 = vunpack.c.l.b16 %v4668
      %v4705 = vunpack.c.l.b16 %v4669
      %v4706 = vunpack.c.l.b16 %v4670
      %v4707 = vpack.c.b16 %v4692, %v4691
      %v4708 = vpack.c.b16 %v4694, %v4693
      %v4709 = vpack.c.b16 %v4696, %v4695
      %v4710 = vpack.c.b16 %v4698, %v4697
      %v4711 = vpack.c.b16 %v4700, %v4699
      %v4712 = vpack.c.b16 %v4702, %v4701
      %v4713 = vpack.c.b16 %v4704, %v4703
      %v4714 = vpack.c.b16 %v4706, %v4705
      %4723 = vmatprep.subr.bf16.mxu0 0
      %4724 = vmatpush1.bf16.msra.mxu0 %v4707
      %4725 = vmatprep.subr.bf16.mxu0 0
      %4726 = vmatpush1.bf16.msra.mxu0 %v4708
      %4727 = vmatprep.subr.bf16.mxu0 0
      %4728 = vmatpush1.bf16.msra.mxu0 %v4709
      %4729 = vmatprep.subr.bf16.mxu0 0
      %4730 = vmatpush1.bf16.msra.mxu0 %v4710
      %4731 = vmatprep.subr.bf16.mxu0 0
      %4732 = vmatpush1.bf16.msra.mxu0 %v4711
      %4733 = vmatprep.subr.bf16.mxu0 0
      %4734 = vmatpush1.bf16.msra.mxu0 %v4712
      %4735 = vmatprep.subr.bf16.mxu0 0
      %4736 = vmatpush1.bf16.msra.mxu0 %v4713
      %4737 = vmatprep.subr.bf16.mxu0 0
      %4738 = vmatpush1.bf16.msra.mxu0 %v4714
      %4739 = vmatprep.subr.bf16.mxu0 0
      %4740 = vmatpush1.bf16.msra.mxu0 0
      %4741 = vmatprep.subr.bf16.mxu0 0
      %4742 = vmatpush1.bf16.msra.mxu0 0
      %4743 = vmatprep.subr.bf16.mxu0 0
      %4744 = vmatpush1.bf16.msra.mxu0 0
      %4745 = vmatprep.subr.bf16.mxu0 0
      %4746 = vmatpush1.bf16.msra.mxu0 0
      %4747 = vmatprep.subr.bf16.mxu0 0
      %4748 = vmatpush1.bf16.msra.mxu0 0
      %4749 = vmatprep.subr.bf16.mxu0 0
      %4750 = vmatpush1.bf16.msra.mxu0 0
      %4751 = vmatprep.subr.bf16.mxu0 0
      %4752 = vmatpush1.bf16.msra.mxu0 0
      %4753 = vmatprep.subr.bf16.mxu0 0
      %4754 = vmatpush1.bf16.msra.mxu0 0
      %4755 = vmatprep.mubr.bf16.mxu0 0
      %4756 = vmatmul.mubr.bf16.gmra.mrb[0].mxu0 %v3933
      %v4757 = vpop.f32.mrb[0].mxu0
      %v4758 = vadd.f32 0.0, %v4757
      %v4759 = vpop.f32.mrb[0].mxu0
      %v4760 = vpop.f32.mrb[0].mxu0
      %v4761 = vadd.f32 0.0, %v4760
      %v4762 = vpop.f32.mrb[0].mxu0
      %4763 = vmatprep.mubr.bf16.mxu0 0
      %4764 = vmatmul.mubr.bf16.gmra.mrb[0].mxu0 %v3934
      %v4765 = vpop.f32.mrb[0].mxu0
      %v4766 = vadd.f32 0.0, %v4765
      %v4767 = vpop.f32.mrb[0].mxu0
      %v4768 = vpop.f32.mrb[0].mxu0
      %v4769 = vadd.f32 0.0, %v4768
      %v4770 = vpop.f32.mrb[0].mxu0
      %4771 = vmatprep.mubr.bf16.mxu0 0
      %4772 = vmatmul.mubr.bf16.gmra.mrb[0].mxu0 %v3935
      %v4773 = vpop.f32.mrb[0].mxu0
      %v4774 = vadd.f32 0.0, %v4773
      %v4775 = vpop.f32.mrb[0].mxu0
      %v4776 = vpop.f32.mrb[0].mxu0
      %v4777 = vadd.f32 0.0, %v4776
      %v4778 = vpop.f32.mrb[0].mxu0
      %4779 = vmatprep.mubr.bf16.mxu0 0
      %4780 = vmatmul.mubr.bf16.gmra.mrb[0].mxu0 %v3936
      %v4781 = vpop.f32.mrb[0].mxu0
      %v4782 = vadd.f32 0.0, %v4781
      %v4783 = vpop.f32.mrb[0].mxu0
      %v4784 = vpop.f32.mrb[0].mxu0
      %v4785 = vadd.f32 0.0, %v4784
      %v4786 = vpop.f32.mrb[0].mxu0
      %4787 = vmatprep.mubr.bf16.mxu0 0
      %4788 = vmatmul.mubr.bf16.gmra.mrb[0].mxu0 %v3937
      %v4789 = vpop.f32.mrb[0].mxu0
      %v4790 = vadd.f32 0.0, %v4789
      %v4791 = vpop.f32.mrb[0].mxu0
      %v4792 = vpop.f32.mrb[0].mxu0
      %v4793 = vadd.f32 0.0, %v4792
      %v4794 = vpop.f32.mrb[0].mxu0
      %4795 = vmatprep.mubr.bf16.mxu0 0
      %4796 = vmatmul.mubr.bf16.gmra.mrb[0].mxu0 %v3938
      %v4797 = vpop.f32.mrb[0].mxu0
      %v4798 = vadd.f32 0.0, %v4797
      %v4799 = vpop.f32.mrb[0].mxu0
      %v4800 = vpop.f32.mrb[0].mxu0
      %v4801 = vadd.f32 0.0, %v4800
      %v4802 = vpop.f32.mrb[0].mxu0
      %4803 = vmatprep.mubr.bf16.mxu0 0
      %4804 = vmatmul.mubr.bf16.gmra.mrb[0].mxu0 %v3939
      %v4805 = vpop.f32.mrb[0].mxu0
      %v4806 = vadd.f32 0.0, %v4805
      %v4807 = vpop.f32.mrb[0].mxu0
      %v4808 = vpop.f32.mrb[0].mxu0
      %v4809 = vadd.f32 0.0, %v4808
      %v4810 = vpop.f32.mrb[0].mxu0
      %4811 = vmatprep.mubr.bf16.mxu0 0
      %4812 = vmatmul.mubr.bf16.gmra.mrb[0].mxu0 %v3940
      %v4813 = vpop.f32.mrb[0].mxu0
      %v4814 = vadd.f32 0.0, %v4813
      %v4815 = vpop.f32.mrb[0].mxu0
      %v4816 = vpop.f32.mrb[0].mxu0
      %v4817 = vadd.f32 0.0, %v4816
      %v4818 = vpop.f32.mrb[0].mxu0
      %4819 = vmatprep.mubr.bf16.mxu0 0
      %4820 = vmatmul.mubr.bf16.gmra.mrb[0].mxu0 %v3941
      %v4821 = vpop.f32.mrb[0].mxu0
      %v4822 = vadd.f32 0.0, %v4821
      %v4823 = vpop.f32.mrb[0].mxu0
      %v4824 = vpop.f32.mrb[0].mxu0
      %v4825 = vadd.f32 0.0, %v4824
      %v4826 = vpop.f32.mrb[0].mxu0
      %4827 = vmatprep.mubr.bf16.mxu0 0
      %4828 = vmatmul.mubr.bf16.gmra.mrb[0].mxu0 %v3942
      %v4829 = vpop.f32.mrb[0].mxu0
      %v4830 = vadd.f32 0.0, %v4829
      %v4831 = vpop.f32.mrb[0].mxu0
      %v4832 = vpop.f32.mrb[0].mxu0
      %v4833 = vadd.f32 0.0, %v4832
      %v4834 = vpop.f32.mrb[0].mxu0
      %4835 = vmatprep.mubr.bf16.mxu0 0
      %4836 = vmatmul.mubr.bf16.gmra.mrb[0].mxu0 %v3943
      %v4837 = vpop.f32.mrb[0].mxu0
      %v4838 = vadd.f32 0.0, %v4837
      %v4839 = vpop.f32.mrb[0].mxu0
      %v4840 = vpop.f32.mrb[0].mxu0
      %v4841 = vadd.f32 0.0, %v4840
      %v4842 = vpop.f32.mrb[0].mxu0
      %4843 = vmatprep.mubr.bf16.mxu0 0
      %4844 = vmatmul.mubr.bf16.gmra.mrb[0].mxu0 %v3944
      %v4845 = vpop.f32.mrb[0].mxu0
      %v4846 = vadd.f32 0.0, %v4845
      %v4847 = vpop.f32.mrb[0].mxu0
      %v4848 = vpop.f32.mrb[0].mxu0
      %v4849 = vadd.f32 0.0, %v4848
      %v4850 = vpop.f32.mrb[0].mxu0
      %4851 = vmatprep.mubr.bf16.mxu0 0
      %4852 = vmatmul.mubr.bf16.gmra.mrb[0].mxu0 %v3945
      %v4853 = vpop.f32.mrb[0].mxu0
      %v4854 = vadd.f32 0.0, %v4853
      %v4855 = vpop.f32.mrb[0].mxu0
      %v4856 = vpop.f32.mrb[0].mxu0
      %v4857 = vadd.f32 0.0, %v4856
      %v4858 = vpop.f32.mrb[0].mxu0
      %4859 = vmatprep.mubr.bf16.mxu0 0
      %4860 = vmatmul.mubr.bf16.gmra.mrb[0].mxu0 %v3946
      %v4861 = vpop.f32.mrb[0].mxu0
      %v4862 = vadd.f32 0.0, %v4861
      %v4863 = vpop.f32.mrb[0].mxu0
      %v4864 = vpop.f32.mrb[0].mxu0
      %v4865 = vadd.f32 0.0, %v4864
      %v4866 = vpop.f32.mrb[0].mxu0
      %4867 = vmatprep.mubr.bf16.mxu0 0
      %4868 = vmatmul.mubr.bf16.gmra.mrb[0].mxu0 %v3947
      %v4869 = vpop.f32.mrb[0].mxu0
      %v4870 = vadd.f32 0.0, %v4869
      %v4871 = vpop.f32.mrb[0].mxu0
      %v4872 = vpop.f32.mrb[0].mxu0
      %v4873 = vadd.f32 0.0, %v4872
      %v4874 = vpop.f32.mrb[0].mxu0
      %4875 = vmatprep.mubr.bf16.mxu0 0
      %4876 = vmatmul.mubr.bf16.gmra.mrb[0].mxu0 %v3948
      %v4877 = vpop.f32.mrb[0].mxu0
      %v4878 = vadd.f32 0.0, %v4877
      %v4879 = vpop.f32.mrb[0].mxu0
      %v4880 = vpop.f32.mrb[0].mxu0
      %v4881 = vadd.f32 0.0, %v4880
      %v4882 = vpop.f32.mrb[0].mxu0
      %4883 = vmatprep.mubr.bf16.mxu0 0
      %4884 = vmatmul.mubr.bf16.gmra.mrb[0].mxu0 %v4319
      %v4885 = vpop.f32.mrb[0].mxu0
      %v4886 = vadd.f32 0.0, %v4885
      %v4887 = vpop.f32.mrb[0].mxu0
      %v4888 = vpop.f32.mrb[0].mxu0
      %v4889 = vadd.f32 0.0, %v4888
      %v4890 = vpop.f32.mrb[0].mxu0
      %4891 = vmatprep.mubr.bf16.mxu0 0
      %4892 = vmatmul.mubr.bf16.gmra.mrb[0].mxu0 %v4673
      %v4893 = vpop.f32.mrb[0].mxu0
      %v4894 = vadd.f32 0.0, %v4893
      %v4895 = vpop.f32.mrb[0].mxu0
      %v4896 = vpop.f32.mrb[0].mxu0
      %v4897 = vadd.f32 0.0, %v4896
      %v4898 = vpop.f32.mrb[0].mxu0
      %4899 = vdwg.mxu0
      %v4900 = vld [vmem:[#allocation3] sm:$0xff]
      %v4901 = vld [vmem:[#allocation3 + $0x8] sm:$0xff]
      %v4902 = vld [vmem:[#allocation3 + $0x10] sm:$0xff]
      %v4903 = vld [vmem:[#allocation3 + $0x18] sm:$0xff]
      %v4904 = vld [vmem:[#allocation3 + $0x20] sm:$0xff]
      %v4905 = vld [vmem:[#allocation3 + $0x28] sm:$0xff]
      %v4906 = vld [vmem:[#allocation3 + $0x30] sm:$0xff]
      %v4907 = vld [vmem:[#allocation3 + $0x38] sm:$0xff]
      %v4908 = vld [vmem:[#allocation3 + $0x40] sm:$0xff]
      %v4909 = vld [vmem:[#allocation3 + $0x48] sm:$0xff]
      %v4910 = vld [vmem:[#allocation3 + $0x50] sm:$0xff]
      %v4911 = vld [vmem:[#allocation3 + $0x58] sm:$0xff]
      %v4912 = vld [vmem:[#allocation3 + $0x60] sm:$0xff]
      %v4913 = vld [vmem:[#allocation3 + $0x68] sm:$0xff]
      %v4914 = vld [vmem:[#allocation3 + $0x70] sm:$0xff]
      %v4915 = vld [vmem:[#allocation3 + $0x78] sm:$0xff]
      %v4916 = vld [vmem:[#allocation3 + $0x80] sm:$0xff]
      %v4917 = vld [vmem:[#allocation3 + $0x88] sm:$0xff]
      %v4918 = vld [vmem:[#allocation3 + $0x90] sm:$0xff]
      %v4919 = vld [vmem:[#allocation3 + $0x98] sm:$0xff]
      %v4920 = vld [vmem:[#allocation3 + $0xa0] sm:$0xff]
      %v4921 = vld [vmem:[#allocation3 + $0xa8] sm:$0xff]
      %v4922 = vld [vmem:[#allocation3 + $0xb0] sm:$0xff]
      %v4923 = vld [vmem:[#allocation3 + $0xb8] sm:$0xff]
      %v4924 = vld [vmem:[#allocation3 + $0xc0] sm:$0xff]
      %v4925 = vld [vmem:[#allocation3 + $0xc8] sm:$0xff]
      %v4926 = vld [vmem:[#allocation3 + $0xd0] sm:$0xff]
      %v4927 = vld [vmem:[#allocation3 + $0xd8] sm:$0xff]
      %v4928 = vld [vmem:[#allocation3 + $0xe0] sm:$0xff]
      %v4929 = vld [vmem:[#allocation3 + $0xe8] sm:$0xff]
      %v4930 = vld [vmem:[#allocation3 + $0xf0] sm:$0xff]
      %v4931 = vld [vmem:[#allocation3 + $0xf8] sm:$0xff]
      %v4932 = vld [vmem:[#allocation3 + $0x100] sm:$0xff]
      %v4933 = vld [vmem:[#allocation3 + $0x108] sm:$0xff]
      %v4934 = vld [vmem:[#allocation3 + $0x110] sm:$0xff]
      %v4935 = vld [vmem:[#allocation3 + $0x118] sm:$0xff]
      %v4936 = vadd.f32 %v4900, %v4758
      %v4937 = vadd.f32 %v4901, %v4761
      %v4938 = vadd.f32 %v4902, %v4766
      %v4939 = vadd.f32 %v4903, %v4769
      %v4940 = vadd.f32 %v4904, %v4774
      %v4941 = vadd.f32 %v4905, %v4777
      %v4942 = vadd.f32 %v4906, %v4782
      %v4943 = vadd.f32 %v4907, %v4785
      %v4944 = vadd.f32 %v4908, %v4790
      %v4945 = vadd.f32 %v4909, %v4793
      %v4946 = vadd.f32 %v4910, %v4798
      %v4947 = vadd.f32 %v4911, %v4801
      %v4948 = vadd.f32 %v4912, %v4806
      %v4949 = vadd.f32 %v4913, %v4809
      %v4950 = vadd.f32 %v4914, %v4814
      %v4951 = vadd.f32 %v4915, %v4817
      %v4952 = vadd.f32 %v4916, %v4822
      %v4953 = vadd.f32 %v4917, %v4825
      %v4954 = vadd.f32 %v4918, %v4830
      %v4955 = vadd.f32 %v4919, %v4833
      %v4956 = vadd.f32 %v4920, %v4838
      %v4957 = vadd.f32 %v4921, %v4841
      %v4958 = vadd.f32 %v4922, %v4846
      %v4959 = vadd.f32 %v4923, %v4849
      %v4960 = vadd.f32 %v4924, %v4854
      %v4961 = vadd.f32 %v4925, %v4857
      %v4962 = vadd.f32 %v4926, %v4862
      %v4963 = vadd.f32 %v4927, %v4865
      %v4964 = vadd.f32 %v4928, %v4870
      %v4965 = vadd.f32 %v4929, %v4873
      %v4966 = vadd.f32 %v4930, %v4878
      %v4967 = vadd.f32 %v4931, %v4881
      %v4968 = vadd.f32 %v4932, %v4886
      %v4969 = vadd.f32 %v4933, %v4889
      %v4970 = vadd.f32 %v4934, %v4894
      %v4971 = vadd.f32 %v4935, %v4897
      %4972 = vst [vmem:[#allocation3] sm:$0xff] %v4936
      %4973 = vst [vmem:[#allocation3 + $0x8] sm:$0xff] %v4937
      %4974 = vst [vmem:[#allocation3 + $0x10] sm:$0xff] %v4938
      %4975 = vst [vmem:[#allocation3 + $0x18] sm:$0xff] %v4939
      %4976 = vst [vmem:[#allocation3 + $0x20] sm:$0xff] %v4940
      %4977 = vst [vmem:[#allocation3 + $0x28] sm:$0xff] %v4941
      %4978 = vst [vmem:[#allocation3 + $0x30] sm:$0xff] %v4942
      %4979 = vst [vmem:[#allocation3 + $0x38] sm:$0xff] %v4943
      %4980 = vst [vmem:[#allocation3 + $0x40] sm:$0xff] %v4944
      %4981 = vst [vmem:[#allocation3 + $0x48] sm:$0xff] %v4945
      %4982 = vst [vmem:[#allocation3 + $0x50] sm:$0xff] %v4946
      %4983 = vst [vmem:[#allocation3 + $0x58] sm:$0xff] %v4947
      %4984 = vst [vmem:[#allocation3 + $0x60] sm:$0xff] %v4948
      %4985 = vst [vmem:[#allocation3 + $0x68] sm:$0xff] %v4949
      %4986 = vst [vmem:[#allocation3 + $0x70] sm:$0xff] %v4950
      %4987 = vst [vmem:[#allocation3 + $0x78] sm:$0xff] %v4951
      %4988 = vst [vmem:[#allocation3 + $0x80] sm:$0xff] %v4952
      %4989 = vst [vmem:[#allocation3 + $0x88] sm:$0xff] %v4953
      %4990 = vst [vmem:[#allocation3 + $0x90] sm:$0xff] %v4954
      %4991 = vst [vmem:[#allocation3 + $0x98] sm:$0xff] %v4955
      %4992 = vst [vmem:[#allocation3 + $0xa0] sm:$0xff] %v4956
      %4993 = vst [vmem:[#allocation3 + $0xa8] sm:$0xff] %v4957
      %4994 = vst [vmem:[#allocation3 + $0xb0] sm:$0xff] %v4958
      %4995 = vst [vmem:[#allocation3 + $0xb8] sm:$0xff] %v4959
      %4996 = vst [vmem:[#allocation3 + $0xc0] sm:$0xff] %v4960
      %4997 = vst [vmem:[#allocation3 + $0xc8] sm:$0xff] %v4961
      %4998 = vst [vmem:[#allocation3 + $0xd0] sm:$0xff] %v4962
      %4999 = vst [vmem:[#allocation3 + $0xd8] sm:$0xff] %v4963
      %5000 = vst [vmem:[#allocation3 + $0xe0] sm:$0xff] %v4964
      %5001 = vst [vmem:[#allocation3 + $0xe8] sm:$0xff] %v4965
      %5002 = vst [vmem:[#allocation3 + $0xf0] sm:$0xff] %v4966
      %5003 = vst [vmem:[#allocation3 + $0xf8] sm:$0xff] %v4967
      %5004 = vst [vmem:[#allocation3 + $0x100] sm:$0xff] %v4968
      %5005 = vst [vmem:[#allocation3 + $0x108] sm:$0xff] %v4969
      %5006 = vst [vmem:[#allocation3 + $0x110] sm:$0xff] %v4970
      %5007 = vst [vmem:[#allocation3 + $0x118] sm:$0xff] %v4971
      %v5008 = vld [vmem:[#allocation3] sm:$0xff]
      %v5009 = vld [vmem:[#allocation3 + $0x8] sm:$0xff]
      %v5010 = vld [vmem:[#allocation3 + $0x10] sm:$0xff]
      %v5011 = vld [vmem:[#allocation3 + $0x18] sm:$0xff]
      %v5012 = vld [vmem:[#allocation3 + $0x20] sm:$0xff]
      %v5013 = vld [vmem:[#allocation3 + $0x28] sm:$0xff]
      %v5014 = vld [vmem:[#allocation3 + $0x30] sm:$0xff]
      %v5015 = vld [vmem:[#allocation3 + $0x38] sm:$0xff]
      %v5016 = vld [vmem:[#allocation3 + $0x40] sm:$0xff]
      %v5017 = vld [vmem:[#allocation3 + $0x48] sm:$0xff]
      %v5018 = vld [vmem:[#allocation3 + $0x50] sm:$0xff]
      %v5019 = vld [vmem:[#allocation3 + $0x58] sm:$0xff]
      %v5020 = vld [vmem:[#allocation3 + $0x60] sm:$0xff]
      %v5021 = vld [vmem:[#allocation3 + $0x68] sm:$0xff]
      %v5022 = vld [vmem:[#allocation3 + $0x70] sm:$0xff]
      %v5023 = vld [vmem:[#allocation3 + $0x78] sm:$0xff]
      %v5024 = vld [vmem:[#allocation3 + $0x80] sm:$0xff]
      %v5025 = vld [vmem:[#allocation3 + $0x88] sm:$0xff]
      %v5026 = vld [vmem:[#allocation3 + $0x90] sm:$0xff]
      %v5027 = vld [vmem:[#allocation3 + $0x98] sm:$0xff]
      %v5028 = vld [vmem:[#allocation3 + $0xa0] sm:$0xff]
      %v5029 = vld [vmem:[#allocation3 + $0xa8] sm:$0xff]
      %v5030 = vld [vmem:[#allocation3 + $0xb0] sm:$0xff]
      %v5031 = vld [vmem:[#allocation3 + $0xb8] sm:$0xff]
      %v5032 = vld [vmem:[#allocation3 + $0xc0] sm:$0xff]
      %v5033 = vld [vmem:[#allocation3 + $0xc8] sm:$0xff]
      %v5034 = vld [vmem:[#allocation3 + $0xd0] sm:$0xff]
      %v5035 = vld [vmem:[#allocation3 + $0xd8] sm:$0xff]
      %v5036 = vld [vmem:[#allocation3 + $0xe0] sm:$0xff]
      %v5037 = vld [vmem:[#allocation3 + $0xe8] sm:$0xff]
      %v5038 = vld [vmem:[#allocation3 + $0xf0] sm:$0xff]
      %v5039 = vld [vmem:[#allocation3 + $0xf8] sm:$0xff]
      %v5040 = vld [vmem:[#allocation3 + $0x100] sm:$0xff]
      %v5041 = vld [vmem:[#allocation3 + $0x108] sm:$0xff]
      %v5042 = vld [vmem:[#allocation3 + $0x110] sm:$0xff]
      %v5043 = vld [vmem:[#allocation3 + $0x118] sm:$0xff]
      %v5044 = vld [vmem:[%s2] sm:$0x1]
      %v5046 = vlaneseq
      %v5047 = vshrl.u32 %v5046, 7
      %v5048 = vsub.s32 0, %v5047
      %v5049 = vrot.slane %v5044, %v5048
      %v5051 = vadd.f32 %v5008, %v5049
      %v5052 = vadd.f32 %v5009, %v5049
      %v5053 = vadd.f32 %v5010, %v5049
      %v5054 = vadd.f32 %v5011, %v5049
      %v5055 = vadd.f32 %v5012, %v5049
      %v5056 = vadd.f32 %v5013, %v5049
      %v5057 = vadd.f32 %v5014, %v5049
      %v5058 = vadd.f32 %v5015, %v5049
      %v5059 = vadd.f32 %v5016, %v5049
      %v5060 = vadd.f32 %v5017, %v5049
      %v5061 = vadd.f32 %v5018, %v5049
      %v5062 = vadd.f32 %v5019, %v5049
      %v5063 = vadd.f32 %v5020, %v5049
      %v5064 = vadd.f32 %v5021, %v5049
      %v5065 = vadd.f32 %v5022, %v5049
      %v5066 = vadd.f32 %v5023, %v5049
      %v5067 = vadd.f32 %v5024, %v5049
      %v5068 = vadd.f32 %v5025, %v5049
      %v5069 = vadd.f32 %v5026, %v5049
      %v5070 = vadd.f32 %v5027, %v5049
      %v5071 = vadd.f32 %v5028, %v5049
      %v5072 = vadd.f32 %v5029, %v5049
      %v5073 = vadd.f32 %v5030, %v5049
      %v5074 = vadd.f32 %v5031, %v5049
      %v5075 = vadd.f32 %v5032, %v5049
      %v5076 = vadd.f32 %v5033, %v5049
      %v5077 = vadd.f32 %v5034, %v5049
      %v5078 = vadd.f32 %v5035, %v5049
      %v5079 = vadd.f32 %v5036, %v5049
      %v5080 = vadd.f32 %v5037, %v5049
      %v5081 = vadd.f32 %v5038, %v5049
      %v5082 = vadd.f32 %v5039, %v5049
      %v5083 = vadd.f32 %v5040, %v5049
      %v5084 = vadd.f32 %v5041, %v5049
      %v5085 = vadd.f32 %v5042, %v5049
      %v5086 = vadd.f32 %v5043, %v5049
      %v5087 = vmax.f32 %v5051, 0.0
      %v5088 = vmax.f32 %v5052, 0.0
      %v5089 = vmax.f32 %v5053, 0.0
      %v5090 = vmax.f32 %v5054, 0.0
      %v5091 = vmax.f32 %v5055, 0.0
      %v5092 = vmax.f32 %v5056, 0.0
      %v5093 = vmax.f32 %v5057, 0.0
      %v5094 = vmax.f32 %v5058, 0.0
      %v5095 = vmax.f32 %v5059, 0.0
      %v5096 = vmax.f32 %v5060, 0.0
      %v5097 = vmax.f32 %v5061, 0.0
      %v5098 = vmax.f32 %v5062, 0.0
      %v5099 = vmax.f32 %v5063, 0.0
      %v5100 = vmax.f32 %v5064, 0.0
      %v5101 = vmax.f32 %v5065, 0.0
      %v5102 = vmax.f32 %v5066, 0.0
      %v5103 = vmax.f32 %v5067, 0.0
      %v5104 = vmax.f32 %v5068, 0.0
      %v5105 = vmax.f32 %v5069, 0.0
      %v5106 = vmax.f32 %v5070, 0.0
      %v5107 = vmax.f32 %v5071, 0.0
      %v5108 = vmax.f32 %v5072, 0.0
      %v5109 = vmax.f32 %v5073, 0.0
      %v5110 = vmax.f32 %v5074, 0.0
      %v5111 = vmax.f32 %v5075, 0.0
      %v5112 = vmax.f32 %v5076, 0.0
      %v5113 = vmax.f32 %v5077, 0.0
      %v5114 = vmax.f32 %v5078, 0.0
      %v5115 = vmax.f32 %v5079, 0.0
      %v5116 = vmax.f32 %v5080, 0.0
      %v5117 = vmax.f32 %v5081, 0.0
      %v5118 = vmax.f32 %v5082, 0.0
      %v5119 = vmax.f32 %v5083, 0.0
      %v5120 = vmax.f32 %v5084, 0.0
      %v5121 = vmax.f32 %v5085, 0.0
      %v5122 = vmax.f32 %v5086, 0.0
      %v5123 = vpack.c.bf16 %v5088, %v5087
      %v5124 = vpack.c.bf16 %v5090, %v5089
      %v5125 = vpack.c.bf16 %v5092, %v5091
      %v5126 = vpack.c.bf16 %v5094, %v5093
      %v5127 = vpack.c.bf16 %v5096, %v5095
      %v5128 = vpack.c.bf16 %v5098, %v5097
      %v5129 = vpack.c.bf16 %v5100, %v5099
      %v5130 = vpack.c.bf16 %v5102, %v5101
      %v5131 = vpack.c.bf16 %v5104, %v5103
      %v5132 = vpack.c.bf16 %v5106, %v5105
      %v5133 = vpack.c.bf16 %v5108, %v5107
      %v5134 = vpack.c.bf16 %v5110, %v5109
      %v5135 = vpack.c.bf16 %v5112, %v5111
      %v5136 = vpack.c.bf16 %v5114, %v5113
      %v5137 = vpack.c.bf16 %v5116, %v5115
      %v5138 = vpack.c.bf16 %v5118, %v5117
      %v5139 = vpack.c.bf16 %v5120, %v5119
      %v5140 = vpack.c.bf16 %v5122, %v5121
      %v5159 = vunpack.c.l.b16 %v5123
      %v5160 = vunpack.c.h.b16 %v5123
      %v5161 = vunpack.c.l.b16 %v5124
      %v5162 = vunpack.c.h.b16 %v5124
      %v5163 = vunpack.c.l.b16 %v5125
      %v5164 = vunpack.c.h.b16 %v5125
      %v5165 = vunpack.c.l.b16 %v5126
      %v5166 = vunpack.c.h.b16 %v5126
      %v5167 = vunpack.c.l.b16 %v5127
      %v5168 = vunpack.c.h.b16 %v5127
      %v5169 = vunpack.c.l.b16 %v5128
      %v5170 = vunpack.c.h.b16 %v5128
      %v5171 = vunpack.c.l.b16 %v5129
      %v5172 = vunpack.c.h.b16 %v5129
      %v5173 = vunpack.c.l.b16 %v5130
      %v5174 = vunpack.c.h.b16 %v5130
      %v5175 = vunpack.c.l.b16 %v5131
      %v5176 = vunpack.c.h.b16 %v5131
      %v5177 = vunpack.c.l.b16 %v5132
      %v5178 = vunpack.c.h.b16 %v5132
      %v5179 = vunpack.c.l.b16 %v5133
      %v5180 = vunpack.c.h.b16 %v5133
      %v5181 = vunpack.c.l.b16 %v5134
      %v5182 = vunpack.c.h.b16 %v5134
      %v5183 = vunpack.c.l.b16 %v5135
      %v5184 = vunpack.c.h.b16 %v5135
      %v5185 = vunpack.c.l.b16 %v5136
      %v5186 = vunpack.c.h.b16 %v5136
      %v5187 = vunpack.c.l.b16 %v5137
      %v5188 = vunpack.c.h.b16 %v5137
      %v5189 = vunpack.c.l.b16 %v5138
      %v5190 = vunpack.c.h.b16 %v5138
      %v5191 = vunpack.c.l.b16 %v5139
      %v5192 = vunpack.c.h.b16 %v5139
      %v5193 = vunpack.c.l.b16 %v5140
      %v5194 = vunpack.c.h.b16 %v5140
      %v5195 = vpack.c.b16 %v5159, %v5159
      %v5196 = vpack.c.b16 %v5160, %v5160
      %v5197 = vpack.c.b16 %v5161, %v5161
      %v5198 = vpack.c.b16 %v5162, %v5162
      %v5199 = vpack.c.b16 %v5163, %v5163
      %v5200 = vpack.c.b16 %v5164, %v5164
      %v5201 = vpack.c.b16 %v5165, %v5165
      %v5202 = vpack.c.b16 %v5166, %v5166
      %v5203 = vpack.c.b16 %v5167, %v5167
      %v5204 = vpack.c.b16 %v5168, %v5168
      %v5205 = vpack.c.b16 %v5169, %v5169
      %v5206 = vpack.c.b16 %v5170, %v5170
      %v5207 = vpack.c.b16 %v5171, %v5171
      %v5208 = vpack.c.b16 %v5172, %v5172
      %v5209 = vpack.c.b16 %v5173, %v5173
      %v5210 = vpack.c.b16 %v5174, %v5174
      %v5211 = vpack.c.b16 %v5175, %v5175
      %v5212 = vpack.c.b16 %v5176, %v5176
      %v5213 = vpack.c.b16 %v5177, %v5177
      %v5214 = vpack.c.b16 %v5178, %v5178
      %v5215 = vpack.c.b16 %v5179, %v5179
      %v5216 = vpack.c.b16 %v5180, %v5180
      %v5217 = vpack.c.b16 %v5181, %v5181
      %v5218 = vpack.c.b16 %v5182, %v5182
      %v5219 = vpack.c.b16 %v5183, %v5183
      %v5220 = vpack.c.b16 %v5184, %v5184
      %v5221 = vpack.c.b16 %v5185, %v5185
      %v5222 = vpack.c.b16 %v5186, %v5186
      %v5223 = vpack.c.b16 %v5187, %v5187
      %v5224 = vpack.c.b16 %v5188, %v5188
      %v5225 = vpack.c.b16 %v5189, %v5189
      %v5226 = vpack.c.b16 %v5190, %v5190
      %v5227 = vpack.c.b16 %v5191, %v5191
      %v5228 = vpack.c.b16 %v5192, %v5192
      %v5229 = vpack.c.b16 %v5193, %v5193
      %v5230 = vpack.c.b16 %v5194, %v5194
      %5267 = vst [vmem:[#allocation2 + $0x8] sm:$0xf] %v5195
      %5268 = vst [vmem:[#allocation2 + $0xc] sm:$0xf] %v5196
      %5269 = vst [vmem:[#allocation2 + $0x1c] sm:$0xf] %v5197
      %5270 = vst [vmem:[#allocation2 + $0x20] sm:$0xf] %v5198
      %5271 = vst [vmem:[#allocation2 + $0x30] sm:$0xf] %v5199
      %5272 = vst [vmem:[#allocation2 + $0x34] sm:$0xf] %v5200
      %5273 = vst [vmem:[#allocation2 + $0x44] sm:$0xf] %v5201
      %5274 = vst [vmem:[#allocation2 + $0x48] sm:$0xf] %v5202
      %5275 = vst [vmem:[#allocation2 + $0x58] sm:$0xf] %v5203
      %5276 = vst [vmem:[#allocation2 + $0x5c] sm:$0xf] %v5204
      %5277 = vst [vmem:[#allocation2 + $0x6c] sm:$0xf] %v5205
      %5278 = vst [vmem:[#allocation2 + $0x70] sm:$0xf] %v5206
      %5279 = vst [vmem:[#allocation2 + $0x80] sm:$0xf] %v5207
      %5280 = vst [vmem:[#allocation2 + $0x84] sm:$0xf] %v5208
      %5281 = vst [vmem:[#allocation2 + $0x94] sm:$0xf] %v5209
      %5282 = vst [vmem:[#allocation2 + $0x98] sm:$0xf] %v5210
      %5283 = vst [vmem:[#allocation2 + $0xa8] sm:$0xf] %v5211
      %5284 = vst [vmem:[#allocation2 + $0xac] sm:$0xf] %v5212
      %5285 = vst [vmem:[#allocation2 + $0xbc] sm:$0xf] %v5213
      %5286 = vst [vmem:[#allocation2 + $0xc0] sm:$0xf] %v5214
      %5287 = vst [vmem:[#allocation2 + $0xd0] sm:$0xf] %v5215
      %5288 = vst [vmem:[#allocation2 + $0xd4] sm:$0xf] %v5216
      %5289 = vst [vmem:[#allocation2 + $0xe4] sm:$0xf] %v5217
      %5290 = vst [vmem:[#allocation2 + $0xe8] sm:$0xf] %v5218
      %5291 = vst [vmem:[#allocation2 + $0xf8] sm:$0xf] %v5219
      %5292 = vst [vmem:[#allocation2 + $0xfc] sm:$0xf] %v5220
      %5293 = vst [vmem:[#allocation2 + $0x10c] sm:$0xf] %v5221
      %5294 = vst [vmem:[#allocation2 + $0x110] sm:$0xf] %v5222
      %5295 = vst [vmem:[#allocation2 + $0x120] sm:$0xf] %v5223
      %5296 = vst [vmem:[#allocation2 + $0x124] sm:$0xf] %v5224
      %5297 = vst [vmem:[#allocation2 + $0x134] sm:$0xf] %v5225
      %5298 = vst [vmem:[#allocation2 + $0x138] sm:$0xf] %v5226
      %5299 = vst [vmem:[#allocation2 + $0x148] sm:$0xf] %v5227
      %5300 = vst [vmem:[#allocation2 + $0x14c] sm:$0xf] %v5228
      %5301 = vst [vmem:[#allocation2 + $0x15c] sm:$0xf] %v5229
      %5302 = vst [vmem:[#allocation2 + $0x160] sm:$0xf] %v5230
      %p5303 = scmp.eq.s32.totalorder %s21, 0
      // Predicated region
      $region41: #{double_conv.1} parent=39 // pred_check
        %p5304 = pneg %p5303
      $region42: #{double_conv.1} parent=39 // pred_check_branch
        %5306 = sbr.rel (%p5304) target = $region44
      $region43: #{double_conv.1} parent=39 // pred_region
        %5307 = vst [vmem:[#allocation2 + $0x8] sm:$0xf] 0
        %5308 = vst [vmem:[#allocation2 + $0xc] sm:$0xf] 0
        %s5309 = scalar_lea.vmem [#allocation2], 340
        %5310 = vst [vmem:[%s5309 + $0x8] sm:$0xf] 0
        %5311 = vst [vmem:[%s5309 + $0xc] sm:$0xf] 0
      $region44: #{double_conv.1} parent=39 // pred_fallthru
        _
      %vm5312 = vcmask 1043459
      %vm5313 = vsmask.f32 7950
      %vm5314 = vmand %vm5312, %vm5313
      %v5315 = vld [vmem:[#allocation2 + $0x4] sm:$0x8]
      %v5316 = vsel %vm5314, 0, %v5315
      %5317 = vst [vmem:[#allocation2 + $0x4] sm:$0x8] %v5316
      %v5318 = vld [vmem:[#allocation2 + $0x18] sm:$0x8]
      %v5319 = vsel %vm5314, 0, %v5318
      %5320 = vst [vmem:[#allocation2 + $0x18] sm:$0x8] %v5319
      %v5321 = vld [vmem:[#allocation2 + $0x2c] sm:$0x8]
      %v5322 = vsel %vm5314, 0, %v5321
      %5323 = vst [vmem:[#allocation2 + $0x2c] sm:$0x8] %v5322
      %v5324 = vld [vmem:[#allocation2 + $0x40] sm:$0x8]
      %v5325 = vsel %vm5314, 0, %v5324
      %5326 = vst [vmem:[#allocation2 + $0x40] sm:$0x8] %v5325
      %v5327 = vld [vmem:[#allocation2 + $0x54] sm:$0x8]
      %v5328 = vsel %vm5314, 0, %v5327
      %5329 = vst [vmem:[#allocation2 + $0x54] sm:$0x8] %v5328
      %v5330 = vld [vmem:[#allocation2 + $0x68] sm:$0x8]
      %v5331 = vsel %vm5314, 0, %v5330
      %5332 = vst [vmem:[#allocation2 + $0x68] sm:$0x8] %v5331
      %v5333 = vld [vmem:[#allocation2 + $0x7c] sm:$0x8]
      %v5334 = vsel %vm5314, 0, %v5333
      %5335 = vst [vmem:[#allocation2 + $0x7c] sm:$0x8] %v5334
      %v5336 = vld [vmem:[#allocation2 + $0x90] sm:$0x8]
      %v5337 = vsel %vm5314, 0, %v5336
      %5338 = vst [vmem:[#allocation2 + $0x90] sm:$0x8] %v5337
      %v5339 = vld [vmem:[#allocation2 + $0xa4] sm:$0x8]
      %v5340 = vsel %vm5314, 0, %v5339
      %5341 = vst [vmem:[#allocation2 + $0xa4] sm:$0x8] %v5340
      %v5342 = vld [vmem:[#allocation2 + $0xb8] sm:$0x8]
      %v5343 = vsel %vm5314, 0, %v5342
      %5344 = vst [vmem:[#allocation2 + $0xb8] sm:$0x8] %v5343
      %v5345 = vld [vmem:[#allocation2 + $0xcc] sm:$0x8]
      %v5346 = vsel %vm5314, 0, %v5345
      %5347 = vst [vmem:[#allocation2 + $0xcc] sm:$0x8] %v5346
      %v5348 = vld [vmem:[#allocation2 + $0xe0] sm:$0x8]
      %v5349 = vsel %vm5314, 0, %v5348
      %5350 = vst [vmem:[#allocation2 + $0xe0] sm:$0x8] %v5349
      %v5351 = vld [vmem:[#allocation2 + $0xf4] sm:$0x8]
      %v5352 = vsel %vm5314, 0, %v5351
      %5353 = vst [vmem:[#allocation2 + $0xf4] sm:$0x8] %v5352
      %v5354 = vld [vmem:[#allocation2 + $0x108] sm:$0x8]
      %v5355 = vsel %vm5314, 0, %v5354
      %5356 = vst [vmem:[#allocation2 + $0x108] sm:$0x8] %v5355
      %v5357 = vld [vmem:[#allocation2 + $0x11c] sm:$0x8]
      %v5358 = vsel %vm5314, 0, %v5357
      %5359 = vst [vmem:[#allocation2 + $0x11c] sm:$0x8] %v5358
      %v5360 = vld [vmem:[#allocation2 + $0x130] sm:$0x8]
      %v5361 = vsel %vm5314, 0, %v5360
      %5362 = vst [vmem:[#allocation2 + $0x130] sm:$0x8] %v5361
      %v5363 = vld [vmem:[#allocation2 + $0x144] sm:$0x8]
      %v5364 = vsel %vm5314, 0, %v5363
      %5365 = vst [vmem:[#allocation2 + $0x144] sm:$0x8] %v5364
      %v5366 = vld [vmem:[#allocation2 + $0x158] sm:$0x8]
      %v5367 = vsel %vm5314, 0, %v5366
      %5368 = vst [vmem:[#allocation2 + $0x158] sm:$0x8] %v5367
      %vm5369 = vcmask 1040384
      %vm5370 = vsmask.f32 256
      %vm5371 = vmand %vm5369, %vm5370
      %v5372 = vld [vmem:[#allocation2 + $0x10] sm:$0x1]
      %v5373 = vsel %vm5371, 0, %v5372
      %5374 = vst [vmem:[#allocation2 + $0x10] sm:$0x1] %v5373
      %v5375 = vld [vmem:[#allocation2 + $0x24] sm:$0x1]
      %v5376 = vsel %vm5371, 0, %v5375
      %5377 = vst [vmem:[#allocation2 + $0x24] sm:$0x1] %v5376
      %v5378 = vld [vmem:[#allocation2 + $0x38] sm:$0x1]
      %v5379 = vsel %vm5371, 0, %v5378
      %5380 = vst [vmem:[#allocation2 + $0x38] sm:$0x1] %v5379
      %v5381 = vld [vmem:[#allocation2 + $0x4c] sm:$0x1]
      %v5382 = vsel %vm5371, 0, %v5381
      %5383 = vst [vmem:[#allocation2 + $0x4c] sm:$0x1] %v5382
      %v5384 = vld [vmem:[#allocation2 + $0x60] sm:$0x1]
      %v5385 = vsel %vm5371, 0, %v5384
      %5386 = vst [vmem:[#allocation2 + $0x60] sm:$0x1] %v5385
      %v5387 = vld [vmem:[#allocation2 + $0x74] sm:$0x1]
      %v5388 = vsel %vm5371, 0, %v5387
      %5389 = vst [vmem:[#allocation2 + $0x74] sm:$0x1] %v5388
      %v5390 = vld [vmem:[#allocation2 + $0x88] sm:$0x1]
      %v5391 = vsel %vm5371, 0, %v5390
      %5392 = vst [vmem:[#allocation2 + $0x88] sm:$0x1] %v5391
      %v5393 = vld [vmem:[#allocation2 + $0x9c] sm:$0x1]
      %v5394 = vsel %vm5371, 0, %v5393
      %5395 = vst [vmem:[#allocation2 + $0x9c] sm:$0x1] %v5394
      %v5396 = vld [vmem:[#allocation2 + $0xb0] sm:$0x1]
      %v5397 = vsel %vm5371, 0, %v5396
      %5398 = vst [vmem:[#allocation2 + $0xb0] sm:$0x1] %v5397
      %v5399 = vld [vmem:[#allocation2 + $0xc4] sm:$0x1]
      %v5400 = vsel %vm5371, 0, %v5399
      %5401 = vst [vmem:[#allocation2 + $0xc4] sm:$0x1] %v5400
      %v5402 = vld [vmem:[#allocation2 + $0xd8] sm:$0x1]
      %v5403 = vsel %vm5371, 0, %v5402
      %5404 = vst [vmem:[#allocation2 + $0xd8] sm:$0x1] %v5403
      %v5405 = vld [vmem:[#allocation2 + $0xec] sm:$0x1]
      %v5406 = vsel %vm5371, 0, %v5405
      %5407 = vst [vmem:[#allocation2 + $0xec] sm:$0x1] %v5406
      %v5408 = vld [vmem:[#allocation2 + $0x100] sm:$0x1]
      %v5409 = vsel %vm5371, 0, %v5408
      %5410 = vst [vmem:[#allocation2 + $0x100] sm:$0x1] %v5409
      %v5411 = vld [vmem:[#allocation2 + $0x114] sm:$0x1]
      %v5412 = vsel %vm5371, 0, %v5411
      %5413 = vst [vmem:[#allocation2 + $0x114] sm:$0x1] %v5412
      %v5414 = vld [vmem:[#allocation2 + $0x128] sm:$0x1]
      %v5415 = vsel %vm5371, 0, %v5414
      %5416 = vst [vmem:[#allocation2 + $0x128] sm:$0x1] %v5415
      %v5417 = vld [vmem:[#allocation2 + $0x13c] sm:$0x1]
      %v5418 = vsel %vm5371, 0, %v5417
      %5419 = vst [vmem:[#allocation2 + $0x13c] sm:$0x1] %v5418
      %v5420 = vld [vmem:[#allocation2 + $0x150] sm:$0x1]
      %v5421 = vsel %vm5371, 0, %v5420
      %5422 = vst [vmem:[#allocation2 + $0x150] sm:$0x1] %v5421
      %v5423 = vld [vmem:[#allocation2 + $0x164] sm:$0x1]
      %v5424 = vsel %vm5371, 0, %v5423
      %5425 = vst [vmem:[#allocation2 + $0x164] sm:$0x1] %v5424
      %v5426 = vld [vmem:[#allocation2 + $0x4] sm:$0x8]
      %v5427 = vld [vmem:[#allocation2 + $0x8] sm:$0xf]
      %v5428 = vld [vmem:[#allocation2 + $0xc] sm:$0xf]
      %v5429 = vld [vmem:[#allocation2 + $0x18] sm:$0x8]
      %v5430 = vld [vmem:[#allocation2 + $0x1c] sm:$0xf]
      %v5431 = vld [vmem:[#allocation2 + $0x20] sm:$0xf]
      %v5432 = vld [vmem:[#allocation2 + $0x2c] sm:$0x8]
      %v5433 = vld [vmem:[#allocation2 + $0x30] sm:$0xf]
      %v5434 = vld [vmem:[#allocation2 + $0x34] sm:$0xf]
      %v5435 = vld [vmem:[#allocation2 + $0x40] sm:$0x8]
      %v5436 = vld [vmem:[#allocation2 + $0x44] sm:$0xf]
      %v5437 = vld [vmem:[#allocation2 + $0x48] sm:$0xf]
      %v5438 = vld [vmem:[#allocation2 + $0x54] sm:$0x8]
      %v5439 = vld [vmem:[#allocation2 + $0x58] sm:$0xf]
      %v5440 = vld [vmem:[#allocation2 + $0x5c] sm:$0xf]
      %v5441 = vld [vmem:[#allocation2 + $0x68] sm:$0x8]
      %v5442 = vld [vmem:[#allocation2 + $0x6c] sm:$0xf]
      %v5443 = vld [vmem:[#allocation2 + $0x70] sm:$0xf]
      %v5444 = vld [vmem:[#allocation2 + $0x7c] sm:$0x8]
      %v5445 = vld [vmem:[#allocation2 + $0x80] sm:$0xf]
      %v5446 = vld [vmem:[#allocation2 + $0x84] sm:$0xf]
      %v5447 = vld [vmem:[#allocation2 + $0x90] sm:$0x8]
      %v5448 = vld [vmem:[#allocation2 + $0x94] sm:$0xf]
      %v5449 = vld [vmem:[#allocation2 + $0x98] sm:$0xf]
      %v5450 = vld [vmem:[#allocation2 + $0xa4] sm:$0x8]
      %v5451 = vld [vmem:[#allocation2 + $0xa8] sm:$0xf]
      %v5452 = vld [vmem:[#allocation2 + $0xac] sm:$0xf]
      %v5453 = vld [vmem:[#allocation2 + $0xb8] sm:$0x8]
      %v5454 = vld [vmem:[#allocation2 + $0xbc] sm:$0xf]
      %v5455 = vld [vmem:[#allocation2 + $0xc0] sm:$0xf]
      %v5456 = vld [vmem:[#allocation2 + $0xcc] sm:$0x8]
      %v5457 = vld [vmem:[#allocation2 + $0xd0] sm:$0xf]
      %v5458 = vld [vmem:[#allocation2 + $0xd4] sm:$0xf]
      %v5459 = vld [vmem:[#allocation2 + $0xe0] sm:$0x8]
      %v5460 = vld [vmem:[#allocation2 + $0xe4] sm:$0xf]
      %v5461 = vld [vmem:[#allocation2 + $0xe8] sm:$0xf]
      %v5462 = vld [vmem:[#allocation2 + $0xf4] sm:$0x8]
      %v5463 = vld [vmem:[#allocation2 + $0xf8] sm:$0xf]
      %v5464 = vld [vmem:[#allocation2 + $0xfc] sm:$0xf]
      %v5465 = vld [vmem:[#allocation2 + $0x108] sm:$0x8]
      %v5466 = vld [vmem:[#allocation2 + $0x10c] sm:$0xf]
      %v5467 = vld [vmem:[#allocation2 + $0x110] sm:$0xf]
      %v5468 = vld [vmem:[#allocation2 + $0x11c] sm:$0x8]
      %v5469 = vld [vmem:[#allocation2 + $0x120] sm:$0xf]
      %v5470 = vld [vmem:[#allocation2 + $0x124] sm:$0xf]
      %v5471 = vld [vmem:[#allocation2 + $0x130] sm:$0x8]
      %v5472 = vld [vmem:[#allocation2 + $0x134] sm:$0xf]
      %v5473 = vld [vmem:[#allocation2 + $0x138] sm:$0xf]
      %v5474 = vld [vmem:[#allocation2 + $0x144] sm:$0x8]
      %v5475 = vld [vmem:[#allocation2 + $0x148] sm:$0xf]
      %v5476 = vld [vmem:[#allocation2 + $0x14c] sm:$0xf]
      %v5477 = vld [vmem:[#allocation2 + $0x158] sm:$0x8]
      %v5478 = vld [vmem:[#allocation2 + $0x15c] sm:$0xf]
      %v5479 = vld [vmem:[#allocation2 + $0x160] sm:$0xf]
      %vm5480 = vsmask.f32 4368
      %vm5481 = vmor %vm5370, %vm5480
      %v5483 = vshrl.u32 %v5426, 16
      %v5485 = vrot.slane %v5483, 7
      %v5486 = vrot.slane %v5485, 4
      %v5488 = vshrl.u32 %v5427, 16
      %v5490 = vrot.slane %v5488, 7
      %v5491 = vshll.u32 %v5427, 16
      %v5493 = vor.u32 %v5490, %v5491
      %v5494 = vsel %vm5481, %v5486, %v5493
      %v5495 = vrot.slane %v5490, 4
      %v5497 = vshrl.u32 %v5428, 16
      %v5499 = vrot.slane %v5497, 7
      %v5500 = vshll.u32 %v5428, 16
      %v5502 = vor.u32 %v5499, %v5500
      %v5503 = vsel %vm5481, %v5495, %v5502
      %v5505 = vshrl.u32 %v5429, 16
      %v5507 = vrot.slane %v5505, 7
      %v5508 = vrot.slane %v5507, 4
      %v5510 = vshrl.u32 %v5430, 16
      %v5512 = vrot.slane %v5510, 7
      %v5513 = vshll.u32 %v5430, 16
      %v5515 = vor.u32 %v5512, %v5513
      %v5516 = vsel %vm5481, %v5508, %v5515
      %v5517 = vrot.slane %v5512, 4
      %v5519 = vshrl.u32 %v5431, 16
      %v5521 = vrot.slane %v5519, 7
      %v5522 = vshll.u32 %v5431, 16
      %v5524 = vor.u32 %v5521, %v5522
      %v5525 = vsel %vm5481, %v5517, %v5524
      %v5527 = vshrl.u32 %v5432, 16
      %v5529 = vrot.slane %v5527, 7
      %v5530 = vrot.slane %v5529, 4
      %v5532 = vshrl.u32 %v5433, 16
      %v5534 = vrot.slane %v5532, 7
      %v5535 = vshll.u32 %v5433, 16
      %v5537 = vor.u32 %v5534, %v5535
      %v5538 = vsel %vm5481, %v5530, %v5537
      %v5539 = vrot.slane %v5534, 4
      %v5541 = vshrl.u32 %v5434, 16
      %v5543 = vrot.slane %v5541, 7
      %v5544 = vshll.u32 %v5434, 16
      %v5546 = vor.u32 %v5543, %v5544
      %v5547 = vsel %vm5481, %v5539, %v5546
      %v5549 = vshrl.u32 %v5435, 16
      %v5551 = vrot.slane %v5549, 7
      %v5552 = vrot.slane %v5551, 4
      %v5554 = vshrl.u32 %v5436, 16
      %v5556 = vrot.slane %v5554, 7
      %v5557 = vshll.u32 %v5436, 16
      %v5559 = vor.u32 %v5556, %v5557
      %v5560 = vsel %vm5481, %v5552, %v5559
      %v5561 = vrot.slane %v5556, 4
      %v5563 = vshrl.u32 %v5437, 16
      %v5565 = vrot.slane %v5563, 7
      %v5566 = vshll.u32 %v5437, 16
      %v5568 = vor.u32 %v5565, %v5566
      %v5569 = vsel %vm5481, %v5561, %v5568
      %v5571 = vshrl.u32 %v5438, 16
      %v5573 = vrot.slane %v5571, 7
      %v5574 = vrot.slane %v5573, 4
      %v5576 = vshrl.u32 %v5439, 16
      %v5578 = vrot.slane %v5576, 7
      %v5579 = vshll.u32 %v5439, 16
      %v5581 = vor.u32 %v5578, %v5579
      %v5582 = vsel %vm5481, %v5574, %v5581
      %v5583 = vrot.slane %v5578, 4
      %v5585 = vshrl.u32 %v5440, 16
      %v5587 = vrot.slane %v5585, 7
      %v5588 = vshll.u32 %v5440, 16
      %v5590 = vor.u32 %v5587, %v5588
      %v5591 = vsel %vm5481, %v5583, %v5590
      %v5593 = vshrl.u32 %v5441, 16
      %v5595 = vrot.slane %v5593, 7
      %v5596 = vrot.slane %v5595, 4
      %v5598 = vshrl.u32 %v5442, 16
      %v5600 = vrot.slane %v5598, 7
      %v5601 = vshll.u32 %v5442, 16
      %v5603 = vor.u32 %v5600, %v5601
      %v5604 = vsel %vm5481, %v5596, %v5603
      %v5605 = vrot.slane %v5600, 4
      %v5607 = vshrl.u32 %v5443, 16
      %v5609 = vrot.slane %v5607, 7
      %v5610 = vshll.u32 %v5443, 16
      %v5612 = vor.u32 %v5609, %v5610
      %v5613 = vsel %vm5481, %v5605, %v5612
      %v5615 = vshrl.u32 %v5444, 16
      %v5617 = vrot.slane %v5615, 7
      %v5618 = vrot.slane %v5617, 4
      %v5620 = vshrl.u32 %v5445, 16
      %v5622 = vrot.slane %v5620, 7
      %v5623 = vshll.u32 %v5445, 16
      %v5625 = vor.u32 %v5622, %v5623
      %v5626 = vsel %vm5481, %v5618, %v5625
      %v5627 = vrot.slane %v5622, 4
      %v5629 = vshrl.u32 %v5446, 16
      %v5631 = vrot.slane %v5629, 7
      %v5632 = vshll.u32 %v5446, 16
      %v5634 = vor.u32 %v5631, %v5632
      %v5635 = vsel %vm5481, %v5627, %v5634
      %v5637 = vshrl.u32 %v5447, 16
      %v5639 = vrot.slane %v5637, 7
      %v5640 = vrot.slane %v5639, 4
      %v5642 = vshrl.u32 %v5448, 16
      %v5644 = vrot.slane %v5642, 7
      %v5645 = vshll.u32 %v5448, 16
      %v5647 = vor.u32 %v5644, %v5645
      %v5648 = vsel %vm5481, %v5640, %v5647
      %v5649 = vrot.slane %v5644, 4
      %v5651 = vshrl.u32 %v5449, 16
      %v5653 = vrot.slane %v5651, 7
      %v5654 = vshll.u32 %v5449, 16
      %v5656 = vor.u32 %v5653, %v5654
      %v5657 = vsel %vm5481, %v5649, %v5656
      %v5659 = vshrl.u32 %v5450, 16
      %v5661 = vrot.slane %v5659, 7
      %v5662 = vrot.slane %v5661, 4
      %v5664 = vshrl.u32 %v5451, 16
      %v5666 = vrot.slane %v5664, 7
      %v5667 = vshll.u32 %v5451, 16
      %v5669 = vor.u32 %v5666, %v5667
      %v5670 = vsel %vm5481, %v5662, %v5669
      %v5671 = vrot.slane %v5666, 4
      %v5673 = vshrl.u32 %v5452, 16
      %v5675 = vrot.slane %v5673, 7
      %v5676 = vshll.u32 %v5452, 16
      %v5678 = vor.u32 %v5675, %v5676
      %v5679 = vsel %vm5481, %v5671, %v5678
      %v5681 = vshrl.u32 %v5453, 16
      %v5683 = vrot.slane %v5681, 7
      %v5684 = vrot.slane %v5683, 4
      %v5686 = vshrl.u32 %v5454, 16
      %v5688 = vrot.slane %v5686, 7
      %v5689 = vshll.u32 %v5454, 16
      %v5691 = vor.u32 %v5688, %v5689
      %v5692 = vsel %vm5481, %v5684, %v5691
      %v5693 = vrot.slane %v5688, 4
      %v5695 = vshrl.u32 %v5455, 16
      %v5697 = vrot.slane %v5695, 7
      %v5698 = vshll.u32 %v5455, 16
      %v5700 = vor.u32 %v5697, %v5698
      %v5701 = vsel %vm5481, %v5693, %v5700
      %v5703 = vshrl.u32 %v5456, 16
      %v5705 = vrot.slane %v5703, 7
      %v5706 = vrot.slane %v5705, 4
      %v5708 = vshrl.u32 %v5457, 16
      %v5710 = vrot.slane %v5708, 7
      %v5711 = vshll.u32 %v5457, 16
      %v5713 = vor.u32 %v5710, %v5711
      %v5714 = vsel %vm5481, %v5706, %v5713
      %v5715 = vrot.slane %v5710, 4
      %v5717 = vshrl.u32 %v5458, 16
      %v5719 = vrot.slane %v5717, 7
      %v5720 = vshll.u32 %v5458, 16
      %v5722 = vor.u32 %v5719, %v5720
      %v5723 = vsel %vm5481, %v5715, %v5722
      %v5725 = vshrl.u32 %v5459, 16
      %v5727 = vrot.slane %v5725, 7
      %v5728 = vrot.slane %v5727, 4
      %v5730 = vshrl.u32 %v5460, 16
      %v5732 = vrot.slane %v5730, 7
      %v5733 = vshll.u32 %v5460, 16
      %v5735 = vor.u32 %v5732, %v5733
      %v5736 = vsel %vm5481, %v5728, %v5735
      %v5737 = vrot.slane %v5732, 4
      %v5739 = vshrl.u32 %v5461, 16
      %v5741 = vrot.slane %v5739, 7
      %v5742 = vshll.u32 %v5461, 16
      %v5744 = vor.u32 %v5741, %v5742
      %v5745 = vsel %vm5481, %v5737, %v5744
      %v5747 = vshrl.u32 %v5462, 16
      %v5749 = vrot.slane %v5747, 7
      %v5750 = vrot.slane %v5749, 4
      %v5752 = vshrl.u32 %v5463, 16
      %v5754 = vrot.slane %v5752, 7
      %v5755 = vshll.u32 %v5463, 16
      %v5757 = vor.u32 %v5754, %v5755
      %v5758 = vsel %vm5481, %v5750, %v5757
      %v5759 = vrot.slane %v5754, 4
      %v5761 = vshrl.u32 %v5464, 16
      %v5763 = vrot.slane %v5761, 7
      %v5764 = vshll.u32 %v5464, 16
      %v5766 = vor.u32 %v5763, %v5764
      %v5767 = vsel %vm5481, %v5759, %v5766
      %v5769 = vshrl.u32 %v5465, 16
      %v5771 = vrot.slane %v5769, 7
      %v5772 = vrot.slane %v5771, 4
      %v5774 = vshrl.u32 %v5466, 16
      %v5776 = vrot.slane %v5774, 7
      %v5777 = vshll.u32 %v5466, 16
      %v5779 = vor.u32 %v5776, %v5777
      %v5780 = vsel %vm5481, %v5772, %v5779
      %v5781 = vrot.slane %v5776, 4
      %v5783 = vshrl.u32 %v5467, 16
      %v5785 = vrot.slane %v5783, 7
      %v5786 = vshll.u32 %v5467, 16
      %v5788 = vor.u32 %v5785, %v5786
      %v5789 = vsel %vm5481, %v5781, %v5788
      %v5791 = vshrl.u32 %v5468, 16
      %v5793 = vrot.slane %v5791, 7
      %v5794 = vrot.slane %v5793, 4
      %v5796 = vshrl.u32 %v5469, 16
      %v5798 = vrot.slane %v5796, 7
      %v5799 = vshll.u32 %v5469, 16
      %v5801 = vor.u32 %v5798, %v5799
      %v5802 = vsel %vm5481, %v5794, %v5801
      %v5803 = vrot.slane %v5798, 4
      %v5805 = vshrl.u32 %v5470, 16
      %v5807 = vrot.slane %v5805, 7
      %v5808 = vshll.u32 %v5470, 16
      %v5810 = vor.u32 %v5807, %v5808
      %v5811 = vsel %vm5481, %v5803, %v5810
      %v5813 = vshrl.u32 %v5471, 16
      %v5815 = vrot.slane %v5813, 7
      %v5816 = vrot.slane %v5815, 4
      %v5818 = vshrl.u32 %v5472, 16
      %v5820 = vrot.slane %v5818, 7
      %v5821 = vshll.u32 %v5472, 16
      %v5823 = vor.u32 %v5820, %v5821
      %v5824 = vsel %vm5481, %v5816, %v5823
      %v5825 = vrot.slane %v5820, 4
      %v5827 = vshrl.u32 %v5473, 16
      %v5829 = vrot.slane %v5827, 7
      %v5830 = vshll.u32 %v5473, 16
      %v5832 = vor.u32 %v5829, %v5830
      %v5833 = vsel %vm5481, %v5825, %v5832
      %v5835 = vshrl.u32 %v5474, 16
      %v5837 = vrot.slane %v5835, 7
      %v5838 = vrot.slane %v5837, 4
      %v5840 = vshrl.u32 %v5475, 16
      %v5842 = vrot.slane %v5840, 7
      %v5843 = vshll.u32 %v5475, 16
      %v5845 = vor.u32 %v5842, %v5843
      %v5846 = vsel %vm5481, %v5838, %v5845
      %v5847 = vrot.slane %v5842, 4
      %v5849 = vshrl.u32 %v5476, 16
      %v5851 = vrot.slane %v5849, 7
      %v5852 = vshll.u32 %v5476, 16
      %v5854 = vor.u32 %v5851, %v5852
      %v5855 = vsel %vm5481, %v5847, %v5854
      %v5857 = vshrl.u32 %v5477, 16
      %v5859 = vrot.slane %v5857, 7
      %v5860 = vrot.slane %v5859, 4
      %v5862 = vshrl.u32 %v5478, 16
      %v5864 = vrot.slane %v5862, 7
      %v5865 = vshll.u32 %v5478, 16
      %v5867 = vor.u32 %v5864, %v5865
      %v5868 = vsel %vm5481, %v5860, %v5867
      %v5869 = vrot.slane %v5864, 4
      %v5871 = vshrl.u32 %v5479, 16
      %v5873 = vrot.slane %v5871, 7
      %v5874 = vshll.u32 %v5479, 16
      %v5876 = vor.u32 %v5873, %v5874
      %v5877 = vsel %vm5481, %v5869, %v5876
      %v5878 = vld [vmem:[%s3] sm:$0xf]
      %v5879 = vld [vmem:[%s3 + $0x4] sm:$0xf]
      %v5880 = vld [vmem:[%s3 + $0x8] sm:$0xf]
      %v5881 = vld [vmem:[%s3 + $0xc] sm:$0xf]
      %v5882 = vld [vmem:[%s3 + $0x10] sm:$0xf]
      %v5883 = vld [vmem:[%s3 + $0x14] sm:$0xf]
      %v5884 = vld [vmem:[%s3 + $0x18] sm:$0xf]
      %v5885 = vld [vmem:[%s3 + $0x1c] sm:$0xf]
      %v5886 = vld [vmem:[%s3 + $0x20] sm:$0xf]
      %v5887 = vld [vmem:[%s3 + $0x24] sm:$0xf]
      %v5888 = vld [vmem:[%s3 + $0x28] sm:$0xf]
      %v5889 = vld [vmem:[%s3 + $0x2c] sm:$0xf]
      %v5890 = vld [vmem:[%s3 + $0x30] sm:$0xf]
      %v5891 = vld [vmem:[%s3 + $0x34] sm:$0xf]
      %v5892 = vld [vmem:[%s3 + $0x38] sm:$0xf]
      %v5893 = vld [vmem:[%s3 + $0x3c] sm:$0xf]
      %v5894 = vunpack.c.l.b16 %v5494
      %v5895 = vunpack.c.l.b16 %v5503
      %v5896 = vunpack.c.l.b16 %v5516
      %v5897 = vunpack.c.l.b16 %v5525
      %v5898 = vunpack.c.l.b16 %v5538
      %v5899 = vunpack.c.l.b16 %v5547
      %v5900 = vunpack.c.l.b16 %v5560
      %v5901 = vunpack.c.l.b16 %v5569
      %v5902 = vunpack.c.l.b16 %v5582
      %v5903 = vunpack.c.l.b16 %v5591
      %v5904 = vunpack.c.l.b16 %v5604
      %v5905 = vunpack.c.l.b16 %v5613
      %v5906 = vunpack.c.l.b16 %v5626
      %v5907 = vunpack.c.l.b16 %v5635
      %v5908 = vunpack.c.l.b16 %v5648
      %v5909 = vunpack.c.l.b16 %v5657
      %v5910 = vunpack.c.l.b16 %v5670
      %v5911 = vunpack.c.l.b16 %v5679
      %v5912 = vunpack.c.l.b16 %v5692
      %v5913 = vunpack.c.l.b16 %v5701
      %v5914 = vunpack.c.l.b16 %v5714
      %v5915 = vunpack.c.l.b16 %v5723
      %v5916 = vunpack.c.l.b16 %v5736
      %v5917 = vunpack.c.l.b16 %v5745
      %v5918 = vunpack.c.l.b16 %v5758
      %v5919 = vunpack.c.l.b16 %v5767
      %v5920 = vunpack.c.l.b16 %v5780
      %v5921 = vunpack.c.l.b16 %v5789
      %v5922 = vunpack.c.l.b16 %v5802
      %v5923 = vunpack.c.l.b16 %v5811
      %v5924 = vunpack.c.l.b16 %v5824
      %v5925 = vunpack.c.l.b16 %v5833
      %v5926 = vpack.c.b16 %v5895, %v5894
      %v5927 = vpack.c.b16 %v5897, %v5896
      %v5928 = vpack.c.b16 %v5899, %v5898
      %v5929 = vpack.c.b16 %v5901, %v5900
      %v5930 = vpack.c.b16 %v5903, %v5902
      %v5931 = vpack.c.b16 %v5905, %v5904
      %v5932 = vpack.c.b16 %v5907, %v5906
      %v5933 = vpack.c.b16 %v5909, %v5908
      %v5934 = vpack.c.b16 %v5911, %v5910
      %v5935 = vpack.c.b16 %v5913, %v5912
      %v5936 = vpack.c.b16 %v5915, %v5914
      %v5937 = vpack.c.b16 %v5917, %v5916
      %v5938 = vpack.c.b16 %v5919, %v5918
      %v5939 = vpack.c.b16 %v5921, %v5920
      %v5940 = vpack.c.b16 %v5923, %v5922
      %v5941 = vpack.c.b16 %v5925, %v5924
      %v5974 = vunpack.c.l.b16 %v5878
      %v5975 = vunpack.c.l.b16 %v5879
      %v5976 = vunpack.c.l.b16 %v5880
      %v5977 = vunpack.c.l.b16 %v5881
      %v5978 = vunpack.c.l.b16 %v5882
      %v5979 = vunpack.c.l.b16 %v5883
      %v5980 = vunpack.c.l.b16 %v5884
      %v5981 = vunpack.c.l.b16 %v5885
      %v5982 = vunpack.c.l.b16 %v5886
      %v5983 = vunpack.c.l.b16 %v5887
      %v5984 = vunpack.c.l.b16 %v5888
      %v5985 = vunpack.c.l.b16 %v5889
      %v5986 = vunpack.c.l.b16 %v5890
      %v5987 = vunpack.c.l.b16 %v5891
      %v5988 = vunpack.c.l.b16 %v5892
      %v5989 = vunpack.c.l.b16 %v5893
      %v5990 = vpack.c.b16 %v5975, %v5974
      %v5991 = vpack.c.b16 %v5977, %v5976
      %v5992 = vpack.c.b16 %v5979, %v5978
      %v5993 = vpack.c.b16 %v5981, %v5980
      %v5994 = vpack.c.b16 %v5983, %v5982
      %v5995 = vpack.c.b16 %v5985, %v5984
      %v5996 = vpack.c.b16 %v5987, %v5986
      %v5997 = vpack.c.b16 %v5989, %v5988
      %6006 = vmatprep.subr.bf16.mxu0 0
      %6007 = vmatpush1.bf16.msra.mxu0 %v5990
      %6008 = vmatprep.subr.bf16.mxu0 0
      %6009 = vmatpush1.bf16.msra.mxu0 %v5991
      %6010 = vmatprep.subr.bf16.mxu0 0
      %6011 = vmatpush1.bf16.msra.mxu0 %v5992
      %6012 = vmatprep.subr.bf16.mxu0 0
      %6013 = vmatpush1.bf16.msra.mxu0 %v5993
      %6014 = vmatprep.subr.bf16.mxu0 0
      %6015 = vmatpush1.bf16.msra.mxu0 %v5994
      %6016 = vmatprep.subr.bf16.mxu0 0
      %6017 = vmatpush1.bf16.msra.mxu0 %v5995
      %6018 = vmatprep.subr.bf16.mxu0 0
      %6019 = vmatpush1.bf16.msra.mxu0 %v5996
      %6020 = vmatprep.subr.bf16.mxu0 0
      %6021 = vmatpush1.bf16.msra.mxu0 %v5997
      %6022 = vmatprep.subr.bf16.mxu0 0
      %6023 = vmatpush1.bf16.msra.mxu0 0
      %6024 = vmatprep.subr.bf16.mxu0 0
      %6025 = vmatpush1.bf16.msra.mxu0 0
      %6026 = vmatprep.subr.bf16.mxu0 0
      %6027 = vmatpush1.bf16.msra.mxu0 0
      %6028 = vmatprep.subr.bf16.mxu0 0
      %6029 = vmatpush1.bf16.msra.mxu0 0
      %6030 = vmatprep.subr.bf16.mxu0 0
      %6031 = vmatpush1.bf16.msra.mxu0 0
      %6032 = vmatprep.subr.bf16.mxu0 0
      %6033 = vmatpush1.bf16.msra.mxu0 0
      %6034 = vmatprep.subr.bf16.mxu0 0
      %6035 = vmatpush1.bf16.msra.mxu0 0
      %6036 = vmatprep.subr.bf16.mxu0 0
      %6037 = vmatpush1.bf16.msra.mxu0 0
      %6038 = vmatprep.mubr.bf16.mxu0 0
      %6039 = vmatmul.mubr.bf16.gmra.mrb[0].mxu0 %v5926
      %v6040 = vpop.f32.mrb[0].mxu0
      %v6041 = vadd.f32 0.0, %v6040
      %v6042 = vpop.f32.mrb[0].mxu0
      %v6043 = vpop.f32.mrb[0].mxu0
      %v6044 = vadd.f32 0.0, %v6043
      %v6045 = vpop.f32.mrb[0].mxu0
      %6046 = vmatprep.mubr.bf16.mxu0 0
      %6047 = vmatmul.mubr.bf16.gmra.mrb[0].mxu0 %v5927
      %v6048 = vpop.f32.mrb[0].mxu0
      %v6049 = vadd.f32 0.0, %v6048
      %v6050 = vpop.f32.mrb[0].mxu0
      %v6051 = vpop.f32.mrb[0].mxu0
      %v6052 = vadd.f32 0.0, %v6051
      %v6053 = vpop.f32.mrb[0].mxu0
      %6054 = vmatprep.mubr.bf16.mxu0 0
      %6055 = vmatmul.mubr.bf16.gmra.mrb[0].mxu0 %v5928
      %v6056 = vpop.f32.mrb[0].mxu0
      %v6057 = vadd.f32 0.0, %v6056
      %v6058 = vpop.f32.mrb[0].mxu0
      %v6059 = vpop.f32.mrb[0].mxu0
      %v6060 = vadd.f32 0.0, %v6059
      %v6061 = vpop.f32.mrb[0].mxu0
      %6062 = vmatprep.mubr.bf16.mxu0 0
      %6063 = vmatmul.mubr.bf16.gmra.mrb[0].mxu0 %v5929
      %v6064 = vpop.f32.mrb[0].mxu0
      %v6065 = vadd.f32 0.0, %v6064
      %v6066 = vpop.f32.mrb[0].mxu0
      %v6067 = vpop.f32.mrb[0].mxu0
      %v6068 = vadd.f32 0.0, %v6067
      %v6069 = vpop.f32.mrb[0].mxu0
      %6070 = vmatprep.mubr.bf16.mxu0 0
      %6071 = vmatmul.mubr.bf16.gmra.mrb[0].mxu0 %v5930
      %v6072 = vpop.f32.mrb[0].mxu0
      %v6073 = vadd.f32 0.0, %v6072
      %v6074 = vpop.f32.mrb[0].mxu0
      %v6075 = vpop.f32.mrb[0].mxu0
      %v6076 = vadd.f32 0.0, %v6075
      %v6077 = vpop.f32.mrb[0].mxu0
      %6078 = vmatprep.mubr.bf16.mxu0 0
      %6079 = vmatmul.mubr.bf16.gmra.mrb[0].mxu0 %v5931
      %v6080 = vpop.f32.mrb[0].mxu0
      %v6081 = vadd.f32 0.0, %v6080
      %v6082 = vpop.f32.mrb[0].mxu0
      %v6083 = vpop.f32.mrb[0].mxu0
      %v6084 = vadd.f32 0.0, %v6083
      %v6085 = vpop.f32.mrb[0].mxu0
      %6086 = vmatprep.mubr.bf16.mxu0 0
      %6087 = vmatmul.mubr.bf16.gmra.mrb[0].mxu0 %v5932
      %v6088 = vpop.f32.mrb[0].mxu0
      %v6089 = vadd.f32 0.0, %v6088
      %v6090 = vpop.f32.mrb[0].mxu0
      %v6091 = vpop.f32.mrb[0].mxu0
      %v6092 = vadd.f32 0.0, %v6091
      %v6093 = vpop.f32.mrb[0].mxu0
      %6094 = vmatprep.mubr.bf16.mxu0 0
      %6095 = vmatmul.mubr.bf16.gmra.mrb[0].mxu0 %v5933
      %v6096 = vpop.f32.mrb[0].mxu0
      %v6097 = vadd.f32 0.0, %v6096
      %v6098 = vpop.f32.mrb[0].mxu0
      %v6099 = vpop.f32.mrb[0].mxu0
      %v6100 = vadd.f32 0.0, %v6099
      %v6101 = vpop.f32.mrb[0].mxu0
      %6102 = vmatprep.mubr.bf16.mxu0 0
      %6103 = vmatmul.mubr.bf16.gmra.mrb[0].mxu0 %v5934
      %v6104 = vpop.f32.mrb[0].mxu0
      %v6105 = vadd.f32 0.0, %v6104
      %v6106 = vpop.f32.mrb[0].mxu0
      %v6107 = vpop.f32.mrb[0].mxu0
      %v6108 = vadd.f32 0.0, %v6107
      %v6109 = vpop.f32.mrb[0].mxu0
      %6110 = vmatprep.mubr.bf16.mxu0 0
      %6111 = vmatmul.mubr.bf16.gmra.mrb[0].mxu0 %v5935
      %v6112 = vpop.f32.mrb[0].mxu0
      %v6113 = vadd.f32 0.0, %v6112
      %v6114 = vpop.f32.mrb[0].mxu0
      %v6115 = vpop.f32.mrb[0].mxu0
      %v6116 = vadd.f32 0.0, %v6115
      %v6117 = vpop.f32.mrb[0].mxu0
      %6118 = vmatprep.mubr.bf16.mxu0 0
      %6119 = vmatmul.mubr.bf16.gmra.mrb[0].mxu0 %v5936
      %v6120 = vpop.f32.mrb[0].mxu0
      %v6121 = vadd.f32 0.0, %v6120
      %v6122 = vpop.f32.mrb[0].mxu0
      %v6123 = vpop.f32.mrb[0].mxu0
      %v6124 = vadd.f32 0.0, %v6123
      %v6125 = vpop.f32.mrb[0].mxu0
      %6126 = vmatprep.mubr.bf16.mxu0 0
      %6127 = vmatmul.mubr.bf16.gmra.mrb[0].mxu0 %v5937
      %v6128 = vpop.f32.mrb[0].mxu0
      %v6129 = vadd.f32 0.0, %v6128
      %v6130 = vpop.f32.mrb[0].mxu0
      %v6131 = vpop.f32.mrb[0].mxu0
      %v6132 = vadd.f32 0.0, %v6131
      %v6133 = vpop.f32.mrb[0].mxu0
      %6134 = vmatprep.mubr.bf16.mxu0 0
      %6135 = vmatmul.mubr.bf16.gmra.mrb[0].mxu0 %v5938
      %v6136 = vpop.f32.mrb[0].mxu0
      %v6137 = vadd.f32 0.0, %v6136
      %v6138 = vpop.f32.mrb[0].mxu0
      %v6139 = vpop.f32.mrb[0].mxu0
      %v6140 = vadd.f32 0.0, %v6139
      %v6141 = vpop.f32.mrb[0].mxu0
      %6142 = vmatprep.mubr.bf16.mxu0 0
      %6143 = vmatmul.mubr.bf16.gmra.mrb[0].mxu0 %v5939
      %v6144 = vpop.f32.mrb[0].mxu0
      %v6145 = vadd.f32 0.0, %v6144
      %v6146 = vpop.f32.mrb[0].mxu0
      %v6147 = vpop.f32.mrb[0].mxu0
      %v6148 = vadd.f32 0.0, %v6147
      %v6149 = vpop.f32.mrb[0].mxu0
      %6150 = vmatprep.mubr.bf16.mxu0 0
      %6151 = vmatmul.mubr.bf16.gmra.mrb[0].mxu0 %v5940
      %v6152 = vpop.f32.mrb[0].mxu0
      %v6153 = vadd.f32 0.0, %v6152
      %v6154 = vpop.f32.mrb[0].mxu0
      %v6155 = vpop.f32.mrb[0].mxu0
      %v6156 = vadd.f32 0.0, %v6155
      %v6157 = vpop.f32.mrb[0].mxu0
      %6158 = vmatprep.mubr.bf16.mxu0 0
      %6159 = vmatmul.mubr.bf16.gmra.mrb[0].mxu0 %v5941
      %v6160 = vpop.f32.mrb[0].mxu0
      %v6161 = vadd.f32 0.0, %v6160
      %v6162 = vpop.f32.mrb[0].mxu0
      %v6163 = vpop.f32.mrb[0].mxu0
      %v6164 = vadd.f32 0.0, %v6163
      %v6165 = vpop.f32.mrb[0].mxu0
      %6166 = vdwg.mxu0
      %6167 = vst [vmem:[#allocation4] sm:$0xff] %v6041
      %6168 = vst [vmem:[#allocation4 + $0x8] sm:$0xff] %v6044
      %6169 = vst [vmem:[#allocation4 + $0x10] sm:$0xff] %v6049
      %6170 = vst [vmem:[#allocation4 + $0x18] sm:$0xff] %v6052
      %6171 = vst [vmem:[#allocation4 + $0x20] sm:$0xff] %v6057
      %6172 = vst [vmem:[#allocation4 + $0x28] sm:$0xff] %v6060
      %6173 = vst [vmem:[#allocation4 + $0x30] sm:$0xff] %v6065
      %6174 = vst [vmem:[#allocation4 + $0x38] sm:$0xff] %v6068
      %6175 = vst [vmem:[#allocation4 + $0x40] sm:$0xff] %v6073
      %6176 = vst [vmem:[#allocation4 + $0x48] sm:$0xff] %v6076
      %6177 = vst [vmem:[#allocation4 + $0x50] sm:$0xff] %v6081
      %6178 = vst [vmem:[#allocation4 + $0x58] sm:$0xff] %v6084
      %6179 = vst [vmem:[#allocation4 + $0x60] sm:$0xff] %v6089
      %6180 = vst [vmem:[#allocation4 + $0x68] sm:$0xff] %v6092
      %6181 = vst [vmem:[#allocation4 + $0x70] sm:$0xff] %v6097
      %6182 = vst [vmem:[#allocation4 + $0x78] sm:$0xff] %v6100
      %6183 = vst [vmem:[#allocation4 + $0x80] sm:$0xff] %v6105
      %6184 = vst [vmem:[#allocation4 + $0x88] sm:$0xff] %v6108
      %6185 = vst [vmem:[#allocation4 + $0x90] sm:$0xff] %v6113
      %6186 = vst [vmem:[#allocation4 + $0x98] sm:$0xff] %v6116
      %6187 = vst [vmem:[#allocation4 + $0xa0] sm:$0xff] %v6121
      %6188 = vst [vmem:[#allocation4 + $0xa8] sm:$0xff] %v6124
      %6189 = vst [vmem:[#allocation4 + $0xb0] sm:$0xff] %v6129
      %6190 = vst [vmem:[#allocation4 + $0xb8] sm:$0xff] %v6132
      %6191 = vst [vmem:[#allocation4 + $0xc0] sm:$0xff] %v6137
      %6192 = vst [vmem:[#allocation4 + $0xc8] sm:$0xff] %v6140
      %6193 = vst [vmem:[#allocation4 + $0xd0] sm:$0xff] %v6145
      %6194 = vst [vmem:[#allocation4 + $0xd8] sm:$0xff] %v6148
      %6195 = vst [vmem:[#allocation4 + $0xe0] sm:$0xff] %v6153
      %6196 = vst [vmem:[#allocation4 + $0xe8] sm:$0xff] %v6156
      %6197 = vst [vmem:[#allocation4 + $0xf0] sm:$0xff] %v6161
      %6198 = vst [vmem:[#allocation4 + $0xf8] sm:$0xff] %v6164
      %s6199 = scalar_lea.vmem %s3, 192
      %v6200 = vld [vmem:[%s6199] sm:$0xf]
      %v6201 = vld [vmem:[%s6199 + $0x4] sm:$0xf]
      %v6202 = vld [vmem:[%s6199 + $0x8] sm:$0xf]
      %v6203 = vld [vmem:[%s6199 + $0xc] sm:$0xf]
      %v6204 = vld [vmem:[%s6199 + $0x10] sm:$0xf]
      %v6205 = vld [vmem:[%s6199 + $0x14] sm:$0xf]
      %v6206 = vld [vmem:[%s6199 + $0x18] sm:$0xf]
      %v6207 = vld [vmem:[%s6199 + $0x1c] sm:$0xf]
      %v6208 = vld [vmem:[%s6199 + $0x20] sm:$0xf]
      %v6209 = vld [vmem:[%s6199 + $0x24] sm:$0xf]
      %v6210 = vld [vmem:[%s6199 + $0x28] sm:$0xf]
      %v6211 = vld [vmem:[%s6199 + $0x2c] sm:$0xf]
      %v6212 = vld [vmem:[%s6199 + $0x30] sm:$0xf]
      %v6213 = vld [vmem:[%s6199 + $0x34] sm:$0xf]
      %v6214 = vld [vmem:[%s6199 + $0x38] sm:$0xf]
      %v6215 = vld [vmem:[%s6199 + $0x3c] sm:$0xf]
      %v6216 = vunpack.c.l.b16 %v5846
      %v6217 = vunpack.c.l.b16 %v5855
      %v6218 = vpack.c.b16 %v6217, %v6216
      %v6236 = vunpack.c.l.b16 %v6200
      %v6237 = vunpack.c.l.b16 %v6201
      %v6238 = vunpack.c.l.b16 %v6202
      %v6239 = vunpack.c.l.b16 %v6203
      %v6240 = vunpack.c.l.b16 %v6204
      %v6241 = vunpack.c.l.b16 %v6205
      %v6242 = vunpack.c.l.b16 %v6206
      %v6243 = vunpack.c.l.b16 %v6207
      %v6244 = vunpack.c.l.b16 %v6208
      %v6245 = vunpack.c.l.b16 %v6209
      %v6246 = vunpack.c.l.b16 %v6210
      %v6247 = vunpack.c.l.b16 %v6211
      %v6248 = vunpack.c.l.b16 %v6212
      %v6249 = vunpack.c.l.b16 %v6213
      %v6250 = vunpack.c.l.b16 %v6214
      %v6251 = vunpack.c.l.b16 %v6215
      %v6252 = vpack.c.b16 %v6237, %v6236
      %v6253 = vpack.c.b16 %v6239, %v6238
      %v6254 = vpack.c.b16 %v6241, %v6240
      %v6255 = vpack.c.b16 %v6243, %v6242
      %v6256 = vpack.c.b16 %v6245, %v6244
      %v6257 = vpack.c.b16 %v6247, %v6246
      %v6258 = vpack.c.b16 %v6249, %v6248
      %v6259 = vpack.c.b16 %v6251, %v6250
      %6268 = vmatprep.subr.bf16.mxu0 0
      %6269 = vmatpush1.bf16.msra.mxu0 %v6252
      %6270 = vmatprep.subr.bf16.mxu0 0
      %6271 = vmatpush1.bf16.msra.mxu0 %v6253
      %6272 = vmatprep.subr.bf16.mxu0 0
      %6273 = vmatpush1.bf16.msra.mxu0 %v6254
      %6274 = vmatprep.subr.bf16.mxu0 0
      %6275 = vmatpush1.bf16.msra.mxu0 %v6255
      %6276 = vmatprep.subr.bf16.mxu0 0
      %6277 = vmatpush1.bf16.msra.mxu0 %v6256
      %6278 = vmatprep.subr.bf16.mxu0 0
      %6279 = vmatpush1.bf16.msra.mxu0 %v6257
      %6280 = vmatprep.subr.bf16.mxu0 0
      %6281 = vmatpush1.bf16.msra.mxu0 %v6258
      %6282 = vmatprep.subr.bf16.mxu0 0
      %6283 = vmatpush1.bf16.msra.mxu0 %v6259
      %6284 = vmatprep.subr.bf16.mxu0 0
      %6285 = vmatpush1.bf16.msra.mxu0 0
      %6286 = vmatprep.subr.bf16.mxu0 0
      %6287 = vmatpush1.bf16.msra.mxu0 0
      %6288 = vmatprep.subr.bf16.mxu0 0
      %6289 = vmatpush1.bf16.msra.mxu0 0
      %6290 = vmatprep.subr.bf16.mxu0 0
      %6291 = vmatpush1.bf16.msra.mxu0 0
      %6292 = vmatprep.subr.bf16.mxu0 0
      %6293 = vmatpush1.bf16.msra.mxu0 0
      %6294 = vmatprep.subr.bf16.mxu0 0
      %6295 = vmatpush1.bf16.msra.mxu0 0
      %6296 = vmatprep.subr.bf16.mxu0 0
      %6297 = vmatpush1.bf16.msra.mxu0 0
      %6298 = vmatprep.subr.bf16.mxu0 0
      %6299 = vmatpush1.bf16.msra.mxu0 0
      %6300 = vmatprep.mubr.bf16.mxu0 0
      %6301 = vmatmul.mubr.bf16.gmra.mrb[0].mxu0 %v5927
      %v6302 = vpop.f32.mrb[0].mxu0
      %v6303 = vadd.f32 0.0, %v6302
      %v6304 = vpop.f32.mrb[0].mxu0
      %v6305 = vpop.f32.mrb[0].mxu0
      %v6306 = vadd.f32 0.0, %v6305
      %v6307 = vpop.f32.mrb[0].mxu0
      %6308 = vmatprep.mubr.bf16.mxu0 0
      %6309 = vmatmul.mubr.bf16.gmra.mrb[0].mxu0 %v5928
      %v6310 = vpop.f32.mrb[0].mxu0
      %v6311 = vadd.f32 0.0, %v6310
      %v6312 = vpop.f32.mrb[0].mxu0
      %v6313 = vpop.f32.mrb[0].mxu0
      %v6314 = vadd.f32 0.0, %v6313
      %v6315 = vpop.f32.mrb[0].mxu0
      %6316 = vmatprep.mubr.bf16.mxu0 0
      %6317 = vmatmul.mubr.bf16.gmra.mrb[0].mxu0 %v5929
      %v6318 = vpop.f32.mrb[0].mxu0
      %v6319 = vadd.f32 0.0, %v6318
      %v6320 = vpop.f32.mrb[0].mxu0
      %v6321 = vpop.f32.mrb[0].mxu0
      %v6322 = vadd.f32 0.0, %v6321
      %v6323 = vpop.f32.mrb[0].mxu0
      %6324 = vmatprep.mubr.bf16.mxu0 0
      %6325 = vmatmul.mubr.bf16.gmra.mrb[0].mxu0 %v5930
      %v6326 = vpop.f32.mrb[0].mxu0
      %v6327 = vadd.f32 0.0, %v6326
      %v6328 = vpop.f32.mrb[0].mxu0
      %v6329 = vpop.f32.mrb[0].mxu0
      %v6330 = vadd.f32 0.0, %v6329
      %v6331 = vpop.f32.mrb[0].mxu0
      %6332 = vmatprep.mubr.bf16.mxu0 0
      %6333 = vmatmul.mubr.bf16.gmra.mrb[0].mxu0 %v5931
      %v6334 = vpop.f32.mrb[0].mxu0
      %v6335 = vadd.f32 0.0, %v6334
      %v6336 = vpop.f32.mrb[0].mxu0
      %v6337 = vpop.f32.mrb[0].mxu0
      %v6338 = vadd.f32 0.0, %v6337
      %v6339 = vpop.f32.mrb[0].mxu0
      %6340 = vmatprep.mubr.bf16.mxu0 0
      %6341 = vmatmul.mubr.bf16.gmra.mrb[0].mxu0 %v5932
      %v6342 = vpop.f32.mrb[0].mxu0
      %v6343 = vadd.f32 0.0, %v6342
      %v6344 = vpop.f32.mrb[0].mxu0
      %v6345 = vpop.f32.mrb[0].mxu0
      %v6346 = vadd.f32 0.0, %v6345
      %v6347 = vpop.f32.mrb[0].mxu0
      %6348 = vmatprep.mubr.bf16.mxu0 0
      %6349 = vmatmul.mubr.bf16.gmra.mrb[0].mxu0 %v5933
      %v6350 = vpop.f32.mrb[0].mxu0
      %v6351 = vadd.f32 0.0, %v6350
      %v6352 = vpop.f32.mrb[0].mxu0
      %v6353 = vpop.f32.mrb[0].mxu0
      %v6354 = vadd.f32 0.0, %v6353
      %v6355 = vpop.f32.mrb[0].mxu0
      %6356 = vmatprep.mubr.bf16.mxu0 0
      %6357 = vmatmul.mubr.bf16.gmra.mrb[0].mxu0 %v5934
      %v6358 = vpop.f32.mrb[0].mxu0
      %v6359 = vadd.f32 0.0, %v6358
      %v6360 = vpop.f32.mrb[0].mxu0
      %v6361 = vpop.f32.mrb[0].mxu0
      %v6362 = vadd.f32 0.0, %v6361
      %v6363 = vpop.f32.mrb[0].mxu0
      %6364 = vmatprep.mubr.bf16.mxu0 0
      %6365 = vmatmul.mubr.bf16.gmra.mrb[0].mxu0 %v5935
      %v6366 = vpop.f32.mrb[0].mxu0
      %v6367 = vadd.f32 0.0, %v6366
      %v6368 = vpop.f32.mrb[0].mxu0
      %v6369 = vpop.f32.mrb[0].mxu0
      %v6370 = vadd.f32 0.0, %v6369
      %v6371 = vpop.f32.mrb[0].mxu0
      %6372 = vmatprep.mubr.bf16.mxu0 0
      %6373 = vmatmul.mubr.bf16.gmra.mrb[0].mxu0 %v5936
      %v6374 = vpop.f32.mrb[0].mxu0
      %v6375 = vadd.f32 0.0, %v6374
      %v6376 = vpop.f32.mrb[0].mxu0
      %v6377 = vpop.f32.mrb[0].mxu0
      %v6378 = vadd.f32 0.0, %v6377
      %v6379 = vpop.f32.mrb[0].mxu0
      %6380 = vmatprep.mubr.bf16.mxu0 0
      %6381 = vmatmul.mubr.bf16.gmra.mrb[0].mxu0 %v5937
      %v6382 = vpop.f32.mrb[0].mxu0
      %v6383 = vadd.f32 0.0, %v6382
      %v6384 = vpop.f32.mrb[0].mxu0
      %v6385 = vpop.f32.mrb[0].mxu0
      %v6386 = vadd.f32 0.0, %v6385
      %v6387 = vpop.f32.mrb[0].mxu0
      %6388 = vmatprep.mubr.bf16.mxu0 0
      %6389 = vmatmul.mubr.bf16.gmra.mrb[0].mxu0 %v5938
      %v6390 = vpop.f32.mrb[0].mxu0
      %v6391 = vadd.f32 0.0, %v6390
      %v6392 = vpop.f32.mrb[0].mxu0
      %v6393 = vpop.f32.mrb[0].mxu0
      %v6394 = vadd.f32 0.0, %v6393
      %v6395 = vpop.f32.mrb[0].mxu0
      %6396 = vmatprep.mubr.bf16.mxu0 0
      %6397 = vmatmul.mubr.bf16.gmra.mrb[0].mxu0 %v5939
      %v6398 = vpop.f32.mrb[0].mxu0
      %v6399 = vadd.f32 0.0, %v6398
      %v6400 = vpop.f32.mrb[0].mxu0
      %v6401 = vpop.f32.mrb[0].mxu0
      %v6402 = vadd.f32 0.0, %v6401
      %v6403 = vpop.f32.mrb[0].mxu0
      %6404 = vmatprep.mubr.bf16.mxu0 0
      %6405 = vmatmul.mubr.bf16.gmra.mrb[0].mxu0 %v5940
      %v6406 = vpop.f32.mrb[0].mxu0
      %v6407 = vadd.f32 0.0, %v6406
      %v6408 = vpop.f32.mrb[0].mxu0
      %v6409 = vpop.f32.mrb[0].mxu0
      %v6410 = vadd.f32 0.0, %v6409
      %v6411 = vpop.f32.mrb[0].mxu0
      %6412 = vmatprep.mubr.bf16.mxu0 0
      %6413 = vmatmul.mubr.bf16.gmra.mrb[0].mxu0 %v5941
      %v6414 = vpop.f32.mrb[0].mxu0
      %v6415 = vadd.f32 0.0, %v6414
      %v6416 = vpop.f32.mrb[0].mxu0
      %v6417 = vpop.f32.mrb[0].mxu0
      %v6418 = vadd.f32 0.0, %v6417
      %v6419 = vpop.f32.mrb[0].mxu0
      %6420 = vmatprep.mubr.bf16.mxu0 0
      %6421 = vmatmul.mubr.bf16.gmra.mrb[0].mxu0 %v6218
      %v6422 = vpop.f32.mrb[0].mxu0
      %v6423 = vadd.f32 0.0, %v6422
      %v6424 = vpop.f32.mrb[0].mxu0
      %v6425 = vpop.f32.mrb[0].mxu0
      %v6426 = vadd.f32 0.0, %v6425
      %v6427 = vpop.f32.mrb[0].mxu0
      %6428 = vdwg.mxu0
      %v6429 = vld [vmem:[#allocation4] sm:$0xff]
      %v6430 = vld [vmem:[#allocation4 + $0x8] sm:$0xff]
      %v6431 = vld [vmem:[#allocation4 + $0x10] sm:$0xff]
      %v6432 = vld [vmem:[#allocation4 + $0x18] sm:$0xff]
      %v6433 = vld [vmem:[#allocation4 + $0x20] sm:$0xff]
      %v6434 = vld [vmem:[#allocation4 + $0x28] sm:$0xff]
      %v6435 = vld [vmem:[#allocation4 + $0x30] sm:$0xff]
      %v6436 = vld [vmem:[#allocation4 + $0x38] sm:$0xff]
      %v6437 = vld [vmem:[#allocation4 + $0x40] sm:$0xff]
      %v6438 = vld [vmem:[#allocation4 + $0x48] sm:$0xff]
      %v6439 = vld [vmem:[#allocation4 + $0x50] sm:$0xff]
      %v6440 = vld [vmem:[#allocation4 + $0x58] sm:$0xff]
      %v6441 = vld [vmem:[#allocation4 + $0x60] sm:$0xff]
      %v6442 = vld [vmem:[#allocation4 + $0x68] sm:$0xff]
      %v6443 = vld [vmem:[#allocation4 + $0x70] sm:$0xff]
      %v6444 = vld [vmem:[#allocation4 + $0x78] sm:$0xff]
      %v6445 = vld [vmem:[#allocation4 + $0x80] sm:$0xff]
      %v6446 = vld [vmem:[#allocation4 + $0x88] sm:$0xff]
      %v6447 = vld [vmem:[#allocation4 + $0x90] sm:$0xff]
      %v6448 = vld [vmem:[#allocation4 + $0x98] sm:$0xff]
      %v6449 = vld [vmem:[#allocation4 + $0xa0] sm:$0xff]
      %v6450 = vld [vmem:[#allocation4 + $0xa8] sm:$0xff]
      %v6451 = vld [vmem:[#allocation4 + $0xb0] sm:$0xff]
      %v6452 = vld [vmem:[#allocation4 + $0xb8] sm:$0xff]
      %v6453 = vld [vmem:[#allocation4 + $0xc0] sm:$0xff]
      %v6454 = vld [vmem:[#allocation4 + $0xc8] sm:$0xff]
      %v6455 = vld [vmem:[#allocation4 + $0xd0] sm:$0xff]
      %v6456 = vld [vmem:[#allocation4 + $0xd8] sm:$0xff]
      %v6457 = vld [vmem:[#allocation4 + $0xe0] sm:$0xff]
      %v6458 = vld [vmem:[#allocation4 + $0xe8] sm:$0xff]
      %v6459 = vld [vmem:[#allocation4 + $0xf0] sm:$0xff]
      %v6460 = vld [vmem:[#allocation4 + $0xf8] sm:$0xff]
      %v6461 = vadd.f32 %v6429, %v6303
      %v6462 = vadd.f32 %v6430, %v6306
      %v6463 = vadd.f32 %v6431, %v6311
      %v6464 = vadd.f32 %v6432, %v6314
      %v6465 = vadd.f32 %v6433, %v6319
      %v6466 = vadd.f32 %v6434, %v6322
      %v6467 = vadd.f32 %v6435, %v6327
      %v6468 = vadd.f32 %v6436, %v6330
      %v6469 = vadd.f32 %v6437, %v6335
      %v6470 = vadd.f32 %v6438, %v6338
      %v6471 = vadd.f32 %v6439, %v6343
      %v6472 = vadd.f32 %v6440, %v6346
      %v6473 = vadd.f32 %v6441, %v6351
      %v6474 = vadd.f32 %v6442, %v6354
      %v6475 = vadd.f32 %v6443, %v6359
      %v6476 = vadd.f32 %v6444, %v6362
      %v6477 = vadd.f32 %v6445, %v6367
      %v6478 = vadd.f32 %v6446, %v6370
      %v6479 = vadd.f32 %v6447, %v6375
      %v6480 = vadd.f32 %v6448, %v6378
      %v6481 = vadd.f32 %v6449, %v6383
      %v6482 = vadd.f32 %v6450, %v6386
      %v6483 = vadd.f32 %v6451, %v6391
      %v6484 = vadd.f32 %v6452, %v6394
      %v6485 = vadd.f32 %v6453, %v6399
      %v6486 = vadd.f32 %v6454, %v6402
      %v6487 = vadd.f32 %v6455, %v6407
      %v6488 = vadd.f32 %v6456, %v6410
      %v6489 = vadd.f32 %v6457, %v6415
      %v6490 = vadd.f32 %v6458, %v6418
      %v6491 = vadd.f32 %v6459, %v6423
      %v6492 = vadd.f32 %v6460, %v6426
      %6493 = vst [vmem:[#allocation4] sm:$0xff] %v6461
      %6494 = vst [vmem:[#allocation4 + $0x8] sm:$0xff] %v6462
      %6495 = vst [vmem:[#allocation4 + $0x10] sm:$0xff] %v6463
      %6496 = vst [vmem:[#allocation4 + $0x18] sm:$0xff] %v6464
      %6497 = vst [vmem:[#allocation4 + $0x20] sm:$0xff] %v6465
      %6498 = vst [vmem:[#allocation4 + $0x28] sm:$0xff] %v6466
      %6499 = vst [vmem:[#allocation4 + $0x30] sm:$0xff] %v6467
      %6500 = vst [vmem:[#allocation4 + $0x38] sm:$0xff] %v6468
      %6501 = vst [vmem:[#allocation4 + $0x40] sm:$0xff] %v6469
      %6502 = vst [vmem:[#allocation4 + $0x48] sm:$0xff] %v6470
      %6503 = vst [vmem:[#allocation4 + $0x50] sm:$0xff] %v6471
      %6504 = vst [vmem:[#allocation4 + $0x58] sm:$0xff] %v6472
      %6505 = vst [vmem:[#allocation4 + $0x60] sm:$0xff] %v6473
      %6506 = vst [vmem:[#allocation4 + $0x68] sm:$0xff] %v6474
      %6507 = vst [vmem:[#allocation4 + $0x70] sm:$0xff] %v6475
      %6508 = vst [vmem:[#allocation4 + $0x78] sm:$0xff] %v6476
      %6509 = vst [vmem:[#allocation4 + $0x80] sm:$0xff] %v6477
      %6510 = vst [vmem:[#allocation4 + $0x88] sm:$0xff] %v6478
      %6511 = vst [vmem:[#allocation4 + $0x90] sm:$0xff] %v6479
      %6512 = vst [vmem:[#allocation4 + $0x98] sm:$0xff] %v6480
      %6513 = vst [vmem:[#allocation4 + $0xa0] sm:$0xff] %v6481
      %6514 = vst [vmem:[#allocation4 + $0xa8] sm:$0xff] %v6482
      %6515 = vst [vmem:[#allocation4 + $0xb0] sm:$0xff] %v6483
      %6516 = vst [vmem:[#allocation4 + $0xb8] sm:$0xff] %v6484
      %6517 = vst [vmem:[#allocation4 + $0xc0] sm:$0xff] %v6485
      %6518 = vst [vmem:[#allocation4 + $0xc8] sm:$0xff] %v6486
      %6519 = vst [vmem:[#allocation4 + $0xd0] sm:$0xff] %v6487
      %6520 = vst [vmem:[#allocation4 + $0xd8] sm:$0xff] %v6488
      %6521 = vst [vmem:[#allocation4 + $0xe0] sm:$0xff] %v6489
      %6522 = vst [vmem:[#allocation4 + $0xe8] sm:$0xff] %v6490
      %6523 = vst [vmem:[#allocation4 + $0xf0] sm:$0xff] %v6491
      %6524 = vst [vmem:[#allocation4 + $0xf8] sm:$0xff] %v6492
      %s6525 = scalar_lea.vmem %s3, 384
      %v6526 = vld [vmem:[%s6525] sm:$0xf]
      %v6527 = vld [vmem:[%s6525 + $0x4] sm:$0xf]
      %v6528 = vld [vmem:[%s6525 + $0x8] sm:$0xf]
      %v6529 = vld [vmem:[%s6525 + $0xc] sm:$0xf]
      %v6530 = vld [vmem:[%s6525 + $0x10] sm:$0xf]
      %v6531 = vld [vmem:[%s6525 + $0x14] sm:$0xf]
      %v6532 = vld [vmem:[%s6525 + $0x18] sm:$0xf]
      %v6533 = vld [vmem:[%s6525 + $0x1c] sm:$0xf]
      %v6534 = vld [vmem:[%s6525 + $0x20] sm:$0xf]
      %v6535 = vld [vmem:[%s6525 + $0x24] sm:$0xf]
      %v6536 = vld [vmem:[%s6525 + $0x28] sm:$0xf]
      %v6537 = vld [vmem:[%s6525 + $0x2c] sm:$0xf]
      %v6538 = vld [vmem:[%s6525 + $0x30] sm:$0xf]
      %v6539 = vld [vmem:[%s6525 + $0x34] sm:$0xf]
      %v6540 = vld [vmem:[%s6525 + $0x38] sm:$0xf]
      %v6541 = vld [vmem:[%s6525 + $0x3c] sm:$0xf]
      %v6542 = vunpack.c.l.b16 %v5868
      %v6543 = vunpack.c.l.b16 %v5877
      %v6544 = vpack.c.b16 %v6543, %v6542
      %v6562 = vunpack.c.l.b16 %v6526
      %v6563 = vunpack.c.l.b16 %v6527
      %v6564 = vunpack.c.l.b16 %v6528
      %v6565 = vunpack.c.l.b16 %v6529
      %v6566 = vunpack.c.l.b16 %v6530
      %v6567 = vunpack.c.l.b16 %v6531
      %v6568 = vunpack.c.l.b16 %v6532
      %v6569 = vunpack.c.l.b16 %v6533
      %v6570 = vunpack.c.l.b16 %v6534
      %v6571 = vunpack.c.l.b16 %v6535
      %v6572 = vunpack.c.l.b16 %v6536
      %v6573 = vunpack.c.l.b16 %v6537
      %v6574 = vunpack.c.l.b16 %v6538
      %v6575 = vunpack.c.l.b16 %v6539
      %v6576 = vunpack.c.l.b16 %v6540
      %v6577 = vunpack.c.l.b16 %v6541
      %v6578 = vpack.c.b16 %v6563, %v6562
      %v6579 = vpack.c.b16 %v6565, %v6564
      %v6580 = vpack.c.b16 %v6567, %v6566
      %v6581 = vpack.c.b16 %v6569, %v6568
      %v6582 = vpack.c.b16 %v6571, %v6570
      %v6583 = vpack.c.b16 %v6573, %v6572
      %v6584 = vpack.c.b16 %v6575, %v6574
      %v6585 = vpack.c.b16 %v6577, %v6576
      %6594 = vmatprep.subr.bf16.mxu0 0
      %6595 = vmatpush1.bf16.msra.mxu0 %v6578
      %6596 = vmatprep.subr.bf16.mxu0 0
      %6597 = vmatpush1.bf16.msra.mxu0 %v6579
      %6598 = vmatprep.subr.bf16.mxu0 0
      %6599 = vmatpush1.bf16.msra.mxu0 %v6580
      %6600 = vmatprep.subr.bf16.mxu0 0
      %6601 = vmatpush1.bf16.msra.mxu0 %v6581
      %6602 = vmatprep.subr.bf16.mxu0 0
      %6603 = vmatpush1.bf16.msra.mxu0 %v6582
      %6604 = vmatprep.subr.bf16.mxu0 0
      %6605 = vmatpush1.bf16.msra.mxu0 %v6583
      %6606 = vmatprep.subr.bf16.mxu0 0
      %6607 = vmatpush1.bf16.msra.mxu0 %v6584
      %6608 = vmatprep.subr.bf16.mxu0 0
      %6609 = vmatpush1.bf16.msra.mxu0 %v6585
      %6610 = vmatprep.subr.bf16.mxu0 0
      %6611 = vmatpush1.bf16.msra.mxu0 0
      %6612 = vmatprep.subr.bf16.mxu0 0
      %6613 = vmatpush1.bf16.msra.mxu0 0
      %6614 = vmatprep.subr.bf16.mxu0 0
      %6615 = vmatpush1.bf16.msra.mxu0 0
      %6616 = vmatprep.subr.bf16.mxu0 0
      %6617 = vmatpush1.bf16.msra.mxu0 0
      %6618 = vmatprep.subr.bf16.mxu0 0
      %6619 = vmatpush1.bf16.msra.mxu0 0
      %6620 = vmatprep.subr.bf16.mxu0 0
      %6621 = vmatpush1.bf16.msra.mxu0 0
      %6622 = vmatprep.subr.bf16.mxu0 0
      %6623 = vmatpush1.bf16.msra.mxu0 0
      %6624 = vmatprep.subr.bf16.mxu0 0
      %6625 = vmatpush1.bf16.msra.mxu0 0
      %6626 = vmatprep.mubr.bf16.mxu0 0
      %6627 = vmatmul.mubr.bf16.gmra.mrb[0].mxu0 %v5928
      %v6628 = vpop.f32.mrb[0].mxu0
      %v6629 = vadd.f32 0.0, %v6628
      %v6630 = vpop.f32.mrb[0].mxu0
      %v6631 = vpop.f32.mrb[0].mxu0
      %v6632 = vadd.f32 0.0, %v6631
      %v6633 = vpop.f32.mrb[0].mxu0
      %6634 = vmatprep.mubr.bf16.mxu0 0
      %6635 = vmatmul.mubr.bf16.gmra.mrb[0].mxu0 %v5929
      %v6636 = vpop.f32.mrb[0].mxu0
      %v6637 = vadd.f32 0.0, %v6636
      %v6638 = vpop.f32.mrb[0].mxu0
      %v6639 = vpop.f32.mrb[0].mxu0
      %v6640 = vadd.f32 0.0, %v6639
      %v6641 = vpop.f32.mrb[0].mxu0
      %6642 = vmatprep.mubr.bf16.mxu0 0
      %6643 = vmatmul.mubr.bf16.gmra.mrb[0].mxu0 %v5930
      %v6644 = vpop.f32.mrb[0].mxu0
      %v6645 = vadd.f32 0.0, %v6644
      %v6646 = vpop.f32.mrb[0].mxu0
      %v6647 = vpop.f32.mrb[0].mxu0
      %v6648 = vadd.f32 0.0, %v6647
      %v6649 = vpop.f32.mrb[0].mxu0
      %6650 = vmatprep.mubr.bf16.mxu0 0
      %6651 = vmatmul.mubr.bf16.gmra.mrb[0].mxu0 %v5931
      %v6652 = vpop.f32.mrb[0].mxu0
      %v6653 = vadd.f32 0.0, %v6652
      %v6654 = vpop.f32.mrb[0].mxu0
      %v6655 = vpop.f32.mrb[0].mxu0
      %v6656 = vadd.f32 0.0, %v6655
      %v6657 = vpop.f32.mrb[0].mxu0
      %6658 = vmatprep.mubr.bf16.mxu0 0
      %6659 = vmatmul.mubr.bf16.gmra.mrb[0].mxu0 %v5932
      %v6660 = vpop.f32.mrb[0].mxu0
      %v6661 = vadd.f32 0.0, %v6660
      %v6662 = vpop.f32.mrb[0].mxu0
      %v6663 = vpop.f32.mrb[0].mxu0
      %v6664 = vadd.f32 0.0, %v6663
      %v6665 = vpop.f32.mrb[0].mxu0
      %6666 = vmatprep.mubr.bf16.mxu0 0
      %6667 = vmatmul.mubr.bf16.gmra.mrb[0].mxu0 %v5933
      %v6668 = vpop.f32.mrb[0].mxu0
      %v6669 = vadd.f32 0.0, %v6668
      %v6670 = vpop.f32.mrb[0].mxu0
      %v6671 = vpop.f32.mrb[0].mxu0
      %v6672 = vadd.f32 0.0, %v6671
      %v6673 = vpop.f32.mrb[0].mxu0
      %6674 = vmatprep.mubr.bf16.mxu0 0
      %6675 = vmatmul.mubr.bf16.gmra.mrb[0].mxu0 %v5934
      %v6676 = vpop.f32.mrb[0].mxu0
      %v6677 = vadd.f32 0.0, %v6676
      %v6678 = vpop.f32.mrb[0].mxu0
      %v6679 = vpop.f32.mrb[0].mxu0
      %v6680 = vadd.f32 0.0, %v6679
      %v6681 = vpop.f32.mrb[0].mxu0
      %6682 = vmatprep.mubr.bf16.mxu0 0
      %6683 = vmatmul.mubr.bf16.gmra.mrb[0].mxu0 %v5935
      %v6684 = vpop.f32.mrb[0].mxu0
      %v6685 = vadd.f32 0.0, %v6684
      %v6686 = vpop.f32.mrb[0].mxu0
      %v6687 = vpop.f32.mrb[0].mxu0
      %v6688 = vadd.f32 0.0, %v6687
      %v6689 = vpop.f32.mrb[0].mxu0
      %6690 = vmatprep.mubr.bf16.mxu0 0
      %6691 = vmatmul.mubr.bf16.gmra.mrb[0].mxu0 %v5936
      %v6692 = vpop.f32.mrb[0].mxu0
      %v6693 = vadd.f32 0.0, %v6692
      %v6694 = vpop.f32.mrb[0].mxu0
      %v6695 = vpop.f32.mrb[0].mxu0
      %v6696 = vadd.f32 0.0, %v6695
      %v6697 = vpop.f32.mrb[0].mxu0
      %6698 = vmatprep.mubr.bf16.mxu0 0
      %6699 = vmatmul.mubr.bf16.gmra.mrb[0].mxu0 %v5937
      %v6700 = vpop.f32.mrb[0].mxu0
      %v6701 = vadd.f32 0.0, %v6700
      %v6702 = vpop.f32.mrb[0].mxu0
      %v6703 = vpop.f32.mrb[0].mxu0
      %v6704 = vadd.f32 0.0, %v6703
      %v6705 = vpop.f32.mrb[0].mxu0
      %6706 = vmatprep.mubr.bf16.mxu0 0
      %6707 = vmatmul.mubr.bf16.gmra.mrb[0].mxu0 %v5938
      %v6708 = vpop.f32.mrb[0].mxu0
      %v6709 = vadd.f32 0.0, %v6708
      %v6710 = vpop.f32.mrb[0].mxu0
      %v6711 = vpop.f32.mrb[0].mxu0
      %v6712 = vadd.f32 0.0, %v6711
      %v6713 = vpop.f32.mrb[0].mxu0
      %6714 = vmatprep.mubr.bf16.mxu0 0
      %6715 = vmatmul.mubr.bf16.gmra.mrb[0].mxu0 %v5939
      %v6716 = vpop.f32.mrb[0].mxu0
      %v6717 = vadd.f32 0.0, %v6716
      %v6718 = vpop.f32.mrb[0].mxu0
      %v6719 = vpop.f32.mrb[0].mxu0
      %v6720 = vadd.f32 0.0, %v6719
      %v6721 = vpop.f32.mrb[0].mxu0
      %6722 = vmatprep.mubr.bf16.mxu0 0
      %6723 = vmatmul.mubr.bf16.gmra.mrb[0].mxu0 %v5940
      %v6724 = vpop.f32.mrb[0].mxu0
      %v6725 = vadd.f32 0.0, %v6724
      %v6726 = vpop.f32.mrb[0].mxu0
      %v6727 = vpop.f32.mrb[0].mxu0
      %v6728 = vadd.f32 0.0, %v6727
      %v6729 = vpop.f32.mrb[0].mxu0
      %6730 = vmatprep.mubr.bf16.mxu0 0
      %6731 = vmatmul.mubr.bf16.gmra.mrb[0].mxu0 %v5941
      %v6732 = vpop.f32.mrb[0].mxu0
      %v6733 = vadd.f32 0.0, %v6732
      %v6734 = vpop.f32.mrb[0].mxu0
      %v6735 = vpop.f32.mrb[0].mxu0
      %v6736 = vadd.f32 0.0, %v6735
      %v6737 = vpop.f32.mrb[0].mxu0
      %6738 = vmatprep.mubr.bf16.mxu0 0
      %6739 = vmatmul.mubr.bf16.gmra.mrb[0].mxu0 %v6218
      %v6740 = vpop.f32.mrb[0].mxu0
      %v6741 = vadd.f32 0.0, %v6740
      %v6742 = vpop.f32.mrb[0].mxu0
      %v6743 = vpop.f32.mrb[0].mxu0
      %v6744 = vadd.f32 0.0, %v6743
      %v6745 = vpop.f32.mrb[0].mxu0
      %6746 = vmatprep.mubr.bf16.mxu0 0
      %6747 = vmatmul.mubr.bf16.gmra.mrb[0].mxu0 %v6544
      %v6748 = vpop.f32.mrb[0].mxu0
      %v6749 = vadd.f32 0.0, %v6748
      %v6750 = vpop.f32.mrb[0].mxu0
      %v6751 = vpop.f32.mrb[0].mxu0
      %v6752 = vadd.f32 0.0, %v6751
      %v6753 = vpop.f32.mrb[0].mxu0
      %6754 = vdwg.mxu0
      %v6755 = vld [vmem:[#allocation4] sm:$0xff]
      %v6756 = vld [vmem:[#allocation4 + $0x8] sm:$0xff]
      %v6757 = vld [vmem:[#allocation4 + $0x10] sm:$0xff]
      %v6758 = vld [vmem:[#allocation4 + $0x18] sm:$0xff]
      %v6759 = vld [vmem:[#allocation4 + $0x20] sm:$0xff]
      %v6760 = vld [vmem:[#allocation4 + $0x28] sm:$0xff]
      %v6761 = vld [vmem:[#allocation4 + $0x30] sm:$0xff]
      %v6762 = vld [vmem:[#allocation4 + $0x38] sm:$0xff]
      %v6763 = vld [vmem:[#allocation4 + $0x40] sm:$0xff]
      %v6764 = vld [vmem:[#allocation4 + $0x48] sm:$0xff]
      %v6765 = vld [vmem:[#allocation4 + $0x50] sm:$0xff]
      %v6766 = vld [vmem:[#allocation4 + $0x58] sm:$0xff]
      %v6767 = vld [vmem:[#allocation4 + $0x60] sm:$0xff]
      %v6768 = vld [vmem:[#allocation4 + $0x68] sm:$0xff]
      %v6769 = vld [vmem:[#allocation4 + $0x70] sm:$0xff]
      %v6770 = vld [vmem:[#allocation4 + $0x78] sm:$0xff]
      %v6771 = vld [vmem:[#allocation4 + $0x80] sm:$0xff]
      %v6772 = vld [vmem:[#allocation4 + $0x88] sm:$0xff]
      %v6773 = vld [vmem:[#allocation4 + $0x90] sm:$0xff]
      %v6774 = vld [vmem:[#allocation4 + $0x98] sm:$0xff]
      %v6775 = vld [vmem:[#allocation4 + $0xa0] sm:$0xff]
      %v6776 = vld [vmem:[#allocation4 + $0xa8] sm:$0xff]
      %v6777 = vld [vmem:[#allocation4 + $0xb0] sm:$0xff]
      %v6778 = vld [vmem:[#allocation4 + $0xb8] sm:$0xff]
      %v6779 = vld [vmem:[#allocation4 + $0xc0] sm:$0xff]
      %v6780 = vld [vmem:[#allocation4 + $0xc8] sm:$0xff]
      %v6781 = vld [vmem:[#allocation4 + $0xd0] sm:$0xff]
      %v6782 = vld [vmem:[#allocation4 + $0xd8] sm:$0xff]
      %v6783 = vld [vmem:[#allocation4 + $0xe0] sm:$0xff]
      %v6784 = vld [vmem:[#allocation4 + $0xe8] sm:$0xff]
      %v6785 = vld [vmem:[#allocation4 + $0xf0] sm:$0xff]
      %v6786 = vld [vmem:[#allocation4 + $0xf8] sm:$0xff]
      %v6787 = vadd.f32 %v6755, %v6629
      %v6788 = vadd.f32 %v6756, %v6632
      %v6789 = vadd.f32 %v6757, %v6637
      %v6790 = vadd.f32 %v6758, %v6640
      %v6791 = vadd.f32 %v6759, %v6645
      %v6792 = vadd.f32 %v6760, %v6648
      %v6793 = vadd.f32 %v6761, %v6653
      %v6794 = vadd.f32 %v6762, %v6656
      %v6795 = vadd.f32 %v6763, %v6661
      %v6796 = vadd.f32 %v6764, %v6664
      %v6797 = vadd.f32 %v6765, %v6669
      %v6798 = vadd.f32 %v6766, %v6672
      %v6799 = vadd.f32 %v6767, %v6677
      %v6800 = vadd.f32 %v6768, %v6680
      %v6801 = vadd.f32 %v6769, %v6685
      %v6802 = vadd.f32 %v6770, %v6688
      %v6803 = vadd.f32 %v6771, %v6693
      %v6804 = vadd.f32 %v6772, %v6696
      %v6805 = vadd.f32 %v6773, %v6701
      %v6806 = vadd.f32 %v6774, %v6704
      %v6807 = vadd.f32 %v6775, %v6709
      %v6808 = vadd.f32 %v6776, %v6712
      %v6809 = vadd.f32 %v6777, %v6717
      %v6810 = vadd.f32 %v6778, %v6720
      %v6811 = vadd.f32 %v6779, %v6725
      %v6812 = vadd.f32 %v6780, %v6728
      %v6813 = vadd.f32 %v6781, %v6733
      %v6814 = vadd.f32 %v6782, %v6736
      %v6815 = vadd.f32 %v6783, %v6741
      %v6816 = vadd.f32 %v6784, %v6744
      %v6817 = vadd.f32 %v6785, %v6749
      %v6818 = vadd.f32 %v6786, %v6752
      %6819 = vst [vmem:[#allocation4] sm:$0xff] %v6787
      %6820 = vst [vmem:[#allocation4 + $0x8] sm:$0xff] %v6788
      %6821 = vst [vmem:[#allocation4 + $0x10] sm:$0xff] %v6789
      %6822 = vst [vmem:[#allocation4 + $0x18] sm:$0xff] %v6790
      %6823 = vst [vmem:[#allocation4 + $0x20] sm:$0xff] %v6791
      %6824 = vst [vmem:[#allocation4 + $0x28] sm:$0xff] %v6792
      %6825 = vst [vmem:[#allocation4 + $0x30] sm:$0xff] %v6793
      %6826 = vst [vmem:[#allocation4 + $0x38] sm:$0xff] %v6794
      %6827 = vst [vmem:[#allocation4 + $0x40] sm:$0xff] %v6795
      %6828 = vst [vmem:[#allocation4 + $0x48] sm:$0xff] %v6796
      %6829 = vst [vmem:[#allocation4 + $0x50] sm:$0xff] %v6797
      %6830 = vst [vmem:[#allocation4 + $0x58] sm:$0xff] %v6798
      %6831 = vst [vmem:[#allocation4 + $0x60] sm:$0xff] %v6799
      %6832 = vst [vmem:[#allocation4 + $0x68] sm:$0xff] %v6800
      %6833 = vst [vmem:[#allocation4 + $0x70] sm:$0xff] %v6801
      %6834 = vst [vmem:[#allocation4 + $0x78] sm:$0xff] %v6802
      %6835 = vst [vmem:[#allocation4 + $0x80] sm:$0xff] %v6803
      %6836 = vst [vmem:[#allocation4 + $0x88] sm:$0xff] %v6804
      %6837 = vst [vmem:[#allocation4 + $0x90] sm:$0xff] %v6805
      %6838 = vst [vmem:[#allocation4 + $0x98] sm:$0xff] %v6806
      %6839 = vst [vmem:[#allocation4 + $0xa0] sm:$0xff] %v6807
      %6840 = vst [vmem:[#allocation4 + $0xa8] sm:$0xff] %v6808
      %6841 = vst [vmem:[#allocation4 + $0xb0] sm:$0xff] %v6809
      %6842 = vst [vmem:[#allocation4 + $0xb8] sm:$0xff] %v6810
      %6843 = vst [vmem:[#allocation4 + $0xc0] sm:$0xff] %v6811
      %6844 = vst [vmem:[#allocation4 + $0xc8] sm:$0xff] %v6812
      %6845 = vst [vmem:[#allocation4 + $0xd0] sm:$0xff] %v6813
      %6846 = vst [vmem:[#allocation4 + $0xd8] sm:$0xff] %v6814
      %6847 = vst [vmem:[#allocation4 + $0xe0] sm:$0xff] %v6815
      %6848 = vst [vmem:[#allocation4 + $0xe8] sm:$0xff] %v6816
      %6849 = vst [vmem:[#allocation4 + $0xf0] sm:$0xff] %v6817
      %6850 = vst [vmem:[#allocation4 + $0xf8] sm:$0xff] %v6818
      %v6851 = vld [vmem:[#allocation2 + $0x8] sm:$0xf]
      %v6852 = vld [vmem:[#allocation2 + $0xc] sm:$0xf]
      %v6853 = vld [vmem:[#allocation2 + $0x1c] sm:$0xf]
      %v6854 = vld [vmem:[#allocation2 + $0x20] sm:$0xf]
      %v6855 = vld [vmem:[#allocation2 + $0x30] sm:$0xf]
      %v6856 = vld [vmem:[#allocation2 + $0x34] sm:$0xf]
      %v6857 = vld [vmem:[#allocation2 + $0x44] sm:$0xf]
      %v6858 = vld [vmem:[#allocation2 + $0x48] sm:$0xf]
      %v6859 = vld [vmem:[#allocation2 + $0x58] sm:$0xf]
      %v6860 = vld [vmem:[#allocation2 + $0x5c] sm:$0xf]
      %v6861 = vld [vmem:[#allocation2 + $0x6c] sm:$0xf]
      %v6862 = vld [vmem:[#allocation2 + $0x70] sm:$0xf]
      %v6863 = vld [vmem:[#allocation2 + $0x80] sm:$0xf]
      %v6864 = vld [vmem:[#allocation2 + $0x84] sm:$0xf]
      %v6865 = vld [vmem:[#allocation2 + $0x94] sm:$0xf]
      %v6866 = vld [vmem:[#allocation2 + $0x98] sm:$0xf]
      %v6867 = vld [vmem:[#allocation2 + $0xa8] sm:$0xf]
      %v6868 = vld [vmem:[#allocation2 + $0xac] sm:$0xf]
      %v6869 = vld [vmem:[#allocation2 + $0xbc] sm:$0xf]
      %v6870 = vld [vmem:[#allocation2 + $0xc0] sm:$0xf]
      %v6871 = vld [vmem:[#allocation2 + $0xd0] sm:$0xf]
      %v6872 = vld [vmem:[#allocation2 + $0xd4] sm:$0xf]
      %v6873 = vld [vmem:[#allocation2 + $0xe4] sm:$0xf]
      %v6874 = vld [vmem:[#allocation2 + $0xe8] sm:$0xf]
      %v6875 = vld [vmem:[#allocation2 + $0xf8] sm:$0xf]
      %v6876 = vld [vmem:[#allocation2 + $0xfc] sm:$0xf]
      %v6877 = vld [vmem:[#allocation2 + $0x10c] sm:$0xf]
      %v6878 = vld [vmem:[#allocation2 + $0x110] sm:$0xf]
      %v6879 = vld [vmem:[#allocation2 + $0x120] sm:$0xf]
      %v6880 = vld [vmem:[#allocation2 + $0x124] sm:$0xf]
      %v6881 = vld [vmem:[#allocation2 + $0x134] sm:$0xf]
      %v6882 = vld [vmem:[#allocation2 + $0x138] sm:$0xf]
      %v6883 = vld [vmem:[#allocation2 + $0x148] sm:$0xf]
      %v6884 = vld [vmem:[#allocation2 + $0x14c] sm:$0xf]
      %v6885 = vld [vmem:[#allocation2 + $0x15c] sm:$0xf]
      %v6886 = vld [vmem:[#allocation2 + $0x160] sm:$0xf]
      %s6887 = scalar_lea.vmem %s3, 64
      %v6888 = vld [vmem:[%s6887] sm:$0xf]
      %v6889 = vld [vmem:[%s6887 + $0x4] sm:$0xf]
      %v6890 = vld [vmem:[%s6887 + $0x8] sm:$0xf]
      %v6891 = vld [vmem:[%s6887 + $0xc] sm:$0xf]
      %v6892 = vld [vmem:[%s6887 + $0x10] sm:$0xf]
      %v6893 = vld [vmem:[%s6887 + $0x14] sm:$0xf]
      %v6894 = vld [vmem:[%s6887 + $0x18] sm:$0xf]
      %v6895 = vld [vmem:[%s6887 + $0x1c] sm:$0xf]
      %v6896 = vld [vmem:[%s6887 + $0x20] sm:$0xf]
      %v6897 = vld [vmem:[%s6887 + $0x24] sm:$0xf]
      %v6898 = vld [vmem:[%s6887 + $0x28] sm:$0xf]
      %v6899 = vld [vmem:[%s6887 + $0x2c] sm:$0xf]
      %v6900 = vld [vmem:[%s6887 + $0x30] sm:$0xf]
      %v6901 = vld [vmem:[%s6887 + $0x34] sm:$0xf]
      %v6902 = vld [vmem:[%s6887 + $0x38] sm:$0xf]
      %v6903 = vld [vmem:[%s6887 + $0x3c] sm:$0xf]
      %v6936 = vunpack.c.l.b16 %v6851
      %v6937 = vunpack.c.l.b16 %v6852
      %v6938 = vunpack.c.l.b16 %v6853
      %v6939 = vunpack.c.l.b16 %v6854
      %v6940 = vunpack.c.l.b16 %v6855
      %v6941 = vunpack.c.l.b16 %v6856
      %v6942 = vunpack.c.l.b16 %v6857
      %v6943 = vunpack.c.l.b16 %v6858
      %v6944 = vunpack.c.l.b16 %v6859
      %v6945 = vunpack.c.l.b16 %v6860
      %v6946 = vunpack.c.l.b16 %v6861
      %v6947 = vunpack.c.l.b16 %v6862
      %v6948 = vunpack.c.l.b16 %v6863
      %v6949 = vunpack.c.l.b16 %v6864
      %v6950 = vunpack.c.l.b16 %v6865
      %v6951 = vunpack.c.l.b16 %v6866
      %v6952 = vunpack.c.l.b16 %v6867
      %v6953 = vunpack.c.l.b16 %v6868
      %v6954 = vunpack.c.l.b16 %v6869
      %v6955 = vunpack.c.l.b16 %v6870
      %v6956 = vunpack.c.l.b16 %v6871
      %v6957 = vunpack.c.l.b16 %v6872
      %v6958 = vunpack.c.l.b16 %v6873
      %v6959 = vunpack.c.l.b16 %v6874
      %v6960 = vunpack.c.l.b16 %v6875
      %v6961 = vunpack.c.l.b16 %v6876
      %v6962 = vunpack.c.l.b16 %v6877
      %v6963 = vunpack.c.l.b16 %v6878
      %v6964 = vunpack.c.l.b16 %v6879
      %v6965 = vunpack.c.l.b16 %v6880
      %v6966 = vunpack.c.l.b16 %v6881
      %v6967 = vunpack.c.l.b16 %v6882
      %v6968 = vpack.c.b16 %v6937, %v6936
      %v6969 = vpack.c.b16 %v6939, %v6938
      %v6970 = vpack.c.b16 %v6941, %v6940
      %v6971 = vpack.c.b16 %v6943, %v6942
      %v6972 = vpack.c.b16 %v6945, %v6944
      %v6973 = vpack.c.b16 %v6947, %v6946
      %v6974 = vpack.c.b16 %v6949, %v6948
      %v6975 = vpack.c.b16 %v6951, %v6950
      %v6976 = vpack.c.b16 %v6953, %v6952
      %v6977 = vpack.c.b16 %v6955, %v6954
      %v6978 = vpack.c.b16 %v6957, %v6956
      %v6979 = vpack.c.b16 %v6959, %v6958
      %v6980 = vpack.c.b16 %v6961, %v6960
      %v6981 = vpack.c.b16 %v6963, %v6962
      %v6982 = vpack.c.b16 %v6965, %v6964
      %v6983 = vpack.c.b16 %v6967, %v6966
      %v7016 = vunpack.c.l.b16 %v6888
      %v7017 = vunpack.c.l.b16 %v6889
      %v7018 = vunpack.c.l.b16 %v6890
      %v7019 = vunpack.c.l.b16 %v6891
      %v7020 = vunpack.c.l.b16 %v6892
      %v7021 = vunpack.c.l.b16 %v6893
      %v7022 = vunpack.c.l.b16 %v6894
      %v7023 = vunpack.c.l.b16 %v6895
      %v7024 = vunpack.c.l.b16 %v6896
      %v7025 = vunpack.c.l.b16 %v6897
      %v7026 = vunpack.c.l.b16 %v6898
      %v7027 = vunpack.c.l.b16 %v6899
      %v7028 = vunpack.c.l.b16 %v6900
      %v7029 = vunpack.c.l.b16 %v6901
      %v7030 = vunpack.c.l.b16 %v6902
      %v7031 = vunpack.c.l.b16 %v6903
      %v7032 = vpack.c.b16 %v7017, %v7016
      %v7033 = vpack.c.b16 %v7019, %v7018
      %v7034 = vpack.c.b16 %v7021, %v7020
      %v7035 = vpack.c.b16 %v7023, %v7022
      %v7036 = vpack.c.b16 %v7025, %v7024
      %v7037 = vpack.c.b16 %v7027, %v7026
      %v7038 = vpack.c.b16 %v7029, %v7028
      %v7039 = vpack.c.b16 %v7031, %v7030
      %7048 = vmatprep.subr.bf16.mxu0 0
      %7049 = vmatpush1.bf16.msra.mxu0 %v7032
      %7050 = vmatprep.subr.bf16.mxu0 0
      %7051 = vmatpush1.bf16.msra.mxu0 %v7033
      %7052 = vmatprep.subr.bf16.mxu0 0
      %7053 = vmatpush1.bf16.msra.mxu0 %v7034
      %7054 = vmatprep.subr.bf16.mxu0 0
      %7055 = vmatpush1.bf16.msra.mxu0 %v7035
      %7056 = vmatprep.subr.bf16.mxu0 0
      %7057 = vmatpush1.bf16.msra.mxu0 %v7036
      %7058 = vmatprep.subr.bf16.mxu0 0
      %7059 = vmatpush1.bf16.msra.mxu0 %v7037
      %7060 = vmatprep.subr.bf16.mxu0 0
      %7061 = vmatpush1.bf16.msra.mxu0 %v7038
      %7062 = vmatprep.subr.bf16.mxu0 0
      %7063 = vmatpush1.bf16.msra.mxu0 %v7039
      %7064 = vmatprep.subr.bf16.mxu0 0
      %7065 = vmatpush1.bf16.msra.mxu0 0
      %7066 = vmatprep.subr.bf16.mxu0 0
      %7067 = vmatpush1.bf16.msra.mxu0 0
      %7068 = vmatprep.subr.bf16.mxu0 0
      %7069 = vmatpush1.bf16.msra.mxu0 0
      %7070 = vmatprep.subr.bf16.mxu0 0
      %7071 = vmatpush1.bf16.msra.mxu0 0
      %7072 = vmatprep.subr.bf16.mxu0 0
      %7073 = vmatpush1.bf16.msra.mxu0 0
      %7074 = vmatprep.subr.bf16.mxu0 0
      %7075 = vmatpush1.bf16.msra.mxu0 0
      %7076 = vmatprep.subr.bf16.mxu0 0
      %7077 = vmatpush1.bf16.msra.mxu0 0
      %7078 = vmatprep.subr.bf16.mxu0 0
      %7079 = vmatpush1.bf16.msra.mxu0 0
      %7080 = vmatprep.mubr.bf16.mxu0 0
      %7081 = vmatmul.mubr.bf16.gmra.mrb[0].mxu0 %v6968
      %v7082 = vpop.f32.mrb[0].mxu0
      %v7083 = vadd.f32 0.0, %v7082
      %v7084 = vpop.f32.mrb[0].mxu0
      %v7085 = vpop.f32.mrb[0].mxu0
      %v7086 = vadd.f32 0.0, %v7085
      %v7087 = vpop.f32.mrb[0].mxu0
      %7088 = vmatprep.mubr.bf16.mxu0 0
      %7089 = vmatmul.mubr.bf16.gmra.mrb[0].mxu0 %v6969
      %v7090 = vpop.f32.mrb[0].mxu0
      %v7091 = vadd.f32 0.0, %v7090
      %v7092 = vpop.f32.mrb[0].mxu0
      %v7093 = vpop.f32.mrb[0].mxu0
      %v7094 = vadd.f32 0.0, %v7093
      %v7095 = vpop.f32.mrb[0].mxu0
      %7096 = vmatprep.mubr.bf16.mxu0 0
      %7097 = vmatmul.mubr.bf16.gmra.mrb[0].mxu0 %v6970
      %v7098 = vpop.f32.mrb[0].mxu0
      %v7099 = vadd.f32 0.0, %v7098
      %v7100 = vpop.f32.mrb[0].mxu0
      %v7101 = vpop.f32.mrb[0].mxu0
      %v7102 = vadd.f32 0.0, %v7101
      %v7103 = vpop.f32.mrb[0].mxu0
      %7104 = vmatprep.mubr.bf16.mxu0 0
      %7105 = vmatmul.mubr.bf16.gmra.mrb[0].mxu0 %v6971
      %v7106 = vpop.f32.mrb[0].mxu0
      %v7107 = vadd.f32 0.0, %v7106
      %v7108 = vpop.f32.mrb[0].mxu0
      %v7109 = vpop.f32.mrb[0].mxu0
      %v7110 = vadd.f32 0.0, %v7109
      %v7111 = vpop.f32.mrb[0].mxu0
      %7112 = vmatprep.mubr.bf16.mxu0 0
      %7113 = vmatmul.mubr.bf16.gmra.mrb[0].mxu0 %v6972
      %v7114 = vpop.f32.mrb[0].mxu0
      %v7115 = vadd.f32 0.0, %v7114
      %v7116 = vpop.f32.mrb[0].mxu0
      %v7117 = vpop.f32.mrb[0].mxu0
      %v7118 = vadd.f32 0.0, %v7117
      %v7119 = vpop.f32.mrb[0].mxu0
      %7120 = vmatprep.mubr.bf16.mxu0 0
      %7121 = vmatmul.mubr.bf16.gmra.mrb[0].mxu0 %v6973
      %v7122 = vpop.f32.mrb[0].mxu0
      %v7123 = vadd.f32 0.0, %v7122
      %v7124 = vpop.f32.mrb[0].mxu0
      %v7125 = vpop.f32.mrb[0].mxu0
      %v7126 = vadd.f32 0.0, %v7125
      %v7127 = vpop.f32.mrb[0].mxu0
      %7128 = vmatprep.mubr.bf16.mxu0 0
      %7129 = vmatmul.mubr.bf16.gmra.mrb[0].mxu0 %v6974
      %v7130 = vpop.f32.mrb[0].mxu0
      %v7131 = vadd.f32 0.0, %v7130
      %v7132 = vpop.f32.mrb[0].mxu0
      %v7133 = vpop.f32.mrb[0].mxu0
      %v7134 = vadd.f32 0.0, %v7133
      %v7135 = vpop.f32.mrb[0].mxu0
      %7136 = vmatprep.mubr.bf16.mxu0 0
      %7137 = vmatmul.mubr.bf16.gmra.mrb[0].mxu0 %v6975
      %v7138 = vpop.f32.mrb[0].mxu0
      %v7139 = vadd.f32 0.0, %v7138
      %v7140 = vpop.f32.mrb[0].mxu0
      %v7141 = vpop.f32.mrb[0].mxu0
      %v7142 = vadd.f32 0.0, %v7141
      %v7143 = vpop.f32.mrb[0].mxu0
      %7144 = vmatprep.mubr.bf16.mxu0 0
      %7145 = vmatmul.mubr.bf16.gmra.mrb[0].mxu0 %v6976
      %v7146 = vpop.f32.mrb[0].mxu0
      %v7147 = vadd.f32 0.0, %v7146
      %v7148 = vpop.f32.mrb[0].mxu0
      %v7149 = vpop.f32.mrb[0].mxu0
      %v7150 = vadd.f32 0.0, %v7149
      %v7151 = vpop.f32.mrb[0].mxu0
      %7152 = vmatprep.mubr.bf16.mxu0 0
      %7153 = vmatmul.mubr.bf16.gmra.mrb[0].mxu0 %v6977
      %v7154 = vpop.f32.mrb[0].mxu0
      %v7155 = vadd.f32 0.0, %v7154
      %v7156 = vpop.f32.mrb[0].mxu0
      %v7157 = vpop.f32.mrb[0].mxu0
      %v7158 = vadd.f32 0.0, %v7157
      %v7159 = vpop.f32.mrb[0].mxu0
      %7160 = vmatprep.mubr.bf16.mxu0 0
      %7161 = vmatmul.mubr.bf16.gmra.mrb[0].mxu0 %v6978
      %v7162 = vpop.f32.mrb[0].mxu0
      %v7163 = vadd.f32 0.0, %v7162
      %v7164 = vpop.f32.mrb[0].mxu0
      %v7165 = vpop.f32.mrb[0].mxu0
      %v7166 = vadd.f32 0.0, %v7165
      %v7167 = vpop.f32.mrb[0].mxu0
      %7168 = vmatprep.mubr.bf16.mxu0 0
      %7169 = vmatmul.mubr.bf16.gmra.mrb[0].mxu0 %v6979
      %v7170 = vpop.f32.mrb[0].mxu0
      %v7171 = vadd.f32 0.0, %v7170
      %v7172 = vpop.f32.mrb[0].mxu0
      %v7173 = vpop.f32.mrb[0].mxu0
      %v7174 = vadd.f32 0.0, %v7173
      %v7175 = vpop.f32.mrb[0].mxu0
      %7176 = vmatprep.mubr.bf16.mxu0 0
      %7177 = vmatmul.mubr.bf16.gmra.mrb[0].mxu0 %v6980
      %v7178 = vpop.f32.mrb[0].mxu0
      %v7179 = vadd.f32 0.0, %v7178
      %v7180 = vpop.f32.mrb[0].mxu0
      %v7181 = vpop.f32.mrb[0].mxu0
      %v7182 = vadd.f32 0.0, %v7181
      %v7183 = vpop.f32.mrb[0].mxu0
      %7184 = vmatprep.mubr.bf16.mxu0 0
      %7185 = vmatmul.mubr.bf16.gmra.mrb[0].mxu0 %v6981
      %v7186 = vpop.f32.mrb[0].mxu0
      %v7187 = vadd.f32 0.0, %v7186
      %v7188 = vpop.f32.mrb[0].mxu0
      %v7189 = vpop.f32.mrb[0].mxu0
      %v7190 = vadd.f32 0.0, %v7189
      %v7191 = vpop.f32.mrb[0].mxu0
      %7192 = vmatprep.mubr.bf16.mxu0 0
      %7193 = vmatmul.mubr.bf16.gmra.mrb[0].mxu0 %v6982
      %v7194 = vpop.f32.mrb[0].mxu0
      %v7195 = vadd.f32 0.0, %v7194
      %v7196 = vpop.f32.mrb[0].mxu0
      %v7197 = vpop.f32.mrb[0].mxu0
      %v7198 = vadd.f32 0.0, %v7197
      %v7199 = vpop.f32.mrb[0].mxu0
      %7200 = vmatprep.mubr.bf16.mxu0 0
      %7201 = vmatmul.mubr.bf16.gmra.mrb[0].mxu0 %v6983
      %v7202 = vpop.f32.mrb[0].mxu0
      %v7203 = vadd.f32 0.0, %v7202
      %v7204 = vpop.f32.mrb[0].mxu0
      %v7205 = vpop.f32.mrb[0].mxu0
      %v7206 = vadd.f32 0.0, %v7205
      %v7207 = vpop.f32.mrb[0].mxu0
      %7208 = vdwg.mxu0
      %v7209 = vld [vmem:[#allocation4] sm:$0xff]
      %v7210 = vld [vmem:[#allocation4 + $0x8] sm:$0xff]
      %v7211 = vld [vmem:[#allocation4 + $0x10] sm:$0xff]
      %v7212 = vld [vmem:[#allocation4 + $0x18] sm:$0xff]
      %v7213 = vld [vmem:[#allocation4 + $0x20] sm:$0xff]
      %v7214 = vld [vmem:[#allocation4 + $0x28] sm:$0xff]
      %v7215 = vld [vmem:[#allocation4 + $0x30] sm:$0xff]
      %v7216 = vld [vmem:[#allocation4 + $0x38] sm:$0xff]
      %v7217 = vld [vmem:[#allocation4 + $0x40] sm:$0xff]
      %v7218 = vld [vmem:[#allocation4 + $0x48] sm:$0xff]
      %v7219 = vld [vmem:[#allocation4 + $0x50] sm:$0xff]
      %v7220 = vld [vmem:[#allocation4 + $0x58] sm:$0xff]
      %v7221 = vld [vmem:[#allocation4 + $0x60] sm:$0xff]
      %v7222 = vld [vmem:[#allocation4 + $0x68] sm:$0xff]
      %v7223 = vld [vmem:[#allocation4 + $0x70] sm:$0xff]
      %v7224 = vld [vmem:[#allocation4 + $0x78] sm:$0xff]
      %v7225 = vld [vmem:[#allocation4 + $0x80] sm:$0xff]
      %v7226 = vld [vmem:[#allocation4 + $0x88] sm:$0xff]
      %v7227 = vld [vmem:[#allocation4 + $0x90] sm:$0xff]
      %v7228 = vld [vmem:[#allocation4 + $0x98] sm:$0xff]
      %v7229 = vld [vmem:[#allocation4 + $0xa0] sm:$0xff]
      %v7230 = vld [vmem:[#allocation4 + $0xa8] sm:$0xff]
      %v7231 = vld [vmem:[#allocation4 + $0xb0] sm:$0xff]
      %v7232 = vld [vmem:[#allocation4 + $0xb8] sm:$0xff]
      %v7233 = vld [vmem:[#allocation4 + $0xc0] sm:$0xff]
      %v7234 = vld [vmem:[#allocation4 + $0xc8] sm:$0xff]
      %v7235 = vld [vmem:[#allocation4 + $0xd0] sm:$0xff]
      %v7236 = vld [vmem:[#allocation4 + $0xd8] sm:$0xff]
      %v7237 = vld [vmem:[#allocation4 + $0xe0] sm:$0xff]
      %v7238 = vld [vmem:[#allocation4 + $0xe8] sm:$0xff]
      %v7239 = vld [vmem:[#allocation4 + $0xf0] sm:$0xff]
      %v7240 = vld [vmem:[#allocation4 + $0xf8] sm:$0xff]
      %v7241 = vadd.f32 %v7209, %v7083
      %v7242 = vadd.f32 %v7210, %v7086
      %v7243 = vadd.f32 %v7211, %v7091
      %v7244 = vadd.f32 %v7212, %v7094
      %v7245 = vadd.f32 %v7213, %v7099
      %v7246 = vadd.f32 %v7214, %v7102
      %v7247 = vadd.f32 %v7215, %v7107
      %v7248 = vadd.f32 %v7216, %v7110
      %v7249 = vadd.f32 %v7217, %v7115
      %v7250 = vadd.f32 %v7218, %v7118
      %v7251 = vadd.f32 %v7219, %v7123
      %v7252 = vadd.f32 %v7220, %v7126
      %v7253 = vadd.f32 %v7221, %v7131
      %v7254 = vadd.f32 %v7222, %v7134
      %v7255 = vadd.f32 %v7223, %v7139
      %v7256 = vadd.f32 %v7224, %v7142
      %v7257 = vadd.f32 %v7225, %v7147
      %v7258 = vadd.f32 %v7226, %v7150
      %v7259 = vadd.f32 %v7227, %v7155
      %v7260 = vadd.f32 %v7228, %v7158
      %v7261 = vadd.f32 %v7229, %v7163
      %v7262 = vadd.f32 %v7230, %v7166
      %v7263 = vadd.f32 %v7231, %v7171
      %v7264 = vadd.f32 %v7232, %v7174
      %v7265 = vadd.f32 %v7233, %v7179
      %v7266 = vadd.f32 %v7234, %v7182
      %v7267 = vadd.f32 %v7235, %v7187
      %v7268 = vadd.f32 %v7236, %v7190
      %v7269 = vadd.f32 %v7237, %v7195
      %v7270 = vadd.f32 %v7238, %v7198
      %v7271 = vadd.f32 %v7239, %v7203
      %v7272 = vadd.f32 %v7240, %v7206
      %7273 = vst [vmem:[#allocation4] sm:$0xff] %v7241
      %7274 = vst [vmem:[#allocation4 + $0x8] sm:$0xff] %v7242
      %7275 = vst [vmem:[#allocation4 + $0x10] sm:$0xff] %v7243
      %7276 = vst [vmem:[#allocation4 + $0x18] sm:$0xff] %v7244
      %7277 = vst [vmem:[#allocation4 + $0x20] sm:$0xff] %v7245
      %7278 = vst [vmem:[#allocation4 + $0x28] sm:$0xff] %v7246
      %7279 = vst [vmem:[#allocation4 + $0x30] sm:$0xff] %v7247
      %7280 = vst [vmem:[#allocation4 + $0x38] sm:$0xff] %v7248
      %7281 = vst [vmem:[#allocation4 + $0x40] sm:$0xff] %v7249
      %7282 = vst [vmem:[#allocation4 + $0x48] sm:$0xff] %v7250
      %7283 = vst [vmem:[#allocation4 + $0x50] sm:$0xff] %v7251
      %7284 = vst [vmem:[#allocation4 + $0x58] sm:$0xff] %v7252
      %7285 = vst [vmem:[#allocation4 + $0x60] sm:$0xff] %v7253
      %7286 = vst [vmem:[#allocation4 + $0x68] sm:$0xff] %v7254
      %7287 = vst [vmem:[#allocation4 + $0x70] sm:$0xff] %v7255
      %7288 = vst [vmem:[#allocation4 + $0x78] sm:$0xff] %v7256
      %7289 = vst [vmem:[#allocation4 + $0x80] sm:$0xff] %v7257
      %7290 = vst [vmem:[#allocation4 + $0x88] sm:$0xff] %v7258
      %7291 = vst [vmem:[#allocation4 + $0x90] sm:$0xff] %v7259
      %7292 = vst [vmem:[#allocation4 + $0x98] sm:$0xff] %v7260
      %7293 = vst [vmem:[#allocation4 + $0xa0] sm:$0xff] %v7261
      %7294 = vst [vmem:[#allocation4 + $0xa8] sm:$0xff] %v7262
      %7295 = vst [vmem:[#allocation4 + $0xb0] sm:$0xff] %v7263
      %7296 = vst [vmem:[#allocation4 + $0xb8] sm:$0xff] %v7264
      %7297 = vst [vmem:[#allocation4 + $0xc0] sm:$0xff] %v7265
      %7298 = vst [vmem:[#allocation4 + $0xc8] sm:$0xff] %v7266
      %7299 = vst [vmem:[#allocation4 + $0xd0] sm:$0xff] %v7267
      %7300 = vst [vmem:[#allocation4 + $0xd8] sm:$0xff] %v7268
      %7301 = vst [vmem:[#allocation4 + $0xe0] sm:$0xff] %v7269
      %7302 = vst [vmem:[#allocation4 + $0xe8] sm:$0xff] %v7270
      %7303 = vst [vmem:[#allocation4 + $0xf0] sm:$0xff] %v7271
      %7304 = vst [vmem:[#allocation4 + $0xf8] sm:$0xff] %v7272
      %s7305 = scalar_lea.vmem %s3, 256
      %v7306 = vld [vmem:[%s7305] sm:$0xf]
      %v7307 = vld [vmem:[%s7305 + $0x4] sm:$0xf]
      %v7308 = vld [vmem:[%s7305 + $0x8] sm:$0xf]
      %v7309 = vld [vmem:[%s7305 + $0xc] sm:$0xf]
      %v7310 = vld [vmem:[%s7305 + $0x10] sm:$0xf]
      %v7311 = vld [vmem:[%s7305 + $0x14] sm:$0xf]
      %v7312 = vld [vmem:[%s7305 + $0x18] sm:$0xf]
      %v7313 = vld [vmem:[%s7305 + $0x1c] sm:$0xf]
      %v7314 = vld [vmem:[%s7305 + $0x20] sm:$0xf]
      %v7315 = vld [vmem:[%s7305 + $0x24] sm:$0xf]
      %v7316 = vld [vmem:[%s7305 + $0x28] sm:$0xf]
      %v7317 = vld [vmem:[%s7305 + $0x2c] sm:$0xf]
      %v7318 = vld [vmem:[%s7305 + $0x30] sm:$0xf]
      %v7319 = vld [vmem:[%s7305 + $0x34] sm:$0xf]
      %v7320 = vld [vmem:[%s7305 + $0x38] sm:$0xf]
      %v7321 = vld [vmem:[%s7305 + $0x3c] sm:$0xf]
      %v7324 = vunpack.c.l.b16 %v6883
      %v7325 = vunpack.c.l.b16 %v6884
      %v7326 = vpack.c.b16 %v7325, %v7324
      %v7344 = vunpack.c.l.b16 %v7306
      %v7345 = vunpack.c.l.b16 %v7307
      %v7346 = vunpack.c.l.b16 %v7308
      %v7347 = vunpack.c.l.b16 %v7309
      %v7348 = vunpack.c.l.b16 %v7310
      %v7349 = vunpack.c.l.b16 %v7311
      %v7350 = vunpack.c.l.b16 %v7312
      %v7351 = vunpack.c.l.b16 %v7313
      %v7352 = vunpack.c.l.b16 %v7314
      %v7353 = vunpack.c.l.b16 %v7315
      %v7354 = vunpack.c.l.b16 %v7316
      %v7355 = vunpack.c.l.b16 %v7317
      %v7356 = vunpack.c.l.b16 %v7318
      %v7357 = vunpack.c.l.b16 %v7319
      %v7358 = vunpack.c.l.b16 %v7320
      %v7359 = vunpack.c.l.b16 %v7321
      %v7360 = vpack.c.b16 %v7345, %v7344
      %v7361 = vpack.c.b16 %v7347, %v7346
      %v7362 = vpack.c.b16 %v7349, %v7348
      %v7363 = vpack.c.b16 %v7351, %v7350
      %v7364 = vpack.c.b16 %v7353, %v7352
      %v7365 = vpack.c.b16 %v7355, %v7354
      %v7366 = vpack.c.b16 %v7357, %v7356
      %v7367 = vpack.c.b16 %v7359, %v7358
      %7376 = vmatprep.subr.bf16.mxu0 0
      %7377 = vmatpush1.bf16.msra.mxu0 %v7360
      %7378 = vmatprep.subr.bf16.mxu0 0
      %7379 = vmatpush1.bf16.msra.mxu0 %v7361
      %7380 = vmatprep.subr.bf16.mxu0 0
      %7381 = vmatpush1.bf16.msra.mxu0 %v7362
      %7382 = vmatprep.subr.bf16.mxu0 0
      %7383 = vmatpush1.bf16.msra.mxu0 %v7363
      %7384 = vmatprep.subr.bf16.mxu0 0
      %7385 = vmatpush1.bf16.msra.mxu0 %v7364
      %7386 = vmatprep.subr.bf16.mxu0 0
      %7387 = vmatpush1.bf16.msra.mxu0 %v7365
      %7388 = vmatprep.subr.bf16.mxu0 0
      %7389 = vmatpush1.bf16.msra.mxu0 %v7366
      %7390 = vmatprep.subr.bf16.mxu0 0
      %7391 = vmatpush1.bf16.msra.mxu0 %v7367
      %7392 = vmatprep.subr.bf16.mxu0 0
      %7393 = vmatpush1.bf16.msra.mxu0 0
      %7394 = vmatprep.subr.bf16.mxu0 0
      %7395 = vmatpush1.bf16.msra.mxu0 0
      %7396 = vmatprep.subr.bf16.mxu0 0
      %7397 = vmatpush1.bf16.msra.mxu0 0
      %7398 = vmatprep.subr.bf16.mxu0 0
      %7399 = vmatpush1.bf16.msra.mxu0 0
      %7400 = vmatprep.subr.bf16.mxu0 0
      %7401 = vmatpush1.bf16.msra.mxu0 0
      %7402 = vmatprep.subr.bf16.mxu0 0
      %7403 = vmatpush1.bf16.msra.mxu0 0
      %7404 = vmatprep.subr.bf16.mxu0 0
      %7405 = vmatpush1.bf16.msra.mxu0 0
      %7406 = vmatprep.subr.bf16.mxu0 0
      %7407 = vmatpush1.bf16.msra.mxu0 0
      %7408 = vmatprep.mubr.bf16.mxu0 0
      %7409 = vmatmul.mubr.bf16.gmra.mrb[0].mxu0 %v6969
      %v7410 = vpop.f32.mrb[0].mxu0
      %v7411 = vadd.f32 0.0, %v7410
      %v7412 = vpop.f32.mrb[0].mxu0
      %v7413 = vpop.f32.mrb[0].mxu0
      %v7414 = vadd.f32 0.0, %v7413
      %v7415 = vpop.f32.mrb[0].mxu0
      %7416 = vmatprep.mubr.bf16.mxu0 0
      %7417 = vmatmul.mubr.bf16.gmra.mrb[0].mxu0 %v6970
      %v7418 = vpop.f32.mrb[0].mxu0
      %v7419 = vadd.f32 0.0, %v7418
      %v7420 = vpop.f32.mrb[0].mxu0
      %v7421 = vpop.f32.mrb[0].mxu0
      %v7422 = vadd.f32 0.0, %v7421
      %v7423 = vpop.f32.mrb[0].mxu0
      %7424 = vmatprep.mubr.bf16.mxu0 0
      %7425 = vmatmul.mubr.bf16.gmra.mrb[0].mxu0 %v6971
      %v7426 = vpop.f32.mrb[0].mxu0
      %v7427 = vadd.f32 0.0, %v7426
      %v7428 = vpop.f32.mrb[0].mxu0
      %v7429 = vpop.f32.mrb[0].mxu0
      %v7430 = vadd.f32 0.0, %v7429
      %v7431 = vpop.f32.mrb[0].mxu0
      %7432 = vmatprep.mubr.bf16.mxu0 0
      %7433 = vmatmul.mubr.bf16.gmra.mrb[0].mxu0 %v6972
      %v7434 = vpop.f32.mrb[0].mxu0
      %v7435 = vadd.f32 0.0, %v7434
      %v7436 = vpop.f32.mrb[0].mxu0
      %v7437 = vpop.f32.mrb[0].mxu0
      %v7438 = vadd.f32 0.0, %v7437
      %v7439 = vpop.f32.mrb[0].mxu0
      %7440 = vmatprep.mubr.bf16.mxu0 0
      %7441 = vmatmul.mubr.bf16.gmra.mrb[0].mxu0 %v6973
      %v7442 = vpop.f32.mrb[0].mxu0
      %v7443 = vadd.f32 0.0, %v7442
      %v7444 = vpop.f32.mrb[0].mxu0
      %v7445 = vpop.f32.mrb[0].mxu0
      %v7446 = vadd.f32 0.0, %v7445
      %v7447 = vpop.f32.mrb[0].mxu0
      %7448 = vmatprep.mubr.bf16.mxu0 0
      %7449 = vmatmul.mubr.bf16.gmra.mrb[0].mxu0 %v6974
      %v7450 = vpop.f32.mrb[0].mxu0
      %v7451 = vadd.f32 0.0, %v7450
      %v7452 = vpop.f32.mrb[0].mxu0
      %v7453 = vpop.f32.mrb[0].mxu0
      %v7454 = vadd.f32 0.0, %v7453
      %v7455 = vpop.f32.mrb[0].mxu0
      %7456 = vmatprep.mubr.bf16.mxu0 0
      %7457 = vmatmul.mubr.bf16.gmra.mrb[0].mxu0 %v6975
      %v7458 = vpop.f32.mrb[0].mxu0
      %v7459 = vadd.f32 0.0, %v7458
      %v7460 = vpop.f32.mrb[0].mxu0
      %v7461 = vpop.f32.mrb[0].mxu0
      %v7462 = vadd.f32 0.0, %v7461
      %v7463 = vpop.f32.mrb[0].mxu0
      %7464 = vmatprep.mubr.bf16.mxu0 0
      %7465 = vmatmul.mubr.bf16.gmra.mrb[0].mxu0 %v6976
      %v7466 = vpop.f32.mrb[0].mxu0
      %v7467 = vadd.f32 0.0, %v7466
      %v7468 = vpop.f32.mrb[0].mxu0
      %v7469 = vpop.f32.mrb[0].mxu0
      %v7470 = vadd.f32 0.0, %v7469
      %v7471 = vpop.f32.mrb[0].mxu0
      %7472 = vmatprep.mubr.bf16.mxu0 0
      %7473 = vmatmul.mubr.bf16.gmra.mrb[0].mxu0 %v6977
      %v7474 = vpop.f32.mrb[0].mxu0
      %v7475 = vadd.f32 0.0, %v7474
      %v7476 = vpop.f32.mrb[0].mxu0
      %v7477 = vpop.f32.mrb[0].mxu0
      %v7478 = vadd.f32 0.0, %v7477
      %v7479 = vpop.f32.mrb[0].mxu0
      %7480 = vmatprep.mubr.bf16.mxu0 0
      %7481 = vmatmul.mubr.bf16.gmra.mrb[0].mxu0 %v6978
      %v7482 = vpop.f32.mrb[0].mxu0
      %v7483 = vadd.f32 0.0, %v7482
      %v7484 = vpop.f32.mrb[0].mxu0
      %v7485 = vpop.f32.mrb[0].mxu0
      %v7486 = vadd.f32 0.0, %v7485
      %v7487 = vpop.f32.mrb[0].mxu0
      %7488 = vmatprep.mubr.bf16.mxu0 0
      %7489 = vmatmul.mubr.bf16.gmra.mrb[0].mxu0 %v6979
      %v7490 = vpop.f32.mrb[0].mxu0
      %v7491 = vadd.f32 0.0, %v7490
      %v7492 = vpop.f32.mrb[0].mxu0
      %v7493 = vpop.f32.mrb[0].mxu0
      %v7494 = vadd.f32 0.0, %v7493
      %v7495 = vpop.f32.mrb[0].mxu0
      %7496 = vmatprep.mubr.bf16.mxu0 0
      %7497 = vmatmul.mubr.bf16.gmra.mrb[0].mxu0 %v6980
      %v7498 = vpop.f32.mrb[0].mxu0
      %v7499 = vadd.f32 0.0, %v7498
      %v7500 = vpop.f32.mrb[0].mxu0
      %v7501 = vpop.f32.mrb[0].mxu0
      %v7502 = vadd.f32 0.0, %v7501
      %v7503 = vpop.f32.mrb[0].mxu0
      %7504 = vmatprep.mubr.bf16.mxu0 0
      %7505 = vmatmul.mubr.bf16.gmra.mrb[0].mxu0 %v6981
      %v7506 = vpop.f32.mrb[0].mxu0
      %v7507 = vadd.f32 0.0, %v7506
      %v7508 = vpop.f32.mrb[0].mxu0
      %v7509 = vpop.f32.mrb[0].mxu0
      %v7510 = vadd.f32 0.0, %v7509
      %v7511 = vpop.f32.mrb[0].mxu0
      %7512 = vmatprep.mubr.bf16.mxu0 0
      %7513 = vmatmul.mubr.bf16.gmra.mrb[0].mxu0 %v6982
      %v7514 = vpop.f32.mrb[0].mxu0
      %v7515 = vadd.f32 0.0, %v7514
      %v7516 = vpop.f32.mrb[0].mxu0
      %v7517 = vpop.f32.mrb[0].mxu0
      %v7518 = vadd.f32 0.0, %v7517
      %v7519 = vpop.f32.mrb[0].mxu0
      %7520 = vmatprep.mubr.bf16.mxu0 0
      %7521 = vmatmul.mubr.bf16.gmra.mrb[0].mxu0 %v6983
      %v7522 = vpop.f32.mrb[0].mxu0
      %v7523 = vadd.f32 0.0, %v7522
      %v7524 = vpop.f32.mrb[0].mxu0
      %v7525 = vpop.f32.mrb[0].mxu0
      %v7526 = vadd.f32 0.0, %v7525
      %v7527 = vpop.f32.mrb[0].mxu0
      %7528 = vmatprep.mubr.bf16.mxu0 0
      %7529 = vmatmul.mubr.bf16.gmra.mrb[0].mxu0 %v7326
      %v7530 = vpop.f32.mrb[0].mxu0
      %v7531 = vadd.f32 0.0, %v7530
      %v7532 = vpop.f32.mrb[0].mxu0
      %v7533 = vpop.f32.mrb[0].mxu0
      %v7534 = vadd.f32 0.0, %v7533
      %v7535 = vpop.f32.mrb[0].mxu0
      %7536 = vdwg.mxu0
      %v7537 = vld [vmem:[#allocation4] sm:$0xff]
      %v7538 = vld [vmem:[#allocation4 + $0x8] sm:$0xff]
      %v7539 = vld [vmem:[#allocation4 + $0x10] sm:$0xff]
      %v7540 = vld [vmem:[#allocation4 + $0x18] sm:$0xff]
      %v7541 = vld [vmem:[#allocation4 + $0x20] sm:$0xff]
      %v7542 = vld [vmem:[#allocation4 + $0x28] sm:$0xff]
      %v7543 = vld [vmem:[#allocation4 + $0x30] sm:$0xff]
      %v7544 = vld [vmem:[#allocation4 + $0x38] sm:$0xff]
      %v7545 = vld [vmem:[#allocation4 + $0x40] sm:$0xff]
      %v7546 = vld [vmem:[#allocation4 + $0x48] sm:$0xff]
      %v7547 = vld [vmem:[#allocation4 + $0x50] sm:$0xff]
      %v7548 = vld [vmem:[#allocation4 + $0x58] sm:$0xff]
      %v7549 = vld [vmem:[#allocation4 + $0x60] sm:$0xff]
      %v7550 = vld [vmem:[#allocation4 + $0x68] sm:$0xff]
      %v7551 = vld [vmem:[#allocation4 + $0x70] sm:$0xff]
      %v7552 = vld [vmem:[#allocation4 + $0x78] sm:$0xff]
      %v7553 = vld [vmem:[#allocation4 + $0x80] sm:$0xff]
      %v7554 = vld [vmem:[#allocation4 + $0x88] sm:$0xff]
      %v7555 = vld [vmem:[#allocation4 + $0x90] sm:$0xff]
      %v7556 = vld [vmem:[#allocation4 + $0x98] sm:$0xff]
      %v7557 = vld [vmem:[#allocation4 + $0xa0] sm:$0xff]
      %v7558 = vld [vmem:[#allocation4 + $0xa8] sm:$0xff]
      %v7559 = vld [vmem:[#allocation4 + $0xb0] sm:$0xff]
      %v7560 = vld [vmem:[#allocation4 + $0xb8] sm:$0xff]
      %v7561 = vld [vmem:[#allocation4 + $0xc0] sm:$0xff]
      %v7562 = vld [vmem:[#allocation4 + $0xc8] sm:$0xff]
      %v7563 = vld [vmem:[#allocation4 + $0xd0] sm:$0xff]
      %v7564 = vld [vmem:[#allocation4 + $0xd8] sm:$0xff]
      %v7565 = vld [vmem:[#allocation4 + $0xe0] sm:$0xff]
      %v7566 = vld [vmem:[#allocation4 + $0xe8] sm:$0xff]
      %v7567 = vld [vmem:[#allocation4 + $0xf0] sm:$0xff]
      %v7568 = vld [vmem:[#allocation4 + $0xf8] sm:$0xff]
      %v7569 = vadd.f32 %v7537, %v7411
      %v7570 = vadd.f32 %v7538, %v7414
      %v7571 = vadd.f32 %v7539, %v7419
      %v7572 = vadd.f32 %v7540, %v7422
      %v7573 = vadd.f32 %v7541, %v7427
      %v7574 = vadd.f32 %v7542, %v7430
      %v7575 = vadd.f32 %v7543, %v7435
      %v7576 = vadd.f32 %v7544, %v7438
      %v7577 = vadd.f32 %v7545, %v7443
      %v7578 = vadd.f32 %v7546, %v7446
      %v7579 = vadd.f32 %v7547, %v7451
      %v7580 = vadd.f32 %v7548, %v7454
      %v7581 = vadd.f32 %v7549, %v7459
      %v7582 = vadd.f32 %v7550, %v7462
      %v7583 = vadd.f32 %v7551, %v7467
      %v7584 = vadd.f32 %v7552, %v7470
      %v7585 = vadd.f32 %v7553, %v7475
      %v7586 = vadd.f32 %v7554, %v7478
      %v7587 = vadd.f32 %v7555, %v7483
      %v7588 = vadd.f32 %v7556, %v7486
      %v7589 = vadd.f32 %v7557, %v7491
      %v7590 = vadd.f32 %v7558, %v7494
      %v7591 = vadd.f32 %v7559, %v7499
      %v7592 = vadd.f32 %v7560, %v7502
      %v7593 = vadd.f32 %v7561, %v7507
      %v7594 = vadd.f32 %v7562, %v7510
      %v7595 = vadd.f32 %v7563, %v7515
      %v7596 = vadd.f32 %v7564, %v7518
      %v7597 = vadd.f32 %v7565, %v7523
      %v7598 = vadd.f32 %v7566, %v7526
      %v7599 = vadd.f32 %v7567, %v7531
      %v7600 = vadd.f32 %v7568, %v7534
      %7601 = vst [vmem:[#allocation4] sm:$0xff] %v7569
      %7602 = vst [vmem:[#allocation4 + $0x8] sm:$0xff] %v7570
      %7603 = vst [vmem:[#allocation4 + $0x10] sm:$0xff] %v7571
      %7604 = vst [vmem:[#allocation4 + $0x18] sm:$0xff] %v7572
      %7605 = vst [vmem:[#allocation4 + $0x20] sm:$0xff] %v7573
      %7606 = vst [vmem:[#allocation4 + $0x28] sm:$0xff] %v7574
      %7607 = vst [vmem:[#allocation4 + $0x30] sm:$0xff] %v7575
      %7608 = vst [vmem:[#allocation4 + $0x38] sm:$0xff] %v7576
      %7609 = vst [vmem:[#allocation4 + $0x40] sm:$0xff] %v7577
      %7610 = vst [vmem:[#allocation4 + $0x48] sm:$0xff] %v7578
      %7611 = vst [vmem:[#allocation4 + $0x50] sm:$0xff] %v7579
      %7612 = vst [vmem:[#allocation4 + $0x58] sm:$0xff] %v7580
      %7613 = vst [vmem:[#allocation4 + $0x60] sm:$0xff] %v7581
      %7614 = vst [vmem:[#allocation4 + $0x68] sm:$0xff] %v7582
      %7615 = vst [vmem:[#allocation4 + $0x70] sm:$0xff] %v7583
      %7616 = vst [vmem:[#allocation4 + $0x78] sm:$0xff] %v7584
      %7617 = vst [vmem:[#allocation4 + $0x80] sm:$0xff] %v7585
      %7618 = vst [vmem:[#allocation4 + $0x88] sm:$0xff] %v7586
      %7619 = vst [vmem:[#allocation4 + $0x90] sm:$0xff] %v7587
      %7620 = vst [vmem:[#allocation4 + $0x98] sm:$0xff] %v7588
      %7621 = vst [vmem:[#allocation4 + $0xa0] sm:$0xff] %v7589
      %7622 = vst [vmem:[#allocation4 + $0xa8] sm:$0xff] %v7590
      %7623 = vst [vmem:[#allocation4 + $0xb0] sm:$0xff] %v7591
      %7624 = vst [vmem:[#allocation4 + $0xb8] sm:$0xff] %v7592
      %7625 = vst [vmem:[#allocation4 + $0xc0] sm:$0xff] %v7593
      %7626 = vst [vmem:[#allocation4 + $0xc8] sm:$0xff] %v7594
      %7627 = vst [vmem:[#allocation4 + $0xd0] sm:$0xff] %v7595
      %7628 = vst [vmem:[#allocation4 + $0xd8] sm:$0xff] %v7596
      %7629 = vst [vmem:[#allocation4 + $0xe0] sm:$0xff] %v7597
      %7630 = vst [vmem:[#allocation4 + $0xe8] sm:$0xff] %v7598
      %7631 = vst [vmem:[#allocation4 + $0xf0] sm:$0xff] %v7599
      %7632 = vst [vmem:[#allocation4 + $0xf8] sm:$0xff] %v7600
      %s7633 = scalar_lea.vmem %s3, 448
      %v7634 = vld [vmem:[%s7633] sm:$0xf]
      %v7635 = vld [vmem:[%s7633 + $0x4] sm:$0xf]
      %v7636 = vld [vmem:[%s7633 + $0x8] sm:$0xf]
      %v7637 = vld [vmem:[%s7633 + $0xc] sm:$0xf]
      %v7638 = vld [vmem:[%s7633 + $0x10] sm:$0xf]
      %v7639 = vld [vmem:[%s7633 + $0x14] sm:$0xf]
      %v7640 = vld [vmem:[%s7633 + $0x18] sm:$0xf]
      %v7641 = vld [vmem:[%s7633 + $0x1c] sm:$0xf]
      %v7642 = vld [vmem:[%s7633 + $0x20] sm:$0xf]
      %v7643 = vld [vmem:[%s7633 + $0x24] sm:$0xf]
      %v7644 = vld [vmem:[%s7633 + $0x28] sm:$0xf]
      %v7645 = vld [vmem:[%s7633 + $0x2c] sm:$0xf]
      %v7646 = vld [vmem:[%s7633 + $0x30] sm:$0xf]
      %v7647 = vld [vmem:[%s7633 + $0x34] sm:$0xf]
      %v7648 = vld [vmem:[%s7633 + $0x38] sm:$0xf]
      %v7649 = vld [vmem:[%s7633 + $0x3c] sm:$0xf]
      %v7652 = vunpack.c.l.b16 %v6885
      %v7653 = vunpack.c.l.b16 %v6886
      %v7654 = vpack.c.b16 %v7653, %v7652
      %v7672 = vunpack.c.l.b16 %v7634
      %v7673 = vunpack.c.l.b16 %v7635
      %v7674 = vunpack.c.l.b16 %v7636
      %v7675 = vunpack.c.l.b16 %v7637
      %v7676 = vunpack.c.l.b16 %v7638
      %v7677 = vunpack.c.l.b16 %v7639
      %v7678 = vunpack.c.l.b16 %v7640
      %v7679 = vunpack.c.l.b16 %v7641
      %v7680 = vunpack.c.l.b16 %v7642
      %v7681 = vunpack.c.l.b16 %v7643
      %v7682 = vunpack.c.l.b16 %v7644
      %v7683 = vunpack.c.l.b16 %v7645
      %v7684 = vunpack.c.l.b16 %v7646
      %v7685 = vunpack.c.l.b16 %v7647
      %v7686 = vunpack.c.l.b16 %v7648
      %v7687 = vunpack.c.l.b16 %v7649
      %v7688 = vpack.c.b16 %v7673, %v7672
      %v7689 = vpack.c.b16 %v7675, %v7674
      %v7690 = vpack.c.b16 %v7677, %v7676
      %v7691 = vpack.c.b16 %v7679, %v7678
      %v7692 = vpack.c.b16 %v7681, %v7680
      %v7693 = vpack.c.b16 %v7683, %v7682
      %v7694 = vpack.c.b16 %v7685, %v7684
      %v7695 = vpack.c.b16 %v7687, %v7686
      %7704 = vmatprep.subr.bf16.mxu0 0
      %7705 = vmatpush1.bf16.msra.mxu0 %v7688
      %7706 = vmatprep.subr.bf16.mxu0 0
      %7707 = vmatpush1.bf16.msra.mxu0 %v7689
      %7708 = vmatprep.subr.bf16.mxu0 0
      %7709 = vmatpush1.bf16.msra.mxu0 %v7690
      %7710 = vmatprep.subr.bf16.mxu0 0
      %7711 = vmatpush1.bf16.msra.mxu0 %v7691
      %7712 = vmatprep.subr.bf16.mxu0 0
      %7713 = vmatpush1.bf16.msra.mxu0 %v7692
      %7714 = vmatprep.subr.bf16.mxu0 0
      %7715 = vmatpush1.bf16.msra.mxu0 %v7693
      %7716 = vmatprep.subr.bf16.mxu0 0
      %7717 = vmatpush1.bf16.msra.mxu0 %v7694
      %7718 = vmatprep.subr.bf16.mxu0 0
      %7719 = vmatpush1.bf16.msra.mxu0 %v7695
      %7720 = vmatprep.subr.bf16.mxu0 0
      %7721 = vmatpush1.bf16.msra.mxu0 0
      %7722 = vmatprep.subr.bf16.mxu0 0
      %7723 = vmatpush1.bf16.msra.mxu0 0
      %7724 = vmatprep.subr.bf16.mxu0 0
      %7725 = vmatpush1.bf16.msra.mxu0 0
      %7726 = vmatprep.subr.bf16.mxu0 0
      %7727 = vmatpush1.bf16.msra.mxu0 0
      %7728 = vmatprep.subr.bf16.mxu0 0
      %7729 = vmatpush1.bf16.msra.mxu0 0
      %7730 = vmatprep.subr.bf16.mxu0 0
      %7731 = vmatpush1.bf16.msra.mxu0 0
      %7732 = vmatprep.subr.bf16.mxu0 0
      %7733 = vmatpush1.bf16.msra.mxu0 0
      %7734 = vmatprep.subr.bf16.mxu0 0
      %7735 = vmatpush1.bf16.msra.mxu0 0
      %7736 = vmatprep.mubr.bf16.mxu0 0
      %7737 = vmatmul.mubr.bf16.gmra.mrb[0].mxu0 %v6970
      %v7738 = vpop.f32.mrb[0].mxu0
      %v7739 = vadd.f32 0.0, %v7738
      %v7740 = vpop.f32.mrb[0].mxu0
      %v7741 = vpop.f32.mrb[0].mxu0
      %v7742 = vadd.f32 0.0, %v7741
      %v7743 = vpop.f32.mrb[0].mxu0
      %7744 = vmatprep.mubr.bf16.mxu0 0
      %7745 = vmatmul.mubr.bf16.gmra.mrb[0].mxu0 %v6971
      %v7746 = vpop.f32.mrb[0].mxu0
      %v7747 = vadd.f32 0.0, %v7746
      %v7748 = vpop.f32.mrb[0].mxu0
      %v7749 = vpop.f32.mrb[0].mxu0
      %v7750 = vadd.f32 0.0, %v7749
      %v7751 = vpop.f32.mrb[0].mxu0
      %7752 = vmatprep.mubr.bf16.mxu0 0
      %7753 = vmatmul.mubr.bf16.gmra.mrb[0].mxu0 %v6972
      %v7754 = vpop.f32.mrb[0].mxu0
      %v7755 = vadd.f32 0.0, %v7754
      %v7756 = vpop.f32.mrb[0].mxu0
      %v7757 = vpop.f32.mrb[0].mxu0
      %v7758 = vadd.f32 0.0, %v7757
      %v7759 = vpop.f32.mrb[0].mxu0
      %7760 = vmatprep.mubr.bf16.mxu0 0
      %7761 = vmatmul.mubr.bf16.gmra.mrb[0].mxu0 %v6973
      %v7762 = vpop.f32.mrb[0].mxu0
      %v7763 = vadd.f32 0.0, %v7762
      %v7764 = vpop.f32.mrb[0].mxu0
      %v7765 = vpop.f32.mrb[0].mxu0
      %v7766 = vadd.f32 0.0, %v7765
      %v7767 = vpop.f32.mrb[0].mxu0
      %7768 = vmatprep.mubr.bf16.mxu0 0
      %7769 = vmatmul.mubr.bf16.gmra.mrb[0].mxu0 %v6974
      %v7770 = vpop.f32.mrb[0].mxu0
      %v7771 = vadd.f32 0.0, %v7770
      %v7772 = vpop.f32.mrb[0].mxu0
      %v7773 = vpop.f32.mrb[0].mxu0
      %v7774 = vadd.f32 0.0, %v7773
      %v7775 = vpop.f32.mrb[0].mxu0
      %7776 = vmatprep.mubr.bf16.mxu0 0
      %7777 = vmatmul.mubr.bf16.gmra.mrb[0].mxu0 %v6975
      %v7778 = vpop.f32.mrb[0].mxu0
      %v7779 = vadd.f32 0.0, %v7778
      %v7780 = vpop.f32.mrb[0].mxu0
      %v7781 = vpop.f32.mrb[0].mxu0
      %v7782 = vadd.f32 0.0, %v7781
      %v7783 = vpop.f32.mrb[0].mxu0
      %7784 = vmatprep.mubr.bf16.mxu0 0
      %7785 = vmatmul.mubr.bf16.gmra.mrb[0].mxu0 %v6976
      %v7786 = vpop.f32.mrb[0].mxu0
      %v7787 = vadd.f32 0.0, %v7786
      %v7788 = vpop.f32.mrb[0].mxu0
      %v7789 = vpop.f32.mrb[0].mxu0
      %v7790 = vadd.f32 0.0, %v7789
      %v7791 = vpop.f32.mrb[0].mxu0
      %7792 = vmatprep.mubr.bf16.mxu0 0
      %7793 = vmatmul.mubr.bf16.gmra.mrb[0].mxu0 %v6977
      %v7794 = vpop.f32.mrb[0].mxu0
      %v7795 = vadd.f32 0.0, %v7794
      %v7796 = vpop.f32.mrb[0].mxu0
      %v7797 = vpop.f32.mrb[0].mxu0
      %v7798 = vadd.f32 0.0, %v7797
      %v7799 = vpop.f32.mrb[0].mxu0
      %7800 = vmatprep.mubr.bf16.mxu0 0
      %7801 = vmatmul.mubr.bf16.gmra.mrb[0].mxu0 %v6978
      %v7802 = vpop.f32.mrb[0].mxu0
      %v7803 = vadd.f32 0.0, %v7802
      %v7804 = vpop.f32.mrb[0].mxu0
      %v7805 = vpop.f32.mrb[0].mxu0
      %v7806 = vadd.f32 0.0, %v7805
      %v7807 = vpop.f32.mrb[0].mxu0
      %7808 = vmatprep.mubr.bf16.mxu0 0
      %7809 = vmatmul.mubr.bf16.gmra.mrb[0].mxu0 %v6979
      %v7810 = vpop.f32.mrb[0].mxu0
      %v7811 = vadd.f32 0.0, %v7810
      %v7812 = vpop.f32.mrb[0].mxu0
      %v7813 = vpop.f32.mrb[0].mxu0
      %v7814 = vadd.f32 0.0, %v7813
      %v7815 = vpop.f32.mrb[0].mxu0
      %7816 = vmatprep.mubr.bf16.mxu0 0
      %7817 = vmatmul.mubr.bf16.gmra.mrb[0].mxu0 %v6980
      %v7818 = vpop.f32.mrb[0].mxu0
      %v7819 = vadd.f32 0.0, %v7818
      %v7820 = vpop.f32.mrb[0].mxu0
      %v7821 = vpop.f32.mrb[0].mxu0
      %v7822 = vadd.f32 0.0, %v7821
      %v7823 = vpop.f32.mrb[0].mxu0
      %7824 = vmatprep.mubr.bf16.mxu0 0
      %7825 = vmatmul.mubr.bf16.gmra.mrb[0].mxu0 %v6981
      %v7826 = vpop.f32.mrb[0].mxu0
      %v7827 = vadd.f32 0.0, %v7826
      %v7828 = vpop.f32.mrb[0].mxu0
      %v7829 = vpop.f32.mrb[0].mxu0
      %v7830 = vadd.f32 0.0, %v7829
      %v7831 = vpop.f32.mrb[0].mxu0
      %7832 = vmatprep.mubr.bf16.mxu0 0
      %7833 = vmatmul.mubr.bf16.gmra.mrb[0].mxu0 %v6982
      %v7834 = vpop.f32.mrb[0].mxu0
      %v7835 = vadd.f32 0.0, %v7834
      %v7836 = vpop.f32.mrb[0].mxu0
      %v7837 = vpop.f32.mrb[0].mxu0
      %v7838 = vadd.f32 0.0, %v7837
      %v7839 = vpop.f32.mrb[0].mxu0
      %7840 = vmatprep.mubr.bf16.mxu0 0
      %7841 = vmatmul.mubr.bf16.gmra.mrb[0].mxu0 %v6983
      %v7842 = vpop.f32.mrb[0].mxu0
      %v7843 = vadd.f32 0.0, %v7842
      %v7844 = vpop.f32.mrb[0].mxu0
      %v7845 = vpop.f32.mrb[0].mxu0
      %v7846 = vadd.f32 0.0, %v7845
      %v7847 = vpop.f32.mrb[0].mxu0
      %7848 = vmatprep.mubr.bf16.mxu0 0
      %7849 = vmatmul.mubr.bf16.gmra.mrb[0].mxu0 %v7326
      %v7850 = vpop.f32.mrb[0].mxu0
      %v7851 = vadd.f32 0.0, %v7850
      %v7852 = vpop.f32.mrb[0].mxu0
      %v7853 = vpop.f32.mrb[0].mxu0
      %v7854 = vadd.f32 0.0, %v7853
      %v7855 = vpop.f32.mrb[0].mxu0
      %7856 = vmatprep.mubr.bf16.mxu0 0
      %7857 = vmatmul.mubr.bf16.gmra.mrb[0].mxu0 %v7654
      %v7858 = vpop.f32.mrb[0].mxu0
      %v7859 = vadd.f32 0.0, %v7858
      %v7860 = vpop.f32.mrb[0].mxu0
      %v7861 = vpop.f32.mrb[0].mxu0
      %v7862 = vadd.f32 0.0, %v7861
      %v7863 = vpop.f32.mrb[0].mxu0
      %7864 = vdwg.mxu0
      %v7865 = vld [vmem:[#allocation4] sm:$0xff]
      %v7866 = vld [vmem:[#allocation4 + $0x8] sm:$0xff]
      %v7867 = vld [vmem:[#allocation4 + $0x10] sm:$0xff]
      %v7868 = vld [vmem:[#allocation4 + $0x18] sm:$0xff]
      %v7869 = vld [vmem:[#allocation4 + $0x20] sm:$0xff]
      %v7870 = vld [vmem:[#allocation4 + $0x28] sm:$0xff]
      %v7871 = vld [vmem:[#allocation4 + $0x30] sm:$0xff]
      %v7872 = vld [vmem:[#allocation4 + $0x38] sm:$0xff]
      %v7873 = vld [vmem:[#allocation4 + $0x40] sm:$0xff]
      %v7874 = vld [vmem:[#allocation4 + $0x48] sm:$0xff]
      %v7875 = vld [vmem:[#allocation4 + $0x50] sm:$0xff]
      %v7876 = vld [vmem:[#allocation4 + $0x58] sm:$0xff]
      %v7877 = vld [vmem:[#allocation4 + $0x60] sm:$0xff]
      %v7878 = vld [vmem:[#allocation4 + $0x68] sm:$0xff]
      %v7879 = vld [vmem:[#allocation4 + $0x70] sm:$0xff]
      %v7880 = vld [vmem:[#allocation4 + $0x78] sm:$0xff]
      %v7881 = vld [vmem:[#allocation4 + $0x80] sm:$0xff]
      %v7882 = vld [vmem:[#allocation4 + $0x88] sm:$0xff]
      %v7883 = vld [vmem:[#allocation4 + $0x90] sm:$0xff]
      %v7884 = vld [vmem:[#allocation4 + $0x98] sm:$0xff]
      %v7885 = vld [vmem:[#allocation4 + $0xa0] sm:$0xff]
      %v7886 = vld [vmem:[#allocation4 + $0xa8] sm:$0xff]
      %v7887 = vld [vmem:[#allocation4 + $0xb0] sm:$0xff]
      %v7888 = vld [vmem:[#allocation4 + $0xb8] sm:$0xff]
      %v7889 = vld [vmem:[#allocation4 + $0xc0] sm:$0xff]
      %v7890 = vld [vmem:[#allocation4 + $0xc8] sm:$0xff]
      %v7891 = vld [vmem:[#allocation4 + $0xd0] sm:$0xff]
      %v7892 = vld [vmem:[#allocation4 + $0xd8] sm:$0xff]
      %v7893 = vld [vmem:[#allocation4 + $0xe0] sm:$0xff]
      %v7894 = vld [vmem:[#allocation4 + $0xe8] sm:$0xff]
      %v7895 = vld [vmem:[#allocation4 + $0xf0] sm:$0xff]
      %v7896 = vld [vmem:[#allocation4 + $0xf8] sm:$0xff]
      %v7897 = vadd.f32 %v7865, %v7739
      %v7898 = vadd.f32 %v7866, %v7742
      %v7899 = vadd.f32 %v7867, %v7747
      %v7900 = vadd.f32 %v7868, %v7750
      %v7901 = vadd.f32 %v7869, %v7755
      %v7902 = vadd.f32 %v7870, %v7758
      %v7903 = vadd.f32 %v7871, %v7763
      %v7904 = vadd.f32 %v7872, %v7766
      %v7905 = vadd.f32 %v7873, %v7771
      %v7906 = vadd.f32 %v7874, %v7774
      %v7907 = vadd.f32 %v7875, %v7779
      %v7908 = vadd.f32 %v7876, %v7782
      %v7909 = vadd.f32 %v7877, %v7787
      %v7910 = vadd.f32 %v7878, %v7790
      %v7911 = vadd.f32 %v7879, %v7795
      %v7912 = vadd.f32 %v7880, %v7798
      %v7913 = vadd.f32 %v7881, %v7803
      %v7914 = vadd.f32 %v7882, %v7806
      %v7915 = vadd.f32 %v7883, %v7811
      %v7916 = vadd.f32 %v7884, %v7814
      %v7917 = vadd.f32 %v7885, %v7819
      %v7918 = vadd.f32 %v7886, %v7822
      %v7919 = vadd.f32 %v7887, %v7827
      %v7920 = vadd.f32 %v7888, %v7830
      %v7921 = vadd.f32 %v7889, %v7835
      %v7922 = vadd.f32 %v7890, %v7838
      %v7923 = vadd.f32 %v7891, %v7843
      %v7924 = vadd.f32 %v7892, %v7846
      %v7925 = vadd.f32 %v7893, %v7851
      %v7926 = vadd.f32 %v7894, %v7854
      %v7927 = vadd.f32 %v7895, %v7859
      %v7928 = vadd.f32 %v7896, %v7862
      %7929 = vst [vmem:[#allocation4] sm:$0xff] %v7897
      %7930 = vst [vmem:[#allocation4 + $0x8] sm:$0xff] %v7898
      %7931 = vst [vmem:[#allocation4 + $0x10] sm:$0xff] %v7899
      %7932 = vst [vmem:[#allocation4 + $0x18] sm:$0xff] %v7900
      %7933 = vst [vmem:[#allocation4 + $0x20] sm:$0xff] %v7901
      %7934 = vst [vmem:[#allocation4 + $0x28] sm:$0xff] %v7902
      %7935 = vst [vmem:[#allocation4 + $0x30] sm:$0xff] %v7903
      %7936 = vst [vmem:[#allocation4 + $0x38] sm:$0xff] %v7904
      %7937 = vst [vmem:[#allocation4 + $0x40] sm:$0xff] %v7905
      %7938 = vst [vmem:[#allocation4 + $0x48] sm:$0xff] %v7906
      %7939 = vst [vmem:[#allocation4 + $0x50] sm:$0xff] %v7907
      %7940 = vst [vmem:[#allocation4 + $0x58] sm:$0xff] %v7908
      %7941 = vst [vmem:[#allocation4 + $0x60] sm:$0xff] %v7909
      %7942 = vst [vmem:[#allocation4 + $0x68] sm:$0xff] %v7910
      %7943 = vst [vmem:[#allocation4 + $0x70] sm:$0xff] %v7911
      %7944 = vst [vmem:[#allocation4 + $0x78] sm:$0xff] %v7912
      %7945 = vst [vmem:[#allocation4 + $0x80] sm:$0xff] %v7913
      %7946 = vst [vmem:[#allocation4 + $0x88] sm:$0xff] %v7914
      %7947 = vst [vmem:[#allocation4 + $0x90] sm:$0xff] %v7915
      %7948 = vst [vmem:[#allocation4 + $0x98] sm:$0xff] %v7916
      %7949 = vst [vmem:[#allocation4 + $0xa0] sm:$0xff] %v7917
      %7950 = vst [vmem:[#allocation4 + $0xa8] sm:$0xff] %v7918
      %7951 = vst [vmem:[#allocation4 + $0xb0] sm:$0xff] %v7919
      %7952 = vst [vmem:[#allocation4 + $0xb8] sm:$0xff] %v7920
      %7953 = vst [vmem:[#allocation4 + $0xc0] sm:$0xff] %v7921
      %7954 = vst [vmem:[#allocation4 + $0xc8] sm:$0xff] %v7922
      %7955 = vst [vmem:[#allocation4 + $0xd0] sm:$0xff] %v7923
      %7956 = vst [vmem:[#allocation4 + $0xd8] sm:$0xff] %v7924
      %7957 = vst [vmem:[#allocation4 + $0xe0] sm:$0xff] %v7925
      %7958 = vst [vmem:[#allocation4 + $0xe8] sm:$0xff] %v7926
      %7959 = vst [vmem:[#allocation4 + $0xf0] sm:$0xff] %v7927
      %7960 = vst [vmem:[#allocation4 + $0xf8] sm:$0xff] %v7928
      %v7961 = vld [vmem:[#allocation2 + $0x8] sm:$0xf]
      %v7962 = vld [vmem:[#allocation2 + $0xc] sm:$0xf]
      %v7963 = vld [vmem:[#allocation2 + $0x10] sm:$0x1]
      %v7964 = vld [vmem:[#allocation2 + $0x1c] sm:$0xf]
      %v7965 = vld [vmem:[#allocation2 + $0x20] sm:$0xf]
      %v7966 = vld [vmem:[#allocation2 + $0x24] sm:$0x1]
      %v7967 = vld [vmem:[#allocation2 + $0x30] sm:$0xf]
      %v7968 = vld [vmem:[#allocation2 + $0x34] sm:$0xf]
      %v7969 = vld [vmem:[#allocation2 + $0x38] sm:$0x1]
      %v7970 = vld [vmem:[#allocation2 + $0x44] sm:$0xf]
      %v7971 = vld [vmem:[#allocation2 + $0x48] sm:$0xf]
      %v7972 = vld [vmem:[#allocation2 + $0x4c] sm:$0x1]
      %v7973 = vld [vmem:[#allocation2 + $0x58] sm:$0xf]
      %v7974 = vld [vmem:[#allocation2 + $0x5c] sm:$0xf]
      %v7975 = vld [vmem:[#allocation2 + $0x60] sm:$0x1]
      %v7976 = vld [vmem:[#allocation2 + $0x6c] sm:$0xf]
      %v7977 = vld [vmem:[#allocation2 + $0x70] sm:$0xf]
      %v7978 = vld [vmem:[#allocation2 + $0x74] sm:$0x1]
      %v7979 = vld [vmem:[#allocation2 + $0x80] sm:$0xf]
      %v7980 = vld [vmem:[#allocation2 + $0x84] sm:$0xf]
      %v7981 = vld [vmem:[#allocation2 + $0x88] sm:$0x1]
      %v7982 = vld [vmem:[#allocation2 + $0x94] sm:$0xf]
      %v7983 = vld [vmem:[#allocation2 + $0x98] sm:$0xf]
      %v7984 = vld [vmem:[#allocation2 + $0x9c] sm:$0x1]
      %v7985 = vld [vmem:[#allocation2 + $0xa8] sm:$0xf]
      %v7986 = vld [vmem:[#allocation2 + $0xac] sm:$0xf]
      %v7987 = vld [vmem:[#allocation2 + $0xb0] sm:$0x1]
      %v7988 = vld [vmem:[#allocation2 + $0xbc] sm:$0xf]
      %v7989 = vld [vmem:[#allocation2 + $0xc0] sm:$0xf]
      %v7990 = vld [vmem:[#allocation2 + $0xc4] sm:$0x1]
      %v7991 = vld [vmem:[#allocation2 + $0xd0] sm:$0xf]
      %v7992 = vld [vmem:[#allocation2 + $0xd4] sm:$0xf]
      %v7993 = vld [vmem:[#allocation2 + $0xd8] sm:$0x1]
      %v7994 = vld [vmem:[#allocation2 + $0xe4] sm:$0xf]
      %v7995 = vld [vmem:[#allocation2 + $0xe8] sm:$0xf]
      %v7996 = vld [vmem:[#allocation2 + $0xec] sm:$0x1]
      %v7997 = vld [vmem:[#allocation2 + $0xf8] sm:$0xf]
      %v7998 = vld [vmem:[#allocation2 + $0xfc] sm:$0xf]
      %v7999 = vld [vmem:[#allocation2 + $0x100] sm:$0x1]
      %v8000 = vld [vmem:[#allocation2 + $0x10c] sm:$0xf]
      %v8001 = vld [vmem:[#allocation2 + $0x110] sm:$0xf]
      %v8002 = vld [vmem:[#allocation2 + $0x114] sm:$0x1]
      %v8003 = vld [vmem:[#allocation2 + $0x120] sm:$0xf]
      %v8004 = vld [vmem:[#allocation2 + $0x124] sm:$0xf]
      %v8005 = vld [vmem:[#allocation2 + $0x128] sm:$0x1]
      %v8006 = vld [vmem:[#allocation2 + $0x134] sm:$0xf]
      %v8007 = vld [vmem:[#allocation2 + $0x138] sm:$0xf]
      %v8008 = vld [vmem:[#allocation2 + $0x13c] sm:$0x1]
      %v8009 = vld [vmem:[#allocation2 + $0x148] sm:$0xf]
      %v8010 = vld [vmem:[#allocation2 + $0x14c] sm:$0xf]
      %v8011 = vld [vmem:[#allocation2 + $0x150] sm:$0x1]
      %v8012 = vld [vmem:[#allocation2 + $0x15c] sm:$0xf]
      %v8013 = vld [vmem:[#allocation2 + $0x160] sm:$0xf]
      %v8014 = vld [vmem:[#allocation2 + $0x164] sm:$0x1]
      %v8016 = vshrl.u32 %v7961, 16
      %v8018 = vrot.slane %v8016, 4
      %v8019 = vshll.u32 %v7961, 16
      %v8021 = vrot.slane %v8019, 5
      %v8022 = vor.u32 %v8018, %v8021
      %v8023 = vrot.slane %v8022, 4
      %v8025 = vshll.u32 %v7962, 16
      %v8027 = vrot.slane %v8025, 5
      %v8028 = vsel %vm324, %v8023, %v8027
      %v8029 = vshrl.u32 %v7962, 16
      %v8031 = vrot.slane %v8029, 4
      %v8032 = vor.u32 %v8031, %v8027
      %v8033 = vrot.slane %v8032, 4
      %v8035 = vshll.u32 %v7963, 16
      %v8037 = vrot.slane %v8035, 5
      %v8038 = vsel %vm324, %v8033, %v8037
      %v8040 = vshrl.u32 %v7964, 16
      %v8042 = vrot.slane %v8040, 4
      %v8043 = vshll.u32 %v7964, 16
      %v8045 = vrot.slane %v8043, 5
      %v8046 = vor.u32 %v8042, %v8045
      %v8047 = vrot.slane %v8046, 4
      %v8049 = vshll.u32 %v7965, 16
      %v8051 = vrot.slane %v8049, 5
      %v8052 = vsel %vm324, %v8047, %v8051
      %v8053 = vshrl.u32 %v7965, 16
      %v8055 = vrot.slane %v8053, 4
      %v8056 = vor.u32 %v8055, %v8051
      %v8057 = vrot.slane %v8056, 4
      %v8059 = vshll.u32 %v7966, 16
      %v8061 = vrot.slane %v8059, 5
      %v8062 = vsel %vm324, %v8057, %v8061
      %v8064 = vshrl.u32 %v7967, 16
      %v8066 = vrot.slane %v8064, 4
      %v8067 = vshll.u32 %v7967, 16
      %v8069 = vrot.slane %v8067, 5
      %v8070 = vor.u32 %v8066, %v8069
      %v8071 = vrot.slane %v8070, 4
      %v8073 = vshll.u32 %v7968, 16
      %v8075 = vrot.slane %v8073, 5
      %v8076 = vsel %vm324, %v8071, %v8075
      %v8077 = vshrl.u32 %v7968, 16
      %v8079 = vrot.slane %v8077, 4
      %v8080 = vor.u32 %v8079, %v8075
      %v8081 = vrot.slane %v8080, 4
      %v8083 = vshll.u32 %v7969, 16
      %v8085 = vrot.slane %v8083, 5
      %v8086 = vsel %vm324, %v8081, %v8085
      %v8088 = vshrl.u32 %v7970, 16
      %v8090 = vrot.slane %v8088, 4
      %v8091 = vshll.u32 %v7970, 16
      %v8093 = vrot.slane %v8091, 5
      %v8094 = vor.u32 %v8090, %v8093
      %v8095 = vrot.slane %v8094, 4
      %v8097 = vshll.u32 %v7971, 16
      %v8099 = vrot.slane %v8097, 5
      %v8100 = vsel %vm324, %v8095, %v8099
      %v8101 = vshrl.u32 %v7971, 16
      %v8103 = vrot.slane %v8101, 4
      %v8104 = vor.u32 %v8103, %v8099
      %v8105 = vrot.slane %v8104, 4
      %v8107 = vshll.u32 %v7972, 16
      %v8109 = vrot.slane %v8107, 5
      %v8110 = vsel %vm324, %v8105, %v8109
      %v8112 = vshrl.u32 %v7973, 16
      %v8114 = vrot.slane %v8112, 4
      %v8115 = vshll.u32 %v7973, 16
      %v8117 = vrot.slane %v8115, 5
      %v8118 = vor.u32 %v8114, %v8117
      %v8119 = vrot.slane %v8118, 4
      %v8121 = vshll.u32 %v7974, 16
      %v8123 = vrot.slane %v8121, 5
      %v8124 = vsel %vm324, %v8119, %v8123
      %v8125 = vshrl.u32 %v7974, 16
      %v8127 = vrot.slane %v8125, 4
      %v8128 = vor.u32 %v8127, %v8123
      %v8129 = vrot.slane %v8128, 4
      %v8131 = vshll.u32 %v7975, 16
      %v8133 = vrot.slane %v8131, 5
      %v8134 = vsel %vm324, %v8129, %v8133
      %v8136 = vshrl.u32 %v7976, 16
      %v8138 = vrot.slane %v8136, 4
      %v8139 = vshll.u32 %v7976, 16
      %v8141 = vrot.slane %v8139, 5
      %v8142 = vor.u32 %v8138, %v8141
      %v8143 = vrot.slane %v8142, 4
      %v8145 = vshll.u32 %v7977, 16
      %v8147 = vrot.slane %v8145, 5
      %v8148 = vsel %vm324, %v8143, %v8147
      %v8149 = vshrl.u32 %v7977, 16
      %v8151 = vrot.slane %v8149, 4
      %v8152 = vor.u32 %v8151, %v8147
      %v8153 = vrot.slane %v8152, 4
      %v8155 = vshll.u32 %v7978, 16
      %v8157 = vrot.slane %v8155, 5
      %v8158 = vsel %vm324, %v8153, %v8157
      %v8160 = vshrl.u32 %v7979, 16
      %v8162 = vrot.slane %v8160, 4
      %v8163 = vshll.u32 %v7979, 16
      %v8165 = vrot.slane %v8163, 5
      %v8166 = vor.u32 %v8162, %v8165
      %v8167 = vrot.slane %v8166, 4
      %v8169 = vshll.u32 %v7980, 16
      %v8171 = vrot.slane %v8169, 5
      %v8172 = vsel %vm324, %v8167, %v8171
      %v8173 = vshrl.u32 %v7980, 16
      %v8175 = vrot.slane %v8173, 4
      %v8176 = vor.u32 %v8175, %v8171
      %v8177 = vrot.slane %v8176, 4
      %v8179 = vshll.u32 %v7981, 16
      %v8181 = vrot.slane %v8179, 5
      %v8182 = vsel %vm324, %v8177, %v8181
      %v8184 = vshrl.u32 %v7982, 16
      %v8186 = vrot.slane %v8184, 4
      %v8187 = vshll.u32 %v7982, 16
      %v8189 = vrot.slane %v8187, 5
      %v8190 = vor.u32 %v8186, %v8189
      %v8191 = vrot.slane %v8190, 4
      %v8193 = vshll.u32 %v7983, 16
      %v8195 = vrot.slane %v8193, 5
      %v8196 = vsel %vm324, %v8191, %v8195
      %v8197 = vshrl.u32 %v7983, 16
      %v8199 = vrot.slane %v8197, 4
      %v8200 = vor.u32 %v8199, %v8195
      %v8201 = vrot.slane %v8200, 4
      %v8203 = vshll.u32 %v7984, 16
      %v8205 = vrot.slane %v8203, 5
      %v8206 = vsel %vm324, %v8201, %v8205
      %v8208 = vshrl.u32 %v7985, 16
      %v8210 = vrot.slane %v8208, 4
      %v8211 = vshll.u32 %v7985, 16
      %v8213 = vrot.slane %v8211, 5
      %v8214 = vor.u32 %v8210, %v8213
      %v8215 = vrot.slane %v8214, 4
      %v8217 = vshll.u32 %v7986, 16
      %v8219 = vrot.slane %v8217, 5
      %v8220 = vsel %vm324, %v8215, %v8219
      %v8221 = vshrl.u32 %v7986, 16
      %v8223 = vrot.slane %v8221, 4
      %v8224 = vor.u32 %v8223, %v8219
      %v8225 = vrot.slane %v8224, 4
      %v8227 = vshll.u32 %v7987, 16
      %v8229 = vrot.slane %v8227, 5
      %v8230 = vsel %vm324, %v8225, %v8229
      %v8232 = vshrl.u32 %v7988, 16
      %v8234 = vrot.slane %v8232, 4
      %v8235 = vshll.u32 %v7988, 16
      %v8237 = vrot.slane %v8235, 5
      %v8238 = vor.u32 %v8234, %v8237
      %v8239 = vrot.slane %v8238, 4
      %v8241 = vshll.u32 %v7989, 16
      %v8243 = vrot.slane %v8241, 5
      %v8244 = vsel %vm324, %v8239, %v8243
      %v8245 = vshrl.u32 %v7989, 16
      %v8247 = vrot.slane %v8245, 4
      %v8248 = vor.u32 %v8247, %v8243
      %v8249 = vrot.slane %v8248, 4
      %v8251 = vshll.u32 %v7990, 16
      %v8253 = vrot.slane %v8251, 5
      %v8254 = vsel %vm324, %v8249, %v8253
      %v8256 = vshrl.u32 %v7991, 16
      %v8258 = vrot.slane %v8256, 4
      %v8259 = vshll.u32 %v7991, 16
      %v8261 = vrot.slane %v8259, 5
      %v8262 = vor.u32 %v8258, %v8261
      %v8263 = vrot.slane %v8262, 4
      %v8265 = vshll.u32 %v7992, 16
      %v8267 = vrot.slane %v8265, 5
      %v8268 = vsel %vm324, %v8263, %v8267
      %v8269 = vshrl.u32 %v7992, 16
      %v8271 = vrot.slane %v8269, 4
      %v8272 = vor.u32 %v8271, %v8267
      %v8273 = vrot.slane %v8272, 4
      %v8275 = vshll.u32 %v7993, 16
      %v8277 = vrot.slane %v8275, 5
      %v8278 = vsel %vm324, %v8273, %v8277
      %v8280 = vshrl.u32 %v7994, 16
      %v8282 = vrot.slane %v8280, 4
      %v8283 = vshll.u32 %v7994, 16
      %v8285 = vrot.slane %v8283, 5
      %v8286 = vor.u32 %v8282, %v8285
      %v8287 = vrot.slane %v8286, 4
      %v8289 = vshll.u32 %v7995, 16
      %v8291 = vrot.slane %v8289, 5
      %v8292 = vsel %vm324, %v8287, %v8291
      %v8293 = vshrl.u32 %v7995, 16
      %v8295 = vrot.slane %v8293, 4
      %v8296 = vor.u32 %v8295, %v8291
      %v8297 = vrot.slane %v8296, 4
      %v8299 = vshll.u32 %v7996, 16
      %v8301 = vrot.slane %v8299, 5
      %v8302 = vsel %vm324, %v8297, %v8301
      %v8304 = vshrl.u32 %v7997, 16
      %v8306 = vrot.slane %v8304, 4
      %v8307 = vshll.u32 %v7997, 16
      %v8309 = vrot.slane %v8307, 5
      %v8310 = vor.u32 %v8306, %v8309
      %v8311 = vrot.slane %v8310, 4
      %v8313 = vshll.u32 %v7998, 16
      %v8315 = vrot.slane %v8313, 5
      %v8316 = vsel %vm324, %v8311, %v8315
      %v8317 = vshrl.u32 %v7998, 16
      %v8319 = vrot.slane %v8317, 4
      %v8320 = vor.u32 %v8319, %v8315
      %v8321 = vrot.slane %v8320, 4
      %v8323 = vshll.u32 %v7999, 16
      %v8325 = vrot.slane %v8323, 5
      %v8326 = vsel %vm324, %v8321, %v8325
      %v8328 = vshrl.u32 %v8000, 16
      %v8330 = vrot.slane %v8328, 4
      %v8331 = vshll.u32 %v8000, 16
      %v8333 = vrot.slane %v8331, 5
      %v8334 = vor.u32 %v8330, %v8333
      %v8335 = vrot.slane %v8334, 4
      %v8337 = vshll.u32 %v8001, 16
      %v8339 = vrot.slane %v8337, 5
      %v8340 = vsel %vm324, %v8335, %v8339
      %v8341 = vshrl.u32 %v8001, 16
      %v8343 = vrot.slane %v8341, 4
      %v8344 = vor.u32 %v8343, %v8339
      %v8345 = vrot.slane %v8344, 4
      %v8347 = vshll.u32 %v8002, 16
      %v8349 = vrot.slane %v8347, 5
      %v8350 = vsel %vm324, %v8345, %v8349
      %v8352 = vshrl.u32 %v8003, 16
      %v8354 = vrot.slane %v8352, 4
      %v8355 = vshll.u32 %v8003, 16
      %v8357 = vrot.slane %v8355, 5
      %v8358 = vor.u32 %v8354, %v8357
      %v8359 = vrot.slane %v8358, 4
      %v8361 = vshll.u32 %v8004, 16
      %v8363 = vrot.slane %v8361, 5
      %v8364 = vsel %vm324, %v8359, %v8363
      %v8365 = vshrl.u32 %v8004, 16
      %v8367 = vrot.slane %v8365, 4
      %v8368 = vor.u32 %v8367, %v8363
      %v8369 = vrot.slane %v8368, 4
      %v8371 = vshll.u32 %v8005, 16
      %v8373 = vrot.slane %v8371, 5
      %v8374 = vsel %vm324, %v8369, %v8373
      %v8376 = vshrl.u32 %v8006, 16
      %v8378 = vrot.slane %v8376, 4
      %v8379 = vshll.u32 %v8006, 16
      %v8381 = vrot.slane %v8379, 5
      %v8382 = vor.u32 %v8378, %v8381
      %v8383 = vrot.slane %v8382, 4
      %v8385 = vshll.u32 %v8007, 16
      %v8387 = vrot.slane %v8385, 5
      %v8388 = vsel %vm324, %v8383, %v8387
      %v8389 = vshrl.u32 %v8007, 16
      %v8391 = vrot.slane %v8389, 4
      %v8392 = vor.u32 %v8391, %v8387
      %v8393 = vrot.slane %v8392, 4
      %v8395 = vshll.u32 %v8008, 16
      %v8397 = vrot.slane %v8395, 5
      %v8398 = vsel %vm324, %v8393, %v8397
      %v8400 = vshrl.u32 %v8009, 16
      %v8402 = vrot.slane %v8400, 4
      %v8403 = vshll.u32 %v8009, 16
      %v8405 = vrot.slane %v8403, 5
      %v8406 = vor.u32 %v8402, %v8405
      %v8407 = vrot.slane %v8406, 4
      %v8409 = vshll.u32 %v8010, 16
      %v8411 = vrot.slane %v8409, 5
      %v8412 = vsel %vm324, %v8407, %v8411
      %v8413 = vshrl.u32 %v8010, 16
      %v8415 = vrot.slane %v8413, 4
      %v8416 = vor.u32 %v8415, %v8411
      %v8417 = vrot.slane %v8416, 4
      %v8419 = vshll.u32 %v8011, 16
      %v8421 = vrot.slane %v8419, 5
      %v8422 = vsel %vm324, %v8417, %v8421
      %v8424 = vshrl.u32 %v8012, 16
      %v8426 = vrot.slane %v8424, 4
      %v8427 = vshll.u32 %v8012, 16
      %v8429 = vrot.slane %v8427, 5
      %v8430 = vor.u32 %v8426, %v8429
      %v8431 = vrot.slane %v8430, 4
      %v8433 = vshll.u32 %v8013, 16
      %v8435 = vrot.slane %v8433, 5
      %v8436 = vsel %vm324, %v8431, %v8435
      %v8437 = vshrl.u32 %v8013, 16
      %v8439 = vrot.slane %v8437, 4
      %v8440 = vor.u32 %v8439, %v8435
      %v8441 = vrot.slane %v8440, 4
      %v8443 = vshll.u32 %v8014, 16
      %v8445 = vrot.slane %v8443, 5
      %v8446 = vsel %vm324, %v8441, %v8445
      %s8447 = scalar_lea.vmem %s3, 128
      %v8448 = vld [vmem:[%s8447] sm:$0xf]
      %v8449 = vld [vmem:[%s8447 + $0x4] sm:$0xf]
      %v8450 = vld [vmem:[%s8447 + $0x8] sm:$0xf]
      %v8451 = vld [vmem:[%s8447 + $0xc] sm:$0xf]
      %v8452 = vld [vmem:[%s8447 + $0x10] sm:$0xf]
      %v8453 = vld [vmem:[%s8447 + $0x14] sm:$0xf]
      %v8454 = vld [vmem:[%s8447 + $0x18] sm:$0xf]
      %v8455 = vld [vmem:[%s8447 + $0x1c] sm:$0xf]
      %v8456 = vld [vmem:[%s8447 + $0x20] sm:$0xf]
      %v8457 = vld [vmem:[%s8447 + $0x24] sm:$0xf]
      %v8458 = vld [vmem:[%s8447 + $0x28] sm:$0xf]
      %v8459 = vld [vmem:[%s8447 + $0x2c] sm:$0xf]
      %v8460 = vld [vmem:[%s8447 + $0x30] sm:$0xf]
      %v8461 = vld [vmem:[%s8447 + $0x34] sm:$0xf]
      %v8462 = vld [vmem:[%s8447 + $0x38] sm:$0xf]
      %v8463 = vld [vmem:[%s8447 + $0x3c] sm:$0xf]
      %v8464 = vunpack.c.l.b16 %v8028
      %v8465 = vunpack.c.l.b16 %v8038
      %v8466 = vunpack.c.l.b16 %v8052
      %v8467 = vunpack.c.l.b16 %v8062
      %v8468 = vunpack.c.l.b16 %v8076
      %v8469 = vunpack.c.l.b16 %v8086
      %v8470 = vunpack.c.l.b16 %v8100
      %v8471 = vunpack.c.l.b16 %v8110
      %v8472 = vunpack.c.l.b16 %v8124
      %v8473 = vunpack.c.l.b16 %v8134
      %v8474 = vunpack.c.l.b16 %v8148
      %v8475 = vunpack.c.l.b16 %v8158
      %v8476 = vunpack.c.l.b16 %v8172
      %v8477 = vunpack.c.l.b16 %v8182
      %v8478 = vunpack.c.l.b16 %v8196
      %v8479 = vunpack.c.l.b16 %v8206
      %v8480 = vunpack.c.l.b16 %v8220
      %v8481 = vunpack.c.l.b16 %v8230
      %v8482 = vunpack.c.l.b16 %v8244
      %v8483 = vunpack.c.l.b16 %v8254
      %v8484 = vunpack.c.l.b16 %v8268
      %v8485 = vunpack.c.l.b16 %v8278
      %v8486 = vunpack.c.l.b16 %v8292
      %v8487 = vunpack.c.l.b16 %v8302
      %v8488 = vunpack.c.l.b16 %v8316
      %v8489 = vunpack.c.l.b16 %v8326
      %v8490 = vunpack.c.l.b16 %v8340
      %v8491 = vunpack.c.l.b16 %v8350
      %v8492 = vunpack.c.l.b16 %v8364
      %v8493 = vunpack.c.l.b16 %v8374
      %v8494 = vunpack.c.l.b16 %v8388
      %v8495 = vunpack.c.l.b16 %v8398
      %v8496 = vpack.c.b16 %v8465, %v8464
      %v8497 = vpack.c.b16 %v8467, %v8466
      %v8498 = vpack.c.b16 %v8469, %v8468
      %v8499 = vpack.c.b16 %v8471, %v8470
      %v8500 = vpack.c.b16 %v8473, %v8472
      %v8501 = vpack.c.b16 %v8475, %v8474
      %v8502 = vpack.c.b16 %v8477, %v8476
      %v8503 = vpack.c.b16 %v8479, %v8478
      %v8504 = vpack.c.b16 %v8481, %v8480
      %v8505 = vpack.c.b16 %v8483, %v8482
      %v8506 = vpack.c.b16 %v8485, %v8484
      %v8507 = vpack.c.b16 %v8487, %v8486
      %v8508 = vpack.c.b16 %v8489, %v8488
      %v8509 = vpack.c.b16 %v8491, %v8490
      %v8510 = vpack.c.b16 %v8493, %v8492
      %v8511 = vpack.c.b16 %v8495, %v8494
      %v8544 = vunpack.c.l.b16 %v8448
      %v8545 = vunpack.c.l.b16 %v8449
      %v8546 = vunpack.c.l.b16 %v8450
      %v8547 = vunpack.c.l.b16 %v8451
      %v8548 = vunpack.c.l.b16 %v8452
      %v8549 = vunpack.c.l.b16 %v8453
      %v8550 = vunpack.c.l.b16 %v8454
      %v8551 = vunpack.c.l.b16 %v8455
      %v8552 = vunpack.c.l.b16 %v8456
      %v8553 = vunpack.c.l.b16 %v8457
      %v8554 = vunpack.c.l.b16 %v8458
      %v8555 = vunpack.c.l.b16 %v8459
      %v8556 = vunpack.c.l.b16 %v8460
      %v8557 = vunpack.c.l.b16 %v8461
      %v8558 = vunpack.c.l.b16 %v8462
      %v8559 = vunpack.c.l.b16 %v8463
      %v8560 = vpack.c.b16 %v8545, %v8544
      %v8561 = vpack.c.b16 %v8547, %v8546
      %v8562 = vpack.c.b16 %v8549, %v8548
      %v8563 = vpack.c.b16 %v8551, %v8550
      %v8564 = vpack.c.b16 %v8553, %v8552
      %v8565 = vpack.c.b16 %v8555, %v8554
      %v8566 = vpack.c.b16 %v8557, %v8556
      %v8567 = vpack.c.b16 %v8559, %v8558
      %8576 = vmatprep.subr.bf16.mxu0 0
      %8577 = vmatpush1.bf16.msra.mxu0 %v8560
      %8578 = vmatprep.subr.bf16.mxu0 0
      %8579 = vmatpush1.bf16.msra.mxu0 %v8561
      %8580 = vmatprep.subr.bf16.mxu0 0
      %8581 = vmatpush1.bf16.msra.mxu0 %v8562
      %8582 = vmatprep.subr.bf16.mxu0 0
      %8583 = vmatpush1.bf16.msra.mxu0 %v8563
      %8584 = vmatprep.subr.bf16.mxu0 0
      %8585 = vmatpush1.bf16.msra.mxu0 %v8564
      %8586 = vmatprep.subr.bf16.mxu0 0
      %8587 = vmatpush1.bf16.msra.mxu0 %v8565
      %8588 = vmatprep.subr.bf16.mxu0 0
      %8589 = vmatpush1.bf16.msra.mxu0 %v8566
      %8590 = vmatprep.subr.bf16.mxu0 0
      %8591 = vmatpush1.bf16.msra.mxu0 %v8567
      %8592 = vmatprep.subr.bf16.mxu0 0
      %8593 = vmatpush1.bf16.msra.mxu0 0
      %8594 = vmatprep.subr.bf16.mxu0 0
      %8595 = vmatpush1.bf16.msra.mxu0 0
      %8596 = vmatprep.subr.bf16.mxu0 0
      %8597 = vmatpush1.bf16.msra.mxu0 0
      %8598 = vmatprep.subr.bf16.mxu0 0
      %8599 = vmatpush1.bf16.msra.mxu0 0
      %8600 = vmatprep.subr.bf16.mxu0 0
      %8601 = vmatpush1.bf16.msra.mxu0 0
      %8602 = vmatprep.subr.bf16.mxu0 0
      %8603 = vmatpush1.bf16.msra.mxu0 0
      %8604 = vmatprep.subr.bf16.mxu0 0
      %8605 = vmatpush1.bf16.msra.mxu0 0
      %8606 = vmatprep.subr.bf16.mxu0 0
      %8607 = vmatpush1.bf16.msra.mxu0 0
      %8608 = vmatprep.mubr.bf16.mxu0 0
      %8609 = vmatmul.mubr.bf16.gmra.mrb[0].mxu0 %v8496
      %v8610 = vpop.f32.mrb[0].mxu0
      %v8611 = vadd.f32 0.0, %v8610
      %v8612 = vpop.f32.mrb[0].mxu0
      %v8613 = vpop.f32.mrb[0].mxu0
      %v8614 = vadd.f32 0.0, %v8613
      %v8615 = vpop.f32.mrb[0].mxu0
      %8616 = vmatprep.mubr.bf16.mxu0 0
      %8617 = vmatmul.mubr.bf16.gmra.mrb[0].mxu0 %v8497
      %v8618 = vpop.f32.mrb[0].mxu0
      %v8619 = vadd.f32 0.0, %v8618
      %v8620 = vpop.f32.mrb[0].mxu0
      %v8621 = vpop.f32.mrb[0].mxu0
      %v8622 = vadd.f32 0.0, %v8621
      %v8623 = vpop.f32.mrb[0].mxu0
      %8624 = vmatprep.mubr.bf16.mxu0 0
      %8625 = vmatmul.mubr.bf16.gmra.mrb[0].mxu0 %v8498
      %v8626 = vpop.f32.mrb[0].mxu0
      %v8627 = vadd.f32 0.0, %v8626
      %v8628 = vpop.f32.mrb[0].mxu0
      %v8629 = vpop.f32.mrb[0].mxu0
      %v8630 = vadd.f32 0.0, %v8629
      %v8631 = vpop.f32.mrb[0].mxu0
      %8632 = vmatprep.mubr.bf16.mxu0 0
      %8633 = vmatmul.mubr.bf16.gmra.mrb[0].mxu0 %v8499
      %v8634 = vpop.f32.mrb[0].mxu0
      %v8635 = vadd.f32 0.0, %v8634
      %v8636 = vpop.f32.mrb[0].mxu0
      %v8637 = vpop.f32.mrb[0].mxu0
      %v8638 = vadd.f32 0.0, %v8637
      %v8639 = vpop.f32.mrb[0].mxu0
      %8640 = vmatprep.mubr.bf16.mxu0 0
      %8641 = vmatmul.mubr.bf16.gmra.mrb[0].mxu0 %v8500
      %v8642 = vpop.f32.mrb[0].mxu0
      %v8643 = vadd.f32 0.0, %v8642
      %v8644 = vpop.f32.mrb[0].mxu0
      %v8645 = vpop.f32.mrb[0].mxu0
      %v8646 = vadd.f32 0.0, %v8645
      %v8647 = vpop.f32.mrb[0].mxu0
      %8648 = vmatprep.mubr.bf16.mxu0 0
      %8649 = vmatmul.mubr.bf16.gmra.mrb[0].mxu0 %v8501
      %v8650 = vpop.f32.mrb[0].mxu0
      %v8651 = vadd.f32 0.0, %v8650
      %v8652 = vpop.f32.mrb[0].mxu0
      %v8653 = vpop.f32.mrb[0].mxu0
      %v8654 = vadd.f32 0.0, %v8653
      %v8655 = vpop.f32.mrb[0].mxu0
      %8656 = vmatprep.mubr.bf16.mxu0 0
      %8657 = vmatmul.mubr.bf16.gmra.mrb[0].mxu0 %v8502
      %v8658 = vpop.f32.mrb[0].mxu0
      %v8659 = vadd.f32 0.0, %v8658
      %v8660 = vpop.f32.mrb[0].mxu0
      %v8661 = vpop.f32.mrb[0].mxu0
      %v8662 = vadd.f32 0.0, %v8661
      %v8663 = vpop.f32.mrb[0].mxu0
      %8664 = vmatprep.mubr.bf16.mxu0 0
      %8665 = vmatmul.mubr.bf16.gmra.mrb[0].mxu0 %v8503
      %v8666 = vpop.f32.mrb[0].mxu0
      %v8667 = vadd.f32 0.0, %v8666
      %v8668 = vpop.f32.mrb[0].mxu0
      %v8669 = vpop.f32.mrb[0].mxu0
      %v8670 = vadd.f32 0.0, %v8669
      %v8671 = vpop.f32.mrb[0].mxu0
      %8672 = vmatprep.mubr.bf16.mxu0 0
      %8673 = vmatmul.mubr.bf16.gmra.mrb[0].mxu0 %v8504
      %v8674 = vpop.f32.mrb[0].mxu0
      %v8675 = vadd.f32 0.0, %v8674
      %v8676 = vpop.f32.mrb[0].mxu0
      %v8677 = vpop.f32.mrb[0].mxu0
      %v8678 = vadd.f32 0.0, %v8677
      %v8679 = vpop.f32.mrb[0].mxu0
      %8680 = vmatprep.mubr.bf16.mxu0 0
      %8681 = vmatmul.mubr.bf16.gmra.mrb[0].mxu0 %v8505
      %v8682 = vpop.f32.mrb[0].mxu0
      %v8683 = vadd.f32 0.0, %v8682
      %v8684 = vpop.f32.mrb[0].mxu0
      %v8685 = vpop.f32.mrb[0].mxu0
      %v8686 = vadd.f32 0.0, %v8685
      %v8687 = vpop.f32.mrb[0].mxu0
      %8688 = vmatprep.mubr.bf16.mxu0 0
      %8689 = vmatmul.mubr.bf16.gmra.mrb[0].mxu0 %v8506
      %v8690 = vpop.f32.mrb[0].mxu0
      %v8691 = vadd.f32 0.0, %v8690
      %v8692 = vpop.f32.mrb[0].mxu0
      %v8693 = vpop.f32.mrb[0].mxu0
      %v8694 = vadd.f32 0.0, %v8693
      %v8695 = vpop.f32.mrb[0].mxu0
      %8696 = vmatprep.mubr.bf16.mxu0 0
      %8697 = vmatmul.mubr.bf16.gmra.mrb[0].mxu0 %v8507
      %v8698 = vpop.f32.mrb[0].mxu0
      %v8699 = vadd.f32 0.0, %v8698
      %v8700 = vpop.f32.mrb[0].mxu0
      %v8701 = vpop.f32.mrb[0].mxu0
      %v8702 = vadd.f32 0.0, %v8701
      %v8703 = vpop.f32.mrb[0].mxu0
      %8704 = vmatprep.mubr.bf16.mxu0 0
      %8705 = vmatmul.mubr.bf16.gmra.mrb[0].mxu0 %v8508
      %v8706 = vpop.f32.mrb[0].mxu0
      %v8707 = vadd.f32 0.0, %v8706
      %v8708 = vpop.f32.mrb[0].mxu0
      %v8709 = vpop.f32.mrb[0].mxu0
      %v8710 = vadd.f32 0.0, %v8709
      %v8711 = vpop.f32.mrb[0].mxu0
      %8712 = vmatprep.mubr.bf16.mxu0 0
      %8713 = vmatmul.mubr.bf16.gmra.mrb[0].mxu0 %v8509
      %v8714 = vpop.f32.mrb[0].mxu0
      %v8715 = vadd.f32 0.0, %v8714
      %v8716 = vpop.f32.mrb[0].mxu0
      %v8717 = vpop.f32.mrb[0].mxu0
      %v8718 = vadd.f32 0.0, %v8717
      %v8719 = vpop.f32.mrb[0].mxu0
      %8720 = vmatprep.mubr.bf16.mxu0 0
      %8721 = vmatmul.mubr.bf16.gmra.mrb[0].mxu0 %v8510
      %v8722 = vpop.f32.mrb[0].mxu0
      %v8723 = vadd.f32 0.0, %v8722
      %v8724 = vpop.f32.mrb[0].mxu0
      %v8725 = vpop.f32.mrb[0].mxu0
      %v8726 = vadd.f32 0.0, %v8725
      %v8727 = vpop.f32.mrb[0].mxu0
      %8728 = vmatprep.mubr.bf16.mxu0 0
      %8729 = vmatmul.mubr.bf16.gmra.mrb[0].mxu0 %v8511
      %v8730 = vpop.f32.mrb[0].mxu0
      %v8731 = vadd.f32 0.0, %v8730
      %v8732 = vpop.f32.mrb[0].mxu0
      %v8733 = vpop.f32.mrb[0].mxu0
      %v8734 = vadd.f32 0.0, %v8733
      %v8735 = vpop.f32.mrb[0].mxu0
      %8736 = vdwg.mxu0
      %v8737 = vld [vmem:[#allocation4] sm:$0xff]
      %v8738 = vld [vmem:[#allocation4 + $0x8] sm:$0xff]
      %v8739 = vld [vmem:[#allocation4 + $0x10] sm:$0xff]
      %v8740 = vld [vmem:[#allocation4 + $0x18] sm:$0xff]
      %v8741 = vld [vmem:[#allocation4 + $0x20] sm:$0xff]
      %v8742 = vld [vmem:[#allocation4 + $0x28] sm:$0xff]
      %v8743 = vld [vmem:[#allocation4 + $0x30] sm:$0xff]
      %v8744 = vld [vmem:[#allocation4 + $0x38] sm:$0xff]
      %v8745 = vld [vmem:[#allocation4 + $0x40] sm:$0xff]
      %v8746 = vld [vmem:[#allocation4 + $0x48] sm:$0xff]
      %v8747 = vld [vmem:[#allocation4 + $0x50] sm:$0xff]
      %v8748 = vld [vmem:[#allocation4 + $0x58] sm:$0xff]
      %v8749 = vld [vmem:[#allocation4 + $0x60] sm:$0xff]
      %v8750 = vld [vmem:[#allocation4 + $0x68] sm:$0xff]
      %v8751 = vld [vmem:[#allocation4 + $0x70] sm:$0xff]
      %v8752 = vld [vmem:[#allocation4 + $0x78] sm:$0xff]
      %v8753 = vld [vmem:[#allocation4 + $0x80] sm:$0xff]
      %v8754 = vld [vmem:[#allocation4 + $0x88] sm:$0xff]
      %v8755 = vld [vmem:[#allocation4 + $0x90] sm:$0xff]
      %v8756 = vld [vmem:[#allocation4 + $0x98] sm:$0xff]
      %v8757 = vld [vmem:[#allocation4 + $0xa0] sm:$0xff]
      %v8758 = vld [vmem:[#allocation4 + $0xa8] sm:$0xff]
      %v8759 = vld [vmem:[#allocation4 + $0xb0] sm:$0xff]
      %v8760 = vld [vmem:[#allocation4 + $0xb8] sm:$0xff]
      %v8761 = vld [vmem:[#allocation4 + $0xc0] sm:$0xff]
      %v8762 = vld [vmem:[#allocation4 + $0xc8] sm:$0xff]
      %v8763 = vld [vmem:[#allocation4 + $0xd0] sm:$0xff]
      %v8764 = vld [vmem:[#allocation4 + $0xd8] sm:$0xff]
      %v8765 = vld [vmem:[#allocation4 + $0xe0] sm:$0xff]
      %v8766 = vld [vmem:[#allocation4 + $0xe8] sm:$0xff]
      %v8767 = vld [vmem:[#allocation4 + $0xf0] sm:$0xff]
      %v8768 = vld [vmem:[#allocation4 + $0xf8] sm:$0xff]
      %v8769 = vadd.f32 %v8737, %v8611
      %v8770 = vadd.f32 %v8738, %v8614
      %v8771 = vadd.f32 %v8739, %v8619
      %v8772 = vadd.f32 %v8740, %v8622
      %v8773 = vadd.f32 %v8741, %v8627
      %v8774 = vadd.f32 %v8742, %v8630
      %v8775 = vadd.f32 %v8743, %v8635
      %v8776 = vadd.f32 %v8744, %v8638
      %v8777 = vadd.f32 %v8745, %v8643
      %v8778 = vadd.f32 %v8746, %v8646
      %v8779 = vadd.f32 %v8747, %v8651
      %v8780 = vadd.f32 %v8748, %v8654
      %v8781 = vadd.f32 %v8749, %v8659
      %v8782 = vadd.f32 %v8750, %v8662
      %v8783 = vadd.f32 %v8751, %v8667
      %v8784 = vadd.f32 %v8752, %v8670
      %v8785 = vadd.f32 %v8753, %v8675
      %v8786 = vadd.f32 %v8754, %v8678
      %v8787 = vadd.f32 %v8755, %v8683
      %v8788 = vadd.f32 %v8756, %v8686
      %v8789 = vadd.f32 %v8757, %v8691
      %v8790 = vadd.f32 %v8758, %v8694
      %v8791 = vadd.f32 %v8759, %v8699
      %v8792 = vadd.f32 %v8760, %v8702
      %v8793 = vadd.f32 %v8761, %v8707
      %v8794 = vadd.f32 %v8762, %v8710
      %v8795 = vadd.f32 %v8763, %v8715
      %v8796 = vadd.f32 %v8764, %v8718
      %v8797 = vadd.f32 %v8765, %v8723
      %v8798 = vadd.f32 %v8766, %v8726
      %v8799 = vadd.f32 %v8767, %v8731
      %v8800 = vadd.f32 %v8768, %v8734
      %8801 = vst [vmem:[#allocation4] sm:$0xff] %v8769
      %8802 = vst [vmem:[#allocation4 + $0x8] sm:$0xff] %v8770
      %8803 = vst [vmem:[#allocation4 + $0x10] sm:$0xff] %v8771
      %8804 = vst [vmem:[#allocation4 + $0x18] sm:$0xff] %v8772
      %8805 = vst [vmem:[#allocation4 + $0x20] sm:$0xff] %v8773
      %8806 = vst [vmem:[#allocation4 + $0x28] sm:$0xff] %v8774
      %8807 = vst [vmem:[#allocation4 + $0x30] sm:$0xff] %v8775
      %8808 = vst [vmem:[#allocation4 + $0x38] sm:$0xff] %v8776
      %8809 = vst [vmem:[#allocation4 + $0x40] sm:$0xff] %v8777
      %8810 = vst [vmem:[#allocation4 + $0x48] sm:$0xff] %v8778
      %8811 = vst [vmem:[#allocation4 + $0x50] sm:$0xff] %v8779
      %8812 = vst [vmem:[#allocation4 + $0x58] sm:$0xff] %v8780
      %8813 = vst [vmem:[#allocation4 + $0x60] sm:$0xff] %v8781
      %8814 = vst [vmem:[#allocation4 + $0x68] sm:$0xff] %v8782
      %8815 = vst [vmem:[#allocation4 + $0x70] sm:$0xff] %v8783
      %8816 = vst [vmem:[#allocation4 + $0x78] sm:$0xff] %v8784
      %8817 = vst [vmem:[#allocation4 + $0x80] sm:$0xff] %v8785
      %8818 = vst [vmem:[#allocation4 + $0x88] sm:$0xff] %v8786
      %8819 = vst [vmem:[#allocation4 + $0x90] sm:$0xff] %v8787
      %8820 = vst [vmem:[#allocation4 + $0x98] sm:$0xff] %v8788
      %8821 = vst [vmem:[#allocation4 + $0xa0] sm:$0xff] %v8789
      %8822 = vst [vmem:[#allocation4 + $0xa8] sm:$0xff] %v8790
      %8823 = vst [vmem:[#allocation4 + $0xb0] sm:$0xff] %v8791
      %8824 = vst [vmem:[#allocation4 + $0xb8] sm:$0xff] %v8792
      %8825 = vst [vmem:[#allocation4 + $0xc0] sm:$0xff] %v8793
      %8826 = vst [vmem:[#allocation4 + $0xc8] sm:$0xff] %v8794
      %8827 = vst [vmem:[#allocation4 + $0xd0] sm:$0xff] %v8795
      %8828 = vst [vmem:[#allocation4 + $0xd8] sm:$0xff] %v8796
      %8829 = vst [vmem:[#allocation4 + $0xe0] sm:$0xff] %v8797
      %8830 = vst [vmem:[#allocation4 + $0xe8] sm:$0xff] %v8798
      %8831 = vst [vmem:[#allocation4 + $0xf0] sm:$0xff] %v8799
      %8832 = vst [vmem:[#allocation4 + $0xf8] sm:$0xff] %v8800
      %s8833 = scalar_lea.vmem %s3, 320
      %v8834 = vld [vmem:[%s8833] sm:$0xf]
      %v8835 = vld [vmem:[%s8833 + $0x4] sm:$0xf]
      %v8836 = vld [vmem:[%s8833 + $0x8] sm:$0xf]
      %v8837 = vld [vmem:[%s8833 + $0xc] sm:$0xf]
      %v8838 = vld [vmem:[%s8833 + $0x10] sm:$0xf]
      %v8839 = vld [vmem:[%s8833 + $0x14] sm:$0xf]
      %v8840 = vld [vmem:[%s8833 + $0x18] sm:$0xf]
      %v8841 = vld [vmem:[%s8833 + $0x1c] sm:$0xf]
      %v8842 = vld [vmem:[%s8833 + $0x20] sm:$0xf]
      %v8843 = vld [vmem:[%s8833 + $0x24] sm:$0xf]
      %v8844 = vld [vmem:[%s8833 + $0x28] sm:$0xf]
      %v8845 = vld [vmem:[%s8833 + $0x2c] sm:$0xf]
      %v8846 = vld [vmem:[%s8833 + $0x30] sm:$0xf]
      %v8847 = vld [vmem:[%s8833 + $0x34] sm:$0xf]
      %v8848 = vld [vmem:[%s8833 + $0x38] sm:$0xf]
      %v8849 = vld [vmem:[%s8833 + $0x3c] sm:$0xf]
      %v8850 = vunpack.c.l.b16 %v8412
      %v8851 = vunpack.c.l.b16 %v8422
      %v8852 = vpack.c.b16 %v8851, %v8850
      %v8870 = vunpack.c.l.b16 %v8834
      %v8871 = vunpack.c.l.b16 %v8835
      %v8872 = vunpack.c.l.b16 %v8836
      %v8873 = vunpack.c.l.b16 %v8837
      %v8874 = vunpack.c.l.b16 %v8838
      %v8875 = vunpack.c.l.b16 %v8839
      %v8876 = vunpack.c.l.b16 %v8840
      %v8877 = vunpack.c.l.b16 %v8841
      %v8878 = vunpack.c.l.b16 %v8842
      %v8879 = vunpack.c.l.b16 %v8843
      %v8880 = vunpack.c.l.b16 %v8844
      %v8881 = vunpack.c.l.b16 %v8845
      %v8882 = vunpack.c.l.b16 %v8846
      %v8883 = vunpack.c.l.b16 %v8847
      %v8884 = vunpack.c.l.b16 %v8848
      %v8885 = vunpack.c.l.b16 %v8849
      %v8886 = vpack.c.b16 %v8871, %v8870
      %v8887 = vpack.c.b16 %v8873, %v8872
      %v8888 = vpack.c.b16 %v8875, %v8874
      %v8889 = vpack.c.b16 %v8877, %v8876
      %v8890 = vpack.c.b16 %v8879, %v8878
      %v8891 = vpack.c.b16 %v8881, %v8880
      %v8892 = vpack.c.b16 %v8883, %v8882
      %v8893 = vpack.c.b16 %v8885, %v8884
      %8902 = vmatprep.subr.bf16.mxu0 0
      %8903 = vmatpush1.bf16.msra.mxu0 %v8886
      %8904 = vmatprep.subr.bf16.mxu0 0
      %8905 = vmatpush1.bf16.msra.mxu0 %v8887
      %8906 = vmatprep.subr.bf16.mxu0 0
      %8907 = vmatpush1.bf16.msra.mxu0 %v8888
      %8908 = vmatprep.subr.bf16.mxu0 0
      %8909 = vmatpush1.bf16.msra.mxu0 %v8889
      %8910 = vmatprep.subr.bf16.mxu0 0
      %8911 = vmatpush1.bf16.msra.mxu0 %v8890
      %8912 = vmatprep.subr.bf16.mxu0 0
      %8913 = vmatpush1.bf16.msra.mxu0 %v8891
      %8914 = vmatprep.subr.bf16.mxu0 0
      %8915 = vmatpush1.bf16.msra.mxu0 %v8892
      %8916 = vmatprep.subr.bf16.mxu0 0
      %8917 = vmatpush1.bf16.msra.mxu0 %v8893
      %8918 = vmatprep.subr.bf16.mxu0 0
      %8919 = vmatpush1.bf16.msra.mxu0 0
      %8920 = vmatprep.subr.bf16.mxu0 0
      %8921 = vmatpush1.bf16.msra.mxu0 0
      %8922 = vmatprep.subr.bf16.mxu0 0
      %8923 = vmatpush1.bf16.msra.mxu0 0
      %8924 = vmatprep.subr.bf16.mxu0 0
      %8925 = vmatpush1.bf16.msra.mxu0 0
      %8926 = vmatprep.subr.bf16.mxu0 0
      %8927 = vmatpush1.bf16.msra.mxu0 0
      %8928 = vmatprep.subr.bf16.mxu0 0
      %8929 = vmatpush1.bf16.msra.mxu0 0
      %8930 = vmatprep.subr.bf16.mxu0 0
      %8931 = vmatpush1.bf16.msra.mxu0 0
      %8932 = vmatprep.subr.bf16.mxu0 0
      %8933 = vmatpush1.bf16.msra.mxu0 0
      %8934 = vmatprep.mubr.bf16.mxu0 0
      %8935 = vmatmul.mubr.bf16.gmra.mrb[0].mxu0 %v8497
      %v8936 = vpop.f32.mrb[0].mxu0
      %v8937 = vadd.f32 0.0, %v8936
      %v8938 = vpop.f32.mrb[0].mxu0
      %v8939 = vpop.f32.mrb[0].mxu0
      %v8940 = vadd.f32 0.0, %v8939
      %v8941 = vpop.f32.mrb[0].mxu0
      %8942 = vmatprep.mubr.bf16.mxu0 0
      %8943 = vmatmul.mubr.bf16.gmra.mrb[0].mxu0 %v8498
      %v8944 = vpop.f32.mrb[0].mxu0
      %v8945 = vadd.f32 0.0, %v8944
      %v8946 = vpop.f32.mrb[0].mxu0
      %v8947 = vpop.f32.mrb[0].mxu0
      %v8948 = vadd.f32 0.0, %v8947
      %v8949 = vpop.f32.mrb[0].mxu0
      %8950 = vmatprep.mubr.bf16.mxu0 0
      %8951 = vmatmul.mubr.bf16.gmra.mrb[0].mxu0 %v8499
      %v8952 = vpop.f32.mrb[0].mxu0
      %v8953 = vadd.f32 0.0, %v8952
      %v8954 = vpop.f32.mrb[0].mxu0
      %v8955 = vpop.f32.mrb[0].mxu0
      %v8956 = vadd.f32 0.0, %v8955
      %v8957 = vpop.f32.mrb[0].mxu0
      %8958 = vmatprep.mubr.bf16.mxu0 0
      %8959 = vmatmul.mubr.bf16.gmra.mrb[0].mxu0 %v8500
      %v8960 = vpop.f32.mrb[0].mxu0
      %v8961 = vadd.f32 0.0, %v8960
      %v8962 = vpop.f32.mrb[0].mxu0
      %v8963 = vpop.f32.mrb[0].mxu0
      %v8964 = vadd.f32 0.0, %v8963
      %v8965 = vpop.f32.mrb[0].mxu0
      %8966 = vmatprep.mubr.bf16.mxu0 0
      %8967 = vmatmul.mubr.bf16.gmra.mrb[0].mxu0 %v8501
      %v8968 = vpop.f32.mrb[0].mxu0
      %v8969 = vadd.f32 0.0, %v8968
      %v8970 = vpop.f32.mrb[0].mxu0
      %v8971 = vpop.f32.mrb[0].mxu0
      %v8972 = vadd.f32 0.0, %v8971
      %v8973 = vpop.f32.mrb[0].mxu0
      %8974 = vmatprep.mubr.bf16.mxu0 0
      %8975 = vmatmul.mubr.bf16.gmra.mrb[0].mxu0 %v8502
      %v8976 = vpop.f32.mrb[0].mxu0
      %v8977 = vadd.f32 0.0, %v8976
      %v8978 = vpop.f32.mrb[0].mxu0
      %v8979 = vpop.f32.mrb[0].mxu0
      %v8980 = vadd.f32 0.0, %v8979
      %v8981 = vpop.f32.mrb[0].mxu0
      %8982 = vmatprep.mubr.bf16.mxu0 0
      %8983 = vmatmul.mubr.bf16.gmra.mrb[0].mxu0 %v8503
      %v8984 = vpop.f32.mrb[0].mxu0
      %v8985 = vadd.f32 0.0, %v8984
      %v8986 = vpop.f32.mrb[0].mxu0
      %v8987 = vpop.f32.mrb[0].mxu0
      %v8988 = vadd.f32 0.0, %v8987
      %v8989 = vpop.f32.mrb[0].mxu0
      %8990 = vmatprep.mubr.bf16.mxu0 0
      %8991 = vmatmul.mubr.bf16.gmra.mrb[0].mxu0 %v8504
      %v8992 = vpop.f32.mrb[0].mxu0
      %v8993 = vadd.f32 0.0, %v8992
      %v8994 = vpop.f32.mrb[0].mxu0
      %v8995 = vpop.f32.mrb[0].mxu0
      %v8996 = vadd.f32 0.0, %v8995
      %v8997 = vpop.f32.mrb[0].mxu0
      %8998 = vmatprep.mubr.bf16.mxu0 0
      %8999 = vmatmul.mubr.bf16.gmra.mrb[0].mxu0 %v8505
      %v9000 = vpop.f32.mrb[0].mxu0
      %v9001 = vadd.f32 0.0, %v9000
      %v9002 = vpop.f32.mrb[0].mxu0
      %v9003 = vpop.f32.mrb[0].mxu0
      %v9004 = vadd.f32 0.0, %v9003
      %v9005 = vpop.f32.mrb[0].mxu0
      %9006 = vmatprep.mubr.bf16.mxu0 0
      %9007 = vmatmul.mubr.bf16.gmra.mrb[0].mxu0 %v8506
      %v9008 = vpop.f32.mrb[0].mxu0
      %v9009 = vadd.f32 0.0, %v9008
      %v9010 = vpop.f32.mrb[0].mxu0
      %v9011 = vpop.f32.mrb[0].mxu0
      %v9012 = vadd.f32 0.0, %v9011
      %v9013 = vpop.f32.mrb[0].mxu0
      %9014 = vmatprep.mubr.bf16.mxu0 0
      %9015 = vmatmul.mubr.bf16.gmra.mrb[0].mxu0 %v8507
      %v9016 = vpop.f32.mrb[0].mxu0
      %v9017 = vadd.f32 0.0, %v9016
      %v9018 = vpop.f32.mrb[0].mxu0
      %v9019 = vpop.f32.mrb[0].mxu0
      %v9020 = vadd.f32 0.0, %v9019
      %v9021 = vpop.f32.mrb[0].mxu0
      %9022 = vmatprep.mubr.bf16.mxu0 0
      %9023 = vmatmul.mubr.bf16.gmra.mrb[0].mxu0 %v8508
      %v9024 = vpop.f32.mrb[0].mxu0
      %v9025 = vadd.f32 0.0, %v9024
      %v9026 = vpop.f32.mrb[0].mxu0
      %v9027 = vpop.f32.mrb[0].mxu0
      %v9028 = vadd.f32 0.0, %v9027
      %v9029 = vpop.f32.mrb[0].mxu0
      %9030 = vmatprep.mubr.bf16.mxu0 0
      %9031 = vmatmul.mubr.bf16.gmra.mrb[0].mxu0 %v8509
      %v9032 = vpop.f32.mrb[0].mxu0
      %v9033 = vadd.f32 0.0, %v9032
      %v9034 = vpop.f32.mrb[0].mxu0
      %v9035 = vpop.f32.mrb[0].mxu0
      %v9036 = vadd.f32 0.0, %v9035
      %v9037 = vpop.f32.mrb[0].mxu0
      %9038 = vmatprep.mubr.bf16.mxu0 0
      %9039 = vmatmul.mubr.bf16.gmra.mrb[0].mxu0 %v8510
      %v9040 = vpop.f32.mrb[0].mxu0
      %v9041 = vadd.f32 0.0, %v9040
      %v9042 = vpop.f32.mrb[0].mxu0
      %v9043 = vpop.f32.mrb[0].mxu0
      %v9044 = vadd.f32 0.0, %v9043
      %v9045 = vpop.f32.mrb[0].mxu0
      %9046 = vmatprep.mubr.bf16.mxu0 0
      %9047 = vmatmul.mubr.bf16.gmra.mrb[0].mxu0 %v8511
      %v9048 = vpop.f32.mrb[0].mxu0
      %v9049 = vadd.f32 0.0, %v9048
      %v9050 = vpop.f32.mrb[0].mxu0
      %v9051 = vpop.f32.mrb[0].mxu0
      %v9052 = vadd.f32 0.0, %v9051
      %v9053 = vpop.f32.mrb[0].mxu0
      %9054 = vmatprep.mubr.bf16.mxu0 0
      %9055 = vmatmul.mubr.bf16.gmra.mrb[0].mxu0 %v8852
      %v9056 = vpop.f32.mrb[0].mxu0
      %v9057 = vadd.f32 0.0, %v9056
      %v9058 = vpop.f32.mrb[0].mxu0
      %v9059 = vpop.f32.mrb[0].mxu0
      %v9060 = vadd.f32 0.0, %v9059
      %v9061 = vpop.f32.mrb[0].mxu0
      %9062 = vdwg.mxu0
      %v9063 = vld [vmem:[#allocation4] sm:$0xff]
      %v9064 = vld [vmem:[#allocation4 + $0x8] sm:$0xff]
      %v9065 = vld [vmem:[#allocation4 + $0x10] sm:$0xff]
      %v9066 = vld [vmem:[#allocation4 + $0x18] sm:$0xff]
      %v9067 = vld [vmem:[#allocation4 + $0x20] sm:$0xff]
      %v9068 = vld [vmem:[#allocation4 + $0x28] sm:$0xff]
      %v9069 = vld [vmem:[#allocation4 + $0x30] sm:$0xff]
      %v9070 = vld [vmem:[#allocation4 + $0x38] sm:$0xff]
      %v9071 = vld [vmem:[#allocation4 + $0x40] sm:$0xff]
      %v9072 = vld [vmem:[#allocation4 + $0x48] sm:$0xff]
      %v9073 = vld [vmem:[#allocation4 + $0x50] sm:$0xff]
      %v9074 = vld [vmem:[#allocation4 + $0x58] sm:$0xff]
      %v9075 = vld [vmem:[#allocation4 + $0x60] sm:$0xff]
      %v9076 = vld [vmem:[#allocation4 + $0x68] sm:$0xff]
      %v9077 = vld [vmem:[#allocation4 + $0x70] sm:$0xff]
      %v9078 = vld [vmem:[#allocation4 + $0x78] sm:$0xff]
      %v9079 = vld [vmem:[#allocation4 + $0x80] sm:$0xff]
      %v9080 = vld [vmem:[#allocation4 + $0x88] sm:$0xff]
      %v9081 = vld [vmem:[#allocation4 + $0x90] sm:$0xff]
      %v9082 = vld [vmem:[#allocation4 + $0x98] sm:$0xff]
      %v9083 = vld [vmem:[#allocation4 + $0xa0] sm:$0xff]
      %v9084 = vld [vmem:[#allocation4 + $0xa8] sm:$0xff]
      %v9085 = vld [vmem:[#allocation4 + $0xb0] sm:$0xff]
      %v9086 = vld [vmem:[#allocation4 + $0xb8] sm:$0xff]
      %v9087 = vld [vmem:[#allocation4 + $0xc0] sm:$0xff]
      %v9088 = vld [vmem:[#allocation4 + $0xc8] sm:$0xff]
      %v9089 = vld [vmem:[#allocation4 + $0xd0] sm:$0xff]
      %v9090 = vld [vmem:[#allocation4 + $0xd8] sm:$0xff]
      %v9091 = vld [vmem:[#allocation4 + $0xe0] sm:$0xff]
      %v9092 = vld [vmem:[#allocation4 + $0xe8] sm:$0xff]
      %v9093 = vld [vmem:[#allocation4 + $0xf0] sm:$0xff]
      %v9094 = vld [vmem:[#allocation4 + $0xf8] sm:$0xff]
      %v9095 = vadd.f32 %v9063, %v8937
      %v9096 = vadd.f32 %v9064, %v8940
      %v9097 = vadd.f32 %v9065, %v8945
      %v9098 = vadd.f32 %v9066, %v8948
      %v9099 = vadd.f32 %v9067, %v8953
      %v9100 = vadd.f32 %v9068, %v8956
      %v9101 = vadd.f32 %v9069, %v8961
      %v9102 = vadd.f32 %v9070, %v8964
      %v9103 = vadd.f32 %v9071, %v8969
      %v9104 = vadd.f32 %v9072, %v8972
      %v9105 = vadd.f32 %v9073, %v8977
      %v9106 = vadd.f32 %v9074, %v8980
      %v9107 = vadd.f32 %v9075, %v8985
      %v9108 = vadd.f32 %v9076, %v8988
      %v9109 = vadd.f32 %v9077, %v8993
      %v9110 = vadd.f32 %v9078, %v8996
      %v9111 = vadd.f32 %v9079, %v9001
      %v9112 = vadd.f32 %v9080, %v9004
      %v9113 = vadd.f32 %v9081, %v9009
      %v9114 = vadd.f32 %v9082, %v9012
      %v9115 = vadd.f32 %v9083, %v9017
      %v9116 = vadd.f32 %v9084, %v9020
      %v9117 = vadd.f32 %v9085, %v9025
      %v9118 = vadd.f32 %v9086, %v9028
      %v9119 = vadd.f32 %v9087, %v9033
      %v9120 = vadd.f32 %v9088, %v9036
      %v9121 = vadd.f32 %v9089, %v9041
      %v9122 = vadd.f32 %v9090, %v9044
      %v9123 = vadd.f32 %v9091, %v9049
      %v9124 = vadd.f32 %v9092, %v9052
      %v9125 = vadd.f32 %v9093, %v9057
      %v9126 = vadd.f32 %v9094, %v9060
      %9127 = vst [vmem:[#allocation4] sm:$0xff] %v9095
      %9128 = vst [vmem:[#allocation4 + $0x8] sm:$0xff] %v9096
      %9129 = vst [vmem:[#allocation4 + $0x10] sm:$0xff] %v9097
      %9130 = vst [vmem:[#allocation4 + $0x18] sm:$0xff] %v9098
      %9131 = vst [vmem:[#allocation4 + $0x20] sm:$0xff] %v9099
      %9132 = vst [vmem:[#allocation4 + $0x28] sm:$0xff] %v9100
      %9133 = vst [vmem:[#allocation4 + $0x30] sm:$0xff] %v9101
      %9134 = vst [vmem:[#allocation4 + $0x38] sm:$0xff] %v9102
      %9135 = vst [vmem:[#allocation4 + $0x40] sm:$0xff] %v9103
      %9136 = vst [vmem:[#allocation4 + $0x48] sm:$0xff] %v9104
      %9137 = vst [vmem:[#allocation4 + $0x50] sm:$0xff] %v9105
      %9138 = vst [vmem:[#allocation4 + $0x58] sm:$0xff] %v9106
      %9139 = vst [vmem:[#allocation4 + $0x60] sm:$0xff] %v9107
      %9140 = vst [vmem:[#allocation4 + $0x68] sm:$0xff] %v9108
      %9141 = vst [vmem:[#allocation4 + $0x70] sm:$0xff] %v9109
      %9142 = vst [vmem:[#allocation4 + $0x78] sm:$0xff] %v9110
      %9143 = vst [vmem:[#allocation4 + $0x80] sm:$0xff] %v9111
      %9144 = vst [vmem:[#allocation4 + $0x88] sm:$0xff] %v9112
      %9145 = vst [vmem:[#allocation4 + $0x90] sm:$0xff] %v9113
      %9146 = vst [vmem:[#allocation4 + $0x98] sm:$0xff] %v9114
      %9147 = vst [vmem:[#allocation4 + $0xa0] sm:$0xff] %v9115
      %9148 = vst [vmem:[#allocation4 + $0xa8] sm:$0xff] %v9116
      %9149 = vst [vmem:[#allocation4 + $0xb0] sm:$0xff] %v9117
      %9150 = vst [vmem:[#allocation4 + $0xb8] sm:$0xff] %v9118
      %9151 = vst [vmem:[#allocation4 + $0xc0] sm:$0xff] %v9119
      %9152 = vst [vmem:[#allocation4 + $0xc8] sm:$0xff] %v9120
      %9153 = vst [vmem:[#allocation4 + $0xd0] sm:$0xff] %v9121
      %9154 = vst [vmem:[#allocation4 + $0xd8] sm:$0xff] %v9122
      %9155 = vst [vmem:[#allocation4 + $0xe0] sm:$0xff] %v9123
      %9156 = vst [vmem:[#allocation4 + $0xe8] sm:$0xff] %v9124
      %9157 = vst [vmem:[#allocation4 + $0xf0] sm:$0xff] %v9125
      %9158 = vst [vmem:[#allocation4 + $0xf8] sm:$0xff] %v9126
      %s9159 = scalar_lea.vmem %s3, 512
      %v9160 = vld [vmem:[%s9159] sm:$0xf]
      %v9161 = vld [vmem:[%s9159 + $0x4] sm:$0xf]
      %v9162 = vld [vmem:[%s9159 + $0x8] sm:$0xf]
      %v9163 = vld [vmem:[%s9159 + $0xc] sm:$0xf]
      %v9164 = vld [vmem:[%s9159 + $0x10] sm:$0xf]
      %v9165 = vld [vmem:[%s9159 + $0x14] sm:$0xf]
      %v9166 = vld [vmem:[%s9159 + $0x18] sm:$0xf]
      %v9167 = vld [vmem:[%s9159 + $0x1c] sm:$0xf]
      %v9168 = vld [vmem:[%s9159 + $0x20] sm:$0xf]
      %v9169 = vld [vmem:[%s9159 + $0x24] sm:$0xf]
      %v9170 = vld [vmem:[%s9159 + $0x28] sm:$0xf]
      %v9171 = vld [vmem:[%s9159 + $0x2c] sm:$0xf]
      %v9172 = vld [vmem:[%s9159 + $0x30] sm:$0xf]
      %v9173 = vld [vmem:[%s9159 + $0x34] sm:$0xf]
      %v9174 = vld [vmem:[%s9159 + $0x38] sm:$0xf]
      %v9175 = vld [vmem:[%s9159 + $0x3c] sm:$0xf]
      %v9176 = vunpack.c.l.b16 %v8436
      %v9177 = vunpack.c.l.b16 %v8446
      %v9178 = vpack.c.b16 %v9177, %v9176
      %v9196 = vunpack.c.l.b16 %v9160
      %v9197 = vunpack.c.l.b16 %v9161
      %v9198 = vunpack.c.l.b16 %v9162
      %v9199 = vunpack.c.l.b16 %v9163
      %v9200 = vunpack.c.l.b16 %v9164
      %v9201 = vunpack.c.l.b16 %v9165
      %v9202 = vunpack.c.l.b16 %v9166
      %v9203 = vunpack.c.l.b16 %v9167
      %v9204 = vunpack.c.l.b16 %v9168
      %v9205 = vunpack.c.l.b16 %v9169
      %v9206 = vunpack.c.l.b16 %v9170
      %v9207 = vunpack.c.l.b16 %v9171
      %v9208 = vunpack.c.l.b16 %v9172
      %v9209 = vunpack.c.l.b16 %v9173
      %v9210 = vunpack.c.l.b16 %v9174
      %v9211 = vunpack.c.l.b16 %v9175
      %v9212 = vpack.c.b16 %v9197, %v9196
      %v9213 = vpack.c.b16 %v9199, %v9198
      %v9214 = vpack.c.b16 %v9201, %v9200
      %v9215 = vpack.c.b16 %v9203, %v9202
      %v9216 = vpack.c.b16 %v9205, %v9204
      %v9217 = vpack.c.b16 %v9207, %v9206
      %v9218 = vpack.c.b16 %v9209, %v9208
      %v9219 = vpack.c.b16 %v9211, %v9210
      %9228 = vmatprep.subr.bf16.mxu0 0
      %9229 = vmatpush1.bf16.msra.mxu0 %v9212
      %9230 = vmatprep.subr.bf16.mxu0 0
      %9231 = vmatpush1.bf16.msra.mxu0 %v9213
      %9232 = vmatprep.subr.bf16.mxu0 0
      %9233 = vmatpush1.bf16.msra.mxu0 %v9214
      %9234 = vmatprep.subr.bf16.mxu0 0
      %9235 = vmatpush1.bf16.msra.mxu0 %v9215
      %9236 = vmatprep.subr.bf16.mxu0 0
      %9237 = vmatpush1.bf16.msra.mxu0 %v9216
      %9238 = vmatprep.subr.bf16.mxu0 0
      %9239 = vmatpush1.bf16.msra.mxu0 %v9217
      %9240 = vmatprep.subr.bf16.mxu0 0
      %9241 = vmatpush1.bf16.msra.mxu0 %v9218
      %9242 = vmatprep.subr.bf16.mxu0 0
      %9243 = vmatpush1.bf16.msra.mxu0 %v9219
      %9244 = vmatprep.subr.bf16.mxu0 0
      %9245 = vmatpush1.bf16.msra.mxu0 0
      %9246 = vmatprep.subr.bf16.mxu0 0
      %9247 = vmatpush1.bf16.msra.mxu0 0
      %9248 = vmatprep.subr.bf16.mxu0 0
      %9249 = vmatpush1.bf16.msra.mxu0 0
      %9250 = vmatprep.subr.bf16.mxu0 0
      %9251 = vmatpush1.bf16.msra.mxu0 0
      %9252 = vmatprep.subr.bf16.mxu0 0
      %9253 = vmatpush1.bf16.msra.mxu0 0
      %9254 = vmatprep.subr.bf16.mxu0 0
      %9255 = vmatpush1.bf16.msra.mxu0 0
      %9256 = vmatprep.subr.bf16.mxu0 0
      %9257 = vmatpush1.bf16.msra.mxu0 0
      %9258 = vmatprep.subr.bf16.mxu0 0
      %9259 = vmatpush1.bf16.msra.mxu0 0
      %9260 = vmatprep.mubr.bf16.mxu0 0
      %9261 = vmatmul.mubr.bf16.gmra.mrb[0].mxu0 %v8498
      %v9262 = vpop.f32.mrb[0].mxu0
      %v9263 = vadd.f32 0.0, %v9262
      %v9264 = vpop.f32.mrb[0].mxu0
      %v9265 = vpop.f32.mrb[0].mxu0
      %v9266 = vadd.f32 0.0, %v9265
      %v9267 = vpop.f32.mrb[0].mxu0
      %9268 = vmatprep.mubr.bf16.mxu0 0
      %9269 = vmatmul.mubr.bf16.gmra.mrb[0].mxu0 %v8499
      %v9270 = vpop.f32.mrb[0].mxu0
      %v9271 = vadd.f32 0.0, %v9270
      %v9272 = vpop.f32.mrb[0].mxu0
      %v9273 = vpop.f32.mrb[0].mxu0
      %v9274 = vadd.f32 0.0, %v9273
      %v9275 = vpop.f32.mrb[0].mxu0
      %9276 = vmatprep.mubr.bf16.mxu0 0
      %9277 = vmatmul.mubr.bf16.gmra.mrb[0].mxu0 %v8500
      %v9278 = vpop.f32.mrb[0].mxu0
      %v9279 = vadd.f32 0.0, %v9278
      %v9280 = vpop.f32.mrb[0].mxu0
      %v9281 = vpop.f32.mrb[0].mxu0
      %v9282 = vadd.f32 0.0, %v9281
      %v9283 = vpop.f32.mrb[0].mxu0
      %9284 = vmatprep.mubr.bf16.mxu0 0
      %9285 = vmatmul.mubr.bf16.gmra.mrb[0].mxu0 %v8501
      %v9286 = vpop.f32.mrb[0].mxu0
      %v9287 = vadd.f32 0.0, %v9286
      %v9288 = vpop.f32.mrb[0].mxu0
      %v9289 = vpop.f32.mrb[0].mxu0
      %v9290 = vadd.f32 0.0, %v9289
      %v9291 = vpop.f32.mrb[0].mxu0
      %9292 = vmatprep.mubr.bf16.mxu0 0
      %9293 = vmatmul.mubr.bf16.gmra.mrb[0].mxu0 %v8502
      %v9294 = vpop.f32.mrb[0].mxu0
      %v9295 = vadd.f32 0.0, %v9294
      %v9296 = vpop.f32.mrb[0].mxu0
      %v9297 = vpop.f32.mrb[0].mxu0
      %v9298 = vadd.f32 0.0, %v9297
      %v9299 = vpop.f32.mrb[0].mxu0
      %9300 = vmatprep.mubr.bf16.mxu0 0
      %9301 = vmatmul.mubr.bf16.gmra.mrb[0].mxu0 %v8503
      %v9302 = vpop.f32.mrb[0].mxu0
      %v9303 = vadd.f32 0.0, %v9302
      %v9304 = vpop.f32.mrb[0].mxu0
      %v9305 = vpop.f32.mrb[0].mxu0
      %v9306 = vadd.f32 0.0, %v9305
      %v9307 = vpop.f32.mrb[0].mxu0
      %9308 = vmatprep.mubr.bf16.mxu0 0
      %9309 = vmatmul.mubr.bf16.gmra.mrb[0].mxu0 %v8504
      %v9310 = vpop.f32.mrb[0].mxu0
      %v9311 = vadd.f32 0.0, %v9310
      %v9312 = vpop.f32.mrb[0].mxu0
      %v9313 = vpop.f32.mrb[0].mxu0
      %v9314 = vadd.f32 0.0, %v9313
      %v9315 = vpop.f32.mrb[0].mxu0
      %9316 = vmatprep.mubr.bf16.mxu0 0
      %9317 = vmatmul.mubr.bf16.gmra.mrb[0].mxu0 %v8505
      %v9318 = vpop.f32.mrb[0].mxu0
      %v9319 = vadd.f32 0.0, %v9318
      %v9320 = vpop.f32.mrb[0].mxu0
      %v9321 = vpop.f32.mrb[0].mxu0
      %v9322 = vadd.f32 0.0, %v9321
      %v9323 = vpop.f32.mrb[0].mxu0
      %9324 = vmatprep.mubr.bf16.mxu0 0
      %9325 = vmatmul.mubr.bf16.gmra.mrb[0].mxu0 %v8506
      %v9326 = vpop.f32.mrb[0].mxu0
      %v9327 = vadd.f32 0.0, %v9326
      %v9328 = vpop.f32.mrb[0].mxu0
      %v9329 = vpop.f32.mrb[0].mxu0
      %v9330 = vadd.f32 0.0, %v9329
      %v9331 = vpop.f32.mrb[0].mxu0
      %9332 = vmatprep.mubr.bf16.mxu0 0
      %9333 = vmatmul.mubr.bf16.gmra.mrb[0].mxu0 %v8507
      %v9334 = vpop.f32.mrb[0].mxu0
      %v9335 = vadd.f32 0.0, %v9334
      %v9336 = vpop.f32.mrb[0].mxu0
      %v9337 = vpop.f32.mrb[0].mxu0
      %v9338 = vadd.f32 0.0, %v9337
      %v9339 = vpop.f32.mrb[0].mxu0
      %9340 = vmatprep.mubr.bf16.mxu0 0
      %9341 = vmatmul.mubr.bf16.gmra.mrb[0].mxu0 %v8508
      %v9342 = vpop.f32.mrb[0].mxu0
      %v9343 = vadd.f32 0.0, %v9342
      %v9344 = vpop.f32.mrb[0].mxu0
      %v9345 = vpop.f32.mrb[0].mxu0
      %v9346 = vadd.f32 0.0, %v9345
      %v9347 = vpop.f32.mrb[0].mxu0
      %9348 = vmatprep.mubr.bf16.mxu0 0
      %9349 = vmatmul.mubr.bf16.gmra.mrb[0].mxu0 %v8509
      %v9350 = vpop.f32.mrb[0].mxu0
      %v9351 = vadd.f32 0.0, %v9350
      %v9352 = vpop.f32.mrb[0].mxu0
      %v9353 = vpop.f32.mrb[0].mxu0
      %v9354 = vadd.f32 0.0, %v9353
      %v9355 = vpop.f32.mrb[0].mxu0
      %9356 = vmatprep.mubr.bf16.mxu0 0
      %9357 = vmatmul.mubr.bf16.gmra.mrb[0].mxu0 %v8510
      %v9358 = vpop.f32.mrb[0].mxu0
      %v9359 = vadd.f32 0.0, %v9358
      %v9360 = vpop.f32.mrb[0].mxu0
      %v9361 = vpop.f32.mrb[0].mxu0
      %v9362 = vadd.f32 0.0, %v9361
      %v9363 = vpop.f32.mrb[0].mxu0
      %9364 = vmatprep.mubr.bf16.mxu0 0
      %9365 = vmatmul.mubr.bf16.gmra.mrb[0].mxu0 %v8511
      %v9366 = vpop.f32.mrb[0].mxu0
      %v9367 = vadd.f32 0.0, %v9366
      %v9368 = vpop.f32.mrb[0].mxu0
      %v9369 = vpop.f32.mrb[0].mxu0
      %v9370 = vadd.f32 0.0, %v9369
      %v9371 = vpop.f32.mrb[0].mxu0
      %9372 = vmatprep.mubr.bf16.mxu0 0
      %9373 = vmatmul.mubr.bf16.gmra.mrb[0].mxu0 %v8852
      %v9374 = vpop.f32.mrb[0].mxu0
      %v9375 = vadd.f32 0.0, %v9374
      %v9376 = vpop.f32.mrb[0].mxu0
      %v9377 = vpop.f32.mrb[0].mxu0
      %v9378 = vadd.f32 0.0, %v9377
      %v9379 = vpop.f32.mrb[0].mxu0
      %9380 = vmatprep.mubr.bf16.mxu0 0
      %9381 = vmatmul.mubr.bf16.gmra.mrb[0].mxu0 %v9178
      %v9382 = vpop.f32.mrb[0].mxu0
      %v9383 = vadd.f32 0.0, %v9382
      %v9384 = vpop.f32.mrb[0].mxu0
      %v9385 = vpop.f32.mrb[0].mxu0
      %v9386 = vadd.f32 0.0, %v9385
      %v9387 = vpop.f32.mrb[0].mxu0
      %9388 = vdwg.mxu0
      %v9389 = vld [vmem:[#allocation4] sm:$0xff]
      %v9390 = vld [vmem:[#allocation4 + $0x8] sm:$0xff]
      %v9391 = vld [vmem:[#allocation4 + $0x10] sm:$0xff]
      %v9392 = vld [vmem:[#allocation4 + $0x18] sm:$0xff]
      %v9393 = vld [vmem:[#allocation4 + $0x20] sm:$0xff]
      %v9394 = vld [vmem:[#allocation4 + $0x28] sm:$0xff]
      %v9395 = vld [vmem:[#allocation4 + $0x30] sm:$0xff]
      %v9396 = vld [vmem:[#allocation4 + $0x38] sm:$0xff]
      %v9397 = vld [vmem:[#allocation4 + $0x40] sm:$0xff]
      %v9398 = vld [vmem:[#allocation4 + $0x48] sm:$0xff]
      %v9399 = vld [vmem:[#allocation4 + $0x50] sm:$0xff]
      %v9400 = vld [vmem:[#allocation4 + $0x58] sm:$0xff]
      %v9401 = vld [vmem:[#allocation4 + $0x60] sm:$0xff]
      %v9402 = vld [vmem:[#allocation4 + $0x68] sm:$0xff]
      %v9403 = vld [vmem:[#allocation4 + $0x70] sm:$0xff]
      %v9404 = vld [vmem:[#allocation4 + $0x78] sm:$0xff]
      %v9405 = vld [vmem:[#allocation4 + $0x80] sm:$0xff]
      %v9406 = vld [vmem:[#allocation4 + $0x88] sm:$0xff]
      %v9407 = vld [vmem:[#allocation4 + $0x90] sm:$0xff]
      %v9408 = vld [vmem:[#allocation4 + $0x98] sm:$0xff]
      %v9409 = vld [vmem:[#allocation4 + $0xa0] sm:$0xff]
      %v9410 = vld [vmem:[#allocation4 + $0xa8] sm:$0xff]
      %v9411 = vld [vmem:[#allocation4 + $0xb0] sm:$0xff]
      %v9412 = vld [vmem:[#allocation4 + $0xb8] sm:$0xff]
      %v9413 = vld [vmem:[#allocation4 + $0xc0] sm:$0xff]
      %v9414 = vld [vmem:[#allocation4 + $0xc8] sm:$0xff]
      %v9415 = vld [vmem:[#allocation4 + $0xd0] sm:$0xff]
      %v9416 = vld [vmem:[#allocation4 + $0xd8] sm:$0xff]
      %v9417 = vld [vmem:[#allocation4 + $0xe0] sm:$0xff]
      %v9418 = vld [vmem:[#allocation4 + $0xe8] sm:$0xff]
      %v9419 = vld [vmem:[#allocation4 + $0xf0] sm:$0xff]
      %v9420 = vld [vmem:[#allocation4 + $0xf8] sm:$0xff]
      %v9421 = vadd.f32 %v9389, %v9263
      %v9422 = vadd.f32 %v9390, %v9266
      %v9423 = vadd.f32 %v9391, %v9271
      %v9424 = vadd.f32 %v9392, %v9274
      %v9425 = vadd.f32 %v9393, %v9279
      %v9426 = vadd.f32 %v9394, %v9282
      %v9427 = vadd.f32 %v9395, %v9287
      %v9428 = vadd.f32 %v9396, %v9290
      %v9429 = vadd.f32 %v9397, %v9295
      %v9430 = vadd.f32 %v9398, %v9298
      %v9431 = vadd.f32 %v9399, %v9303
      %v9432 = vadd.f32 %v9400, %v9306
      %v9433 = vadd.f32 %v9401, %v9311
      %v9434 = vadd.f32 %v9402, %v9314
      %v9435 = vadd.f32 %v9403, %v9319
      %v9436 = vadd.f32 %v9404, %v9322
      %v9437 = vadd.f32 %v9405, %v9327
      %v9438 = vadd.f32 %v9406, %v9330
      %v9439 = vadd.f32 %v9407, %v9335
      %v9440 = vadd.f32 %v9408, %v9338
      %v9441 = vadd.f32 %v9409, %v9343
      %v9442 = vadd.f32 %v9410, %v9346
      %v9443 = vadd.f32 %v9411, %v9351
      %v9444 = vadd.f32 %v9412, %v9354
      %v9445 = vadd.f32 %v9413, %v9359
      %v9446 = vadd.f32 %v9414, %v9362
      %v9447 = vadd.f32 %v9415, %v9367
      %v9448 = vadd.f32 %v9416, %v9370
      %v9449 = vadd.f32 %v9417, %v9375
      %v9450 = vadd.f32 %v9418, %v9378
      %v9451 = vadd.f32 %v9419, %v9383
      %v9452 = vadd.f32 %v9420, %v9386
      %9453 = vst [vmem:[#allocation4] sm:$0xff] %v9421
      %9454 = vst [vmem:[#allocation4 + $0x8] sm:$0xff] %v9422
      %9455 = vst [vmem:[#allocation4 + $0x10] sm:$0xff] %v9423
      %9456 = vst [vmem:[#allocation4 + $0x18] sm:$0xff] %v9424
      %9457 = vst [vmem:[#allocation4 + $0x20] sm:$0xff] %v9425
      %9458 = vst [vmem:[#allocation4 + $0x28] sm:$0xff] %v9426
      %9459 = vst [vmem:[#allocation4 + $0x30] sm:$0xff] %v9427
      %9460 = vst [vmem:[#allocation4 + $0x38] sm:$0xff] %v9428
      %9461 = vst [vmem:[#allocation4 + $0x40] sm:$0xff] %v9429
      %9462 = vst [vmem:[#allocation4 + $0x48] sm:$0xff] %v9430
      %9463 = vst [vmem:[#allocation4 + $0x50] sm:$0xff] %v9431
      %9464 = vst [vmem:[#allocation4 + $0x58] sm:$0xff] %v9432
      %9465 = vst [vmem:[#allocation4 + $0x60] sm:$0xff] %v9433
      %9466 = vst [vmem:[#allocation4 + $0x68] sm:$0xff] %v9434
      %9467 = vst [vmem:[#allocation4 + $0x70] sm:$0xff] %v9435
      %9468 = vst [vmem:[#allocation4 + $0x78] sm:$0xff] %v9436
      %9469 = vst [vmem:[#allocation4 + $0x80] sm:$0xff] %v9437
      %9470 = vst [vmem:[#allocation4 + $0x88] sm:$0xff] %v9438
      %9471 = vst [vmem:[#allocation4 + $0x90] sm:$0xff] %v9439
      %9472 = vst [vmem:[#allocation4 + $0x98] sm:$0xff] %v9440
      %9473 = vst [vmem:[#allocation4 + $0xa0] sm:$0xff] %v9441
      %9474 = vst [vmem:[#allocation4 + $0xa8] sm:$0xff] %v9442
      %9475 = vst [vmem:[#allocation4 + $0xb0] sm:$0xff] %v9443
      %9476 = vst [vmem:[#allocation4 + $0xb8] sm:$0xff] %v9444
      %9477 = vst [vmem:[#allocation4 + $0xc0] sm:$0xff] %v9445
      %9478 = vst [vmem:[#allocation4 + $0xc8] sm:$0xff] %v9446
      %9479 = vst [vmem:[#allocation4 + $0xd0] sm:$0xff] %v9447
      %9480 = vst [vmem:[#allocation4 + $0xd8] sm:$0xff] %v9448
      %9481 = vst [vmem:[#allocation4 + $0xe0] sm:$0xff] %v9449
      %9482 = vst [vmem:[#allocation4 + $0xe8] sm:$0xff] %v9450
      %9483 = vst [vmem:[#allocation4 + $0xf0] sm:$0xff] %v9451
      %9484 = vst [vmem:[#allocation4 + $0xf8] sm:$0xff] %v9452
      %v9485 = vld [vmem:[#allocation4] sm:$0xff]
      %v9486 = vld [vmem:[#allocation4 + $0x8] sm:$0xff]
      %v9487 = vld [vmem:[#allocation4 + $0x10] sm:$0xff]
      %v9488 = vld [vmem:[#allocation4 + $0x18] sm:$0xff]
      %v9489 = vld [vmem:[#allocation4 + $0x20] sm:$0xff]
      %v9490 = vld [vmem:[#allocation4 + $0x28] sm:$0xff]
      %v9491 = vld [vmem:[#allocation4 + $0x30] sm:$0xff]
      %v9492 = vld [vmem:[#allocation4 + $0x38] sm:$0xff]
      %v9493 = vld [vmem:[#allocation4 + $0x40] sm:$0xff]
      %v9494 = vld [vmem:[#allocation4 + $0x48] sm:$0xff]
      %v9495 = vld [vmem:[#allocation4 + $0x50] sm:$0xff]
      %v9496 = vld [vmem:[#allocation4 + $0x58] sm:$0xff]
      %v9497 = vld [vmem:[#allocation4 + $0x60] sm:$0xff]
      %v9498 = vld [vmem:[#allocation4 + $0x68] sm:$0xff]
      %v9499 = vld [vmem:[#allocation4 + $0x70] sm:$0xff]
      %v9500 = vld [vmem:[#allocation4 + $0x78] sm:$0xff]
      %v9501 = vld [vmem:[#allocation4 + $0x80] sm:$0xff]
      %v9502 = vld [vmem:[#allocation4 + $0x88] sm:$0xff]
      %v9503 = vld [vmem:[#allocation4 + $0x90] sm:$0xff]
      %v9504 = vld [vmem:[#allocation4 + $0x98] sm:$0xff]
      %v9505 = vld [vmem:[#allocation4 + $0xa0] sm:$0xff]
      %v9506 = vld [vmem:[#allocation4 + $0xa8] sm:$0xff]
      %v9507 = vld [vmem:[#allocation4 + $0xb0] sm:$0xff]
      %v9508 = vld [vmem:[#allocation4 + $0xb8] sm:$0xff]
      %v9509 = vld [vmem:[#allocation4 + $0xc0] sm:$0xff]
      %v9510 = vld [vmem:[#allocation4 + $0xc8] sm:$0xff]
      %v9511 = vld [vmem:[#allocation4 + $0xd0] sm:$0xff]
      %v9512 = vld [vmem:[#allocation4 + $0xd8] sm:$0xff]
      %v9513 = vld [vmem:[#allocation4 + $0xe0] sm:$0xff]
      %v9514 = vld [vmem:[#allocation4 + $0xe8] sm:$0xff]
      %v9515 = vld [vmem:[#allocation4 + $0xf0] sm:$0xff]
      %v9516 = vld [vmem:[#allocation4 + $0xf8] sm:$0xff]
      %v9517 = vld [vmem:[%s4] sm:$0x1]
      %v9519 = vlaneseq
      %v9520 = vshrl.u32 %v9519, 7
      %v9521 = vsub.s32 0, %v9520
      %v9522 = vrot.slane %v9517, %v9521
      %v9524 = vadd.f32 %v9485, %v9522
      %v9525 = vadd.f32 %v9486, %v9522
      %v9526 = vadd.f32 %v9487, %v9522
      %v9527 = vadd.f32 %v9488, %v9522
      %v9528 = vadd.f32 %v9489, %v9522
      %v9529 = vadd.f32 %v9490, %v9522
      %v9530 = vadd.f32 %v9491, %v9522
      %v9531 = vadd.f32 %v9492, %v9522
      %v9532 = vadd.f32 %v9493, %v9522
      %v9533 = vadd.f32 %v9494, %v9522
      %v9534 = vadd.f32 %v9495, %v9522
      %v9535 = vadd.f32 %v9496, %v9522
      %v9536 = vadd.f32 %v9497, %v9522
      %v9537 = vadd.f32 %v9498, %v9522
      %v9538 = vadd.f32 %v9499, %v9522
      %v9539 = vadd.f32 %v9500, %v9522
      %v9540 = vadd.f32 %v9501, %v9522
      %v9541 = vadd.f32 %v9502, %v9522
      %v9542 = vadd.f32 %v9503, %v9522
      %v9543 = vadd.f32 %v9504, %v9522
      %v9544 = vadd.f32 %v9505, %v9522
      %v9545 = vadd.f32 %v9506, %v9522
      %v9546 = vadd.f32 %v9507, %v9522
      %v9547 = vadd.f32 %v9508, %v9522
      %v9548 = vadd.f32 %v9509, %v9522
      %v9549 = vadd.f32 %v9510, %v9522
      %v9550 = vadd.f32 %v9511, %v9522
      %v9551 = vadd.f32 %v9512, %v9522
      %v9552 = vadd.f32 %v9513, %v9522
      %v9553 = vadd.f32 %v9514, %v9522
      %v9554 = vadd.f32 %v9515, %v9522
      %v9555 = vadd.f32 %v9516, %v9522
      %v9556 = vmax.f32 %v9524, 0.0
      %v9557 = vmax.f32 %v9525, 0.0
      %v9558 = vmax.f32 %v9526, 0.0
      %v9559 = vmax.f32 %v9527, 0.0
      %v9560 = vmax.f32 %v9528, 0.0
      %v9561 = vmax.f32 %v9529, 0.0
      %v9562 = vmax.f32 %v9530, 0.0
      %v9563 = vmax.f32 %v9531, 0.0
      %v9564 = vmax.f32 %v9532, 0.0
      %v9565 = vmax.f32 %v9533, 0.0
      %v9566 = vmax.f32 %v9534, 0.0
      %v9567 = vmax.f32 %v9535, 0.0
      %v9568 = vmax.f32 %v9536, 0.0
      %v9569 = vmax.f32 %v9537, 0.0
      %v9570 = vmax.f32 %v9538, 0.0
      %v9571 = vmax.f32 %v9539, 0.0
      %v9572 = vmax.f32 %v9540, 0.0
      %v9573 = vmax.f32 %v9541, 0.0
      %v9574 = vmax.f32 %v9542, 0.0
      %v9575 = vmax.f32 %v9543, 0.0
      %v9576 = vmax.f32 %v9544, 0.0
      %v9577 = vmax.f32 %v9545, 0.0
      %v9578 = vmax.f32 %v9546, 0.0
      %v9579 = vmax.f32 %v9547, 0.0
      %v9580 = vmax.f32 %v9548, 0.0
      %v9581 = vmax.f32 %v9549, 0.0
      %v9582 = vmax.f32 %v9550, 0.0
      %v9583 = vmax.f32 %v9551, 0.0
      %v9584 = vmax.f32 %v9552, 0.0
      %v9585 = vmax.f32 %v9553, 0.0
      %v9586 = vmax.f32 %v9554, 0.0
      %v9587 = vmax.f32 %v9555, 0.0
      %v9588 = vpack.c.bf16 %v9557, %v9556
      %v9589 = vpack.c.bf16 %v9559, %v9558
      %v9590 = vpack.c.bf16 %v9561, %v9560
      %v9591 = vpack.c.bf16 %v9563, %v9562
      %v9592 = vpack.c.bf16 %v9565, %v9564
      %v9593 = vpack.c.bf16 %v9567, %v9566
      %v9594 = vpack.c.bf16 %v9569, %v9568
      %v9595 = vpack.c.bf16 %v9571, %v9570
      %v9596 = vpack.c.bf16 %v9573, %v9572
      %v9597 = vpack.c.bf16 %v9575, %v9574
      %v9598 = vpack.c.bf16 %v9577, %v9576
      %v9599 = vpack.c.bf16 %v9579, %v9578
      %v9600 = vpack.c.bf16 %v9581, %v9580
      %v9601 = vpack.c.bf16 %v9583, %v9582
      %v9602 = vpack.c.bf16 %v9585, %v9584
      %v9603 = vpack.c.bf16 %v9587, %v9586
      %v9620 = vunpack.c.l.b16 %v9588
      %v9621 = vunpack.c.h.b16 %v9588
      %v9622 = vunpack.c.l.b16 %v9589
      %v9623 = vunpack.c.h.b16 %v9589
      %v9624 = vunpack.c.l.b16 %v9590
      %v9625 = vunpack.c.h.b16 %v9590
      %v9626 = vunpack.c.l.b16 %v9591
      %v9627 = vunpack.c.h.b16 %v9591
      %v9628 = vunpack.c.l.b16 %v9592
      %v9629 = vunpack.c.h.b16 %v9592
      %v9630 = vunpack.c.l.b16 %v9593
      %v9631 = vunpack.c.h.b16 %v9593
      %v9632 = vunpack.c.l.b16 %v9594
      %v9633 = vunpack.c.h.b16 %v9594
      %v9634 = vunpack.c.l.b16 %v9595
      %v9635 = vunpack.c.h.b16 %v9595
      %v9636 = vunpack.c.l.b16 %v9596
      %v9637 = vunpack.c.h.b16 %v9596
      %v9638 = vunpack.c.l.b16 %v9597
      %v9639 = vunpack.c.h.b16 %v9597
      %v9640 = vunpack.c.l.b16 %v9598
      %v9641 = vunpack.c.h.b16 %v9598
      %v9642 = vunpack.c.l.b16 %v9599
      %v9643 = vunpack.c.h.b16 %v9599
      %v9644 = vunpack.c.l.b16 %v9600
      %v9645 = vunpack.c.h.b16 %v9600
      %v9646 = vunpack.c.l.b16 %v9601
      %v9647 = vunpack.c.h.b16 %v9601
      %v9648 = vunpack.c.l.b16 %v9602
      %v9649 = vunpack.c.h.b16 %v9602
      %v9650 = vunpack.c.l.b16 %v9603
      %v9651 = vunpack.c.h.b16 %v9603
      %v9652 = vpack.c.b16 %v9620, %v9620
      %v9653 = vpack.c.b16 %v9621, %v9621
      %v9654 = vpack.c.b16 %v9622, %v9622
      %v9655 = vpack.c.b16 %v9623, %v9623
      %v9656 = vpack.c.b16 %v9624, %v9624
      %v9657 = vpack.c.b16 %v9625, %v9625
      %v9658 = vpack.c.b16 %v9626, %v9626
      %v9659 = vpack.c.b16 %v9627, %v9627
      %v9660 = vpack.c.b16 %v9628, %v9628
      %v9661 = vpack.c.b16 %v9629, %v9629
      %v9662 = vpack.c.b16 %v9630, %v9630
      %v9663 = vpack.c.b16 %v9631, %v9631
      %v9664 = vpack.c.b16 %v9632, %v9632
      %v9665 = vpack.c.b16 %v9633, %v9633
      %v9666 = vpack.c.b16 %v9634, %v9634
      %v9667 = vpack.c.b16 %v9635, %v9635
      %v9668 = vpack.c.b16 %v9636, %v9636
      %v9669 = vpack.c.b16 %v9637, %v9637
      %v9670 = vpack.c.b16 %v9638, %v9638
      %v9671 = vpack.c.b16 %v9639, %v9639
      %v9672 = vpack.c.b16 %v9640, %v9640
      %v9673 = vpack.c.b16 %v9641, %v9641
      %v9674 = vpack.c.b16 %v9642, %v9642
      %v9675 = vpack.c.b16 %v9643, %v9643
      %v9676 = vpack.c.b16 %v9644, %v9644
      %v9677 = vpack.c.b16 %v9645, %v9645
      %v9678 = vpack.c.b16 %v9646, %v9646
      %v9679 = vpack.c.b16 %v9647, %v9647
      %v9680 = vpack.c.b16 %v9648, %v9648
      %v9681 = vpack.c.b16 %v9649, %v9649
      %v9682 = vpack.c.b16 %v9650, %v9650
      %v9683 = vpack.c.b16 %v9651, %v9651
      %9716 = vst [vmem:[%s260] sm:$0xf] %v9652
      %9717 = vst [vmem:[%s260 + $0x4] sm:$0xf] %v9653
      %9718 = vst [vmem:[%s260 + $0x8] sm:$0xf] %v9654
      %9719 = vst [vmem:[%s260 + $0xc] sm:$0xf] %v9655
      %9720 = vst [vmem:[%s260 + $0x10] sm:$0xf] %v9656
      %9721 = vst [vmem:[%s260 + $0x14] sm:$0xf] %v9657
      %9722 = vst [vmem:[%s260 + $0x18] sm:$0xf] %v9658
      %9723 = vst [vmem:[%s260 + $0x1c] sm:$0xf] %v9659
      %9724 = vst [vmem:[%s260 + $0x20] sm:$0xf] %v9660
      %9725 = vst [vmem:[%s260 + $0x24] sm:$0xf] %v9661
      %9726 = vst [vmem:[%s260 + $0x28] sm:$0xf] %v9662
      %9727 = vst [vmem:[%s260 + $0x2c] sm:$0xf] %v9663
      %9728 = vst [vmem:[%s260 + $0x30] sm:$0xf] %v9664
      %9729 = vst [vmem:[%s260 + $0x34] sm:$0xf] %v9665
      %9730 = vst [vmem:[%s260 + $0x38] sm:$0xf] %v9666
      %9731 = vst [vmem:[%s260 + $0x3c] sm:$0xf] %v9667
      %9732 = vst [vmem:[%s260 + $0x40] sm:$0xf] %v9668
      %9733 = vst [vmem:[%s260 + $0x44] sm:$0xf] %v9669
      %9734 = vst [vmem:[%s260 + $0x48] sm:$0xf] %v9670
      %9735 = vst [vmem:[%s260 + $0x4c] sm:$0xf] %v9671
      %9736 = vst [vmem:[%s260 + $0x50] sm:$0xf] %v9672
      %9737 = vst [vmem:[%s260 + $0x54] sm:$0xf] %v9673
      %9738 = vst [vmem:[%s260 + $0x58] sm:$0xf] %v9674
      %9739 = vst [vmem:[%s260 + $0x5c] sm:$0xf] %v9675
      %9740 = vst [vmem:[%s260 + $0x60] sm:$0xf] %v9676
      %9741 = vst [vmem:[%s260 + $0x64] sm:$0xf] %v9677
      %9742 = vst [vmem:[%s260 + $0x68] sm:$0xf] %v9678
      %9743 = vst [vmem:[%s260 + $0x6c] sm:$0xf] %v9679
      %9744 = vst [vmem:[%s260 + $0x70] sm:$0xf] %v9680
      %9745 = vst [vmem:[%s260 + $0x74] sm:$0xf] %v9681
      %9746 = vst [vmem:[%s260 + $0x78] sm:$0xf] %v9682
      %9747 = vst [vmem:[%s260 + $0x7c] sm:$0xf] %v9683
      %p9748 = scmp.lt.s32.totalorder %s20, 1
      %s9749 = scalar_select %p9748, %s20, 1
      %p9750 = scmp.lt.s32.totalorder %s21, 0
      %s9751 = scalar_select %p9750, %s21, 0
      %s9752 = smul.addr %s9751, 32
      %s9753 = smul.addr %s9749, 32
      %s9754 = sadd.s32 %s9752, %s9753
      %s9755 = smul.addr %s9754, 4
      %s9756 = scalar_lea.vmem %s5, %s9755
      // Predicated region
      $region45: #{double_conv.1} parent=39 // pred_check
        %p9757 = pneg %p160
      $region46: #{double_conv.1} parent=39 // pred_check_branch
        %9759 = sbr.rel (%p9757) target = $region48
      $region47: #{double_conv.1} parent=39 // pred_region
        _
      $region48: #{double_conv.1} parent=39 // pred_fallthru
        _
    $region40: #{double_conv.1} parent=5 // pred_fallthru
      _
    %p9760 = scmp.le.s32.totalorder 2, %s11
    // Predicated region
    $region49: #{double_conv.1} parent=5 // pred_check
      %p9761 = pneg %p9760
    $region50: #{double_conv.1} parent=5 // pred_check_branch
      %9763 = sbr.rel (%p9761) target = $region52
    $region51: #{double_conv.1} parent=5 // pred_region
      %s9764 = ssub.s32 %s11, 2
      // Predicated region
      $region53: #{double_conv.1} parent=51 // pred_check
        %p9765 = pneg %p166
      $region54: #{double_conv.1} parent=51 // pred_check_branch
        %9767 = sbr.rel (%p9765) target = $region56
      $region55: #{double_conv.1} parent=51 // pred_region
        %p9768 = scmp.lt.s32.totalorder %s22, 1
        %s9769 = scalar_select %p9768, %s22, 1
        %p9770 = scmp.lt.s32.totalorder %s23, 0
        %s9771 = scalar_select %p9770, %s23, 0
        %s9772 = smul.addr %s9771, 32
        %s9773 = smul.addr %s9769, 32
        %s9774 = sadd.s32 %s9772, %s9773
        %s9775 = smul.addr %s9774, 4
        %s9776 = scalar_lea.vmem %s5, %s9775
      $region56: #{double_conv.1} parent=51 // pred_fallthru
        _
    $region52: #{double_conv.1} parent=5 // pred_fallthru
      _
  $region6: #{double_conv.1} parent=0 // loop_footer
    %s15 = sadd.s32 1, %s11
  $region7: #{double_conv.1} parent=0 // loop_footer_branch
    %10 = sbr.rel target = $region3
  $region8: #{double_conv.1} parent=0 // loop_exit
    _

</llo_original>
